<compile_context>
chip_gen: v7x
topology: tpu7x:2x2x1
jax: 0.10.0
libtpu: 0.0.40
codegen_flags: <defaults>
</compile_context>

<pallas_src>
import numpy as np
import jax
import jax.numpy as jnp
from jax.experimental import pallas as pl
from jax.experimental.pallas import tpu as pltpu


# ---------------------------------------------------------------------------
# Trace-time helpers
# ---------------------------------------------------------------------------
def _interp_matrix(out_size: int, in_size: int) -> np.ndarray:
    """Bilinear interpolation matrix, align_corners=True (nn.Upsample semantics)."""
    m = np.zeros((out_size, in_size), dtype=np.float32)
    if in_size == 1:
        m[:, 0] = 1.0
        return m
    scale = (in_size - 1) / (out_size - 1)
    for i in range(out_size):
        src = i * scale
        lo = min(int(np.floor(src)), in_size - 2)
        frac = src - lo
        m[i, lo] += 1.0 - frac
        m[i, lo + 1] += frac
    return m


# ---------------------------------------------------------------------------
# Fused Pallas kernel: upsample + pad + concat + (conv3x3+BN+ReLU) x 2
# One grid step per batch element; everything intermediate stays in VMEM.
# ---------------------------------------------------------------------------
def _fuse_up_kernel(x1_ref, x2_ref, mh_ref, mw_ref, w1_ref, s1_ref, b1_ref,
                    w2_ref, s2_ref, b2_ref, o_ref, xcat_ref, mid_ref):
    _, h1, w1s, c1 = x1_ref.shape
    _, h2, w2s, c2 = x2_ref.shape
    cin = c1 + c2
    cmid = w1_ref.shape[2]
    cout = w2_ref.shape[2]
    h1u, w1u = 2 * h1, 2 * w1s
    py0 = (h2 - h1u) // 2            # diffY // 2   (diff >= 0 assumed)
    px0 = (w2s - w1u) // 2           # diffX // 2
    npix = h2 * w2s
    f32 = jnp.float32
    cdt = w1_ref.dtype               # MXU operand dtype (f32 or bf16)

    # ---- zero ONLY the pad regions (1px conv halo + diffY/diffX gap). ----
    # The interiors are fully rewritten every grid step, so no full-buffer
    # fill is needed, and correctness does not depend on scratch persistence
    # (safe when the batch axis is sharded across TensorCores).
    xcat_ref[0:1, :, :] = jnp.zeros((1, w2s + 2, cin), f32)
    xcat_ref[h2 + 1:h2 + 2, :, :] = jnp.zeros((1, w2s + 2, cin), f32)
    xcat_ref[:, 0:1, :] = jnp.zeros((h2 + 2, 1, cin), f32)
    xcat_ref[:, w2s + 1:w2s + 2, :] = jnp.zeros((h2 + 2, 1, cin), f32)
    mid_ref[0:1, :, :] = jnp.zeros((1, w2s + 2, cmid), f32)
    mid_ref[h2 + 1:h2 + 2, :, :] = jnp.zeros((1, w2s + 2, cmid), f32)
    mid_ref[:, 0:1, :] = jnp.zeros((h2 + 2, 1, cmid), f32)
    mid_ref[:, w2s + 1:w2s + 2, :] = jnp.zeros((h2 + 2, 1, cmid), f32)
    if (h2 != h1u) or (w2s != w1u):          # static: F.pad gap exists
        xcat_ref[1:1 + h2, 1:1 + w2s, c2:cin] = jnp.zeros((h2, w2s, c1), f32)

    # ---- separable x2 bilinear upsample (align_corners=True): 2 matmuls ----
    x1n = x1_ref[0].astype(cdt)                                  # (h1, w1, c1)
    up_h = jnp.dot(mh_ref[...], x1n.reshape(h1, w1s * c1),
                   preferred_element_type=jnp.float32)           # (h1u, w1*c1)
    up_h = up_h.reshape(h1u, w1s, c1).astype(cdt)
    mw_b = jnp.broadcast_to(mw_ref[...][None], (h1u, w1u, w1s))  # small, (h,W,w)
    up = jnp.einsum('hWw,hwc->hWc', mw_b, up_h,
                    preferred_element_type=jnp.float32)          # (h1u, w1u, c1)

    # ---- fused F.pad + channel concat + conv halo, resident in VMEM ----
    xcat_ref[1:1 + h2, 1:1 + w2s, 0:c2] = x2_ref[0].astype(f32)
    xcat_ref[1 + py0:1 + py0 + h1u, 1 + px0:1 + px0 + w1u, c2:cin] = up

    # ---- conv1 (3x3, pad=1, no bias): 9 accumulating MXU dots, no im2col ----
    acc1 = jnp.zeros((npix, cmid), f32)
    for t in range(9):
        dy, dx = t // 3, t % 3
        tap = xcat_ref[dy:dy + h2, dx:dx + w2s, :].reshape(npix, cin)
        acc1 = acc1 + jnp.dot(tap.astype(cdt), w1_ref[t],
                              preferred_element_type=jnp.float32)
    y1 = jnp.maximum(acc1 * s1_ref[...] + b1_ref[...], 0.0)      # BN + ReLU (f32)

    # ---- conv2: mid activation never leaves VMEM ----
    mid_ref[1:1 + h2, 1:1 + w2s, :] = y1.reshape(h2, w2s, cmid)
    acc2 = jnp.zeros((npix, cout), f32)
    for t in range(9):
        dy, dx = t // 3, t % 3
        tap = mid_ref[dy:dy + h2, dx:dx + w2s, :].reshape(npix, cmid)
        acc2 = acc2 + jnp.dot(tap.astype(cdt), w2_ref[t],
                              preferred_element_type=jnp.float32)
    y2 = jnp.maximum(acc2 * s2_ref[...] + b2_ref[...], 0.0)

    # NHWC store (lane-dense whenever Cout >= 128, the realistic UNet case).
    o_ref[0] = y2.reshape(h2, w2s, cout).astype(o_ref.dtype)


# ---------------------------------------------------------------------------
# Wrapper
# ---------------------------------------------------------------------------
def fuse_up_forward(params, x1, x2, compute_dtype=jnp.bfloat16,
                    out_dtype=jnp.float32):
    """x1: (N, C1, H1, W1), x2: (N, C2, H2, W2), H2 >= 2*H1, W2 >= 2*W1,
    C1 + C2 == in_channels.  Returns (N, Cout, H2, W2) in NCHW like PyTorch."""
    n, c1, h1, w1 = x1.shape
    n2, c2, h2, w2 = x2.shape
    assert n == n2
    h1u, w1u = 2 * h1, 2 * w1
    assert h2 >= h1u and w2 >= w1u  # TODO(synk): negative diff (crop) unsupported
    cin = c1 + c2
    cmid = params["w1"].shape[-1]
    cout = params["w2"].shape[-1]
    npix = h2 * w2

    # TODO(synk): keep the surrounding model NHWC end-to-end to drop these
    # boundary transposes (each one is an extra HBM pass over the activation).
    x1_nhwc = jnp.transpose(x1, (0, 2, 3, 1))
    x2_nhwc = jnp.transpose(x2, (0, 2, 3, 1))

    mh = jnp.asarray(_interp_matrix(h1u, h1), dtype=compute_dtype)
    mw = jnp.asarray(_interp_matrix(w1u, w1), dtype=compute_dtype)
    w1m = params["w1"].reshape(9, cin, cmid).astype(compute_dtype)   # tap-major HWIO
    w2m = params["w2"].reshape(9, cmid, cout).astype(compute_dtype)
    s1 = params["s1"].reshape(1, cmid).astype(jnp.float32)
    b1 = params["b1"].reshape(1, cmid).astype(jnp.float32)
    s2 = params["s2"].reshape(1, cout).astype(jnp.float32)
    b2 = params["b2"].reshape(1, cout).astype(jnp.float32)

    csize = jnp.dtype(compute_dtype).itemsize
    osize = jnp.dtype(out_dtype).itemsize

    # Shape-derived, generation-aware VMEM budget: scratch + double-buffered IO
    # blocks + weights + live intermediates, capped below physical VMEM.
    scratch_bytes = (h2 + 2) * (w2 + 2) * (cin + cmid) * 4
    io_bytes = h1 * w1 * c1 * 4 + h2 * w2 * c2 * 4 + npix * cout * osize
    param_bytes = ((mh.size + mw.size + w1m.size + w2m.size) * csize
                   + (cmid + cout) * 2 * 4)
    work_bytes = (npix * (cin * (4 + csize) + 4 * (cmid + cout))
                  + 2 * h1u * w1u * c1 * 4)
    need = scratch_bytes + 2 * io_bytes + 2 * param_bytes + work_bytes + (4 << 20)
    try:
        cap = int(getattr(pltpu.get_tpu_info(), "vmem_capacity_bytes", 128 << 20))
    except Exception:
        cap = 128 << 20
    vmem_limit = int(min(max(need, 16 << 20), (cap * 7) // 8))

    flops = 2 * n * (h1u * h1 * w1 * c1            # upsample, H pass
                     + h1u * w1u * w1 * c1         # upsample, W pass
                     + npix * 9 * cin * cmid       # conv1
                     + npix * 9 * cmid * cout)     # conv2
    bytes_accessed = (4 * (x1.size + x2.size) + osize * n * npix * cout
                      + csize * (mh.size + mw.size + w1m.size + w2m.size)
                      + 4 * (s1.size + b1.size + s2.size + b2.size))

    out_nhwc = pl.pallas_call(
        _fuse_up_kernel,
        out_shape=jax.ShapeDtypeStruct((n, h2, w2, cout), out_dtype),
        grid_spec=pltpu.PrefetchScalarGridSpec(
            num_scalar_prefetch=0,
            grid=(n,),
            in_specs=[
                pl.BlockSpec((1, h1, w1, c1), lambda i: (i, 0, 0, 0)),
                pl.BlockSpec((1, h2, w2, c2), lambda i: (i, 0, 0, 0)),
                pl.BlockSpec((h1u, h1), lambda i: (0, 0)),
                pl.BlockSpec((w1u, w1), lambda i: (0, 0)),
                pl.BlockSpec((9, cin, cmid), lambda i: (0, 0, 0)),
                pl.BlockSpec((1, cmid), lambda i: (0, 0)),
                pl.BlockSpec((1, cmid), lambda i: (0, 0)),
                pl.BlockSpec((9, cmid, cout), lambda i: (0, 0, 0)),
                pl.BlockSpec((1, cout), lambda i: (0, 0)),
                pl.BlockSpec((1, cout), lambda i: (0, 0)),
            ],
            out_specs=pl.BlockSpec((1, h2, w2, cout), lambda i: (i, 0, 0, 0)),
            scratch_shapes=[
                pltpu.VMEM((h2 + 2, w2 + 2, cin), jnp.float32),    # padded concat
                pltpu.VMEM((h2 + 2, w2 + 2, cmid), jnp.float32),   # padded mid act
            ]),
        compiler_params=pltpu.CompilerParams(
            dimension_semantics=("parallel",),
            vmem_limit_bytes=vmem_limit),
        cost_estimate=pl.CostEstimate(
            flops=int(flops), transcendentals=0,
            bytes_accessed=int(bytes_accessed)),
    )(x1_nhwc, x2_nhwc, mh, mw, w1m, s1, b1, w2m, s2, b2)

    return jnp.transpose(out_nhwc, (0, 3, 1, 2))


# ---------------------------------------------------------------------------
# Parameters (deterministic, synthetic); BN folded in inference mode.
# ---------------------------------------------------------------------------
def init_params(key, in_channels, out_channels):
    mid = in_channels // 2
    k = jax.random.split(key, 4)

    def bn_fold(kk, c):
        gamma = 1.0 + 0.1 * jax.random.normal(kk, (c,), jnp.float32)
        beta = 0.1 * jax.random.normal(jax.random.fold_in(kk, 1), (c,), jnp.float32)
        mean = jnp.zeros((c,), jnp.float32)
        var = jnp.ones((c,), jnp.float32)
        eps = 1e-5
        scale = gamma / jnp.sqrt(var + eps)
        bias = beta - mean * scale
        return scale, bias

    w1 = 0.1 * jax.random.normal(k[0], (3, 3, in_channels, mid), jnp.float32)  # HWIO
    s1, b1 = bn_fold(k[1], mid)
    w2 = 0.1 * jax.random.normal(k[2], (3, 3, mid, out_channels), jnp.float32)
    s2, b2 = bn_fold(k[3], out_channels)
    return dict(w1=w1, s1=s1, b1=b1, w2=w2, s2=s2, b2=b2)


# ---------------------------------------------------------------------------
# Pure-JAX reference (sanity check of the Pallas lowering)
# ---------------------------------------------------------------------------
def _ref_forward(params, x1, x2):
    _, _, h, w = x1.shape
    mh = jnp.asarray(_interp_matrix(2 * h, h))
    mw = jnp.asarray(_interp_matrix(2 * w, w))
    x1u = jnp.einsum('Hh,Ww,nchw->ncHW', mh, mw, x1)
    diff_y = x2.shape[2] - x1u.shape[2]
    diff_x = x2.shape[3] - x1u.shape[3]
    x1u = jnp.pad(x1u, ((0, 0), (0, 0),
                        (diff_y // 2, diff_y - diff_y // 2),
                        (diff_x // 2, diff_x - diff_x // 2)))
    x = jnp.concatenate([x2, x1u], axis=1)
    x = jnp.transpose(x, (0, 2, 3, 1))

    def cbr(xx, wgt, s, b):
        y = jax.lax.conv_general_dilated(
            xx, wgt, (1, 1), 'SAME', dimension_numbers=('NHWC', 'HWIO', 'NHWC'))
        return jnp.maximum(y * s + b, 0.0)

    y = cbr(x, params["w1"], params["s1"], params["b1"])
    y = cbr(y, params["w2"], params["s2"], params["b2"])
    return jnp.transpose(y, (0, 3, 1, 2))


if __name__ == "__main__":
    key = jax.random.PRNGKey(0)
    in_channels, out_channels = 8, 4          # Fuse_Up(8, 4, bilinear=True)
    n = 2

    k1, k2, k3, k4, k5 = jax.random.split(key, 5)
    params = init_params(k3, in_channels, out_channels)

    # Case 1: standard UNet shapes (H2 == 2*H1, no extra diff padding).
    x1 = jax.random.normal(k1, (n, in_channels // 2, 8, 8), jnp.float32)
    x2 = jax.random.normal(k2, (n, in_channels // 2, 16, 16), jnp.float32)
    ref = jax.block_until_ready(_ref_forward(params, x1, x2))

    # f32 MXU operands: tight check against the pure-JAX reference.
    out_f32 = jax.block_until_ready(
        fuse_up_forward(params, x1, x2, compute_dtype=jnp.float32))
    assert out_f32.shape == (n, out_channels, 16, 16), out_f32.shape
    np.testing.assert_allclose(np.asarray(out_f32), np.asarray(ref),
                               rtol=5e-4, atol=5e-4)

    # Default bf16 MXU operands (f32 accumulation) + bf16 output: smoke check.
    out_bf16 = jax.block_until_ready(
        fuse_up_forward(params, x1, x2, out_dtype=jnp.bfloat16))
    np.testing.assert_allclose(
        np.asarray(out_bf16.astype(jnp.float32)), np.asarray(ref),
        rtol=1.5e-1, atol=1.5e-1)

    # Case 2: odd upsampled size -> exercises the diffY/diffX F.pad gap path.
    x1b = jax.random.normal(k4, (n, in_channels // 2, 7, 7), jnp.float32)
    x2b = jax.random.normal(k5, (n, in_channels // 2, 16, 16), jnp.float32)
    refb = jax.block_until_ready(_ref_forward(params, x1b, x2b))
    outb = jax.block_until_ready(
        fuse_up_forward(params, x1b, x2b, compute_dtype=jnp.float32))
    np.testing.assert_allclose(np.asarray(outb), np.asarray(refb),
                               rtol=5e-4, atol=5e-4)

    print("KERNEL_OK")
</pallas_src>

<mosaic_0001>
module attributes {stable_mosaic.version = 11 : i64} {
  func.func @_fuse_up_kernel(%arg0: i32, %arg1: memref<1x8x8x4xf32, #tpu.memory_space<vmem>>, %arg2: memref<1x16x16x4xf32, #tpu.memory_space<vmem>>, %arg3: memref<16x8xf32, #tpu.memory_space<vmem>>, %arg4: memref<16x8xf32, #tpu.memory_space<vmem>>, %arg5: memref<9x8x4xf32, #tpu.memory_space<vmem>>, %arg6: memref<1x4xf32, #tpu.memory_space<vmem>>, %arg7: memref<1x4xf32, #tpu.memory_space<vmem>>, %arg8: memref<9x4x4xf32, #tpu.memory_space<vmem>>, %arg9: memref<1x4xf32, #tpu.memory_space<vmem>>, %arg10: memref<1x4xf32, #tpu.memory_space<vmem>>, %arg11: memref<1x16x16x4xf32, #tpu.memory_space<vmem>>, %arg12: memref<18x18x8xf32, #tpu.memory_space<vmem>>, %arg13: memref<18x18x4xf32, #tpu.memory_space<vmem>>) attributes {dimension_semantics = [#tpu.dimension_semantics<parallel>], iteration_bounds = array<i64: 2>, scalar_prefetch = 0 : i64, scratch_operands = 2 : i64, tpu.core_type = #tpu.core_type<tc>, window_params = [{transform_indices = @transform_0, window_bounds = array<i64: 1, 8, 8, 4>}, {transform_indices = @transform_1, window_bounds = array<i64: 1, 16, 16, 4>}, {pipeline_mode = #tpu.pipeline_mode<synchronous>, transform_indices = @transform_2, window_bounds = array<i64: 16, 8>}, {pipeline_mode = #tpu.pipeline_mode<synchronous>, transform_indices = @transform_3, window_bounds = array<i64: 16, 8>}, {pipeline_mode = #tpu.pipeline_mode<synchronous>, transform_indices = @transform_4, window_bounds = array<i64: 9, 8, 4>}, {pipeline_mode = #tpu.pipeline_mode<synchronous>, transform_indices = @transform_5, window_bounds = array<i64: 1, 4>}, {pipeline_mode = #tpu.pipeline_mode<synchronous>, transform_indices = @transform_6, window_bounds = array<i64: 1, 4>}, {pipeline_mode = #tpu.pipeline_mode<synchronous>, transform_indices = @transform_7, window_bounds = array<i64: 9, 4, 4>}, {pipeline_mode = #tpu.pipeline_mode<synchronous>, transform_indices = @transform_8, window_bounds = array<i64: 1, 4>}, {pipeline_mode = #tpu.pipeline_mode<synchronous>, transform_indices = @transform_9, window_bounds = array<i64: 1, 4>}, {transform_indices = @transform_10, window_bounds = array<i64: 1, 16, 16, 4>}]} {
    %cst = arith.constant 0.000000e+00 : f32
    %0 = vector.broadcast %cst : f32 to vector<1x18x8xf32>
    %c0 = arith.constant 0 : index
    %c0_0 = arith.constant 0 : index
    %c0_1 = arith.constant 0 : index
    %1 = vector.load %arg12[%c0, %c0_0, %c0_1] : memref<18x18x8xf32, #tpu.memory_space<vmem>>, vector<1x18x8xf32>
    tpu.vector_store %arg12[%c0, %c0_0, %c0_1], %0 {strides = array<i32>} : memref<18x18x8xf32, #tpu.memory_space<vmem>>, vector<1x18x8xf32>,
    %cst_2 = arith.constant 0.000000e+00 : f32
    %2 = vector.broadcast %cst_2 : f32 to vector<1x18x8xf32>
    %c17 = arith.constant 17 : index
    %c0_3 = arith.constant 0 : index
    %c0_4 = arith.constant 0 : index
    %3 = vector.load %arg12[%c17, %c0_3, %c0_4] : memref<18x18x8xf32, #tpu.memory_space<vmem>>, vector<1x18x8xf32>
    tpu.vector_store %arg12[%c17, %c0_3, %c0_4], %2 {strides = array<i32>} : memref<18x18x8xf32, #tpu.memory_space<vmem>>, vector<1x18x8xf32>,
    %cst_5 = arith.constant 0.000000e+00 : f32
    %4 = vector.broadcast %cst_5 : f32 to vector<18x1x8xf32>
    %c0_6 = arith.constant 0 : index
    %c0_7 = arith.constant 0 : index
    %c0_8 = arith.constant 0 : index
    %5 = vector.load %arg12[%c0_6, %c0_7, %c0_8] : memref<18x18x8xf32, #tpu.memory_space<vmem>>, vector<18x1x8xf32>
    tpu.vector_store %arg12[%c0_6, %c0_7, %c0_8], %4 {strides = array<i32>} : memref<18x18x8xf32, #tpu.memory_space<vmem>>, vector<18x1x8xf32>,
    %cst_9 = arith.constant 0.000000e+00 : f32
    %6 = vector.broadcast %cst_9 : f32 to vector<18x1x8xf32>
    %c0_10 = arith.constant 0 : index
    %c17_11 = arith.constant 17 : index
    %c0_12 = arith.constant 0 : index
    %7 = vector.load %arg12[%c0_10, %c17_11, %c0_12] : memref<18x18x8xf32, #tpu.memory_space<vmem>>, vector<18x1x8xf32>
    tpu.vector_store %arg12[%c0_10, %c17_11, %c0_12], %6 {strides = array<i32>} : memref<18x18x8xf32, #tpu.memory_space<vmem>>, vector<18x1x8xf32>,
    %cst_13 = arith.constant 0.000000e+00 : f32
    %8 = vector.broadcast %cst_13 : f32 to vector<1x18x4xf32>
    %c0_14 = arith.constant 0 : index
    %c0_15 = arith.constant 0 : index
    %c0_16 = arith.constant 0 : index
    %9 = vector.load %arg13[%c0_14, %c0_15, %c0_16] : memref<18x18x4xf32, #tpu.memory_space<vmem>>, vector<1x18x4xf32>
    tpu.vector_store %arg13[%c0_14, %c0_15, %c0_16], %8 {strides = array<i32>} : memref<18x18x4xf32, #tpu.memory_space<vmem>>, vector<1x18x4xf32>,
    %cst_17 = arith.constant 0.000000e+00 : f32
    %10 = vector.broadcast %cst_17 : f32 to vector<1x18x4xf32>
    %c17_18 = arith.constant 17 : index
    %c0_19 = arith.constant 0 : index
    %c0_20 = arith.constant 0 : index
    %11 = vector.load %arg13[%c17_18, %c0_19, %c0_20] : memref<18x18x4xf32, #tpu.memory_space<vmem>>, vector<1x18x4xf32>
    tpu.vector_store %arg13[%c17_18, %c0_19, %c0_20], %10 {strides = array<i32>} : memref<18x18x4xf32, #tpu.memory_space<vmem>>, vector<1x18x4xf32>,
    %cst_21 = arith.constant 0.000000e+00 : f32
    %12 = vector.broadcast %cst_21 : f32 to vector<18x1x4xf32>
    %c0_22 = arith.constant 0 : index
    %c0_23 = arith.constant 0 : index
    %c0_24 = arith.constant 0 : index
    %13 = vector.load %arg13[%c0_22, %c0_23, %c0_24] : memref<18x18x4xf32, #tpu.memory_space<vmem>>, vector<18x1x4xf32>
    tpu.vector_store %arg13[%c0_22, %c0_23, %c0_24], %12 {strides = array<i32>} : memref<18x18x4xf32, #tpu.memory_space<vmem>>, vector<18x1x4xf32>,
    %cst_25 = arith.constant 0.000000e+00 : f32
    %14 = vector.broadcast %cst_25 : f32 to vector<18x1x4xf32>
    %c0_26 = arith.constant 0 : index
    %c17_27 = arith.constant 17 : index
    %c0_28 = arith.constant 0 : index
    %15 = vector.load %arg13[%c0_26, %c17_27, %c0_28] : memref<18x18x4xf32, #tpu.memory_space<vmem>>, vector<18x1x4xf32>
    tpu.vector_store %arg13[%c0_26, %c17_27, %c0_28], %14 {strides = array<i32>} : memref<18x18x4xf32, #tpu.memory_space<vmem>>, vector<18x1x4xf32>,
    %c0_29 = arith.constant 0 : index
    %c0_30 = arith.constant 0 : index
    %c0_31 = arith.constant 0 : index
    %c0_32 = arith.constant 0 : index
    %16 = vector.load %arg1[%c0_29, %c0_30, %c0_31, %c0_32] : memref<1x8x8x4xf32, #tpu.memory_space<vmem>>, vector<1x8x8x4xf32>
    %17 = vector.shape_cast %16 : vector<1x8x8x4xf32> to vector<8x8x4xf32>
    %c0_33 = arith.constant 0 : index
    %c0_34 = arith.constant 0 : index
    %18 = vector.load %arg3[%c0_33, %c0_34] : memref<16x8xf32, #tpu.memory_space<vmem>>, vector<16x8xf32>
    %19 = vector.shape_cast %17 : vector<8x8x4xf32> to vector<8x32xf32>
    %cst_35 = arith.constant dense<0.000000e+00> : vector<16x32xf32>
    %20 = tpu.matmul %18, %19, %cst_35 {dimension_numbers = #tpu.dot_dimension_numbers<[1], [0], [0], [1], [0, 0, 1, 1], [], []>} : vector<16x8xf32>, vector<8x32xf32>, vector<16x32xf32> -> vector<16x32xf32>
    %21 = vector.shape_cast %20 : vector<16x32xf32> to vector<16x8x4xf32>
    %c0_36 = arith.constant 0 : index
    %c0_37 = arith.constant 0 : index
    %22 = vector.load %arg4[%c0_36, %c0_37] : memref<16x8xf32, #tpu.memory_space<vmem>>, vector<16x8xf32>
    %23 = vector.shape_cast %22 : vector<16x8xf32> to vector<1x16x8xf32>
    %24 = vector.shape_cast %23 : vector<1x16x8xf32> to vector<1x16x8xf32>
    %25 = vector.broadcast %24 : vector<1x16x8xf32> to vector<16x16x8xf32>
    "tpu.trace_start"() <{level = 10 : i32, message = "hWw,hwc->hWc"}> : () -> ()
    %cst_38 = arith.constant dense<0.000000e+00> : vector<16x16x4xf32>
    %26 = tpu.matmul %25, %21, %cst_38 {dimension_numbers = #tpu.dot_dimension_numbers<[2], [1], [1], [2], [0, 0, 0, 1, 1, 2], [0], [0]>} : vector<16x16x8xf32>, vector<16x8x4xf32>, vector<16x16x4xf32> -> vector<16x16x4xf32>
    "tpu.trace_stop"() : () -> ()
    %c0_39 = arith.constant 0 : index
    %c0_40 = arith.constant 0 : index
    %c0_41 = arith.constant 0 : index
    %c0_42 = arith.constant 0 : index
    %27 = vector.load %arg2[%c0_39, %c0_40, %c0_41, %c0_42] : memref<1x16x16x4xf32, #tpu.memory_space<vmem>>, vector<1x16x16x4xf32>
    %28 = vector.shape_cast %27 : vector<1x16x16x4xf32> to vector<16x16x4xf32>
    %c1 = arith.constant 1 : index
    %c1_43 = arith.constant 1 : index
    %c0_44 = arith.constant 0 : index
    %29 = vector.load %arg12[%c1, %c1_43, %c0_44] : memref<18x18x8xf32, #tpu.memory_space<vmem>>, vector<16x16x4xf32>
    tpu.vector_store %arg12[%c1, %c1_43, %c0_44], %28 {strides = array<i32>} : memref<18x18x8xf32, #tpu.memory_space<vmem>>, vector<16x16x4xf32>,
    %c1_45 = arith.constant 1 : index
    %c1_46 = arith.constant 1 : index
    %c4 = arith.constant 4 : index
    %30 = vector.load %arg12[%c1_45, %c1_46, %c4] : memref<18x18x8xf32, #tpu.memory_space<vmem>>, vector<16x16x4xf32>
    tpu.vector_store %arg12[%c1_45, %c1_46, %c4], %26 {strides = array<i32>} : memref<18x18x8xf32, #tpu.memory_space<vmem>>, vector<16x16x4xf32>,
    %cst_47 = arith.constant 0.000000e+00 : f32
    %31 = vector.broadcast %cst_47 : f32 to vector<256x4xf32>
    %c0_48 = arith.constant 0 : index
    %c0_49 = arith.constant 0 : index
    %c0_50 = arith.constant 0 : index
    %32 = vector.load %arg12[%c0_48, %c0_49, %c0_50] : memref<18x18x8xf32, #tpu.memory_space<vmem>>, vector<16x16x8xf32>
    %33 = vector.shape_cast %32 : vector<16x16x8xf32> to vector<256x8xf32>
    %c0_51 = arith.constant 0 : index
    %c0_52 = arith.constant 0 : index
    %c0_53 = arith.constant 0 : index
    %34 = vector.load %arg5[%c0_51, %c0_52, %c0_53] : memref<9x8x4xf32, #tpu.memory_space<vmem>>, vector<1x8x4xf32>
    %35 = vector.shape_cast %34 : vector<1x8x4xf32> to vector<8x4xf32>
    %cst_54 = arith.constant dense<0.000000e+00> : vector<256x4xf32>
    %36 = tpu.matmul %33, %35, %cst_54 {dimension_numbers = #tpu.dot_dimension_numbers<[1], [0], [0], [1], [0, 0, 1, 1], [], []>} : vector<256x8xf32>, vector<8x4xf32>, vector<256x4xf32> -> vector<256x4xf32>
    %37 = arith.addf %31, %36 : vector<256x4xf32>
    %c0_55 = arith.constant 0 : index
    %c1_56 = arith.constant 1 : index
    %c0_57 = arith.constant 0 : index
    %38 = vector.load %arg12[%c0_55, %c1_56, %c0_57] : memref<18x18x8xf32, #tpu.memory_space<vmem>>, vector<16x16x8xf32>
    %39 = vector.shape_cast %38 : vector<16x16x8xf32> to vector<256x8xf32>
    %c1_58 = arith.constant 1 : index
    %c0_59 = arith.constant 0 : index
    %c0_60 = arith.constant 0 : index
    %40 = vector.load %arg5[%c1_58, %c0_59, %c0_60] : memref<9x8x4xf32, #tpu.memory_space<vmem>>, vector<1x8x4xf32>
    %41 = vector.shape_cast %40 : vector<1x8x4xf32> to vector<8x4xf32>
    %cst_61 = arith.constant dense<0.000000e+00> : vector<256x4xf32>
    %42 = tpu.matmul %39, %41, %cst_61 {dimension_numbers = #tpu.dot_dimension_numbers<[1], [0], [0], [1], [0, 0, 1, 1], [], []>} : vector<256x8xf32>, vector<8x4xf32>, vector<256x4xf32> -> vector<256x4xf32>
    %43 = arith.addf %37, %42 : vector<256x4xf32>
    %c0_62 = arith.constant 0 : index
    %c2 = arith.constant 2 : index
    %c0_63 = arith.constant 0 : index
    %44 = vector.load %arg12[%c0_62, %c2, %c0_63] : memref<18x18x8xf32, #tpu.memory_space<vmem>>, vector<16x16x8xf32>
    %45 = vector.shape_cast %44 : vector<16x16x8xf32> to vector<256x8xf32>
    %c2_64 = arith.constant 2 : index
    %c0_65 = arith.constant 0 : index
    %c0_66 = arith.constant 0 : index
    %46 = vector.load %arg5[%c2_64, %c0_65, %c0_66] : memref<9x8x4xf32, #tpu.memory_space<vmem>>, vector<1x8x4xf32>
    %47 = vector.shape_cast %46 : vector<1x8x4xf32> to vector<8x4xf32>
    %cst_67 = arith.constant dense<0.000000e+00> : vector<256x4xf32>
    %48 = tpu.matmul %45, %47, %cst_67 {dimension_numbers = #tpu.dot_dimension_numbers<[1], [0], [0], [1], [0, 0, 1, 1], [], []>} : vector<256x8xf32>, vector<8x4xf32>, vector<256x4xf32> -> vector<256x4xf32>
    %49 = arith.addf %43, %48 : vector<256x4xf32>
    %c1_68 = arith.constant 1 : index
    %c0_69 = arith.constant 0 : index
    %c0_70 = arith.constant 0 : index
    %50 = vector.load %arg12[%c1_68, %c0_69, %c0_70] : memref<18x18x8xf32, #tpu.memory_space<vmem>>, vector<16x16x8xf32>
    %51 = vector.shape_cast %50 : vector<16x16x8xf32> to vector<256x8xf32>
    %c3 = arith.constant 3 : index
    %c0_71 = arith.constant 0 : index
    %c0_72 = arith.constant 0 : index
    %52 = vector.load %arg5[%c3, %c0_71, %c0_72] : memref<9x8x4xf32, #tpu.memory_space<vmem>>, vector<1x8x4xf32>
    %53 = vector.shape_cast %52 : vector<1x8x4xf32> to vector<8x4xf32>
    %cst_73 = arith.constant dense<0.000000e+00> : vector<256x4xf32>
    %54 = tpu.matmul %51, %53, %cst_73 {dimension_numbers = #tpu.dot_dimension_numbers<[1], [0], [0], [1], [0, 0, 1, 1], [], []>} : vector<256x8xf32>, vector<8x4xf32>, vector<256x4xf32> -> vector<256x4xf32>
    %55 = arith.addf %49, %54 : vector<256x4xf32>
    %c1_74 = arith.constant 1 : index
    %c1_75 = arith.constant 1 : index
    %c0_76 = arith.constant 0 : index
    %56 = vector.load %arg12[%c1_74, %c1_75, %c0_76] : memref<18x18x8xf32, #tpu.memory_space<vmem>>, vector<16x16x8xf32>
    %57 = vector.shape_cast %56 : vector<16x16x8xf32> to vector<256x8xf32>
    %c4_77 = arith.constant 4 : index
    %c0_78 = arith.constant 0 : index
    %c0_79 = arith.constant 0 : index
    %58 = vector.load %arg5[%c4_77, %c0_78, %c0_79] : memref<9x8x4xf32, #tpu.memory_space<vmem>>, vector<1x8x4xf32>
    %59 = vector.shape_cast %58 : vector<1x8x4xf32> to vector<8x4xf32>
    %cst_80 = arith.constant dense<0.000000e+00> : vector<256x4xf32>
    %60 = tpu.matmul %57, %59, %cst_80 {dimension_numbers = #tpu.dot_dimension_numbers<[1], [0], [0], [1], [0, 0, 1, 1], [], []>} : vector<256x8xf32>, vector<8x4xf32>, vector<256x4xf32> -> vector<256x4xf32>
    %61 = arith.addf %55, %60 : vector<256x4xf32>
    %c1_81 = arith.constant 1 : index
    %c2_82 = arith.constant 2 : index
    %c0_83 = arith.constant 0 : index
    %62 = vector.load %arg12[%c1_81, %c2_82, %c0_83] : memref<18x18x8xf32, #tpu.memory_space<vmem>>, vector<16x16x8xf32>
    %63 = vector.shape_cast %62 : vector<16x16x8xf32> to vector<256x8xf32>
    %c5 = arith.constant 5 : index
    %c0_84 = arith.constant 0 : index
    %c0_85 = arith.constant 0 : index
    %64 = vector.load %arg5[%c5, %c0_84, %c0_85] : memref<9x8x4xf32, #tpu.memory_space<vmem>>, vector<1x8x4xf32>
    %65 = vector.shape_cast %64 : vector<1x8x4xf32> to vector<8x4xf32>
    %cst_86 = arith.constant dense<0.000000e+00> : vector<256x4xf32>
    %66 = tpu.matmul %63, %65, %cst_86 {dimension_numbers = #tpu.dot_dimension_numbers<[1], [0], [0], [1], [0, 0, 1, 1], [], []>} : vector<256x8xf32>, vector<8x4xf32>, vector<256x4xf32> -> vector<256x4xf32>
    %67 = arith.addf %61, %66 : vector<256x4xf32>
    %c2_87 = arith.constant 2 : index
    %c0_88 = arith.constant 0 : index
    %c0_89 = arith.constant 0 : index
    %68 = vector.load %arg12[%c2_87, %c0_88, %c0_89] : memref<18x18x8xf32, #tpu.memory_space<vmem>>, vector<16x16x8xf32>
    %69 = vector.shape_cast %68 : vector<16x16x8xf32> to vector<256x8xf32>
    %c6 = arith.constant 6 : index
    %c0_90 = arith.constant 0 : index
    %c0_91 = arith.constant 0 : index
    %70 = vector.load %arg5[%c6, %c0_90, %c0_91] : memref<9x8x4xf32, #tpu.memory_space<vmem>>, vector<1x8x4xf32>
    %71 = vector.shape_cast %70 : vector<1x8x4xf32> to vector<8x4xf32>
    %cst_92 = arith.constant dense<0.000000e+00> : vector<256x4xf32>
    %72 = tpu.matmul %69, %71, %cst_92 {dimension_numbers = #tpu.dot_dimension_numbers<[1], [0], [0], [1], [0, 0, 1, 1], [], []>} : vector<256x8xf32>, vector<8x4xf32>, vector<256x4xf32> -> vector<256x4xf32>
    %73 = arith.addf %67, %72 : vector<256x4xf32>
    %c2_93 = arith.constant 2 : index
    %c1_94 = arith.constant 1 : index
    %c0_95 = arith.constant 0 : index
    %74 = vector.load %arg12[%c2_93, %c1_94, %c0_95] : memref<18x18x8xf32, #tpu.memory_space<vmem>>, vector<16x16x8xf32>
    %75 = vector.shape_cast %74 : vector<16x16x8xf32> to vector<256x8xf32>
    %c7 = arith.constant 7 : index
    %c0_96 = arith.constant 0 : index
    %c0_97 = arith.constant 0 : index
    %76 = vector.load %arg5[%c7, %c0_96, %c0_97] : memref<9x8x4xf32, #tpu.memory_space<vmem>>, vector<1x8x4xf32>
    %77 = vector.shape_cast %76 : vector<1x8x4xf32> to vector<8x4xf32>
    %cst_98 = arith.constant dense<0.000000e+00> : vector<256x4xf32>
    %78 = tpu.matmul %75, %77, %cst_98 {dimension_numbers = #tpu.dot_dimension_numbers<[1], [0], [0], [1], [0, 0, 1, 1], [], []>} : vector<256x8xf32>, vector<8x4xf32>, vector<256x4xf32> -> vector<256x4xf32>
    %79 = arith.addf %73, %78 : vector<256x4xf32>
    %c2_99 = arith.constant 2 : index
    %c2_100 = arith.constant 2 : index
    %c0_101 = arith.constant 0 : index
    %80 = vector.load %arg12[%c2_99, %c2_100, %c0_101] : memref<18x18x8xf32, #tpu.memory_space<vmem>>, vector<16x16x8xf32>
    %81 = vector.shape_cast %80 : vector<16x16x8xf32> to vector<256x8xf32>
    %c8 = arith.constant 8 : index
    %c0_102 = arith.constant 0 : index
    %c0_103 = arith.constant 0 : index
    %82 = vector.load %arg5[%c8, %c0_102, %c0_103] : memref<9x8x4xf32, #tpu.memory_space<vmem>>, vector<1x8x4xf32>
    %83 = vector.shape_cast %82 : vector<1x8x4xf32> to vector<8x4xf32>
    %cst_104 = arith.constant dense<0.000000e+00> : vector<256x4xf32>
    %84 = tpu.matmul %81, %83, %cst_104 {dimension_numbers = #tpu.dot_dimension_numbers<[1], [0], [0], [1], [0, 0, 1, 1], [], []>} : vector<256x8xf32>, vector<8x4xf32>, vector<256x4xf32> -> vector<256x4xf32>
    %85 = arith.addf %79, %84 : vector<256x4xf32>
    %c0_105 = arith.constant 0 : index
    %c0_106 = arith.constant 0 : index
    %86 = vector.load %arg6[%c0_105, %c0_106] : memref<1x4xf32, #tpu.memory_space<vmem>>, vector<1x4xf32>
    %87 = vector.broadcast %86 : vector<1x4xf32> to vector<256x4xf32>
    %88 = arith.mulf %85, %87 : vector<256x4xf32>
    %c0_107 = arith.constant 0 : index
    %c0_108 = arith.constant 0 : index
    %89 = vector.load %arg7[%c0_107, %c0_108] : memref<1x4xf32, #tpu.memory_space<vmem>>, vector<1x4xf32>
    %90 = vector.broadcast %89 : vector<1x4xf32> to vector<256x4xf32>
    %91 = arith.addf %88, %90 : vector<256x4xf32>
    %cst_109 = arith.constant 0.000000e+00 : f32
    %92 = vector.broadcast %cst_109 : f32 to vector<256x4xf32>
    %93 = arith.maximumf %91, %92 : vector<256x4xf32>
    %94 = vector.shape_cast %93 : vector<256x4xf32> to vector<16x16x4xf32>
    %c1_110 = arith.constant 1 : index
    %c1_111 = arith.constant 1 : index
    %c0_112 = arith.constant 0 : index
    %95 = vector.load %arg13[%c1_110, %c1_111, %c0_112] : memref<18x18x4xf32, #tpu.memory_space<vmem>>, vector<16x16x4xf32>
    tpu.vector_store %arg13[%c1_110, %c1_111, %c0_112], %94 {strides = array<i32>} : memref<18x18x4xf32, #tpu.memory_space<vmem>>, vector<16x16x4xf32>,
    %cst_113 = arith.constant 0.000000e+00 : f32
    %96 = vector.broadcast %cst_113 : f32 to vector<256x4xf32>
    %c0_114 = arith.constant 0 : index
    %c0_115 = arith.constant 0 : index
    %c0_116 = arith.constant 0 : index
    %97 = vector.load %arg13[%c0_114, %c0_115, %c0_116] : memref<18x18x4xf32, #tpu.memory_space<vmem>>, vector<16x16x4xf32>
    %98 = vector.shape_cast %97 : vector<16x16x4xf32> to vector<256x4xf32>
    %c0_117 = arith.constant 0 : index
    %c0_118 = arith.constant 0 : index
    %c0_119 = arith.constant 0 : index
    %99 = vector.load %arg8[%c0_117, %c0_118, %c0_119] : memref<9x4x4xf32, #tpu.memory_space<vmem>>, vector<1x4x4xf32>
    %100 = vector.shape_cast %99 : vector<1x4x4xf32> to vector<4x4xf32>
    %cst_120 = arith.constant dense<0.000000e+00> : vector<256x4xf32>
    %101 = tpu.matmul %98, %100, %cst_120 {dimension_numbers = #tpu.dot_dimension_numbers<[1], [0], [0], [1], [0, 0, 1, 1], [], []>} : vector<256x4xf32>, vector<4x4xf32>, vector<256x4xf32> -> vector<256x4xf32>
    %102 = arith.addf %96, %101 : vector<256x4xf32>
    %c0_121 = arith.constant 0 : index
    %c1_122 = arith.constant 1 : index
    %c0_123 = arith.constant 0 : index
    %103 = vector.load %arg13[%c0_121, %c1_122, %c0_123] : memref<18x18x4xf32, #tpu.memory_space<vmem>>, vector<16x16x4xf32>
    %104 = vector.shape_cast %103 : vector<16x16x4xf32> to vector<256x4xf32>
    %c1_124 = arith.constant 1 : index
    %c0_125 = arith.constant 0 : index
    %c0_126 = arith.constant 0 : index
    %105 = vector.load %arg8[%c1_124, %c0_125, %c0_126] : memref<9x4x4xf32, #tpu.memory_space<vmem>>, vector<1x4x4xf32>
    %106 = vector.shape_cast %105 : vector<1x4x4xf32> to vector<4x4xf32>
    %cst_127 = arith.constant dense<0.000000e+00> : vector<256x4xf32>
    %107 = tpu.matmul %104, %106, %cst_127 {dimension_numbers = #tpu.dot_dimension_numbers<[1], [0], [0], [1], [0, 0, 1, 1], [], []>} : vector<256x4xf32>, vector<4x4xf32>, vector<256x4xf32> -> vector<256x4xf32>
    %108 = arith.addf %102, %107 : vector<256x4xf32>
    %c0_128 = arith.constant 0 : index
    %c2_129 = arith.constant 2 : index
    %c0_130 = arith.constant 0 : index
    %109 = vector.load %arg13[%c0_128, %c2_129, %c0_130] : memref<18x18x4xf32, #tpu.memory_space<vmem>>, vector<16x16x4xf32>
    %110 = vector.shape_cast %109 : vector<16x16x4xf32> to vector<256x4xf32>
    %c2_131 = arith.constant 2 : index
    %c0_132 = arith.constant 0 : index
    %c0_133 = arith.constant 0 : index
    %111 = vector.load %arg8[%c2_131, %c0_132, %c0_133] : memref<9x4x4xf32, #tpu.memory_space<vmem>>, vector<1x4x4xf32>
    %112 = vector.shape_cast %111 : vector<1x4x4xf32> to vector<4x4xf32>
    %cst_134 = arith.constant dense<0.000000e+00> : vector<256x4xf32>
    %113 = tpu.matmul %110, %112, %cst_134 {dimension_numbers = #tpu.dot_dimension_numbers<[1], [0], [0], [1], [0, 0, 1, 1], [], []>} : vector<256x4xf32>, vector<4x4xf32>, vector<256x4xf32> -> vector<256x4xf32>
    %114 = arith.addf %108, %113 : vector<256x4xf32>
    %c1_135 = arith.constant 1 : index
    %c0_136 = arith.constant 0 : index
    %c0_137 = arith.constant 0 : index
    %115 = vector.load %arg13[%c1_135, %c0_136, %c0_137] : memref<18x18x4xf32, #tpu.memory_space<vmem>>, vector<16x16x4xf32>
    %116 = vector.shape_cast %115 : vector<16x16x4xf32> to vector<256x4xf32>
    %c3_138 = arith.constant 3 : index
    %c0_139 = arith.constant 0 : index
    %c0_140 = arith.constant 0 : index
    %117 = vector.load %arg8[%c3_138, %c0_139, %c0_140] : memref<9x4x4xf32, #tpu.memory_space<vmem>>, vector<1x4x4xf32>
    %118 = vector.shape_cast %117 : vector<1x4x4xf32> to vector<4x4xf32>
    %cst_141 = arith.constant dense<0.000000e+00> : vector<256x4xf32>
    %119 = tpu.matmul %116, %118, %cst_141 {dimension_numbers = #tpu.dot_dimension_numbers<[1], [0], [0], [1], [0, 0, 1, 1], [], []>} : vector<256x4xf32>, vector<4x4xf32>, vector<256x4xf32> -> vector<256x4xf32>
    %120 = arith.addf %114, %119 : vector<256x4xf32>
    %c1_142 = arith.constant 1 : index
    %c1_143 = arith.constant 1 : index
    %c0_144 = arith.constant 0 : index
    %121 = vector.load %arg13[%c1_142, %c1_143, %c0_144] : memref<18x18x4xf32, #tpu.memory_space<vmem>>, vector<16x16x4xf32>
    %122 = vector.shape_cast %121 : vector<16x16x4xf32> to vector<256x4xf32>
    %c4_145 = arith.constant 4 : index
    %c0_146 = arith.constant 0 : index
    %c0_147 = arith.constant 0 : index
    %123 = vector.load %arg8[%c4_145, %c0_146, %c0_147] : memref<9x4x4xf32, #tpu.memory_space<vmem>>, vector<1x4x4xf32>
    %124 = vector.shape_cast %123 : vector<1x4x4xf32> to vector<4x4xf32>
    %cst_148 = arith.constant dense<0.000000e+00> : vector<256x4xf32>
    %125 = tpu.matmul %122, %124, %cst_148 {dimension_numbers = #tpu.dot_dimension_numbers<[1], [0], [0], [1], [0, 0, 1, 1], [], []>} : vector<256x4xf32>, vector<4x4xf32>, vector<256x4xf32> -> vector<256x4xf32>
    %126 = arith.addf %120, %125 : vector<256x4xf32>
    %c1_149 = arith.constant 1 : index
    %c2_150 = arith.constant 2 : index
    %c0_151 = arith.constant 0 : index
    %127 = vector.load %arg13[%c1_149, %c2_150, %c0_151] : memref<18x18x4xf32, #tpu.memory_space<vmem>>, vector<16x16x4xf32>
    %128 = vector.shape_cast %127 : vector<16x16x4xf32> to vector<256x4xf32>
    %c5_152 = arith.constant 5 : index
    %c0_153 = arith.constant 0 : index
    %c0_154 = arith.constant 0 : index
    %129 = vector.load %arg8[%c5_152, %c0_153, %c0_154] : memref<9x4x4xf32, #tpu.memory_space<vmem>>, vector<1x4x4xf32>
    %130 = vector.shape_cast %129 : vector<1x4x4xf32> to vector<4x4xf32>
    %cst_155 = arith.constant dense<0.000000e+00> : vector<256x4xf32>
    %131 = tpu.matmul %128, %130, %cst_155 {dimension_numbers = #tpu.dot_dimension_numbers<[1], [0], [0], [1], [0, 0, 1, 1], [], []>} : vector<256x4xf32>, vector<4x4xf32>, vector<256x4xf32> -> vector<256x4xf32>
    %132 = arith.addf %126, %131 : vector<256x4xf32>
    %c2_156 = arith.constant 2 : index
    %c0_157 = arith.constant 0 : index
    %c0_158 = arith.constant 0 : index
    %133 = vector.load %arg13[%c2_156, %c0_157, %c0_158] : memref<18x18x4xf32, #tpu.memory_space<vmem>>, vector<16x16x4xf32>
    %134 = vector.shape_cast %133 : vector<16x16x4xf32> to vector<256x4xf32>
    %c6_159 = arith.constant 6 : index
    %c0_160 = arith.constant 0 : index
    %c0_161 = arith.constant 0 : index
    %135 = vector.load %arg8[%c6_159, %c0_160, %c0_161] : memref<9x4x4xf32, #tpu.memory_space<vmem>>, vector<1x4x4xf32>
    %136 = vector.shape_cast %135 : vector<1x4x4xf32> to vector<4x4xf32>
    %cst_162 = arith.constant dense<0.000000e+00> : vector<256x4xf32>
    %137 = tpu.matmul %134, %136, %cst_162 {dimension_numbers = #tpu.dot_dimension_numbers<[1], [0], [0], [1], [0, 0, 1, 1], [], []>} : vector<256x4xf32>, vector<4x4xf32>, vector<256x4xf32> -> vector<256x4xf32>
    %138 = arith.addf %132, %137 : vector<256x4xf32>
    %c2_163 = arith.constant 2 : index
    %c1_164 = arith.constant 1 : index
    %c0_165 = arith.constant 0 : index
    %139 = vector.load %arg13[%c2_163, %c1_164, %c0_165] : memref<18x18x4xf32, #tpu.memory_space<vmem>>, vector<16x16x4xf32>
    %140 = vector.shape_cast %139 : vector<16x16x4xf32> to vector<256x4xf32>
    %c7_166 = arith.constant 7 : index
    %c0_167 = arith.constant 0 : index
    %c0_168 = arith.constant 0 : index
    %141 = vector.load %arg8[%c7_166, %c0_167, %c0_168] : memref<9x4x4xf32, #tpu.memory_space<vmem>>, vector<1x4x4xf32>
    %142 = vector.shape_cast %141 : vector<1x4x4xf32> to vector<4x4xf32>
    %cst_169 = arith.constant dense<0.000000e+00> : vector<256x4xf32>
    %143 = tpu.matmul %140, %142, %cst_169 {dimension_numbers = #tpu.dot_dimension_numbers<[1], [0], [0], [1], [0, 0, 1, 1], [], []>} : vector<256x4xf32>, vector<4x4xf32>, vector<256x4xf32> -> vector<256x4xf32>
    %144 = arith.addf %138, %143 : vector<256x4xf32>
    %c2_170 = arith.constant 2 : index
    %c2_171 = arith.constant 2 : index
    %c0_172 = arith.constant 0 : index
    %145 = vector.load %arg13[%c2_170, %c2_171, %c0_172] : memref<18x18x4xf32, #tpu.memory_space<vmem>>, vector<16x16x4xf32>
    %146 = vector.shape_cast %145 : vector<16x16x4xf32> to vector<256x4xf32>
    %c8_173 = arith.constant 8 : index
    %c0_174 = arith.constant 0 : index
    %c0_175 = arith.constant 0 : index
    %147 = vector.load %arg8[%c8_173, %c0_174, %c0_175] : memref<9x4x4xf32, #tpu.memory_space<vmem>>, vector<1x4x4xf32>
    %148 = vector.shape_cast %147 : vector<1x4x4xf32> to vector<4x4xf32>
    %cst_176 = arith.constant dense<0.000000e+00> : vector<256x4xf32>
    %149 = tpu.matmul %146, %148, %cst_176 {dimension_numbers = #tpu.dot_dimension_numbers<[1], [0], [0], [1], [0, 0, 1, 1], [], []>} : vector<256x4xf32>, vector<4x4xf32>, vector<256x4xf32> -> vector<256x4xf32>
    %150 = arith.addf %144, %149 : vector<256x4xf32>
    %c0_177 = arith.constant 0 : index
    %c0_178 = arith.constant 0 : index
    %151 = vector.load %arg9[%c0_177, %c0_178] : memref<1x4xf32, #tpu.memory_space<vmem>>, vector<1x4xf32>
    %152 = vector.broadcast %151 : vector<1x4xf32> to vector<256x4xf32>
    %153 = arith.mulf %150, %152 : vector<256x4xf32>
    %c0_179 = arith.constant 0 : index
    %c0_180 = arith.constant 0 : index
    %154 = vector.load %arg10[%c0_179, %c0_180] : memref<1x4xf32, #tpu.memory_space<vmem>>, vector<1x4xf32>
    %155 = vector.broadcast %154 : vector<1x4xf32> to vector<256x4xf32>
    %156 = arith.addf %153, %155 : vector<256x4xf32>
    %cst_181 = arith.constant 0.000000e+00 : f32
    %157 = vector.broadcast %cst_181 : f32 to vector<256x4xf32>
    %158 = arith.maximumf %156, %157 : vector<256x4xf32>
    %159 = vector.shape_cast %158 : vector<256x4xf32> to vector<16x16x4xf32>
    %c0_182 = arith.constant 0 : index
    %c0_183 = arith.constant 0 : index
    %c0_184 = arith.constant 0 : index
    %c0_185 = arith.constant 0 : index
    %160 = vector.load %arg11[%c0_182, %c0_183, %c0_184, %c0_185] : memref<1x16x16x4xf32, #tpu.memory_space<vmem>>, vector<1x16x16x4xf32>
    %161 = vector.shape_cast %160 : vector<1x16x16x4xf32> to vector<16x16x4xf32>
    %162 = vector.shape_cast %159 : vector<16x16x4xf32> to vector<1x16x16x4xf32>
    tpu.vector_store %arg11[%c0_182, %c0_183, %c0_184, %c0_185], %162 {strides = array<i32>} : memref<1x16x16x4xf32, #tpu.memory_space<vmem>>, vector<1x16x16x4xf32>,
    return
  }
  func.func @transform_0(%arg0: i32) -> (i32, i32, i32, i32) {
    %c0_i32 = arith.constant 0 : i32
    %c0_i32_0 = arith.constant 0 : i32
    %c0_i32_1 = arith.constant 0 : i32
    %c0_i32_2 = arith.constant 0 : i32
    return %arg0, %c0_i32, %c0_i32_0, %c0_i32_1 : i32, i32, i32, i32
  }
  func.func @transform_1(%arg0: i32) -> (i32, i32, i32, i32) {
    %c0_i32 = arith.constant 0 : i32
    %c0_i32_0 = arith.constant 0 : i32
    %c0_i32_1 = arith.constant 0 : i32
    %c0_i32_2 = arith.constant 0 : i32
    return %arg0, %c0_i32, %c0_i32_0, %c0_i32_1 : i32, i32, i32, i32
  }
  func.func @transform_2(%arg0: i32) -> (i32, i32) {
    %c0_i32 = arith.constant 0 : i32
    %c0_i32_0 = arith.constant 0 : i32
    %c0_i32_1 = arith.constant 0 : i32
    return %c0_i32, %c0_i32_0 : i32, i32
  }
  func.func @transform_3(%arg0: i32) -> (i32, i32) {
    %c0_i32 = arith.constant 0 : i32
    %c0_i32_0 = arith.constant 0 : i32
    %c0_i32_1 = arith.constant 0 : i32
    return %c0_i32, %c0_i32_0 : i32, i32
  }
  func.func @transform_4(%arg0: i32) -> (i32, i32, i32) {
    %c0_i32 = arith.constant 0 : i32
    %c0_i32_0 = arith.constant 0 : i32
    %c0_i32_1 = arith.constant 0 : i32
    %c0_i32_2 = arith.constant 0 : i32
    return %c0_i32, %c0_i32_0, %c0_i32_1 : i32, i32, i32
  }
  func.func @transform_5(%arg0: i32) -> (i32, i32) {
    %c0_i32 = arith.constant 0 : i32
    %c0_i32_0 = arith.constant 0 : i32
    %c0_i32_1 = arith.constant 0 : i32
    return %c0_i32, %c0_i32_0 : i32, i32
  }
  func.func @transform_6(%arg0: i32) -> (i32, i32) {
    %c0_i32 = arith.constant 0 : i32
    %c0_i32_0 = arith.constant 0 : i32
    %c0_i32_1 = arith.constant 0 : i32
    return %c0_i32, %c0_i32_0 : i32, i32
  }
  func.func @transform_7(%arg0: i32) -> (i32, i32, i32) {
    %c0_i32 = arith.constant 0 : i32
    %c0_i32_0 = arith.constant 0 : i32
    %c0_i32_1 = arith.constant 0 : i32
    %c0_i32_2 = arith.constant 0 : i32
    return %c0_i32, %c0_i32_0, %c0_i32_1 : i32, i32, i32
  }
  func.func @transform_8(%arg0: i32) -> (i32, i32) {
    %c0_i32 = arith.constant 0 : i32
    %c0_i32_0 = arith.constant 0 : i32
    %c0_i32_1 = arith.constant 0 : i32
    return %c0_i32, %c0_i32_0 : i32, i32
  }
  func.func @transform_9(%arg0: i32) -> (i32, i32) {
    %c0_i32 = arith.constant 0 : i32
    %c0_i32_0 = arith.constant 0 : i32
    %c0_i32_1 = arith.constant 0 : i32
    return %c0_i32, %c0_i32_0 : i32, i32
  }
  func.func @transform_10(%arg0: i32) -> (i32, i32, i32, i32) {
    %c0_i32 = arith.constant 0 : i32
    %c0_i32_0 = arith.constant 0 : i32
    %c0_i32_1 = arith.constant 0 : i32
    %c0_i32_2 = arith.constant 0 : i32
    return %arg0, %c0_i32, %c0_i32_0, %c0_i32_1 : i32, i32, i32, i32
  }
}

</mosaic_0001>

<llo_original>
// kernel: tpu_custom_call.1
$region0: #{tpu_custom_call.1}
  #allocation0 [shape = 'u32[]', space=smem, size = 0x4, offset = 0x4, fixed_abs, tag = 'smem constant byte address 0x4 - core index']
  #allocation1 [shape = 'u32[144,128]{1,0:T(1,128)}', space=vmem, size = 0x12000, scoped, tag = 'internal scratch']
  #allocation2 [shape = 'f32[18,18,8]{2,1,0:T(8,128)}', space=vmem, size = 0x36000, scoped, tag = 'scratch operand']
  #allocation3 [shape = 'f32[18,18,4]{2,1,0:T(8,128)}', space=vmem, size = 0x36000, scoped, tag = 'scratch operand']
  %s0 = inlined_call_operand.vmem [shape: f32[2,8,8,4], index: 0, kind: input, shape index: {}]
  %s1 = inlined_call_operand.vmem [shape: f32[2,16,16,4], index: 1, kind: input, shape index: {}]
  %s2 = inlined_call_operand.vmem [shape: f32[16,8], index: 2, kind: input, shape index: {}]
  %s3 = inlined_call_operand.vmem [shape: f32[16,8], index: 3, kind: input, shape index: {}]
  %s4 = inlined_call_operand.vmem [shape: f32[9,8,4], index: 4, kind: input, shape index: {}]
  %s5 = inlined_call_operand.vmem [shape: f32[1,4], index: 5, kind: input, shape index: {}]
  %s6 = inlined_call_operand.vmem [shape: f32[1,4], index: 6, kind: input, shape index: {}]
  %s7 = inlined_call_operand.vmem [shape: f32[9,4,4], index: 7, kind: input, shape index: {}]
  %s8 = inlined_call_operand.vmem [shape: f32[1,4], index: 8, kind: input, shape index: {}]
  %s9 = inlined_call_operand.vmem [shape: f32[1,4], index: 9, kind: input, shape index: {}]
  %s10 = inlined_call_operand.vmem [shape: f32[2,16,16,4], index: 10, kind: output, shape index: {}]
  %s11 = sld [smem:[#allocation0]]
  $region73: #{tpu_custom_call.1} parent=0
    _
  %s13 = ssub.s32 1, %s11
  %s14 = scalar_select 0, %s13, %s11
  loop: start=0, step=1, limit=4
  $region2: #{tpu_custom_call.1} parent=0 // loop_pre_header
    _
  $region3: #{tpu_custom_call.1} parent=0 // loop_header
    %s16 = sphi 0, %s20
    %p17 = scmp.ge.s32.totalorder %s16, 4
    %s26 = sphi 0, %s28
    %s29 = sphi 0, %s26
    %s30 = sphi 0, %s29
    %s46 = sphi 0, %s30
    %s52 = sphi 0, %s54
    %s55 = sphi 0, %s52
    %s56 = sphi 0, %s55
    %s72 = sphi 0, %s56
    %s76 = sphi 0, %s76
    %s78 = sphi 0, %s76
    %s79 = sphi 0, %s78
    %s93 = sphi 0, %s79
    %s97 = sphi 0, %s97
    %s99 = sphi 0, %s97
    %s100 = sphi 0, %s99
    %s114 = sphi 0, %s100
    %s118 = sphi 0, %s118
    %s120 = sphi 0, %s118
    %s121 = sphi 0, %s120
    %s135 = sphi 0, %s121
    %s139 = sphi 0, %s139
    %s141 = sphi 0, %s139
    %s142 = sphi 0, %s141
    %s156 = sphi 0, %s142
    %s160 = sphi 0, %s160
    %s162 = sphi 0, %s160
    %s163 = sphi 0, %s162
    %s177 = sphi 0, %s163
    %s181 = sphi 0, %s181
    %s183 = sphi 0, %s181
    %s184 = sphi 0, %s183
    %s198 = sphi 0, %s184
    %s202 = sphi 0, %s202
    %s204 = sphi 0, %s202
    %s205 = sphi 0, %s204
    %s219 = sphi 0, %s205
    %s223 = sphi 0, %s223
    %s225 = sphi 0, %s223
    %s226 = sphi 0, %s225
    %s240 = sphi 0, %s226
    %s246 = sphi 0, %s248
    %s249 = sphi 0, %s246
    %s250 = sphi 0, %s249
    %s266 = sphi 0, %s250
  $region4: #{tpu_custom_call.1} parent=0 // loop_header_branch
    %19 = sbr.rel (%p17) target = $region8
  $region5: #{tpu_custom_call.1} parent=0 // loop_body
    %s21 = ssub.s32 %s16, 1
    %s22 = ssub.s32 %s16, 2
    %s23 = sadd.s32 %s16, 1
    %s24 = ssub.s32 %s16, %s23
    %p25 = scmp.eq.s32.totalorder %s24, 0
    %s27 = sadd.s32 %s26, 1
    %s28 = scalar_select %p25, %s26, %s27
    %p31 = pneg %p25
    %p32 = scmp.eq.s32.totalorder %s16, 1
    %p33 = por %p31, %p32
    %p34 = scmp.ne.s32.totalorder %s26, %s29
    %p35 = scmp.eq.s32.totalorder %s16, 0
    %p36 = por %p34, %p35
    %p37 = scmp.ne.s32.totalorder %s26, %s29
    %p38 = scmp.eq.s32.totalorder %s21, 1
    %p39 = por %p37, %p38
    %p40 = scmp.ne.s32.totalorder %s29, %s30
    %p41 = scmp.eq.s32.totalorder %s21, 0
    %p42 = por %p40, %p41
    %p43 = scmp.ne.s32.totalorder %s29, %s30
    %p44 = scmp.eq.s32.totalorder %s22, 1
    %p45 = por %p43, %p44
    %p47 = scmp.ne.s32.totalorder %s30, %s46
    %p48 = scmp.eq.s32.totalorder %s22, 0
    %p49 = por %p47, %p48
    %s50 = ssub.s32 %s16, %s23
    %p51 = scmp.eq.s32.totalorder %s50, 0
    %s53 = sadd.s32 %s52, 1
    %s54 = scalar_select %p51, %s52, %s53
    %p57 = pneg %p51
    %p58 = scmp.eq.s32.totalorder %s16, 1
    %p59 = por %p57, %p58
    %p60 = scmp.ne.s32.totalorder %s52, %s55
    %p61 = scmp.eq.s32.totalorder %s16, 0
    %p62 = por %p60, %p61
    %p63 = scmp.ne.s32.totalorder %s52, %s55
    %p64 = scmp.eq.s32.totalorder %s21, 1
    %p65 = por %p63, %p64
    %p66 = scmp.ne.s32.totalorder %s55, %s56
    %p67 = scmp.eq.s32.totalorder %s21, 0
    %p68 = por %p66, %p67
    %p69 = scmp.ne.s32.totalorder %s55, %s56
    %p70 = scmp.eq.s32.totalorder %s22, 1
    %p71 = por %p69, %p70
    %p73 = scmp.ne.s32.totalorder %s56, %s72
    %p74 = scmp.eq.s32.totalorder %s22, 0
    %p75 = por %p73, %p74
    %s77 = sadd.s32 %s76, 1
    %p80 = scmp.eq.s32.totalorder %s16, 1
    %p81 = scmp.ne.s32.totalorder %s76, %s78
    %p82 = scmp.eq.s32.totalorder %s16, 0
    %p83 = por %p81, %p82
    %p84 = scmp.ne.s32.totalorder %s76, %s78
    %p85 = scmp.eq.s32.totalorder %s21, 1
    %p86 = por %p84, %p85
    %p87 = scmp.ne.s32.totalorder %s78, %s79
    %p88 = scmp.eq.s32.totalorder %s21, 0
    %p89 = por %p87, %p88
    %p90 = scmp.ne.s32.totalorder %s78, %s79
    %p91 = scmp.eq.s32.totalorder %s22, 1
    %p92 = por %p90, %p91
    %p94 = scmp.ne.s32.totalorder %s79, %s93
    %p95 = scmp.eq.s32.totalorder %s22, 0
    %p96 = por %p94, %p95
    %s98 = sadd.s32 %s97, 1
    %p101 = scmp.eq.s32.totalorder %s16, 1
    %p102 = scmp.ne.s32.totalorder %s97, %s99
    %p103 = scmp.eq.s32.totalorder %s16, 0
    %p104 = por %p102, %p103
    %p105 = scmp.ne.s32.totalorder %s97, %s99
    %p106 = scmp.eq.s32.totalorder %s21, 1
    %p107 = por %p105, %p106
    %p108 = scmp.ne.s32.totalorder %s99, %s100
    %p109 = scmp.eq.s32.totalorder %s21, 0
    %p110 = por %p108, %p109
    %p111 = scmp.ne.s32.totalorder %s99, %s100
    %p112 = scmp.eq.s32.totalorder %s22, 1
    %p113 = por %p111, %p112
    %p115 = scmp.ne.s32.totalorder %s100, %s114
    %p116 = scmp.eq.s32.totalorder %s22, 0
    %p117 = por %p115, %p116
    %s119 = sadd.s32 %s118, 1
    %p122 = scmp.eq.s32.totalorder %s16, 1
    %p123 = scmp.ne.s32.totalorder %s118, %s120
    %p124 = scmp.eq.s32.totalorder %s16, 0
    %p125 = por %p123, %p124
    %p126 = scmp.ne.s32.totalorder %s118, %s120
    %p127 = scmp.eq.s32.totalorder %s21, 1
    %p128 = por %p126, %p127
    %p129 = scmp.ne.s32.totalorder %s120, %s121
    %p130 = scmp.eq.s32.totalorder %s21, 0
    %p131 = por %p129, %p130
    %p132 = scmp.ne.s32.totalorder %s120, %s121
    %p133 = scmp.eq.s32.totalorder %s22, 1
    %p134 = por %p132, %p133
    %p136 = scmp.ne.s32.totalorder %s121, %s135
    %p137 = scmp.eq.s32.totalorder %s22, 0
    %p138 = por %p136, %p137
    %s140 = sadd.s32 %s139, 1
    %p143 = scmp.eq.s32.totalorder %s16, 1
    %p144 = scmp.ne.s32.totalorder %s139, %s141
    %p145 = scmp.eq.s32.totalorder %s16, 0
    %p146 = por %p144, %p145
    %p147 = scmp.ne.s32.totalorder %s139, %s141
    %p148 = scmp.eq.s32.totalorder %s21, 1
    %p149 = por %p147, %p148
    %p150 = scmp.ne.s32.totalorder %s141, %s142
    %p151 = scmp.eq.s32.totalorder %s21, 0
    %p152 = por %p150, %p151
    %p153 = scmp.ne.s32.totalorder %s141, %s142
    %p154 = scmp.eq.s32.totalorder %s22, 1
    %p155 = por %p153, %p154
    %p157 = scmp.ne.s32.totalorder %s142, %s156
    %p158 = scmp.eq.s32.totalorder %s22, 0
    %p159 = por %p157, %p158
    %s161 = sadd.s32 %s160, 1
    %p164 = scmp.eq.s32.totalorder %s16, 1
    %p165 = scmp.ne.s32.totalorder %s160, %s162
    %p166 = scmp.eq.s32.totalorder %s16, 0
    %p167 = por %p165, %p166
    %p168 = scmp.ne.s32.totalorder %s160, %s162
    %p169 = scmp.eq.s32.totalorder %s21, 1
    %p170 = por %p168, %p169
    %p171 = scmp.ne.s32.totalorder %s162, %s163
    %p172 = scmp.eq.s32.totalorder %s21, 0
    %p173 = por %p171, %p172
    %p174 = scmp.ne.s32.totalorder %s162, %s163
    %p175 = scmp.eq.s32.totalorder %s22, 1
    %p176 = por %p174, %p175
    %p178 = scmp.ne.s32.totalorder %s163, %s177
    %p179 = scmp.eq.s32.totalorder %s22, 0
    %p180 = por %p178, %p179
    %s182 = sadd.s32 %s181, 1
    %p185 = scmp.eq.s32.totalorder %s16, 1
    %p186 = scmp.ne.s32.totalorder %s181, %s183
    %p187 = scmp.eq.s32.totalorder %s16, 0
    %p188 = por %p186, %p187
    %p189 = scmp.ne.s32.totalorder %s181, %s183
    %p190 = scmp.eq.s32.totalorder %s21, 1
    %p191 = por %p189, %p190
    %p192 = scmp.ne.s32.totalorder %s183, %s184
    %p193 = scmp.eq.s32.totalorder %s21, 0
    %p194 = por %p192, %p193
    %p195 = scmp.ne.s32.totalorder %s183, %s184
    %p196 = scmp.eq.s32.totalorder %s22, 1
    %p197 = por %p195, %p196
    %p199 = scmp.ne.s32.totalorder %s184, %s198
    %p200 = scmp.eq.s32.totalorder %s22, 0
    %p201 = por %p199, %p200
    %s203 = sadd.s32 %s202, 1
    %p206 = scmp.eq.s32.totalorder %s16, 1
    %p207 = scmp.ne.s32.totalorder %s202, %s204
    %p208 = scmp.eq.s32.totalorder %s16, 0
    %p209 = por %p207, %p208
    %p210 = scmp.ne.s32.totalorder %s202, %s204
    %p211 = scmp.eq.s32.totalorder %s21, 1
    %p212 = por %p210, %p211
    %p213 = scmp.ne.s32.totalorder %s204, %s205
    %p214 = scmp.eq.s32.totalorder %s21, 0
    %p215 = por %p213, %p214
    %p216 = scmp.ne.s32.totalorder %s204, %s205
    %p217 = scmp.eq.s32.totalorder %s22, 1
    %p218 = por %p216, %p217
    %p220 = scmp.ne.s32.totalorder %s205, %s219
    %p221 = scmp.eq.s32.totalorder %s22, 0
    %p222 = por %p220, %p221
    %s224 = sadd.s32 %s223, 1
    %p227 = scmp.eq.s32.totalorder %s16, 1
    %p228 = scmp.ne.s32.totalorder %s223, %s225
    %p229 = scmp.eq.s32.totalorder %s16, 0
    %p230 = por %p228, %p229
    %p231 = scmp.ne.s32.totalorder %s223, %s225
    %p232 = scmp.eq.s32.totalorder %s21, 1
    %p233 = por %p231, %p232
    %p234 = scmp.ne.s32.totalorder %s225, %s226
    %p235 = scmp.eq.s32.totalorder %s21, 0
    %p236 = por %p234, %p235
    %p237 = scmp.ne.s32.totalorder %s225, %s226
    %p238 = scmp.eq.s32.totalorder %s22, 1
    %p239 = por %p237, %p238
    %p241 = scmp.ne.s32.totalorder %s226, %s240
    %p242 = scmp.eq.s32.totalorder %s22, 0
    %p243 = por %p241, %p242
    %s244 = ssub.s32 %s16, %s23
    %p245 = scmp.eq.s32.totalorder %s244, 0
    %s247 = sadd.s32 %s246, 1
    %s248 = scalar_select %p245, %s246, %s247
    %p251 = pneg %p245
    %p252 = scmp.eq.s32.totalorder %s16, 1
    %p253 = por %p251, %p252
    %p254 = scmp.ne.s32.totalorder %s246, %s249
    %p255 = scmp.eq.s32.totalorder %s16, 0
    %p256 = por %p254, %p255
    %p257 = scmp.ne.s32.totalorder %s246, %s249
    %p258 = scmp.eq.s32.totalorder %s21, 1
    %p259 = por %p257, %p258
    %p260 = scmp.ne.s32.totalorder %s249, %s250
    %p261 = scmp.eq.s32.totalorder %s21, 0
    %p262 = por %p260, %p261
    %p263 = scmp.ne.s32.totalorder %s249, %s250
    %p264 = scmp.eq.s32.totalorder %s22, 1
    %p265 = por %p263, %p264
    %p267 = scmp.ne.s32.totalorder %s250, %s266
    %p268 = scmp.eq.s32.totalorder %s22, 0
    %p269 = por %p267, %p268
    %p270 = scmp.le.s32.totalorder 1, %s16
    %p271 = scmp.lt.s32.totalorder %s16, 3
    %p272 = pnand %p270, %p271
    %p273 = pneg %p272
    // Predicated region
    $region9: #{tpu_custom_call.1} parent=5 // pred_check
      _
    $region10: #{tpu_custom_call.1} parent=5 // pred_check_branch
      %275 = sbr.rel (%p272) target = $region12
    $region11: #{tpu_custom_call.1} parent=5 // pred_region
      %s276 = ssub.s32 %s16, 1
      // Predicated region
      $region13: #{tpu_custom_call.1} parent=11 // pred_check
        %p277 = pneg %p89
      $region14: #{tpu_custom_call.1} parent=11 // pred_check_branch
        %279 = sbr.rel (%p277) target = $region16
      $region15: #{tpu_custom_call.1} parent=11 // pred_region
        _
      $region16: #{tpu_custom_call.1} parent=11 // pred_fallthru
        _
      // Predicated region
      $region17: #{tpu_custom_call.1} parent=11 // pred_check
        %p280 = pneg %p110
      $region18: #{tpu_custom_call.1} parent=11 // pred_check_branch
        %282 = sbr.rel (%p280) target = $region20
      $region19: #{tpu_custom_call.1} parent=11 // pred_region
        _
      $region20: #{tpu_custom_call.1} parent=11 // pred_fallthru
        _
      // Predicated region
      $region21: #{tpu_custom_call.1} parent=11 // pred_check
        %p283 = pneg %p131
      $region22: #{tpu_custom_call.1} parent=11 // pred_check_branch
        %285 = sbr.rel (%p283) target = $region24
      $region23: #{tpu_custom_call.1} parent=11 // pred_region
        _
      $region24: #{tpu_custom_call.1} parent=11 // pred_fallthru
        _
      // Predicated region
      $region25: #{tpu_custom_call.1} parent=11 // pred_check
        %p286 = pneg %p152
      $region26: #{tpu_custom_call.1} parent=11 // pred_check_branch
        %288 = sbr.rel (%p286) target = $region28
      $region27: #{tpu_custom_call.1} parent=11 // pred_region
        _
      $region28: #{tpu_custom_call.1} parent=11 // pred_fallthru
        _
      // Predicated region
      $region29: #{tpu_custom_call.1} parent=11 // pred_check
        %p289 = pneg %p173
      $region30: #{tpu_custom_call.1} parent=11 // pred_check_branch
        %291 = sbr.rel (%p289) target = $region32
      $region31: #{tpu_custom_call.1} parent=11 // pred_region
        _
      $region32: #{tpu_custom_call.1} parent=11 // pred_fallthru
        _
      // Predicated region
      $region33: #{tpu_custom_call.1} parent=11 // pred_check
        %p292 = pneg %p194
      $region34: #{tpu_custom_call.1} parent=11 // pred_check_branch
        %294 = sbr.rel (%p292) target = $region36
      $region35: #{tpu_custom_call.1} parent=11 // pred_region
        _
      $region36: #{tpu_custom_call.1} parent=11 // pred_fallthru
        _
      // Predicated region
      $region37: #{tpu_custom_call.1} parent=11 // pred_check
        %p295 = pneg %p215
      $region38: #{tpu_custom_call.1} parent=11 // pred_check_branch
        %297 = sbr.rel (%p295) target = $region40
      $region39: #{tpu_custom_call.1} parent=11 // pred_region
        _
      $region40: #{tpu_custom_call.1} parent=11 // pred_fallthru
        _
      // Predicated region
      $region41: #{tpu_custom_call.1} parent=11 // pred_check
        %p298 = pneg %p236
      $region42: #{tpu_custom_call.1} parent=11 // pred_check_branch
        %300 = sbr.rel (%p298) target = $region44
      $region43: #{tpu_custom_call.1} parent=11 // pred_region
        _
      $region44: #{tpu_custom_call.1} parent=11 // pred_fallthru
        _
    $region12: #{tpu_custom_call.1} parent=5 // pred_fallthru
      _
    %p301 = scmp.lt.s32.totalorder %s16, 2
    // Predicated region
    $region45: #{tpu_custom_call.1} parent=5 // pred_check
      %p302 = pneg %p301
    $region46: #{tpu_custom_call.1} parent=5 // pred_check_branch
      %304 = sbr.rel (%p302) target = $region48
    $region47: #{tpu_custom_call.1} parent=5 // pred_region
      // Predicated region
      $region49: #{tpu_custom_call.1} parent=47 // pred_check
        %p305 = pneg %p36
      $region50: #{tpu_custom_call.1} parent=47 // pred_check_branch
        %307 = sbr.rel (%p305) target = $region52
      $region51: #{tpu_custom_call.1} parent=47 // pred_region
        %p308 = scmp.lt.s32.totalorder %s16, 1
        %s309 = scalar_select %p308, %s16, 1
        %s310 = smul.addr %s309, 8
        %s311 = smul.addr %s310, 8
        %s312 = scalar_lea.vmem %s0, %s311
      $region52: #{tpu_custom_call.1} parent=47 // pred_fallthru
        _
      // Predicated region
      $region53: #{tpu_custom_call.1} parent=47 // pred_check
        %p313 = pneg %p62
      $region54: #{tpu_custom_call.1} parent=47 // pred_check_branch
        %315 = sbr.rel (%p313) target = $region56
      $region55: #{tpu_custom_call.1} parent=47 // pred_region
        %p316 = scmp.lt.s32.totalorder %s16, 1
        %s317 = scalar_select %p316, %s16, 1
        %s318 = smul.addr %s317, 32
        %s319 = smul.addr %s318, 8
        %s320 = scalar_lea.vmem %s1, %s319
      $region56: #{tpu_custom_call.1} parent=47 // pred_fallthru
        _
    $region48: #{tpu_custom_call.1} parent=5 // pred_fallthru
      _
    %p321 = scmp.le.s32.totalorder 1, %s16
    %p322 = scmp.lt.s32.totalorder %s16, 3
    %p323 = pnand %p321, %p322
    %p324 = pneg %p323
    // Predicated region
    $region57: #{tpu_custom_call.1} parent=5 // pred_check
      _
    $region58: #{tpu_custom_call.1} parent=5 // pred_check_branch
      %326 = sbr.rel (%p323) target = $region60
    $region59: #{tpu_custom_call.1} parent=5 // pred_region
      %s327 = ssub.s32 %s16, 1
      %p328 = scmp.lt.s32.totalorder %s21, 1
      %s329 = scalar_select %p328, %s21, 1
      %s330 = smul.addr %s329, 8
      %s331 = smul.addr %s330, 8
      %s332 = scalar_lea.vmem %s0, %s331
      %p333 = pneg %p42
      %p334 = pneg %p39
      %p335 = scmp.lt.s32.totalorder %s21, 1
      %s336 = scalar_select %p335, %s21, 1
      %s337 = smul.addr %s336, 32
      %s338 = smul.addr %s337, 8
      %s339 = scalar_lea.vmem %s1, %s338
      %p340 = pneg %p68
      %p341 = pneg %p65
      %p342 = pneg %p89
      %p343 = pneg %p86
      %p344 = pneg %p110
      %p345 = pneg %p107
      %p346 = pneg %p131
      %p347 = pneg %p128
      %p348 = pneg %p152
      %p349 = pneg %p149
      %p350 = pneg %p173
      %p351 = pneg %p170
      %p352 = pneg %p194
      %p353 = pneg %p191
      %p354 = pneg %p215
      %p355 = pneg %p212
      %p356 = pneg %p236
      %p357 = pneg %p233
      %p358 = pneg %p262
      %p359 = pneg %p259
      %p360 = scmp.lt.s32.totalorder %s21, 1
      %s361 = scalar_select %p360, %s21, 1
      %s362 = smul.addr %s361, 32
      %s363 = smul.addr %s362, 8
      %s364 = scalar_lea.vmem %s10, %s363
      %p365 = scmp.lt.s32.totalorder %s21, 1
      %s366 = scalar_select %p365, %s21, 1
      %s367 = smul.addr %s366, 8
      %s368 = smul.addr %s367, 8
      %s369 = scalar_lea.vmem %s0, %s368
      %p370 = scmp.lt.s32.totalorder %s21, 1
      %s371 = scalar_select %p370, %s21, 1
      %s372 = smul.addr %s371, 32
      %s373 = smul.addr %s372, 8
      %s374 = scalar_lea.vmem %s1, %s373
      %p375 = scmp.lt.s32.totalorder %s21, 1
      %s376 = scalar_select %p375, %s21, 1
      %s377 = smul.addr %s376, 32
      %s378 = smul.addr %s377, 8
      %s379 = scalar_lea.vmem %s10, %s378
      %vm380 = vcmask 64512
      %381 = vst.msk [vmem:[#allocation2] sm:$0xff] %vm380, 0.0
      %382 = vst.msk [vmem:[#allocation2 + $0x8] sm:$0xff] %vm380, 0.0
      %vm383 = vcmask 58368
      %384 = vst.msk [vmem:[#allocation2 + $0x10] sm:$0x3] %vm383, 0.0
      %s385 = scalar_lea.vmem [#allocation2], 408
      %386 = vst.msk [vmem:[%s385] sm:$0xff] %vm380, 0.0
      %387 = vst.msk [vmem:[%s385 + $0x8] sm:$0xff] %vm380, 0.0
      %388 = vst.msk [vmem:[%s385 + $0x10] sm:$0x3] %vm383, 0.0
      %vm389 = vcmask 57344
      %390 = vst.msk [vmem:[#allocation2] sm:$0x1] %vm389, 0.0
      %391 = vst.msk [vmem:[#allocation2 + $0x18] sm:$0x1] %vm389, 0.0
      %392 = vst.msk [vmem:[#allocation2 + $0x30] sm:$0x1] %vm389, 0.0
      %393 = vst.msk [vmem:[#allocation2 + $0x48] sm:$0x1] %vm389, 0.0
      %394 = vst.msk [vmem:[#allocation2 + $0x60] sm:$0x1] %vm389, 0.0
      %395 = vst.msk [vmem:[#allocation2 + $0x78] sm:$0x1] %vm389, 0.0
      %396 = vst.msk [vmem:[#allocation2 + $0x90] sm:$0x1] %vm389, 0.0
      %397 = vst.msk [vmem:[#allocation2 + $0xa8] sm:$0x1] %vm389, 0.0
      %398 = vst.msk [vmem:[#allocation2 + $0xc0] sm:$0x1] %vm389, 0.0
      %399 = vst.msk [vmem:[#allocation2 + $0xd8] sm:$0x1] %vm389, 0.0
      %400 = vst.msk [vmem:[#allocation2 + $0xf0] sm:$0x1] %vm389, 0.0
      %401 = vst.msk [vmem:[#allocation2 + $0x108] sm:$0x1] %vm389, 0.0
      %402 = vst.msk [vmem:[#allocation2 + $0x120] sm:$0x1] %vm389, 0.0
      %403 = vst.msk [vmem:[#allocation2 + $0x138] sm:$0x1] %vm389, 0.0
      %404 = vst.msk [vmem:[#allocation2 + $0x150] sm:$0x1] %vm389, 0.0
      %405 = vst.msk [vmem:[#allocation2 + $0x168] sm:$0x1] %vm389, 0.0
      %406 = vst.msk [vmem:[#allocation2 + $0x180] sm:$0x1] %vm389, 0.0
      %407 = vst.msk [vmem:[#allocation2 + $0x198] sm:$0x1] %vm389, 0.0
      %408 = vst.msk [vmem:[#allocation2 + $0x11] sm:$0x1] %vm389, 0.0
      %409 = vst.msk [vmem:[#allocation2 + $0x29] sm:$0x1] %vm389, 0.0
      %410 = vst.msk [vmem:[#allocation2 + $0x41] sm:$0x1] %vm389, 0.0
      %411 = vst.msk [vmem:[#allocation2 + $0x59] sm:$0x1] %vm389, 0.0
      %412 = vst.msk [vmem:[#allocation2 + $0x71] sm:$0x1] %vm389, 0.0
      %413 = vst.msk [vmem:[#allocation2 + $0x89] sm:$0x1] %vm389, 0.0
      %414 = vst.msk [vmem:[#allocation2 + $0xa1] sm:$0x1] %vm389, 0.0
      %415 = vst.msk [vmem:[#allocation2 + $0xb9] sm:$0x1] %vm389, 0.0
      %416 = vst.msk [vmem:[#allocation2 + $0xd1] sm:$0x1] %vm389, 0.0
      %417 = vst.msk [vmem:[#allocation2 + $0xe9] sm:$0x1] %vm389, 0.0
      %418 = vst.msk [vmem:[#allocation2 + $0x101] sm:$0x1] %vm389, 0.0
      %419 = vst.msk [vmem:[#allocation2 + $0x119] sm:$0x1] %vm389, 0.0
      %420 = vst.msk [vmem:[#allocation2 + $0x131] sm:$0x1] %vm389, 0.0
      %421 = vst.msk [vmem:[#allocation2 + $0x149] sm:$0x1] %vm389, 0.0
      %422 = vst.msk [vmem:[#allocation2 + $0x161] sm:$0x1] %vm389, 0.0
      %423 = vst.msk [vmem:[#allocation2 + $0x179] sm:$0x1] %vm389, 0.0
      %424 = vst.msk [vmem:[#allocation2 + $0x191] sm:$0x1] %vm389, 0.0
      %425 = vst.msk [vmem:[#allocation2 + $0x1a9] sm:$0x1] %vm389, 0.0
      %vm426 = vcmask 31744
      %427 = vst.msk [vmem:[#allocation3] sm:$0xff] %vm426, 0.0
      %428 = vst.msk [vmem:[#allocation3 + $0x8] sm:$0xff] %vm426, 0.0
      %vm429 = vcmask 25600
      %430 = vst.msk [vmem:[#allocation3 + $0x10] sm:$0x3] %vm429, 0.0
      %s431 = scalar_lea.vmem [#allocation3], 408
      %432 = vst.msk [vmem:[%s431] sm:$0xff] %vm426, 0.0
      %433 = vst.msk [vmem:[%s431 + $0x8] sm:$0xff] %vm426, 0.0
      %434 = vst.msk [vmem:[%s431 + $0x10] sm:$0x3] %vm429, 0.0
      %vm435 = vcmask 24576
      %436 = vst.msk [vmem:[#allocation3] sm:$0x1] %vm435, 0.0
      %437 = vst.msk [vmem:[#allocation3 + $0x18] sm:$0x1] %vm435, 0.0
      %438 = vst.msk [vmem:[#allocation3 + $0x30] sm:$0x1] %vm435, 0.0
      %439 = vst.msk [vmem:[#allocation3 + $0x48] sm:$0x1] %vm435, 0.0
      %440 = vst.msk [vmem:[#allocation3 + $0x60] sm:$0x1] %vm435, 0.0
      %441 = vst.msk [vmem:[#allocation3 + $0x78] sm:$0x1] %vm435, 0.0
      %442 = vst.msk [vmem:[#allocation3 + $0x90] sm:$0x1] %vm435, 0.0
      %443 = vst.msk [vmem:[#allocation3 + $0xa8] sm:$0x1] %vm435, 0.0
      %444 = vst.msk [vmem:[#allocation3 + $0xc0] sm:$0x1] %vm435, 0.0
      %445 = vst.msk [vmem:[#allocation3 + $0xd8] sm:$0x1] %vm435, 0.0
      %446 = vst.msk [vmem:[#allocation3 + $0xf0] sm:$0x1] %vm435, 0.0
      %447 = vst.msk [vmem:[#allocation3 + $0x108] sm:$0x1] %vm435, 0.0
      %448 = vst.msk [vmem:[#allocation3 + $0x120] sm:$0x1] %vm435, 0.0
      %449 = vst.msk [vmem:[#allocation3 + $0x138] sm:$0x1] %vm435, 0.0
      %450 = vst.msk [vmem:[#allocation3 + $0x150] sm:$0x1] %vm435, 0.0
      %451 = vst.msk [vmem:[#allocation3 + $0x168] sm:$0x1] %vm435, 0.0
      %452 = vst.msk [vmem:[#allocation3 + $0x180] sm:$0x1] %vm435, 0.0
      %453 = vst.msk [vmem:[#allocation3 + $0x198] sm:$0x1] %vm435, 0.0
      %454 = vst.msk [vmem:[#allocation3 + $0x11] sm:$0x1] %vm435, 0.0
      %455 = vst.msk [vmem:[#allocation3 + $0x29] sm:$0x1] %vm435, 0.0
      %456 = vst.msk [vmem:[#allocation3 + $0x41] sm:$0x1] %vm435, 0.0
      %457 = vst.msk [vmem:[#allocation3 + $0x59] sm:$0x1] %vm435, 0.0
      %458 = vst.msk [vmem:[#allocation3 + $0x71] sm:$0x1] %vm435, 0.0
      %459 = vst.msk [vmem:[#allocation3 + $0x89] sm:$0x1] %vm435, 0.0
      %460 = vst.msk [vmem:[#allocation3 + $0xa1] sm:$0x1] %vm435, 0.0
      %461 = vst.msk [vmem:[#allocation3 + $0xb9] sm:$0x1] %vm435, 0.0
      %462 = vst.msk [vmem:[#allocation3 + $0xd1] sm:$0x1] %vm435, 0.0
      %463 = vst.msk [vmem:[#allocation3 + $0xe9] sm:$0x1] %vm435, 0.0
      %464 = vst.msk [vmem:[#allocation3 + $0x101] sm:$0x1] %vm435, 0.0
      %465 = vst.msk [vmem:[#allocation3 + $0x119] sm:$0x1] %vm435, 0.0
      %466 = vst.msk [vmem:[#allocation3 + $0x131] sm:$0x1] %vm435, 0.0
      %467 = vst.msk [vmem:[#allocation3 + $0x149] sm:$0x1] %vm435, 0.0
      %468 = vst.msk [vmem:[#allocation3 + $0x161] sm:$0x1] %vm435, 0.0
      %469 = vst.msk [vmem:[#allocation3 + $0x179] sm:$0x1] %vm435, 0.0
      %470 = vst.msk [vmem:[#allocation3 + $0x191] sm:$0x1] %vm435, 0.0
      %471 = vst.msk [vmem:[#allocation3 + $0x1a9] sm:$0x1] %vm435, 0.0
      %v472 = vld [vmem:[%s369] sm:$0xff]
      %v473 = vld [vmem:[%s369 + $0x8] sm:$0xff]
      %v474 = vld [vmem:[%s369 + $0x10] sm:$0xff]
      %v475 = vld [vmem:[%s369 + $0x18] sm:$0xff]
      %v476 = vld [vmem:[%s369 + $0x20] sm:$0xff]
      %v477 = vld [vmem:[%s369 + $0x28] sm:$0xff]
      %v478 = vld [vmem:[%s369 + $0x30] sm:$0xff]
      %v479 = vld [vmem:[%s369 + $0x38] sm:$0xff]
      %v480 = vld [vmem:[%s2] sm:$0xff]
      %v481 = vld [vmem:[%s2 + $0x8] sm:$0xff]
      %v482 = vcombine.low %v472, %v474
      %v483 = vcombine.high %v472, %v474
      %v485 = vunpack.c.l.s4 1983009808
      %v486 = vunpack.c.0.s8 %v485
      %v487 = vlaneseq
      %v488 = vshrl.u32 %v487, 7
      %v489 = vsub.s32 %v486, %v488
      %v490 = vrot.slane %v482, %v489
      %v492 = vunpack.c.l.s4 1983009808
      %v493 = vunpack.c.0.s8 %v492
      %v494 = vlaneseq
      %v495 = vshrl.u32 %v494, 7
      %v496 = vsub.s32 %v493, %v495
      %v497 = vrot.slane %v483, %v496
      %v498 = vcombine.low %v473, %v475
      %v499 = vcombine.high %v473, %v475
      %v501 = vunpack.c.l.s4 1983009808
      %v502 = vunpack.c.0.s8 %v501
      %v503 = vlaneseq
      %v504 = vshrl.u32 %v503, 7
      %v505 = vsub.s32 %v502, %v504
      %v506 = vrot.slane %v498, %v505
      %v508 = vunpack.c.l.s4 1983009808
      %v509 = vunpack.c.0.s8 %v508
      %v510 = vlaneseq
      %v511 = vshrl.u32 %v510, 7
      %v512 = vsub.s32 %v509, %v511
      %v513 = vrot.slane %v499, %v512
      %v514 = vcombine.low %v476, %v478
      %v515 = vcombine.high %v476, %v478
      %v517 = vunpack.c.l.s4 1983009808
      %v518 = vunpack.c.0.s8 %v517
      %v519 = vlaneseq
      %v520 = vshrl.u32 %v519, 7
      %v521 = vsub.s32 %v518, %v520
      %v522 = vrot.slane %v514, %v521
      %v524 = vunpack.c.l.s4 1983009808
      %v525 = vunpack.c.0.s8 %v524
      %v526 = vlaneseq
      %v527 = vshrl.u32 %v526, 7
      %v528 = vsub.s32 %v525, %v527
      %v529 = vrot.slane %v515, %v528
      %v530 = vcombine.low %v477, %v479
      %v531 = vcombine.high %v477, %v479
      %v533 = vunpack.c.l.s4 1983009808
      %v534 = vunpack.c.0.s8 %v533
      %v535 = vlaneseq
      %v536 = vshrl.u32 %v535, 7
      %v537 = vsub.s32 %v534, %v536
      %v538 = vrot.slane %v530, %v537
      %v540 = vunpack.c.l.s4 1983009808
      %v541 = vunpack.c.0.s8 %v540
      %v542 = vlaneseq
      %v543 = vshrl.u32 %v542, 7
      %v544 = vsub.s32 %v541, %v543
      %v545 = vrot.slane %v531, %v544
      %v546 = vcombine.low %v490, %v506
      %v547 = vcombine.high %v490, %v506
      %v549 = vunpack.c.l.s4 1934713408
      %v550 = vunpack.c.0.s8 %v549
      %v551 = vlaneseq
      %v552 = vshrl.u32 %v551, 7
      %v553 = vsub.s32 %v550, %v552
      %v554 = vrot.slane %v546, %v553
      %v556 = vunpack.c.l.s4 1934713408
      %v557 = vunpack.c.0.s8 %v556
      %v558 = vlaneseq
      %v559 = vshrl.u32 %v558, 7
      %v560 = vsub.s32 %v557, %v559
      %v561 = vrot.slane %v547, %v560
      %v562 = vcombine.low %v497, %v513
      %v563 = vcombine.high %v497, %v513
      %v565 = vunpack.c.l.s4 1934713408
      %v566 = vunpack.c.0.s8 %v565
      %v567 = vlaneseq
      %v568 = vshrl.u32 %v567, 7
      %v569 = vsub.s32 %v566, %v568
      %v570 = vrot.slane %v562, %v569
      %v572 = vunpack.c.l.s4 1934713408
      %v573 = vunpack.c.0.s8 %v572
      %v574 = vlaneseq
      %v575 = vshrl.u32 %v574, 7
      %v576 = vsub.s32 %v573, %v575
      %v577 = vrot.slane %v563, %v576
      %v578 = vcombine.low %v522, %v538
      %v579 = vcombine.high %v522, %v538
      %v581 = vunpack.c.l.s4 1934713408
      %v582 = vunpack.c.0.s8 %v581
      %v583 = vlaneseq
      %v584 = vshrl.u32 %v583, 7
      %v585 = vsub.s32 %v582, %v584
      %v586 = vrot.slane %v578, %v585
      %v588 = vunpack.c.l.s4 1934713408
      %v589 = vunpack.c.0.s8 %v588
      %v590 = vlaneseq
      %v591 = vshrl.u32 %v590, 7
      %v592 = vsub.s32 %v589, %v591
      %v593 = vrot.slane %v579, %v592
      %v594 = vcombine.low %v529, %v545
      %v595 = vcombine.high %v529, %v545
      %v597 = vunpack.c.l.s4 1934713408
      %v598 = vunpack.c.0.s8 %v597
      %v599 = vlaneseq
      %v600 = vshrl.u32 %v599, 7
      %v601 = vsub.s32 %v598, %v600
      %v602 = vrot.slane %v594, %v601
      %v604 = vunpack.c.l.s4 1934713408
      %v605 = vunpack.c.0.s8 %v604
      %v606 = vlaneseq
      %v607 = vshrl.u32 %v606, 7
      %v608 = vsub.s32 %v605, %v607
      %v609 = vrot.slane %v595, %v608
      %v610 = vcombine.low %v554, %v586
      %v611 = vcombine.high %v554, %v586
      %v612 = vcombine.low %v561, %v593
      %v613 = vcombine.high %v561, %v593
      %v614 = vcombine.low %v570, %v602
      %v615 = vcombine.high %v570, %v602
      %v616 = vcombine.low %v577, %v609
      %v617 = vcombine.high %v577, %v609
      %619 = vrot.lane.b32.xlu0 %v611, 4
      %v620 = vpop.permute.xlu0 %619
      %623 = vrot.lane.b32.xlu0 %v612, 8
      %v624 = vpop.permute.xlu0 %623
      %627 = vrot.lane.b32.xlu0 %v613, 12
      %v628 = vpop.permute.xlu0 %627
      %631 = vrot.lane.b32.xlu0 %v614, 16
      %v632 = vpop.permute.xlu0 %631
      %635 = vrot.lane.b32.xlu0 %v615, 20
      %v636 = vpop.permute.xlu0 %635
      %639 = vrot.lane.b32.xlu0 %v616, 24
      %v640 = vpop.permute.xlu0 %639
      %643 = vrot.lane.b32.xlu0 %v617, 28
      %v644 = vpop.permute.xlu0 %643
      %v646 = vsel %vm426, %v610, %v620
      %v647 = vsel %vm380, %v646, %v624
      %vm648 = vcmask 97280
      %v649 = vsel %vm648, %v647, %v628
      %vm650 = vcmask 130048
      %v651 = vsel %vm650, %v649, %v632
      %vm652 = vcmask 162816
      %v653 = vsel %vm652, %v651, %v636
      %vm654 = vcmask 195584
      %v655 = vsel %vm654, %v653, %v640
      %vm656 = vcmask 228352
      %v657 = vsel %vm656, %v655, %v644
      %v659 = vsel %vm380, %v480, 0
      %v662 = vsel %vm380, %v481, 0
      %664 = vmatprep.subr.mxu0 0.0
      %665 = vmatpush1.msra.mxu0 %v657
      %666 = vmatprep.subr.mxu0 0.0
      %667 = vmatpush1.msra.mxu0 0.0
      %668 = vmatprep.subr.mxu0 0.0
      %669 = vmatpush1.msra.mxu0 0.0
      %670 = vmatprep.subr.mxu0 0.0
      %671 = vmatpush1.msra.mxu0 0.0
      %672 = vmatprep.subr.mxu0 0.0
      %673 = vmatpush1.msra.mxu0 0.0
      %674 = vmatprep.subr.mxu0 0.0
      %675 = vmatpush1.msra.mxu0 0.0
      %676 = vmatprep.subr.mxu0 0.0
      %677 = vmatpush1.msra.mxu0 0.0
      %678 = vmatprep.subr.mxu0 0.0
      %679 = vmatpush1.msra.mxu0 0.0
      %680 = vmatprep.subr.mxu0 0.0
      %681 = vmatpush1.msra.mxu0 0.0
      %682 = vmatprep.subr.mxu0 0.0
      %683 = vmatpush1.msra.mxu0 0.0
      %684 = vmatprep.subr.mxu0 0.0
      %685 = vmatpush1.msra.mxu0 0.0
      %686 = vmatprep.subr.mxu0 0.0
      %687 = vmatpush1.msra.mxu0 0.0
      %688 = vmatprep.subr.mxu0 0.0
      %689 = vmatpush1.msra.mxu0 0.0
      %690 = vmatprep.subr.mxu0 0.0
      %691 = vmatpush1.msra.mxu0 0.0
      %692 = vmatprep.subr.mxu0 0.0
      %693 = vmatpush1.msra.mxu0 0.0
      %694 = vmatprep.subr.mxu0 0.0
      %695 = vmatpush1.msra.mxu0 0.0
      %696 = vmatprep.subr.mxu0 0.0
      %697 = vmatpush1.msra.mxu0 0.0
      %698 = vmatprep.subr.mxu0 0.0
      %699 = vmatpush1.msra.mxu0 0.0
      %700 = vmatprep.subr.mxu0 0.0
      %701 = vmatpush1.msra.mxu0 0.0
      %702 = vmatprep.subr.mxu0 0.0
      %703 = vmatpush1.msra.mxu0 0.0
      %704 = vmatprep.subr.mxu0 0.0
      %705 = vmatpush1.msra.mxu0 0.0
      %706 = vmatprep.subr.mxu0 0.0
      %707 = vmatpush1.msra.mxu0 0.0
      %708 = vmatprep.subr.mxu0 0.0
      %709 = vmatpush1.msra.mxu0 0.0
      %710 = vmatprep.subr.mxu0 0.0
      %711 = vmatpush1.msra.mxu0 0.0
      %712 = vmatprep.subr.mxu0 0.0
      %713 = vmatpush1.msra.mxu0 0.0
      %714 = vmatprep.subr.mxu0 0.0
      %715 = vmatpush1.msra.mxu0 0.0
      %716 = vmatprep.subr.mxu0 0.0
      %717 = vmatpush1.msra.mxu0 0.0
      %718 = vmatprep.subr.mxu0 0.0
      %719 = vmatpush1.msra.mxu0 0.0
      %720 = vmatprep.subr.mxu0 0.0
      %721 = vmatpush1.msra.mxu0 0.0
      %722 = vmatprep.subr.mxu0 0.0
      %723 = vmatpush1.msra.mxu0 0.0
      %724 = vmatprep.subr.mxu0 0.0
      %725 = vmatpush1.msra.mxu0 0.0
      %726 = vmatprep.subr.mxu0 0.0
      %727 = vmatpush1.msra.mxu0 0.0
      %728 = vmatprep.mubr.f32.mxu0 0.0
      %729 = vmatmul.mubr.f32.gmra.mrb[0].mxu0 %v659
      %v730 = vpop.f32.mrb[0].mxu0
      %v731 = vadd.f32 0.0, %v730
      %v732 = vpop.f32.mrb[0].mxu0
      %733 = vmatprep.mubr.f32.mxu0 0.0
      %734 = vmatmul.mubr.f32.gmra.mrb[0].mxu0 %v662
      %v735 = vpop.f32.mrb[0].mxu0
      %v736 = vadd.f32 0.0, %v735
      %v737 = vpop.f32.mrb[0].mxu0
      %738 = vdwg.mxu0
      %741 = vrot.lane.b32.xlu0 %v731, 124
      %v742 = vpop.permute.xlu0 %741
      %743 = vrot.lane.b32.xlu0 %v736, 124
      %v744 = vpop.permute.xlu0 %743
      %747 = vrot.lane.b32.xlu0 %v731, 120
      %v748 = vpop.permute.xlu0 %747
      %749 = vrot.lane.b32.xlu0 %v736, 120
      %v750 = vpop.permute.xlu0 %749
      %753 = vrot.lane.b32.xlu0 %v731, 116
      %v754 = vpop.permute.xlu0 %753
      %755 = vrot.lane.b32.xlu0 %v736, 116
      %v756 = vpop.permute.xlu0 %755
      %759 = vrot.lane.b32.xlu0 %v731, 112
      %v760 = vpop.permute.xlu0 %759
      %761 = vrot.lane.b32.xlu0 %v736, 112
      %v762 = vpop.permute.xlu0 %761
      %765 = vrot.lane.b32.xlu0 %v731, 108
      %v766 = vpop.permute.xlu0 %765
      %767 = vrot.lane.b32.xlu0 %v736, 108
      %v768 = vpop.permute.xlu0 %767
      %771 = vrot.lane.b32.xlu0 %v731, 104
      %v772 = vpop.permute.xlu0 %771
      %773 = vrot.lane.b32.xlu0 %v736, 104
      %v774 = vpop.permute.xlu0 %773
      %777 = vrot.lane.b32.xlu0 %v731, 100
      %v778 = vpop.permute.xlu0 %777
      %779 = vrot.lane.b32.xlu0 %v736, 100
      %v780 = vpop.permute.xlu0 %779
      %v783 = vcombine.low %v731, %v748
      %v784 = vcombine.high %v731, %v748
      %v786 = vunpack.c.l.s4 1983009808
      %v787 = vunpack.c.0.s8 %v786
      %v788 = vlaneseq
      %v789 = vshrl.u32 %v788, 7
      %v790 = vsub.s32 %v787, %v789
      %v791 = vrot.slane %v783, %v790
      %v793 = vunpack.c.l.s4 1983009808
      %v794 = vunpack.c.0.s8 %v793
      %v795 = vlaneseq
      %v796 = vshrl.u32 %v795, 7
      %v797 = vsub.s32 %v794, %v796
      %v798 = vrot.slane %v784, %v797
      %v799 = vcombine.low %v742, %v754
      %v800 = vcombine.high %v742, %v754
      %v802 = vunpack.c.l.s4 1983009808
      %v803 = vunpack.c.0.s8 %v802
      %v804 = vlaneseq
      %v805 = vshrl.u32 %v804, 7
      %v806 = vsub.s32 %v803, %v805
      %v807 = vrot.slane %v799, %v806
      %v809 = vunpack.c.l.s4 1983009808
      %v810 = vunpack.c.0.s8 %v809
      %v811 = vlaneseq
      %v812 = vshrl.u32 %v811, 7
      %v813 = vsub.s32 %v810, %v812
      %v814 = vrot.slane %v800, %v813
      %v815 = vcombine.low %v760, %v772
      %v816 = vcombine.high %v760, %v772
      %v818 = vunpack.c.l.s4 1983009808
      %v819 = vunpack.c.0.s8 %v818
      %v820 = vlaneseq
      %v821 = vshrl.u32 %v820, 7
      %v822 = vsub.s32 %v819, %v821
      %v823 = vrot.slane %v815, %v822
      %v825 = vunpack.c.l.s4 1983009808
      %v826 = vunpack.c.0.s8 %v825
      %v827 = vlaneseq
      %v828 = vshrl.u32 %v827, 7
      %v829 = vsub.s32 %v826, %v828
      %v830 = vrot.slane %v816, %v829
      %v831 = vcombine.low %v766, %v778
      %v832 = vcombine.high %v766, %v778
      %v834 = vunpack.c.l.s4 1983009808
      %v835 = vunpack.c.0.s8 %v834
      %v836 = vlaneseq
      %v837 = vshrl.u32 %v836, 7
      %v838 = vsub.s32 %v835, %v837
      %v839 = vrot.slane %v831, %v838
      %v841 = vunpack.c.l.s4 1983009808
      %v842 = vunpack.c.0.s8 %v841
      %v843 = vlaneseq
      %v844 = vshrl.u32 %v843, 7
      %v845 = vsub.s32 %v842, %v844
      %v846 = vrot.slane %v832, %v845
      %v847 = vcombine.low %v791, %v807
      %v848 = vcombine.high %v791, %v807
      %v850 = vunpack.c.l.s4 1934713408
      %v851 = vunpack.c.0.s8 %v850
      %v852 = vlaneseq
      %v853 = vshrl.u32 %v852, 7
      %v854 = vsub.s32 %v851, %v853
      %v855 = vrot.slane %v847, %v854
      %v857 = vunpack.c.l.s4 1934713408
      %v858 = vunpack.c.0.s8 %v857
      %v859 = vlaneseq
      %v860 = vshrl.u32 %v859, 7
      %v861 = vsub.s32 %v858, %v860
      %v862 = vrot.slane %v848, %v861
      %v863 = vcombine.low %v798, %v814
      %v864 = vcombine.high %v798, %v814
      %v866 = vunpack.c.l.s4 1934713408
      %v867 = vunpack.c.0.s8 %v866
      %v868 = vlaneseq
      %v869 = vshrl.u32 %v868, 7
      %v870 = vsub.s32 %v867, %v869
      %v871 = vrot.slane %v863, %v870
      %v873 = vunpack.c.l.s4 1934713408
      %v874 = vunpack.c.0.s8 %v873
      %v875 = vlaneseq
      %v876 = vshrl.u32 %v875, 7
      %v877 = vsub.s32 %v874, %v876
      %v878 = vrot.slane %v864, %v877
      %v879 = vcombine.low %v823, %v839
      %v880 = vcombine.high %v823, %v839
      %v882 = vunpack.c.l.s4 1934713408
      %v883 = vunpack.c.0.s8 %v882
      %v884 = vlaneseq
      %v885 = vshrl.u32 %v884, 7
      %v886 = vsub.s32 %v883, %v885
      %v887 = vrot.slane %v879, %v886
      %v889 = vunpack.c.l.s4 1934713408
      %v890 = vunpack.c.0.s8 %v889
      %v891 = vlaneseq
      %v892 = vshrl.u32 %v891, 7
      %v893 = vsub.s32 %v890, %v892
      %v894 = vrot.slane %v880, %v893
      %v895 = vcombine.low %v830, %v846
      %v896 = vcombine.high %v830, %v846
      %v898 = vunpack.c.l.s4 1934713408
      %v899 = vunpack.c.0.s8 %v898
      %v900 = vlaneseq
      %v901 = vshrl.u32 %v900, 7
      %v902 = vsub.s32 %v899, %v901
      %v903 = vrot.slane %v895, %v902
      %v905 = vunpack.c.l.s4 1934713408
      %v906 = vunpack.c.0.s8 %v905
      %v907 = vlaneseq
      %v908 = vshrl.u32 %v907, 7
      %v909 = vsub.s32 %v906, %v908
      %v910 = vrot.slane %v896, %v909
      %v911 = vcombine.low %v855, %v887
      %v912 = vcombine.high %v855, %v887
      %v913 = vcombine.low %v862, %v894
      %v914 = vcombine.high %v862, %v894
      %v915 = vcombine.low %v871, %v903
      %v916 = vcombine.high %v871, %v903
      %v917 = vcombine.low %v878, %v910
      %v918 = vcombine.high %v878, %v910
      %v919 = vcombine.low %v736, %v750
      %v920 = vcombine.high %v736, %v750
      %v922 = vunpack.c.l.s4 1983009808
      %v923 = vunpack.c.0.s8 %v922
      %v924 = vlaneseq
      %v925 = vshrl.u32 %v924, 7
      %v926 = vsub.s32 %v923, %v925
      %v927 = vrot.slane %v919, %v926
      %v929 = vunpack.c.l.s4 1983009808
      %v930 = vunpack.c.0.s8 %v929
      %v931 = vlaneseq
      %v932 = vshrl.u32 %v931, 7
      %v933 = vsub.s32 %v930, %v932
      %v934 = vrot.slane %v920, %v933
      %v935 = vcombine.low %v744, %v756
      %v936 = vcombine.high %v744, %v756
      %v938 = vunpack.c.l.s4 1983009808
      %v939 = vunpack.c.0.s8 %v938
      %v940 = vlaneseq
      %v941 = vshrl.u32 %v940, 7
      %v942 = vsub.s32 %v939, %v941
      %v943 = vrot.slane %v935, %v942
      %v945 = vunpack.c.l.s4 1983009808
      %v946 = vunpack.c.0.s8 %v945
      %v947 = vlaneseq
      %v948 = vshrl.u32 %v947, 7
      %v949 = vsub.s32 %v946, %v948
      %v950 = vrot.slane %v936, %v949
      %v951 = vcombine.low %v762, %v774
      %v952 = vcombine.high %v762, %v774
      %v954 = vunpack.c.l.s4 1983009808
      %v955 = vunpack.c.0.s8 %v954
      %v956 = vlaneseq
      %v957 = vshrl.u32 %v956, 7
      %v958 = vsub.s32 %v955, %v957
      %v959 = vrot.slane %v951, %v958
      %v961 = vunpack.c.l.s4 1983009808
      %v962 = vunpack.c.0.s8 %v961
      %v963 = vlaneseq
      %v964 = vshrl.u32 %v963, 7
      %v965 = vsub.s32 %v962, %v964
      %v966 = vrot.slane %v952, %v965
      %v967 = vcombine.low %v768, %v780
      %v968 = vcombine.high %v768, %v780
      %v970 = vunpack.c.l.s4 1983009808
      %v971 = vunpack.c.0.s8 %v970
      %v972 = vlaneseq
      %v973 = vshrl.u32 %v972, 7
      %v974 = vsub.s32 %v971, %v973
      %v975 = vrot.slane %v967, %v974
      %v977 = vunpack.c.l.s4 1983009808
      %v978 = vunpack.c.0.s8 %v977
      %v979 = vlaneseq
      %v980 = vshrl.u32 %v979, 7
      %v981 = vsub.s32 %v978, %v980
      %v982 = vrot.slane %v968, %v981
      %v983 = vcombine.low %v927, %v943
      %v984 = vcombine.high %v927, %v943
      %v986 = vunpack.c.l.s4 1934713408
      %v987 = vunpack.c.0.s8 %v986
      %v988 = vlaneseq
      %v989 = vshrl.u32 %v988, 7
      %v990 = vsub.s32 %v987, %v989
      %v991 = vrot.slane %v983, %v990
      %v993 = vunpack.c.l.s4 1934713408
      %v994 = vunpack.c.0.s8 %v993
      %v995 = vlaneseq
      %v996 = vshrl.u32 %v995, 7
      %v997 = vsub.s32 %v994, %v996
      %v998 = vrot.slane %v984, %v997
      %v999 = vcombine.low %v934, %v950
      %v1000 = vcombine.high %v934, %v950
      %v1002 = vunpack.c.l.s4 1934713408
      %v1003 = vunpack.c.0.s8 %v1002
      %v1004 = vlaneseq
      %v1005 = vshrl.u32 %v1004, 7
      %v1006 = vsub.s32 %v1003, %v1005
      %v1007 = vrot.slane %v999, %v1006
      %v1009 = vunpack.c.l.s4 1934713408
      %v1010 = vunpack.c.0.s8 %v1009
      %v1011 = vlaneseq
      %v1012 = vshrl.u32 %v1011, 7
      %v1013 = vsub.s32 %v1010, %v1012
      %v1014 = vrot.slane %v1000, %v1013
      %v1015 = vcombine.low %v959, %v975
      %v1016 = vcombine.high %v959, %v975
      %v1018 = vunpack.c.l.s4 1934713408
      %v1019 = vunpack.c.0.s8 %v1018
      %v1020 = vlaneseq
      %v1021 = vshrl.u32 %v1020, 7
      %v1022 = vsub.s32 %v1019, %v1021
      %v1023 = vrot.slane %v1015, %v1022
      %v1025 = vunpack.c.l.s4 1934713408
      %v1026 = vunpack.c.0.s8 %v1025
      %v1027 = vlaneseq
      %v1028 = vshrl.u32 %v1027, 7
      %v1029 = vsub.s32 %v1026, %v1028
      %v1030 = vrot.slane %v1016, %v1029
      %v1031 = vcombine.low %v966, %v982
      %v1032 = vcombine.high %v966, %v982
      %v1034 = vunpack.c.l.s4 1934713408
      %v1035 = vunpack.c.0.s8 %v1034
      %v1036 = vlaneseq
      %v1037 = vshrl.u32 %v1036, 7
      %v1038 = vsub.s32 %v1035, %v1037
      %v1039 = vrot.slane %v1031, %v1038
      %v1041 = vunpack.c.l.s4 1934713408
      %v1042 = vunpack.c.0.s8 %v1041
      %v1043 = vlaneseq
      %v1044 = vshrl.u32 %v1043, 7
      %v1045 = vsub.s32 %v1042, %v1044
      %v1046 = vrot.slane %v1032, %v1045
      %v1047 = vcombine.low %v991, %v1023
      %v1048 = vcombine.high %v991, %v1023
      %v1049 = vcombine.low %v998, %v1030
      %v1050 = vcombine.high %v998, %v1030
      %v1051 = vcombine.low %v1007, %v1039
      %v1052 = vcombine.high %v1007, %v1039
      %v1053 = vcombine.low %v1014, %v1046
      %v1054 = vcombine.high %v1014, %v1046
      %v1055 = vld [vmem:[%s3] sm:$0xff]
      %v1056 = vld [vmem:[%s3 + $0x8] sm:$0xff]
      %v1058 = vsel %vm380, %v1055, 0
      %v1061 = vsel %vm380, %v1056, 0
      %1063 = vmatprep.subr.mxu0 0.0
      %1064 = vmatpush1.msra.mxu0 %v911
      %1065 = vmatprep.subr.mxu0 0.0
      %1066 = vmatpush1.msra.mxu0 0.0
      %1067 = vmatprep.subr.mxu0 0.0
      %1068 = vmatpush1.msra.mxu0 0.0
      %1069 = vmatprep.subr.mxu0 0.0
      %1070 = vmatpush1.msra.mxu0 0.0
      %1071 = vmatprep.subr.mxu0 0.0
      %1072 = vmatpush1.msra.mxu0 0.0
      %1073 = vmatprep.subr.mxu0 0.0
      %1074 = vmatpush1.msra.mxu0 0.0
      %1075 = vmatprep.subr.mxu0 0.0
      %1076 = vmatpush1.msra.mxu0 0.0
      %1077 = vmatprep.subr.mxu0 0.0
      %1078 = vmatpush1.msra.mxu0 0.0
      %1079 = vmatprep.subr.mxu0 0.0
      %1080 = vmatpush1.msra.mxu0 0.0
      %1081 = vmatprep.subr.mxu0 0.0
      %1082 = vmatpush1.msra.mxu0 0.0
      %1083 = vmatprep.subr.mxu0 0.0
      %1084 = vmatpush1.msra.mxu0 0.0
      %1085 = vmatprep.subr.mxu0 0.0
      %1086 = vmatpush1.msra.mxu0 0.0
      %1087 = vmatprep.subr.mxu0 0.0
      %1088 = vmatpush1.msra.mxu0 0.0
      %1089 = vmatprep.subr.mxu0 0.0
      %1090 = vmatpush1.msra.mxu0 0.0
      %1091 = vmatprep.subr.mxu0 0.0
      %1092 = vmatpush1.msra.mxu0 0.0
      %1093 = vmatprep.subr.mxu0 0.0
      %1094 = vmatpush1.msra.mxu0 0.0
      %1095 = vmatprep.subr.mxu0 0.0
      %1096 = vmatpush1.msra.mxu0 0.0
      %1097 = vmatprep.subr.mxu0 0.0
      %1098 = vmatpush1.msra.mxu0 0.0
      %1099 = vmatprep.subr.mxu0 0.0
      %1100 = vmatpush1.msra.mxu0 0.0
      %1101 = vmatprep.subr.mxu0 0.0
      %1102 = vmatpush1.msra.mxu0 0.0
      %1103 = vmatprep.subr.mxu0 0.0
      %1104 = vmatpush1.msra.mxu0 0.0
      %1105 = vmatprep.subr.mxu0 0.0
      %1106 = vmatpush1.msra.mxu0 0.0
      %1107 = vmatprep.subr.mxu0 0.0
      %1108 = vmatpush1.msra.mxu0 0.0
      %1109 = vmatprep.subr.mxu0 0.0
      %1110 = vmatpush1.msra.mxu0 0.0
      %1111 = vmatprep.subr.mxu0 0.0
      %1112 = vmatpush1.msra.mxu0 0.0
      %1113 = vmatprep.subr.mxu0 0.0
      %1114 = vmatpush1.msra.mxu0 0.0
      %1115 = vmatprep.subr.mxu0 0.0
      %1116 = vmatpush1.msra.mxu0 0.0
      %1117 = vmatprep.subr.mxu0 0.0
      %1118 = vmatpush1.msra.mxu0 0.0
      %1119 = vmatprep.subr.mxu0 0.0
      %1120 = vmatpush1.msra.mxu0 0.0
      %1121 = vmatprep.subr.mxu0 0.0
      %1122 = vmatpush1.msra.mxu0 0.0
      %1123 = vmatprep.subr.mxu0 0.0
      %1124 = vmatpush1.msra.mxu0 0.0
      %1125 = vmatprep.subr.mxu0 0.0
      %1126 = vmatpush1.msra.mxu0 0.0
      %1127 = vmatprep.mubr.f32.mxu0 0.0
      %1128 = vmatmul.mubr.f32.gmra.mrb[0].mxu0 %v1058
      %v1129 = vpop.f32.mrb[0].mxu0
      %v1130 = vadd.f32 0.0, %v1129
      %v1131 = vpop.f32.mrb[0].mxu0
      %1132 = vmatprep.mubr.f32.mxu0 0.0
      %1133 = vmatmul.mubr.f32.gmra.mrb[0].mxu0 %v1061
      %v1134 = vpop.f32.mrb[0].mxu0
      %v1135 = vadd.f32 0.0, %v1134
      %v1136 = vpop.f32.mrb[0].mxu0
      %1137 = vdwg.mxu0
      %1138 = vmatprep.subr.mxu0 0.0
      %1139 = vmatpush1.msra.mxu0 %v912
      %1140 = vmatprep.subr.mxu0 0.0
      %1141 = vmatpush1.msra.mxu0 0.0
      %1142 = vmatprep.subr.mxu0 0.0
      %1143 = vmatpush1.msra.mxu0 0.0
      %1144 = vmatprep.subr.mxu0 0.0
      %1145 = vmatpush1.msra.mxu0 0.0
      %1146 = vmatprep.subr.mxu0 0.0
      %1147 = vmatpush1.msra.mxu0 0.0
      %1148 = vmatprep.subr.mxu0 0.0
      %1149 = vmatpush1.msra.mxu0 0.0
      %1150 = vmatprep.subr.mxu0 0.0
      %1151 = vmatpush1.msra.mxu0 0.0
      %1152 = vmatprep.subr.mxu0 0.0
      %1153 = vmatpush1.msra.mxu0 0.0
      %1154 = vmatprep.subr.mxu0 0.0
      %1155 = vmatpush1.msra.mxu0 0.0
      %1156 = vmatprep.subr.mxu0 0.0
      %1157 = vmatpush1.msra.mxu0 0.0
      %1158 = vmatprep.subr.mxu0 0.0
      %1159 = vmatpush1.msra.mxu0 0.0
      %1160 = vmatprep.subr.mxu0 0.0
      %1161 = vmatpush1.msra.mxu0 0.0
      %1162 = vmatprep.subr.mxu0 0.0
      %1163 = vmatpush1.msra.mxu0 0.0
      %1164 = vmatprep.subr.mxu0 0.0
      %1165 = vmatpush1.msra.mxu0 0.0
      %1166 = vmatprep.subr.mxu0 0.0
      %1167 = vmatpush1.msra.mxu0 0.0
      %1168 = vmatprep.subr.mxu0 0.0
      %1169 = vmatpush1.msra.mxu0 0.0
      %1170 = vmatprep.subr.mxu0 0.0
      %1171 = vmatpush1.msra.mxu0 0.0
      %1172 = vmatprep.subr.mxu0 0.0
      %1173 = vmatpush1.msra.mxu0 0.0
      %1174 = vmatprep.subr.mxu0 0.0
      %1175 = vmatpush1.msra.mxu0 0.0
      %1176 = vmatprep.subr.mxu0 0.0
      %1177 = vmatpush1.msra.mxu0 0.0
      %1178 = vmatprep.subr.mxu0 0.0
      %1179 = vmatpush1.msra.mxu0 0.0
      %1180 = vmatprep.subr.mxu0 0.0
      %1181 = vmatpush1.msra.mxu0 0.0
      %1182 = vmatprep.subr.mxu0 0.0
      %1183 = vmatpush1.msra.mxu0 0.0
      %1184 = vmatprep.subr.mxu0 0.0
      %1185 = vmatpush1.msra.mxu0 0.0
      %1186 = vmatprep.subr.mxu0 0.0
      %1187 = vmatpush1.msra.mxu0 0.0
      %1188 = vmatprep.subr.mxu0 0.0
      %1189 = vmatpush1.msra.mxu0 0.0
      %1190 = vmatprep.subr.mxu0 0.0
      %1191 = vmatpush1.msra.mxu0 0.0
      %1192 = vmatprep.subr.mxu0 0.0
      %1193 = vmatpush1.msra.mxu0 0.0
      %1194 = vmatprep.subr.mxu0 0.0
      %1195 = vmatpush1.msra.mxu0 0.0
      %1196 = vmatprep.subr.mxu0 0.0
      %1197 = vmatpush1.msra.mxu0 0.0
      %1198 = vmatprep.subr.mxu0 0.0
      %1199 = vmatpush1.msra.mxu0 0.0
      %1200 = vmatprep.subr.mxu0 0.0
      %1201 = vmatpush1.msra.mxu0 0.0
      %1202 = vmatprep.mubr.f32.mxu0 0.0
      %1203 = vmatmul.mubr.f32.gmra.mrb[0].mxu0 %v1058
      %v1204 = vpop.f32.mrb[0].mxu0
      %v1205 = vadd.f32 0.0, %v1204
      %v1206 = vpop.f32.mrb[0].mxu0
      %1207 = vmatprep.mubr.f32.mxu0 0.0
      %1208 = vmatmul.mubr.f32.gmra.mrb[0].mxu0 %v1061
      %v1209 = vpop.f32.mrb[0].mxu0
      %v1210 = vadd.f32 0.0, %v1209
      %v1211 = vpop.f32.mrb[0].mxu0
      %1212 = vdwg.mxu0
      %1213 = vmatprep.subr.mxu0 0.0
      %1214 = vmatpush1.msra.mxu0 %v913
      %1215 = vmatprep.subr.mxu0 0.0
      %1216 = vmatpush1.msra.mxu0 0.0
      %1217 = vmatprep.subr.mxu0 0.0
      %1218 = vmatpush1.msra.mxu0 0.0
      %1219 = vmatprep.subr.mxu0 0.0
      %1220 = vmatpush1.msra.mxu0 0.0
      %1221 = vmatprep.subr.mxu0 0.0
      %1222 = vmatpush1.msra.mxu0 0.0
      %1223 = vmatprep.subr.mxu0 0.0
      %1224 = vmatpush1.msra.mxu0 0.0
      %1225 = vmatprep.subr.mxu0 0.0
      %1226 = vmatpush1.msra.mxu0 0.0
      %1227 = vmatprep.subr.mxu0 0.0
      %1228 = vmatpush1.msra.mxu0 0.0
      %1229 = vmatprep.subr.mxu0 0.0
      %1230 = vmatpush1.msra.mxu0 0.0
      %1231 = vmatprep.subr.mxu0 0.0
      %1232 = vmatpush1.msra.mxu0 0.0
      %1233 = vmatprep.subr.mxu0 0.0
      %1234 = vmatpush1.msra.mxu0 0.0
      %1235 = vmatprep.subr.mxu0 0.0
      %1236 = vmatpush1.msra.mxu0 0.0
      %1237 = vmatprep.subr.mxu0 0.0
      %1238 = vmatpush1.msra.mxu0 0.0
      %1239 = vmatprep.subr.mxu0 0.0
      %1240 = vmatpush1.msra.mxu0 0.0
      %1241 = vmatprep.subr.mxu0 0.0
      %1242 = vmatpush1.msra.mxu0 0.0
      %1243 = vmatprep.subr.mxu0 0.0
      %1244 = vmatpush1.msra.mxu0 0.0
      %1245 = vmatprep.subr.mxu0 0.0
      %1246 = vmatpush1.msra.mxu0 0.0
      %1247 = vmatprep.subr.mxu0 0.0
      %1248 = vmatpush1.msra.mxu0 0.0
      %1249 = vmatprep.subr.mxu0 0.0
      %1250 = vmatpush1.msra.mxu0 0.0
      %1251 = vmatprep.subr.mxu0 0.0
      %1252 = vmatpush1.msra.mxu0 0.0
      %1253 = vmatprep.subr.mxu0 0.0
      %1254 = vmatpush1.msra.mxu0 0.0
      %1255 = vmatprep.subr.mxu0 0.0
      %1256 = vmatpush1.msra.mxu0 0.0
      %1257 = vmatprep.subr.mxu0 0.0
      %1258 = vmatpush1.msra.mxu0 0.0
      %1259 = vmatprep.subr.mxu0 0.0
      %1260 = vmatpush1.msra.mxu0 0.0
      %1261 = vmatprep.subr.mxu0 0.0
      %1262 = vmatpush1.msra.mxu0 0.0
      %1263 = vmatprep.subr.mxu0 0.0
      %1264 = vmatpush1.msra.mxu0 0.0
      %1265 = vmatprep.subr.mxu0 0.0
      %1266 = vmatpush1.msra.mxu0 0.0
      %1267 = vmatprep.subr.mxu0 0.0
      %1268 = vmatpush1.msra.mxu0 0.0
      %1269 = vmatprep.subr.mxu0 0.0
      %1270 = vmatpush1.msra.mxu0 0.0
      %1271 = vmatprep.subr.mxu0 0.0
      %1272 = vmatpush1.msra.mxu0 0.0
      %1273 = vmatprep.subr.mxu0 0.0
      %1274 = vmatpush1.msra.mxu0 0.0
      %1275 = vmatprep.subr.mxu0 0.0
      %1276 = vmatpush1.msra.mxu0 0.0
      %1277 = vmatprep.mubr.f32.mxu0 0.0
      %1278 = vmatmul.mubr.f32.gmra.mrb[0].mxu0 %v1058
      %v1279 = vpop.f32.mrb[0].mxu0
      %v1280 = vadd.f32 0.0, %v1279
      %v1281 = vpop.f32.mrb[0].mxu0
      %1282 = vmatprep.mubr.f32.mxu0 0.0
      %1283 = vmatmul.mubr.f32.gmra.mrb[0].mxu0 %v1061
      %v1284 = vpop.f32.mrb[0].mxu0
      %v1285 = vadd.f32 0.0, %v1284
      %v1286 = vpop.f32.mrb[0].mxu0
      %1287 = vdwg.mxu0
      %1288 = vmatprep.subr.mxu0 0.0
      %1289 = vmatpush1.msra.mxu0 %v914
      %1290 = vmatprep.subr.mxu0 0.0
      %1291 = vmatpush1.msra.mxu0 0.0
      %1292 = vmatprep.subr.mxu0 0.0
      %1293 = vmatpush1.msra.mxu0 0.0
      %1294 = vmatprep.subr.mxu0 0.0
      %1295 = vmatpush1.msra.mxu0 0.0
      %1296 = vmatprep.subr.mxu0 0.0
      %1297 = vmatpush1.msra.mxu0 0.0
      %1298 = vmatprep.subr.mxu0 0.0
      %1299 = vmatpush1.msra.mxu0 0.0
      %1300 = vmatprep.subr.mxu0 0.0
      %1301 = vmatpush1.msra.mxu0 0.0
      %1302 = vmatprep.subr.mxu0 0.0
      %1303 = vmatpush1.msra.mxu0 0.0
      %1304 = vmatprep.subr.mxu0 0.0
      %1305 = vmatpush1.msra.mxu0 0.0
      %1306 = vmatprep.subr.mxu0 0.0
      %1307 = vmatpush1.msra.mxu0 0.0
      %1308 = vmatprep.subr.mxu0 0.0
      %1309 = vmatpush1.msra.mxu0 0.0
      %1310 = vmatprep.subr.mxu0 0.0
      %1311 = vmatpush1.msra.mxu0 0.0
      %1312 = vmatprep.subr.mxu0 0.0
      %1313 = vmatpush1.msra.mxu0 0.0
      %1314 = vmatprep.subr.mxu0 0.0
      %1315 = vmatpush1.msra.mxu0 0.0
      %1316 = vmatprep.subr.mxu0 0.0
      %1317 = vmatpush1.msra.mxu0 0.0
      %1318 = vmatprep.subr.mxu0 0.0
      %1319 = vmatpush1.msra.mxu0 0.0
      %1320 = vmatprep.subr.mxu0 0.0
      %1321 = vmatpush1.msra.mxu0 0.0
      %1322 = vmatprep.subr.mxu0 0.0
      %1323 = vmatpush1.msra.mxu0 0.0
      %1324 = vmatprep.subr.mxu0 0.0
      %1325 = vmatpush1.msra.mxu0 0.0
      %1326 = vmatprep.subr.mxu0 0.0
      %1327 = vmatpush1.msra.mxu0 0.0
      %1328 = vmatprep.subr.mxu0 0.0
      %1329 = vmatpush1.msra.mxu0 0.0
      %1330 = vmatprep.subr.mxu0 0.0
      %1331 = vmatpush1.msra.mxu0 0.0
      %1332 = vmatprep.subr.mxu0 0.0
      %1333 = vmatpush1.msra.mxu0 0.0
      %1334 = vmatprep.subr.mxu0 0.0
      %1335 = vmatpush1.msra.mxu0 0.0
      %1336 = vmatprep.subr.mxu0 0.0
      %1337 = vmatpush1.msra.mxu0 0.0
      %1338 = vmatprep.subr.mxu0 0.0
      %1339 = vmatpush1.msra.mxu0 0.0
      %1340 = vmatprep.subr.mxu0 0.0
      %1341 = vmatpush1.msra.mxu0 0.0
      %1342 = vmatprep.subr.mxu0 0.0
      %1343 = vmatpush1.msra.mxu0 0.0
      %1344 = vmatprep.subr.mxu0 0.0
      %1345 = vmatpush1.msra.mxu0 0.0
      %1346 = vmatprep.subr.mxu0 0.0
      %1347 = vmatpush1.msra.mxu0 0.0
      %1348 = vmatprep.subr.mxu0 0.0
      %1349 = vmatpush1.msra.mxu0 0.0
      %1350 = vmatprep.subr.mxu0 0.0
      %1351 = vmatpush1.msra.mxu0 0.0
      %1352 = vmatprep.mubr.f32.mxu0 0.0
      %1353 = vmatmul.mubr.f32.gmra.mrb[0].mxu0 %v1058
      %v1354 = vpop.f32.mrb[0].mxu0
      %v1355 = vadd.f32 0.0, %v1354
      %v1356 = vpop.f32.mrb[0].mxu0
      %1357 = vmatprep.mubr.f32.mxu0 0.0
      %1358 = vmatmul.mubr.f32.gmra.mrb[0].mxu0 %v1061
      %v1359 = vpop.f32.mrb[0].mxu0
      %v1360 = vadd.f32 0.0, %v1359
      %v1361 = vpop.f32.mrb[0].mxu0
      %1362 = vdwg.mxu0
      %1363 = vmatprep.subr.mxu0 0.0
      %1364 = vmatpush1.msra.mxu0 %v915
      %1365 = vmatprep.subr.mxu0 0.0
      %1366 = vmatpush1.msra.mxu0 0.0
      %1367 = vmatprep.subr.mxu0 0.0
      %1368 = vmatpush1.msra.mxu0 0.0
      %1369 = vmatprep.subr.mxu0 0.0
      %1370 = vmatpush1.msra.mxu0 0.0
      %1371 = vmatprep.subr.mxu0 0.0
      %1372 = vmatpush1.msra.mxu0 0.0
      %1373 = vmatprep.subr.mxu0 0.0
      %1374 = vmatpush1.msra.mxu0 0.0
      %1375 = vmatprep.subr.mxu0 0.0
      %1376 = vmatpush1.msra.mxu0 0.0
      %1377 = vmatprep.subr.mxu0 0.0
      %1378 = vmatpush1.msra.mxu0 0.0
      %1379 = vmatprep.subr.mxu0 0.0
      %1380 = vmatpush1.msra.mxu0 0.0
      %1381 = vmatprep.subr.mxu0 0.0
      %1382 = vmatpush1.msra.mxu0 0.0
      %1383 = vmatprep.subr.mxu0 0.0
      %1384 = vmatpush1.msra.mxu0 0.0
      %1385 = vmatprep.subr.mxu0 0.0
      %1386 = vmatpush1.msra.mxu0 0.0
      %1387 = vmatprep.subr.mxu0 0.0
      %1388 = vmatpush1.msra.mxu0 0.0
      %1389 = vmatprep.subr.mxu0 0.0
      %1390 = vmatpush1.msra.mxu0 0.0
      %1391 = vmatprep.subr.mxu0 0.0
      %1392 = vmatpush1.msra.mxu0 0.0
      %1393 = vmatprep.subr.mxu0 0.0
      %1394 = vmatpush1.msra.mxu0 0.0
      %1395 = vmatprep.subr.mxu0 0.0
      %1396 = vmatpush1.msra.mxu0 0.0
      %1397 = vmatprep.subr.mxu0 0.0
      %1398 = vmatpush1.msra.mxu0 0.0
      %1399 = vmatprep.subr.mxu0 0.0
      %1400 = vmatpush1.msra.mxu0 0.0
      %1401 = vmatprep.subr.mxu0 0.0
      %1402 = vmatpush1.msra.mxu0 0.0
      %1403 = vmatprep.subr.mxu0 0.0
      %1404 = vmatpush1.msra.mxu0 0.0
      %1405 = vmatprep.subr.mxu0 0.0
      %1406 = vmatpush1.msra.mxu0 0.0
      %1407 = vmatprep.subr.mxu0 0.0
      %1408 = vmatpush1.msra.mxu0 0.0
      %1409 = vmatprep.subr.mxu0 0.0
      %1410 = vmatpush1.msra.mxu0 0.0
      %1411 = vmatprep.subr.mxu0 0.0
      %1412 = vmatpush1.msra.mxu0 0.0
      %1413 = vmatprep.subr.mxu0 0.0
      %1414 = vmatpush1.msra.mxu0 0.0
      %1415 = vmatprep.subr.mxu0 0.0
      %1416 = vmatpush1.msra.mxu0 0.0
      %1417 = vmatprep.subr.mxu0 0.0
      %1418 = vmatpush1.msra.mxu0 0.0
      %1419 = vmatprep.subr.mxu0 0.0
      %1420 = vmatpush1.msra.mxu0 0.0
      %1421 = vmatprep.subr.mxu0 0.0
      %1422 = vmatpush1.msra.mxu0 0.0
      %1423 = vmatprep.subr.mxu0 0.0
      %1424 = vmatpush1.msra.mxu0 0.0
      %1425 = vmatprep.subr.mxu0 0.0
      %1426 = vmatpush1.msra.mxu0 0.0
      %1427 = vmatprep.mubr.f32.mxu0 0.0
      %1428 = vmatmul.mubr.f32.gmra.mrb[0].mxu0 %v1058
      %v1429 = vpop.f32.mrb[0].mxu0
      %v1430 = vadd.f32 0.0, %v1429
      %v1431 = vpop.f32.mrb[0].mxu0
      %1432 = vmatprep.mubr.f32.mxu0 0.0
      %1433 = vmatmul.mubr.f32.gmra.mrb[0].mxu0 %v1061
      %v1434 = vpop.f32.mrb[0].mxu0
      %v1435 = vadd.f32 0.0, %v1434
      %v1436 = vpop.f32.mrb[0].mxu0
      %1437 = vdwg.mxu0
      %1438 = vmatprep.subr.mxu0 0.0
      %1439 = vmatpush1.msra.mxu0 %v916
      %1440 = vmatprep.subr.mxu0 0.0
      %1441 = vmatpush1.msra.mxu0 0.0
      %1442 = vmatprep.subr.mxu0 0.0
      %1443 = vmatpush1.msra.mxu0 0.0
      %1444 = vmatprep.subr.mxu0 0.0
      %1445 = vmatpush1.msra.mxu0 0.0
      %1446 = vmatprep.subr.mxu0 0.0
      %1447 = vmatpush1.msra.mxu0 0.0
      %1448 = vmatprep.subr.mxu0 0.0
      %1449 = vmatpush1.msra.mxu0 0.0
      %1450 = vmatprep.subr.mxu0 0.0
      %1451 = vmatpush1.msra.mxu0 0.0
      %1452 = vmatprep.subr.mxu0 0.0
      %1453 = vmatpush1.msra.mxu0 0.0
      %1454 = vmatprep.subr.mxu0 0.0
      %1455 = vmatpush1.msra.mxu0 0.0
      %1456 = vmatprep.subr.mxu0 0.0
      %1457 = vmatpush1.msra.mxu0 0.0
      %1458 = vmatprep.subr.mxu0 0.0
      %1459 = vmatpush1.msra.mxu0 0.0
      %1460 = vmatprep.subr.mxu0 0.0
      %1461 = vmatpush1.msra.mxu0 0.0
      %1462 = vmatprep.subr.mxu0 0.0
      %1463 = vmatpush1.msra.mxu0 0.0
      %1464 = vmatprep.subr.mxu0 0.0
      %1465 = vmatpush1.msra.mxu0 0.0
      %1466 = vmatprep.subr.mxu0 0.0
      %1467 = vmatpush1.msra.mxu0 0.0
      %1468 = vmatprep.subr.mxu0 0.0
      %1469 = vmatpush1.msra.mxu0 0.0
      %1470 = vmatprep.subr.mxu0 0.0
      %1471 = vmatpush1.msra.mxu0 0.0
      %1472 = vmatprep.subr.mxu0 0.0
      %1473 = vmatpush1.msra.mxu0 0.0
      %1474 = vmatprep.subr.mxu0 0.0
      %1475 = vmatpush1.msra.mxu0 0.0
      %1476 = vmatprep.subr.mxu0 0.0
      %1477 = vmatpush1.msra.mxu0 0.0
      %1478 = vmatprep.subr.mxu0 0.0
      %1479 = vmatpush1.msra.mxu0 0.0
      %1480 = vmatprep.subr.mxu0 0.0
      %1481 = vmatpush1.msra.mxu0 0.0
      %1482 = vmatprep.subr.mxu0 0.0
      %1483 = vmatpush1.msra.mxu0 0.0
      %1484 = vmatprep.subr.mxu0 0.0
      %1485 = vmatpush1.msra.mxu0 0.0
      %1486 = vmatprep.subr.mxu0 0.0
      %1487 = vmatpush1.msra.mxu0 0.0
      %1488 = vmatprep.subr.mxu0 0.0
      %1489 = vmatpush1.msra.mxu0 0.0
      %1490 = vmatprep.subr.mxu0 0.0
      %1491 = vmatpush1.msra.mxu0 0.0
      %1492 = vmatprep.subr.mxu0 0.0
      %1493 = vmatpush1.msra.mxu0 0.0
      %1494 = vmatprep.subr.mxu0 0.0
      %1495 = vmatpush1.msra.mxu0 0.0
      %1496 = vmatprep.subr.mxu0 0.0
      %1497 = vmatpush1.msra.mxu0 0.0
      %1498 = vmatprep.subr.mxu0 0.0
      %1499 = vmatpush1.msra.mxu0 0.0
      %1500 = vmatprep.subr.mxu0 0.0
      %1501 = vmatpush1.msra.mxu0 0.0
      %1502 = vmatprep.mubr.f32.mxu0 0.0
      %1503 = vmatmul.mubr.f32.gmra.mrb[0].mxu0 %v1058
      %v1504 = vpop.f32.mrb[0].mxu0
      %v1505 = vadd.f32 0.0, %v1504
      %v1506 = vpop.f32.mrb[0].mxu0
      %1507 = vmatprep.mubr.f32.mxu0 0.0
      %1508 = vmatmul.mubr.f32.gmra.mrb[0].mxu0 %v1061
      %v1509 = vpop.f32.mrb[0].mxu0
      %v1510 = vadd.f32 0.0, %v1509
      %v1511 = vpop.f32.mrb[0].mxu0
      %1512 = vdwg.mxu0
      %1513 = vmatprep.subr.mxu0 0.0
      %1514 = vmatpush1.msra.mxu0 %v917
      %1515 = vmatprep.subr.mxu0 0.0
      %1516 = vmatpush1.msra.mxu0 0.0
      %1517 = vmatprep.subr.mxu0 0.0
      %1518 = vmatpush1.msra.mxu0 0.0
      %1519 = vmatprep.subr.mxu0 0.0
      %1520 = vmatpush1.msra.mxu0 0.0
      %1521 = vmatprep.subr.mxu0 0.0
      %1522 = vmatpush1.msra.mxu0 0.0
      %1523 = vmatprep.subr.mxu0 0.0
      %1524 = vmatpush1.msra.mxu0 0.0
      %1525 = vmatprep.subr.mxu0 0.0
      %1526 = vmatpush1.msra.mxu0 0.0
      %1527 = vmatprep.subr.mxu0 0.0
      %1528 = vmatpush1.msra.mxu0 0.0
      %1529 = vmatprep.subr.mxu0 0.0
      %1530 = vmatpush1.msra.mxu0 0.0
      %1531 = vmatprep.subr.mxu0 0.0
      %1532 = vmatpush1.msra.mxu0 0.0
      %1533 = vmatprep.subr.mxu0 0.0
      %1534 = vmatpush1.msra.mxu0 0.0
      %1535 = vmatprep.subr.mxu0 0.0
      %1536 = vmatpush1.msra.mxu0 0.0
      %1537 = vmatprep.subr.mxu0 0.0
      %1538 = vmatpush1.msra.mxu0 0.0
      %1539 = vmatprep.subr.mxu0 0.0
      %1540 = vmatpush1.msra.mxu0 0.0
      %1541 = vmatprep.subr.mxu0 0.0
      %1542 = vmatpush1.msra.mxu0 0.0
      %1543 = vmatprep.subr.mxu0 0.0
      %1544 = vmatpush1.msra.mxu0 0.0
      %1545 = vmatprep.subr.mxu0 0.0
      %1546 = vmatpush1.msra.mxu0 0.0
      %1547 = vmatprep.subr.mxu0 0.0
      %1548 = vmatpush1.msra.mxu0 0.0
      %1549 = vmatprep.subr.mxu0 0.0
      %1550 = vmatpush1.msra.mxu0 0.0
      %1551 = vmatprep.subr.mxu0 0.0
      %1552 = vmatpush1.msra.mxu0 0.0
      %1553 = vmatprep.subr.mxu0 0.0
      %1554 = vmatpush1.msra.mxu0 0.0
      %1555 = vmatprep.subr.mxu0 0.0
      %1556 = vmatpush1.msra.mxu0 0.0
      %1557 = vmatprep.subr.mxu0 0.0
      %1558 = vmatpush1.msra.mxu0 0.0
      %1559 = vmatprep.subr.mxu0 0.0
      %1560 = vmatpush1.msra.mxu0 0.0
      %1561 = vmatprep.subr.mxu0 0.0
      %1562 = vmatpush1.msra.mxu0 0.0
      %1563 = vmatprep.subr.mxu0 0.0
      %1564 = vmatpush1.msra.mxu0 0.0
      %1565 = vmatprep.subr.mxu0 0.0
      %1566 = vmatpush1.msra.mxu0 0.0
      %1567 = vmatprep.subr.mxu0 0.0
      %1568 = vmatpush1.msra.mxu0 0.0
      %1569 = vmatprep.subr.mxu0 0.0
      %1570 = vmatpush1.msra.mxu0 0.0
      %1571 = vmatprep.subr.mxu0 0.0
      %1572 = vmatpush1.msra.mxu0 0.0
      %1573 = vmatprep.subr.mxu0 0.0
      %1574 = vmatpush1.msra.mxu0 0.0
      %1575 = vmatprep.subr.mxu0 0.0
      %1576 = vmatpush1.msra.mxu0 0.0
      %1577 = vmatprep.mubr.f32.mxu0 0.0
      %1578 = vmatmul.mubr.f32.gmra.mrb[0].mxu0 %v1058
      %v1579 = vpop.f32.mrb[0].mxu0
      %v1580 = vadd.f32 0.0, %v1579
      %v1581 = vpop.f32.mrb[0].mxu0
      %1582 = vmatprep.mubr.f32.mxu0 0.0
      %1583 = vmatmul.mubr.f32.gmra.mrb[0].mxu0 %v1061
      %v1584 = vpop.f32.mrb[0].mxu0
      %v1585 = vadd.f32 0.0, %v1584
      %v1586 = vpop.f32.mrb[0].mxu0
      %1587 = vdwg.mxu0
      %1588 = vmatprep.subr.mxu0 0.0
      %1589 = vmatpush1.msra.mxu0 %v918
      %1590 = vmatprep.subr.mxu0 0.0
      %1591 = vmatpush1.msra.mxu0 0.0
      %1592 = vmatprep.subr.mxu0 0.0
      %1593 = vmatpush1.msra.mxu0 0.0
      %1594 = vmatprep.subr.mxu0 0.0
      %1595 = vmatpush1.msra.mxu0 0.0
      %1596 = vmatprep.subr.mxu0 0.0
      %1597 = vmatpush1.msra.mxu0 0.0
      %1598 = vmatprep.subr.mxu0 0.0
      %1599 = vmatpush1.msra.mxu0 0.0
      %1600 = vmatprep.subr.mxu0 0.0
      %1601 = vmatpush1.msra.mxu0 0.0
      %1602 = vmatprep.subr.mxu0 0.0
      %1603 = vmatpush1.msra.mxu0 0.0
      %1604 = vmatprep.subr.mxu0 0.0
      %1605 = vmatpush1.msra.mxu0 0.0
      %1606 = vmatprep.subr.mxu0 0.0
      %1607 = vmatpush1.msra.mxu0 0.0
      %1608 = vmatprep.subr.mxu0 0.0
      %1609 = vmatpush1.msra.mxu0 0.0
      %1610 = vmatprep.subr.mxu0 0.0
      %1611 = vmatpush1.msra.mxu0 0.0
      %1612 = vmatprep.subr.mxu0 0.0
      %1613 = vmatpush1.msra.mxu0 0.0
      %1614 = vmatprep.subr.mxu0 0.0
      %1615 = vmatpush1.msra.mxu0 0.0
      %1616 = vmatprep.subr.mxu0 0.0
      %1617 = vmatpush1.msra.mxu0 0.0
      %1618 = vmatprep.subr.mxu0 0.0
      %1619 = vmatpush1.msra.mxu0 0.0
      %1620 = vmatprep.subr.mxu0 0.0
      %1621 = vmatpush1.msra.mxu0 0.0
      %1622 = vmatprep.subr.mxu0 0.0
      %1623 = vmatpush1.msra.mxu0 0.0
      %1624 = vmatprep.subr.mxu0 0.0
      %1625 = vmatpush1.msra.mxu0 0.0
      %1626 = vmatprep.subr.mxu0 0.0
      %1627 = vmatpush1.msra.mxu0 0.0
      %1628 = vmatprep.subr.mxu0 0.0
      %1629 = vmatpush1.msra.mxu0 0.0
      %1630 = vmatprep.subr.mxu0 0.0
      %1631 = vmatpush1.msra.mxu0 0.0
      %1632 = vmatprep.subr.mxu0 0.0
      %1633 = vmatpush1.msra.mxu0 0.0
      %1634 = vmatprep.subr.mxu0 0.0
      %1635 = vmatpush1.msra.mxu0 0.0
      %1636 = vmatprep.subr.mxu0 0.0
      %1637 = vmatpush1.msra.mxu0 0.0
      %1638 = vmatprep.subr.mxu0 0.0
      %1639 = vmatpush1.msra.mxu0 0.0
      %1640 = vmatprep.subr.mxu0 0.0
      %1641 = vmatpush1.msra.mxu0 0.0
      %1642 = vmatprep.subr.mxu0 0.0
      %1643 = vmatpush1.msra.mxu0 0.0
      %1644 = vmatprep.subr.mxu0 0.0
      %1645 = vmatpush1.msra.mxu0 0.0
      %1646 = vmatprep.subr.mxu0 0.0
      %1647 = vmatpush1.msra.mxu0 0.0
      %1648 = vmatprep.subr.mxu0 0.0
      %1649 = vmatpush1.msra.mxu0 0.0
      %1650 = vmatprep.subr.mxu0 0.0
      %1651 = vmatpush1.msra.mxu0 0.0
      %1652 = vmatprep.mubr.f32.mxu0 0.0
      %1653 = vmatmul.mubr.f32.gmra.mrb[0].mxu0 %v1058
      %v1654 = vpop.f32.mrb[0].mxu0
      %v1655 = vadd.f32 0.0, %v1654
      %v1656 = vpop.f32.mrb[0].mxu0
      %1657 = vmatprep.mubr.f32.mxu0 0.0
      %1658 = vmatmul.mubr.f32.gmra.mrb[0].mxu0 %v1061
      %v1659 = vpop.f32.mrb[0].mxu0
      %v1660 = vadd.f32 0.0, %v1659
      %v1661 = vpop.f32.mrb[0].mxu0
      %1662 = vdwg.mxu0
      %1663 = vmatprep.subr.mxu0 0.0
      %1664 = vmatpush1.msra.mxu0 %v1047
      %1665 = vmatprep.subr.mxu0 0.0
      %1666 = vmatpush1.msra.mxu0 0.0
      %1667 = vmatprep.subr.mxu0 0.0
      %1668 = vmatpush1.msra.mxu0 0.0
      %1669 = vmatprep.subr.mxu0 0.0
      %1670 = vmatpush1.msra.mxu0 0.0
      %1671 = vmatprep.subr.mxu0 0.0
      %1672 = vmatpush1.msra.mxu0 0.0
      %1673 = vmatprep.subr.mxu0 0.0
      %1674 = vmatpush1.msra.mxu0 0.0
      %1675 = vmatprep.subr.mxu0 0.0
      %1676 = vmatpush1.msra.mxu0 0.0
      %1677 = vmatprep.subr.mxu0 0.0
      %1678 = vmatpush1.msra.mxu0 0.0
      %1679 = vmatprep.subr.mxu0 0.0
      %1680 = vmatpush1.msra.mxu0 0.0
      %1681 = vmatprep.subr.mxu0 0.0
      %1682 = vmatpush1.msra.mxu0 0.0
      %1683 = vmatprep.subr.mxu0 0.0
      %1684 = vmatpush1.msra.mxu0 0.0
      %1685 = vmatprep.subr.mxu0 0.0
      %1686 = vmatpush1.msra.mxu0 0.0
      %1687 = vmatprep.subr.mxu0 0.0
      %1688 = vmatpush1.msra.mxu0 0.0
      %1689 = vmatprep.subr.mxu0 0.0
      %1690 = vmatpush1.msra.mxu0 0.0
      %1691 = vmatprep.subr.mxu0 0.0
      %1692 = vmatpush1.msra.mxu0 0.0
      %1693 = vmatprep.subr.mxu0 0.0
      %1694 = vmatpush1.msra.mxu0 0.0
      %1695 = vmatprep.subr.mxu0 0.0
      %1696 = vmatpush1.msra.mxu0 0.0
      %1697 = vmatprep.subr.mxu0 0.0
      %1698 = vmatpush1.msra.mxu0 0.0
      %1699 = vmatprep.subr.mxu0 0.0
      %1700 = vmatpush1.msra.mxu0 0.0
      %1701 = vmatprep.subr.mxu0 0.0
      %1702 = vmatpush1.msra.mxu0 0.0
      %1703 = vmatprep.subr.mxu0 0.0
      %1704 = vmatpush1.msra.mxu0 0.0
      %1705 = vmatprep.subr.mxu0 0.0
      %1706 = vmatpush1.msra.mxu0 0.0
      %1707 = vmatprep.subr.mxu0 0.0
      %1708 = vmatpush1.msra.mxu0 0.0
      %1709 = vmatprep.subr.mxu0 0.0
      %1710 = vmatpush1.msra.mxu0 0.0
      %1711 = vmatprep.subr.mxu0 0.0
      %1712 = vmatpush1.msra.mxu0 0.0
      %1713 = vmatprep.subr.mxu0 0.0
      %1714 = vmatpush1.msra.mxu0 0.0
      %1715 = vmatprep.subr.mxu0 0.0
      %1716 = vmatpush1.msra.mxu0 0.0
      %1717 = vmatprep.subr.mxu0 0.0
      %1718 = vmatpush1.msra.mxu0 0.0
      %1719 = vmatprep.subr.mxu0 0.0
      %1720 = vmatpush1.msra.mxu0 0.0
      %1721 = vmatprep.subr.mxu0 0.0
      %1722 = vmatpush1.msra.mxu0 0.0
      %1723 = vmatprep.subr.mxu0 0.0
      %1724 = vmatpush1.msra.mxu0 0.0
      %1725 = vmatprep.subr.mxu0 0.0
      %1726 = vmatpush1.msra.mxu0 0.0
      %1727 = vmatprep.mubr.f32.mxu0 0.0
      %1728 = vmatmul.mubr.f32.gmra.mrb[0].mxu0 %v1058
      %v1729 = vpop.f32.mrb[0].mxu0
      %v1730 = vadd.f32 0.0, %v1729
      %v1731 = vpop.f32.mrb[0].mxu0
      %1732 = vmatprep.mubr.f32.mxu0 0.0
      %1733 = vmatmul.mubr.f32.gmra.mrb[0].mxu0 %v1061
      %v1734 = vpop.f32.mrb[0].mxu0
      %v1735 = vadd.f32 0.0, %v1734
      %v1736 = vpop.f32.mrb[0].mxu0
      %1737 = vdwg.mxu0
      %1738 = vmatprep.subr.mxu0 0.0
      %1739 = vmatpush1.msra.mxu0 %v1048
      %1740 = vmatprep.subr.mxu0 0.0
      %1741 = vmatpush1.msra.mxu0 0.0
      %1742 = vmatprep.subr.mxu0 0.0
      %1743 = vmatpush1.msra.mxu0 0.0
      %1744 = vmatprep.subr.mxu0 0.0
      %1745 = vmatpush1.msra.mxu0 0.0
      %1746 = vmatprep.subr.mxu0 0.0
      %1747 = vmatpush1.msra.mxu0 0.0
      %1748 = vmatprep.subr.mxu0 0.0
      %1749 = vmatpush1.msra.mxu0 0.0
      %1750 = vmatprep.subr.mxu0 0.0
      %1751 = vmatpush1.msra.mxu0 0.0
      %1752 = vmatprep.subr.mxu0 0.0
      %1753 = vmatpush1.msra.mxu0 0.0
      %1754 = vmatprep.subr.mxu0 0.0
      %1755 = vmatpush1.msra.mxu0 0.0
      %1756 = vmatprep.subr.mxu0 0.0
      %1757 = vmatpush1.msra.mxu0 0.0
      %1758 = vmatprep.subr.mxu0 0.0
      %1759 = vmatpush1.msra.mxu0 0.0
      %1760 = vmatprep.subr.mxu0 0.0
      %1761 = vmatpush1.msra.mxu0 0.0
      %1762 = vmatprep.subr.mxu0 0.0
      %1763 = vmatpush1.msra.mxu0 0.0
      %1764 = vmatprep.subr.mxu0 0.0
      %1765 = vmatpush1.msra.mxu0 0.0
      %1766 = vmatprep.subr.mxu0 0.0
      %1767 = vmatpush1.msra.mxu0 0.0
      %1768 = vmatprep.subr.mxu0 0.0
      %1769 = vmatpush1.msra.mxu0 0.0
      %1770 = vmatprep.subr.mxu0 0.0
      %1771 = vmatpush1.msra.mxu0 0.0
      %1772 = vmatprep.subr.mxu0 0.0
      %1773 = vmatpush1.msra.mxu0 0.0
      %1774 = vmatprep.subr.mxu0 0.0
      %1775 = vmatpush1.msra.mxu0 0.0
      %1776 = vmatprep.subr.mxu0 0.0
      %1777 = vmatpush1.msra.mxu0 0.0
      %1778 = vmatprep.subr.mxu0 0.0
      %1779 = vmatpush1.msra.mxu0 0.0
      %1780 = vmatprep.subr.mxu0 0.0
      %1781 = vmatpush1.msra.mxu0 0.0
      %1782 = vmatprep.subr.mxu0 0.0
      %1783 = vmatpush1.msra.mxu0 0.0
      %1784 = vmatprep.subr.mxu0 0.0
      %1785 = vmatpush1.msra.mxu0 0.0
      %1786 = vmatprep.subr.mxu0 0.0
      %1787 = vmatpush1.msra.mxu0 0.0
      %1788 = vmatprep.subr.mxu0 0.0
      %1789 = vmatpush1.msra.mxu0 0.0
      %1790 = vmatprep.subr.mxu0 0.0
      %1791 = vmatpush1.msra.mxu0 0.0
      %1792 = vmatprep.subr.mxu0 0.0
      %1793 = vmatpush1.msra.mxu0 0.0
      %1794 = vmatprep.subr.mxu0 0.0
      %1795 = vmatpush1.msra.mxu0 0.0
      %1796 = vmatprep.subr.mxu0 0.0
      %1797 = vmatpush1.msra.mxu0 0.0
      %1798 = vmatprep.subr.mxu0 0.0
      %1799 = vmatpush1.msra.mxu0 0.0
      %1800 = vmatprep.subr.mxu0 0.0
      %1801 = vmatpush1.msra.mxu0 0.0
      %1802 = vmatprep.mubr.f32.mxu0 0.0
      %1803 = vmatmul.mubr.f32.gmra.mrb[0].mxu0 %v1058
      %v1804 = vpop.f32.mrb[0].mxu0
      %v1805 = vadd.f32 0.0, %v1804
      %v1806 = vpop.f32.mrb[0].mxu0
      %1807 = vmatprep.mubr.f32.mxu0 0.0
      %1808 = vmatmul.mubr.f32.gmra.mrb[0].mxu0 %v1061
      %v1809 = vpop.f32.mrb[0].mxu0
      %v1810 = vadd.f32 0.0, %v1809
      %v1811 = vpop.f32.mrb[0].mxu0
      %1812 = vdwg.mxu0
      %1813 = vmatprep.subr.mxu0 0.0
      %1814 = vmatpush1.msra.mxu0 %v1049
      %1815 = vmatprep.subr.mxu0 0.0
      %1816 = vmatpush1.msra.mxu0 0.0
      %1817 = vmatprep.subr.mxu0 0.0
      %1818 = vmatpush1.msra.mxu0 0.0
      %1819 = vmatprep.subr.mxu0 0.0
      %1820 = vmatpush1.msra.mxu0 0.0
      %1821 = vmatprep.subr.mxu0 0.0
      %1822 = vmatpush1.msra.mxu0 0.0
      %1823 = vmatprep.subr.mxu0 0.0
      %1824 = vmatpush1.msra.mxu0 0.0
      %1825 = vmatprep.subr.mxu0 0.0
      %1826 = vmatpush1.msra.mxu0 0.0
      %1827 = vmatprep.subr.mxu0 0.0
      %1828 = vmatpush1.msra.mxu0 0.0
      %1829 = vmatprep.subr.mxu0 0.0
      %1830 = vmatpush1.msra.mxu0 0.0
      %1831 = vmatprep.subr.mxu0 0.0
      %1832 = vmatpush1.msra.mxu0 0.0
      %1833 = vmatprep.subr.mxu0 0.0
      %1834 = vmatpush1.msra.mxu0 0.0
      %1835 = vmatprep.subr.mxu0 0.0
      %1836 = vmatpush1.msra.mxu0 0.0
      %1837 = vmatprep.subr.mxu0 0.0
      %1838 = vmatpush1.msra.mxu0 0.0
      %1839 = vmatprep.subr.mxu0 0.0
      %1840 = vmatpush1.msra.mxu0 0.0
      %1841 = vmatprep.subr.mxu0 0.0
      %1842 = vmatpush1.msra.mxu0 0.0
      %1843 = vmatprep.subr.mxu0 0.0
      %1844 = vmatpush1.msra.mxu0 0.0
      %1845 = vmatprep.subr.mxu0 0.0
      %1846 = vmatpush1.msra.mxu0 0.0
      %1847 = vmatprep.subr.mxu0 0.0
      %1848 = vmatpush1.msra.mxu0 0.0
      %1849 = vmatprep.subr.mxu0 0.0
      %1850 = vmatpush1.msra.mxu0 0.0
      %1851 = vmatprep.subr.mxu0 0.0
      %1852 = vmatpush1.msra.mxu0 0.0
      %1853 = vmatprep.subr.mxu0 0.0
      %1854 = vmatpush1.msra.mxu0 0.0
      %1855 = vmatprep.subr.mxu0 0.0
      %1856 = vmatpush1.msra.mxu0 0.0
      %1857 = vmatprep.subr.mxu0 0.0
      %1858 = vmatpush1.msra.mxu0 0.0
      %1859 = vmatprep.subr.mxu0 0.0
      %1860 = vmatpush1.msra.mxu0 0.0
      %1861 = vmatprep.subr.mxu0 0.0
      %1862 = vmatpush1.msra.mxu0 0.0
      %1863 = vmatprep.subr.mxu0 0.0
      %1864 = vmatpush1.msra.mxu0 0.0
      %1865 = vmatprep.subr.mxu0 0.0
      %1866 = vmatpush1.msra.mxu0 0.0
      %1867 = vmatprep.subr.mxu0 0.0
      %1868 = vmatpush1.msra.mxu0 0.0
      %1869 = vmatprep.subr.mxu0 0.0
      %1870 = vmatpush1.msra.mxu0 0.0
      %1871 = vmatprep.subr.mxu0 0.0
      %1872 = vmatpush1.msra.mxu0 0.0
      %1873 = vmatprep.subr.mxu0 0.0
      %1874 = vmatpush1.msra.mxu0 0.0
      %1875 = vmatprep.subr.mxu0 0.0
      %1876 = vmatpush1.msra.mxu0 0.0
      %1877 = vmatprep.mubr.f32.mxu0 0.0
      %1878 = vmatmul.mubr.f32.gmra.mrb[0].mxu0 %v1058
      %v1879 = vpop.f32.mrb[0].mxu0
      %v1880 = vadd.f32 0.0, %v1879
      %v1881 = vpop.f32.mrb[0].mxu0
      %1882 = vmatprep.mubr.f32.mxu0 0.0
      %1883 = vmatmul.mubr.f32.gmra.mrb[0].mxu0 %v1061
      %v1884 = vpop.f32.mrb[0].mxu0
      %v1885 = vadd.f32 0.0, %v1884
      %v1886 = vpop.f32.mrb[0].mxu0
      %1887 = vdwg.mxu0
      %1888 = vmatprep.subr.mxu0 0.0
      %1889 = vmatpush1.msra.mxu0 %v1050
      %1890 = vmatprep.subr.mxu0 0.0
      %1891 = vmatpush1.msra.mxu0 0.0
      %1892 = vmatprep.subr.mxu0 0.0
      %1893 = vmatpush1.msra.mxu0 0.0
      %1894 = vmatprep.subr.mxu0 0.0
      %1895 = vmatpush1.msra.mxu0 0.0
      %1896 = vmatprep.subr.mxu0 0.0
      %1897 = vmatpush1.msra.mxu0 0.0
      %1898 = vmatprep.subr.mxu0 0.0
      %1899 = vmatpush1.msra.mxu0 0.0
      %1900 = vmatprep.subr.mxu0 0.0
      %1901 = vmatpush1.msra.mxu0 0.0
      %1902 = vmatprep.subr.mxu0 0.0
      %1903 = vmatpush1.msra.mxu0 0.0
      %1904 = vmatprep.subr.mxu0 0.0
      %1905 = vmatpush1.msra.mxu0 0.0
      %1906 = vmatprep.subr.mxu0 0.0
      %1907 = vmatpush1.msra.mxu0 0.0
      %1908 = vmatprep.subr.mxu0 0.0
      %1909 = vmatpush1.msra.mxu0 0.0
      %1910 = vmatprep.subr.mxu0 0.0
      %1911 = vmatpush1.msra.mxu0 0.0
      %1912 = vmatprep.subr.mxu0 0.0
      %1913 = vmatpush1.msra.mxu0 0.0
      %1914 = vmatprep.subr.mxu0 0.0
      %1915 = vmatpush1.msra.mxu0 0.0
      %1916 = vmatprep.subr.mxu0 0.0
      %1917 = vmatpush1.msra.mxu0 0.0
      %1918 = vmatprep.subr.mxu0 0.0
      %1919 = vmatpush1.msra.mxu0 0.0
      %1920 = vmatprep.subr.mxu0 0.0
      %1921 = vmatpush1.msra.mxu0 0.0
      %1922 = vmatprep.subr.mxu0 0.0
      %1923 = vmatpush1.msra.mxu0 0.0
      %1924 = vmatprep.subr.mxu0 0.0
      %1925 = vmatpush1.msra.mxu0 0.0
      %1926 = vmatprep.subr.mxu0 0.0
      %1927 = vmatpush1.msra.mxu0 0.0
      %1928 = vmatprep.subr.mxu0 0.0
      %1929 = vmatpush1.msra.mxu0 0.0
      %1930 = vmatprep.subr.mxu0 0.0
      %1931 = vmatpush1.msra.mxu0 0.0
      %1932 = vmatprep.subr.mxu0 0.0
      %1933 = vmatpush1.msra.mxu0 0.0
      %1934 = vmatprep.subr.mxu0 0.0
      %1935 = vmatpush1.msra.mxu0 0.0
      %1936 = vmatprep.subr.mxu0 0.0
      %1937 = vmatpush1.msra.mxu0 0.0
      %1938 = vmatprep.subr.mxu0 0.0
      %1939 = vmatpush1.msra.mxu0 0.0
      %1940 = vmatprep.subr.mxu0 0.0
      %1941 = vmatpush1.msra.mxu0 0.0
      %1942 = vmatprep.subr.mxu0 0.0
      %1943 = vmatpush1.msra.mxu0 0.0
      %1944 = vmatprep.subr.mxu0 0.0
      %1945 = vmatpush1.msra.mxu0 0.0
      %1946 = vmatprep.subr.mxu0 0.0
      %1947 = vmatpush1.msra.mxu0 0.0
      %1948 = vmatprep.subr.mxu0 0.0
      %1949 = vmatpush1.msra.mxu0 0.0
      %1950 = vmatprep.subr.mxu0 0.0
      %1951 = vmatpush1.msra.mxu0 0.0
      %1952 = vmatprep.mubr.f32.mxu0 0.0
      %1953 = vmatmul.mubr.f32.gmra.mrb[0].mxu0 %v1058
      %v1954 = vpop.f32.mrb[0].mxu0
      %v1955 = vadd.f32 0.0, %v1954
      %v1956 = vpop.f32.mrb[0].mxu0
      %1957 = vmatprep.mubr.f32.mxu0 0.0
      %1958 = vmatmul.mubr.f32.gmra.mrb[0].mxu0 %v1061
      %v1959 = vpop.f32.mrb[0].mxu0
      %v1960 = vadd.f32 0.0, %v1959
      %v1961 = vpop.f32.mrb[0].mxu0
      %1962 = vdwg.mxu0
      %1963 = vmatprep.subr.mxu0 0.0
      %1964 = vmatpush1.msra.mxu0 %v1051
      %1965 = vmatprep.subr.mxu0 0.0
      %1966 = vmatpush1.msra.mxu0 0.0
      %1967 = vmatprep.subr.mxu0 0.0
      %1968 = vmatpush1.msra.mxu0 0.0
      %1969 = vmatprep.subr.mxu0 0.0
      %1970 = vmatpush1.msra.mxu0 0.0
      %1971 = vmatprep.subr.mxu0 0.0
      %1972 = vmatpush1.msra.mxu0 0.0
      %1973 = vmatprep.subr.mxu0 0.0
      %1974 = vmatpush1.msra.mxu0 0.0
      %1975 = vmatprep.subr.mxu0 0.0
      %1976 = vmatpush1.msra.mxu0 0.0
      %1977 = vmatprep.subr.mxu0 0.0
      %1978 = vmatpush1.msra.mxu0 0.0
      %1979 = vmatprep.subr.mxu0 0.0
      %1980 = vmatpush1.msra.mxu0 0.0
      %1981 = vmatprep.subr.mxu0 0.0
      %1982 = vmatpush1.msra.mxu0 0.0
      %1983 = vmatprep.subr.mxu0 0.0
      %1984 = vmatpush1.msra.mxu0 0.0
      %1985 = vmatprep.subr.mxu0 0.0
      %1986 = vmatpush1.msra.mxu0 0.0
      %1987 = vmatprep.subr.mxu0 0.0
      %1988 = vmatpush1.msra.mxu0 0.0
      %1989 = vmatprep.subr.mxu0 0.0
      %1990 = vmatpush1.msra.mxu0 0.0
      %1991 = vmatprep.subr.mxu0 0.0
      %1992 = vmatpush1.msra.mxu0 0.0
      %1993 = vmatprep.subr.mxu0 0.0
      %1994 = vmatpush1.msra.mxu0 0.0
      %1995 = vmatprep.subr.mxu0 0.0
      %1996 = vmatpush1.msra.mxu0 0.0
      %1997 = vmatprep.subr.mxu0 0.0
      %1998 = vmatpush1.msra.mxu0 0.0
      %1999 = vmatprep.subr.mxu0 0.0
      %2000 = vmatpush1.msra.mxu0 0.0
      %2001 = vmatprep.subr.mxu0 0.0
      %2002 = vmatpush1.msra.mxu0 0.0
      %2003 = vmatprep.subr.mxu0 0.0
      %2004 = vmatpush1.msra.mxu0 0.0
      %2005 = vmatprep.subr.mxu0 0.0
      %2006 = vmatpush1.msra.mxu0 0.0
      %2007 = vmatprep.subr.mxu0 0.0
      %2008 = vmatpush1.msra.mxu0 0.0
      %2009 = vmatprep.subr.mxu0 0.0
      %2010 = vmatpush1.msra.mxu0 0.0
      %2011 = vmatprep.subr.mxu0 0.0
      %2012 = vmatpush1.msra.mxu0 0.0
      %2013 = vmatprep.subr.mxu0 0.0
      %2014 = vmatpush1.msra.mxu0 0.0
      %2015 = vmatprep.subr.mxu0 0.0
      %2016 = vmatpush1.msra.mxu0 0.0
      %2017 = vmatprep.subr.mxu0 0.0
      %2018 = vmatpush1.msra.mxu0 0.0
      %2019 = vmatprep.subr.mxu0 0.0
      %2020 = vmatpush1.msra.mxu0 0.0
      %2021 = vmatprep.subr.mxu0 0.0
      %2022 = vmatpush1.msra.mxu0 0.0
      %2023 = vmatprep.subr.mxu0 0.0
      %2024 = vmatpush1.msra.mxu0 0.0
      %2025 = vmatprep.subr.mxu0 0.0
      %2026 = vmatpush1.msra.mxu0 0.0
      %2027 = vmatprep.mubr.f32.mxu0 0.0
      %2028 = vmatmul.mubr.f32.gmra.mrb[0].mxu0 %v1058
      %v2029 = vpop.f32.mrb[0].mxu0
      %v2030 = vadd.f32 0.0, %v2029
      %v2031 = vpop.f32.mrb[0].mxu0
      %2032 = vmatprep.mubr.f32.mxu0 0.0
      %2033 = vmatmul.mubr.f32.gmra.mrb[0].mxu0 %v1061
      %v2034 = vpop.f32.mrb[0].mxu0
      %v2035 = vadd.f32 0.0, %v2034
      %v2036 = vpop.f32.mrb[0].mxu0
      %2037 = vdwg.mxu0
      %2038 = vmatprep.subr.mxu0 0.0
      %2039 = vmatpush1.msra.mxu0 %v1052
      %2040 = vmatprep.subr.mxu0 0.0
      %2041 = vmatpush1.msra.mxu0 0.0
      %2042 = vmatprep.subr.mxu0 0.0
      %2043 = vmatpush1.msra.mxu0 0.0
      %2044 = vmatprep.subr.mxu0 0.0
      %2045 = vmatpush1.msra.mxu0 0.0
      %2046 = vmatprep.subr.mxu0 0.0
      %2047 = vmatpush1.msra.mxu0 0.0
      %2048 = vmatprep.subr.mxu0 0.0
      %2049 = vmatpush1.msra.mxu0 0.0
      %2050 = vmatprep.subr.mxu0 0.0
      %2051 = vmatpush1.msra.mxu0 0.0
      %2052 = vmatprep.subr.mxu0 0.0
      %2053 = vmatpush1.msra.mxu0 0.0
      %2054 = vmatprep.subr.mxu0 0.0
      %2055 = vmatpush1.msra.mxu0 0.0
      %2056 = vmatprep.subr.mxu0 0.0
      %2057 = vmatpush1.msra.mxu0 0.0
      %2058 = vmatprep.subr.mxu0 0.0
      %2059 = vmatpush1.msra.mxu0 0.0
      %2060 = vmatprep.subr.mxu0 0.0
      %2061 = vmatpush1.msra.mxu0 0.0
      %2062 = vmatprep.subr.mxu0 0.0
      %2063 = vmatpush1.msra.mxu0 0.0
      %2064 = vmatprep.subr.mxu0 0.0
      %2065 = vmatpush1.msra.mxu0 0.0
      %2066 = vmatprep.subr.mxu0 0.0
      %2067 = vmatpush1.msra.mxu0 0.0
      %2068 = vmatprep.subr.mxu0 0.0
      %2069 = vmatpush1.msra.mxu0 0.0
      %2070 = vmatprep.subr.mxu0 0.0
      %2071 = vmatpush1.msra.mxu0 0.0
      %2072 = vmatprep.subr.mxu0 0.0
      %2073 = vmatpush1.msra.mxu0 0.0
      %2074 = vmatprep.subr.mxu0 0.0
      %2075 = vmatpush1.msra.mxu0 0.0
      %2076 = vmatprep.subr.mxu0 0.0
      %2077 = vmatpush1.msra.mxu0 0.0
      %2078 = vmatprep.subr.mxu0 0.0
      %2079 = vmatpush1.msra.mxu0 0.0
      %2080 = vmatprep.subr.mxu0 0.0
      %2081 = vmatpush1.msra.mxu0 0.0
      %2082 = vmatprep.subr.mxu0 0.0
      %2083 = vmatpush1.msra.mxu0 0.0
      %2084 = vmatprep.subr.mxu0 0.0
      %2085 = vmatpush1.msra.mxu0 0.0
      %2086 = vmatprep.subr.mxu0 0.0
      %2087 = vmatpush1.msra.mxu0 0.0
      %2088 = vmatprep.subr.mxu0 0.0
      %2089 = vmatpush1.msra.mxu0 0.0
      %2090 = vmatprep.subr.mxu0 0.0
      %2091 = vmatpush1.msra.mxu0 0.0
      %2092 = vmatprep.subr.mxu0 0.0
      %2093 = vmatpush1.msra.mxu0 0.0
      %2094 = vmatprep.subr.mxu0 0.0
      %2095 = vmatpush1.msra.mxu0 0.0
      %2096 = vmatprep.subr.mxu0 0.0
      %2097 = vmatpush1.msra.mxu0 0.0
      %2098 = vmatprep.subr.mxu0 0.0
      %2099 = vmatpush1.msra.mxu0 0.0
      %2100 = vmatprep.subr.mxu0 0.0
      %2101 = vmatpush1.msra.mxu0 0.0
      %2102 = vmatprep.mubr.f32.mxu0 0.0
      %2103 = vmatmul.mubr.f32.gmra.mrb[0].mxu0 %v1058
      %v2104 = vpop.f32.mrb[0].mxu0
      %v2105 = vadd.f32 0.0, %v2104
      %v2106 = vpop.f32.mrb[0].mxu0
      %2107 = vmatprep.mubr.f32.mxu0 0.0
      %2108 = vmatmul.mubr.f32.gmra.mrb[0].mxu0 %v1061
      %v2109 = vpop.f32.mrb[0].mxu0
      %v2110 = vadd.f32 0.0, %v2109
      %v2111 = vpop.f32.mrb[0].mxu0
      %2112 = vdwg.mxu0
      %2113 = vmatprep.subr.mxu0 0.0
      %2114 = vmatpush1.msra.mxu0 %v1053
      %2115 = vmatprep.subr.mxu0 0.0
      %2116 = vmatpush1.msra.mxu0 0.0
      %2117 = vmatprep.subr.mxu0 0.0
      %2118 = vmatpush1.msra.mxu0 0.0
      %2119 = vmatprep.subr.mxu0 0.0
      %2120 = vmatpush1.msra.mxu0 0.0
      %2121 = vmatprep.subr.mxu0 0.0
      %2122 = vmatpush1.msra.mxu0 0.0
      %2123 = vmatprep.subr.mxu0 0.0
      %2124 = vmatpush1.msra.mxu0 0.0
      %2125 = vmatprep.subr.mxu0 0.0
      %2126 = vmatpush1.msra.mxu0 0.0
      %2127 = vmatprep.subr.mxu0 0.0
      %2128 = vmatpush1.msra.mxu0 0.0
      %2129 = vmatprep.subr.mxu0 0.0
      %2130 = vmatpush1.msra.mxu0 0.0
      %2131 = vmatprep.subr.mxu0 0.0
      %2132 = vmatpush1.msra.mxu0 0.0
      %2133 = vmatprep.subr.mxu0 0.0
      %2134 = vmatpush1.msra.mxu0 0.0
      %2135 = vmatprep.subr.mxu0 0.0
      %2136 = vmatpush1.msra.mxu0 0.0
      %2137 = vmatprep.subr.mxu0 0.0
      %2138 = vmatpush1.msra.mxu0 0.0
      %2139 = vmatprep.subr.mxu0 0.0
      %2140 = vmatpush1.msra.mxu0 0.0
      %2141 = vmatprep.subr.mxu0 0.0
      %2142 = vmatpush1.msra.mxu0 0.0
      %2143 = vmatprep.subr.mxu0 0.0
      %2144 = vmatpush1.msra.mxu0 0.0
      %2145 = vmatprep.subr.mxu0 0.0
      %2146 = vmatpush1.msra.mxu0 0.0
      %2147 = vmatprep.subr.mxu0 0.0
      %2148 = vmatpush1.msra.mxu0 0.0
      %2149 = vmatprep.subr.mxu0 0.0
      %2150 = vmatpush1.msra.mxu0 0.0
      %2151 = vmatprep.subr.mxu0 0.0
      %2152 = vmatpush1.msra.mxu0 0.0
      %2153 = vmatprep.subr.mxu0 0.0
      %2154 = vmatpush1.msra.mxu0 0.0
      %2155 = vmatprep.subr.mxu0 0.0
      %2156 = vmatpush1.msra.mxu0 0.0
      %2157 = vmatprep.subr.mxu0 0.0
      %2158 = vmatpush1.msra.mxu0 0.0
      %2159 = vmatprep.subr.mxu0 0.0
      %2160 = vmatpush1.msra.mxu0 0.0
      %2161 = vmatprep.subr.mxu0 0.0
      %2162 = vmatpush1.msra.mxu0 0.0
      %2163 = vmatprep.subr.mxu0 0.0
      %2164 = vmatpush1.msra.mxu0 0.0
      %2165 = vmatprep.subr.mxu0 0.0
      %2166 = vmatpush1.msra.mxu0 0.0
      %2167 = vmatprep.subr.mxu0 0.0
      %2168 = vmatpush1.msra.mxu0 0.0
      %2169 = vmatprep.subr.mxu0 0.0
      %2170 = vmatpush1.msra.mxu0 0.0
      %2171 = vmatprep.subr.mxu0 0.0
      %2172 = vmatpush1.msra.mxu0 0.0
      %2173 = vmatprep.subr.mxu0 0.0
      %2174 = vmatpush1.msra.mxu0 0.0
      %2175 = vmatprep.subr.mxu0 0.0
      %2176 = vmatpush1.msra.mxu0 0.0
      %2177 = vmatprep.mubr.f32.mxu0 0.0
      %2178 = vmatmul.mubr.f32.gmra.mrb[0].mxu0 %v1058
      %v2179 = vpop.f32.mrb[0].mxu0
      %v2180 = vadd.f32 0.0, %v2179
      %v2181 = vpop.f32.mrb[0].mxu0
      %2182 = vmatprep.mubr.f32.mxu0 0.0
      %2183 = vmatmul.mubr.f32.gmra.mrb[0].mxu0 %v1061
      %v2184 = vpop.f32.mrb[0].mxu0
      %v2185 = vadd.f32 0.0, %v2184
      %v2186 = vpop.f32.mrb[0].mxu0
      %2187 = vdwg.mxu0
      %2188 = vmatprep.subr.mxu0 0.0
      %2189 = vmatpush1.msra.mxu0 %v1054
      %2190 = vmatprep.subr.mxu0 0.0
      %2191 = vmatpush1.msra.mxu0 0.0
      %2192 = vmatprep.subr.mxu0 0.0
      %2193 = vmatpush1.msra.mxu0 0.0
      %2194 = vmatprep.subr.mxu0 0.0
      %2195 = vmatpush1.msra.mxu0 0.0
      %2196 = vmatprep.subr.mxu0 0.0
      %2197 = vmatpush1.msra.mxu0 0.0
      %2198 = vmatprep.subr.mxu0 0.0
      %2199 = vmatpush1.msra.mxu0 0.0
      %2200 = vmatprep.subr.mxu0 0.0
      %2201 = vmatpush1.msra.mxu0 0.0
      %2202 = vmatprep.subr.mxu0 0.0
      %2203 = vmatpush1.msra.mxu0 0.0
      %2204 = vmatprep.subr.mxu0 0.0
      %2205 = vmatpush1.msra.mxu0 0.0
      %2206 = vmatprep.subr.mxu0 0.0
      %2207 = vmatpush1.msra.mxu0 0.0
      %2208 = vmatprep.subr.mxu0 0.0
      %2209 = vmatpush1.msra.mxu0 0.0
      %2210 = vmatprep.subr.mxu0 0.0
      %2211 = vmatpush1.msra.mxu0 0.0
      %2212 = vmatprep.subr.mxu0 0.0
      %2213 = vmatpush1.msra.mxu0 0.0
      %2214 = vmatprep.subr.mxu0 0.0
      %2215 = vmatpush1.msra.mxu0 0.0
      %2216 = vmatprep.subr.mxu0 0.0
      %2217 = vmatpush1.msra.mxu0 0.0
      %2218 = vmatprep.subr.mxu0 0.0
      %2219 = vmatpush1.msra.mxu0 0.0
      %2220 = vmatprep.subr.mxu0 0.0
      %2221 = vmatpush1.msra.mxu0 0.0
      %2222 = vmatprep.subr.mxu0 0.0
      %2223 = vmatpush1.msra.mxu0 0.0
      %2224 = vmatprep.subr.mxu0 0.0
      %2225 = vmatpush1.msra.mxu0 0.0
      %2226 = vmatprep.subr.mxu0 0.0
      %2227 = vmatpush1.msra.mxu0 0.0
      %2228 = vmatprep.subr.mxu0 0.0
      %2229 = vmatpush1.msra.mxu0 0.0
      %2230 = vmatprep.subr.mxu0 0.0
      %2231 = vmatpush1.msra.mxu0 0.0
      %2232 = vmatprep.subr.mxu0 0.0
      %2233 = vmatpush1.msra.mxu0 0.0
      %2234 = vmatprep.subr.mxu0 0.0
      %2235 = vmatpush1.msra.mxu0 0.0
      %2236 = vmatprep.subr.mxu0 0.0
      %2237 = vmatpush1.msra.mxu0 0.0
      %2238 = vmatprep.subr.mxu0 0.0
      %2239 = vmatpush1.msra.mxu0 0.0
      %2240 = vmatprep.subr.mxu0 0.0
      %2241 = vmatpush1.msra.mxu0 0.0
      %2242 = vmatprep.subr.mxu0 0.0
      %2243 = vmatpush1.msra.mxu0 0.0
      %2244 = vmatprep.subr.mxu0 0.0
      %2245 = vmatpush1.msra.mxu0 0.0
      %2246 = vmatprep.subr.mxu0 0.0
      %2247 = vmatpush1.msra.mxu0 0.0
      %2248 = vmatprep.subr.mxu0 0.0
      %2249 = vmatpush1.msra.mxu0 0.0
      %2250 = vmatprep.subr.mxu0 0.0
      %2251 = vmatpush1.msra.mxu0 0.0
      %2252 = vmatprep.mubr.f32.mxu0 0.0
      %2253 = vmatmul.mubr.f32.gmra.mrb[0].mxu0 %v1058
      %v2254 = vpop.f32.mrb[0].mxu0
      %v2255 = vadd.f32 0.0, %v2254
      %v2256 = vpop.f32.mrb[0].mxu0
      %2257 = vmatprep.mubr.f32.mxu0 0.0
      %2258 = vmatmul.mubr.f32.gmra.mrb[0].mxu0 %v1061
      %v2259 = vpop.f32.mrb[0].mxu0
      %v2260 = vadd.f32 0.0, %v2259
      %v2261 = vpop.f32.mrb[0].mxu0
      %2262 = vdwg.mxu0
      %v2263 = vld [vmem:[%s374] sm:$0xff]
      %v2264 = vld [vmem:[%s374 + $0x8] sm:$0xff]
      %v2265 = vld [vmem:[%s374 + $0x10] sm:$0xff]
      %v2266 = vld [vmem:[%s374 + $0x18] sm:$0xff]
      %v2267 = vld [vmem:[%s374 + $0x20] sm:$0xff]
      %v2268 = vld [vmem:[%s374 + $0x28] sm:$0xff]
      %v2269 = vld [vmem:[%s374 + $0x30] sm:$0xff]
      %v2270 = vld [vmem:[%s374 + $0x38] sm:$0xff]
      %v2271 = vld [vmem:[%s374 + $0x40] sm:$0xff]
      %v2272 = vld [vmem:[%s374 + $0x48] sm:$0xff]
      %v2273 = vld [vmem:[%s374 + $0x50] sm:$0xff]
      %v2274 = vld [vmem:[%s374 + $0x58] sm:$0xff]
      %v2275 = vld [vmem:[%s374 + $0x60] sm:$0xff]
      %v2276 = vld [vmem:[%s374 + $0x68] sm:$0xff]
      %v2277 = vld [vmem:[%s374 + $0x70] sm:$0xff]
      %v2278 = vld [vmem:[%s374 + $0x78] sm:$0xff]
      %v2279 = vld [vmem:[%s374 + $0x80] sm:$0xff]
      %v2280 = vld [vmem:[%s374 + $0x88] sm:$0xff]
      %v2281 = vld [vmem:[%s374 + $0x90] sm:$0xff]
      %v2282 = vld [vmem:[%s374 + $0x98] sm:$0xff]
      %v2283 = vld [vmem:[%s374 + $0xa0] sm:$0xff]
      %v2284 = vld [vmem:[%s374 + $0xa8] sm:$0xff]
      %v2285 = vld [vmem:[%s374 + $0xb0] sm:$0xff]
      %v2286 = vld [vmem:[%s374 + $0xb8] sm:$0xff]
      %v2287 = vld [vmem:[%s374 + $0xc0] sm:$0xff]
      %v2288 = vld [vmem:[%s374 + $0xc8] sm:$0xff]
      %v2289 = vld [vmem:[%s374 + $0xd0] sm:$0xff]
      %v2290 = vld [vmem:[%s374 + $0xd8] sm:$0xff]
      %v2291 = vld [vmem:[%s374 + $0xe0] sm:$0xff]
      %v2292 = vld [vmem:[%s374 + $0xe8] sm:$0xff]
      %v2293 = vld [vmem:[%s374 + $0xf0] sm:$0xff]
      %v2294 = vld [vmem:[%s374 + $0xf8] sm:$0xff]
      %s2295 = scalar_lea.vmem [#allocation2], 24
      %2296 = vst.msk [vmem:[%s2295 + $0x1] sm:$0xff] %vm426, %v2263
      %2297 = vst.msk [vmem:[%s2295 + $0x9] sm:$0xff] %vm426, %v2264
      %2298 = vst.msk [vmem:[%s2295 + $0x19] sm:$0xff] %vm426, %v2265
      %2299 = vst.msk [vmem:[%s2295 + $0x21] sm:$0xff] %vm426, %v2266
      %2300 = vst.msk [vmem:[%s2295 + $0x31] sm:$0xff] %vm426, %v2267
      %2301 = vst.msk [vmem:[%s2295 + $0x39] sm:$0xff] %vm426, %v2268
      %2302 = vst.msk [vmem:[%s2295 + $0x49] sm:$0xff] %vm426, %v2269
      %2303 = vst.msk [vmem:[%s2295 + $0x51] sm:$0xff] %vm426, %v2270
      %2304 = vst.msk [vmem:[%s2295 + $0x61] sm:$0xff] %vm426, %v2271
      %2305 = vst.msk [vmem:[%s2295 + $0x69] sm:$0xff] %vm426, %v2272
      %2306 = vst.msk [vmem:[%s2295 + $0x79] sm:$0xff] %vm426, %v2273
      %2307 = vst.msk [vmem:[%s2295 + $0x81] sm:$0xff] %vm426, %v2274
      %2308 = vst.msk [vmem:[%s2295 + $0x91] sm:$0xff] %vm426, %v2275
      %2309 = vst.msk [vmem:[%s2295 + $0x99] sm:$0xff] %vm426, %v2276
      %2310 = vst.msk [vmem:[%s2295 + $0xa9] sm:$0xff] %vm426, %v2277
      %2311 = vst.msk [vmem:[%s2295 + $0xb1] sm:$0xff] %vm426, %v2278
      %2312 = vst.msk [vmem:[%s2295 + $0xc1] sm:$0xff] %vm426, %v2279
      %2313 = vst.msk [vmem:[%s2295 + $0xc9] sm:$0xff] %vm426, %v2280
      %2314 = vst.msk [vmem:[%s2295 + $0xd9] sm:$0xff] %vm426, %v2281
      %2315 = vst.msk [vmem:[%s2295 + $0xe1] sm:$0xff] %vm426, %v2282
      %2316 = vst.msk [vmem:[%s2295 + $0xf1] sm:$0xff] %vm426, %v2283
      %2317 = vst.msk [vmem:[%s2295 + $0xf9] sm:$0xff] %vm426, %v2284
      %2318 = vst.msk [vmem:[%s2295 + $0x109] sm:$0xff] %vm426, %v2285
      %2319 = vst.msk [vmem:[%s2295 + $0x111] sm:$0xff] %vm426, %v2286
      %2320 = vst.msk [vmem:[%s2295 + $0x121] sm:$0xff] %vm426, %v2287
      %2321 = vst.msk [vmem:[%s2295 + $0x129] sm:$0xff] %vm426, %v2288
      %2322 = vst.msk [vmem:[%s2295 + $0x139] sm:$0xff] %vm426, %v2289
      %2323 = vst.msk [vmem:[%s2295 + $0x141] sm:$0xff] %vm426, %v2290
      %2324 = vst.msk [vmem:[%s2295 + $0x151] sm:$0xff] %vm426, %v2291
      %2325 = vst.msk [vmem:[%s2295 + $0x159] sm:$0xff] %vm426, %v2292
      %2326 = vst.msk [vmem:[%s2295 + $0x169] sm:$0xff] %vm426, %v2293
      %2327 = vst.msk [vmem:[%s2295 + $0x171] sm:$0xff] %vm426, %v2294
      %2360 = vrot.lane.b32.xlu0 %v1130, 4
      %v2361 = vpop.permute.xlu0 %2360
      %2362 = vrot.lane.b32.xlu0 %v1135, 4
      %v2363 = vpop.permute.xlu0 %2362
      %2364 = vrot.lane.b32.xlu0 %v1205, 4
      %v2365 = vpop.permute.xlu0 %2364
      %2366 = vrot.lane.b32.xlu0 %v1210, 4
      %v2367 = vpop.permute.xlu0 %2366
      %2368 = vrot.lane.b32.xlu0 %v1280, 4
      %v2369 = vpop.permute.xlu0 %2368
      %2370 = vrot.lane.b32.xlu0 %v1285, 4
      %v2371 = vpop.permute.xlu0 %2370
      %2372 = vrot.lane.b32.xlu0 %v1355, 4
      %v2373 = vpop.permute.xlu0 %2372
      %2374 = vrot.lane.b32.xlu0 %v1360, 4
      %v2375 = vpop.permute.xlu0 %2374
      %2376 = vrot.lane.b32.xlu0 %v1430, 4
      %v2377 = vpop.permute.xlu0 %2376
      %2378 = vrot.lane.b32.xlu0 %v1435, 4
      %v2379 = vpop.permute.xlu0 %2378
      %2380 = vrot.lane.b32.xlu0 %v1505, 4
      %v2381 = vpop.permute.xlu0 %2380
      %2382 = vrot.lane.b32.xlu0 %v1510, 4
      %v2383 = vpop.permute.xlu0 %2382
      %2384 = vrot.lane.b32.xlu0 %v1580, 4
      %v2385 = vpop.permute.xlu0 %2384
      %2386 = vrot.lane.b32.xlu0 %v1585, 4
      %v2387 = vpop.permute.xlu0 %2386
      %2388 = vrot.lane.b32.xlu0 %v1655, 4
      %v2389 = vpop.permute.xlu0 %2388
      %2390 = vrot.lane.b32.xlu0 %v1660, 4
      %v2391 = vpop.permute.xlu0 %2390
      %2392 = vrot.lane.b32.xlu0 %v1730, 4
      %v2393 = vpop.permute.xlu0 %2392
      %2394 = vrot.lane.b32.xlu0 %v1735, 4
      %v2395 = vpop.permute.xlu0 %2394
      %2396 = vrot.lane.b32.xlu0 %v1805, 4
      %v2397 = vpop.permute.xlu0 %2396
      %2398 = vrot.lane.b32.xlu0 %v1810, 4
      %v2399 = vpop.permute.xlu0 %2398
      %2400 = vrot.lane.b32.xlu0 %v1880, 4
      %v2401 = vpop.permute.xlu0 %2400
      %2402 = vrot.lane.b32.xlu0 %v1885, 4
      %v2403 = vpop.permute.xlu0 %2402
      %2404 = vrot.lane.b32.xlu0 %v1955, 4
      %v2405 = vpop.permute.xlu0 %2404
      %2406 = vrot.lane.b32.xlu0 %v1960, 4
      %v2407 = vpop.permute.xlu0 %2406
      %2408 = vrot.lane.b32.xlu0 %v2030, 4
      %v2409 = vpop.permute.xlu0 %2408
      %2410 = vrot.lane.b32.xlu0 %v2035, 4
      %v2411 = vpop.permute.xlu0 %2410
      %2412 = vrot.lane.b32.xlu0 %v2105, 4
      %v2413 = vpop.permute.xlu0 %2412
      %2414 = vrot.lane.b32.xlu0 %v2110, 4
      %v2415 = vpop.permute.xlu0 %2414
      %2416 = vrot.lane.b32.xlu0 %v2180, 4
      %v2417 = vpop.permute.xlu0 %2416
      %2418 = vrot.lane.b32.xlu0 %v2185, 4
      %v2419 = vpop.permute.xlu0 %2418
      %2420 = vrot.lane.b32.xlu0 %v2255, 4
      %v2421 = vpop.permute.xlu0 %2420
      %2422 = vrot.lane.b32.xlu0 %v2260, 4
      %v2423 = vpop.permute.xlu0 %2422
      %vm2456 = vcmask 64544
      %2457 = vst.msk [vmem:[%s2295 + $0x1] sm:$0xff] %vm2456, %v2361
      %2458 = vst.msk [vmem:[%s2295 + $0x9] sm:$0xff] %vm2456, %v2363
      %2459 = vst.msk [vmem:[%s2295 + $0x19] sm:$0xff] %vm2456, %v2365
      %2460 = vst.msk [vmem:[%s2295 + $0x21] sm:$0xff] %vm2456, %v2367
      %2461 = vst.msk [vmem:[%s2295 + $0x31] sm:$0xff] %vm2456, %v2369
      %2462 = vst.msk [vmem:[%s2295 + $0x39] sm:$0xff] %vm2456, %v2371
      %2463 = vst.msk [vmem:[%s2295 + $0x49] sm:$0xff] %vm2456, %v2373
      %2464 = vst.msk [vmem:[%s2295 + $0x51] sm:$0xff] %vm2456, %v2375
      %2465 = vst.msk [vmem:[%s2295 + $0x61] sm:$0xff] %vm2456, %v2377
      %2466 = vst.msk [vmem:[%s2295 + $0x69] sm:$0xff] %vm2456, %v2379
      %2467 = vst.msk [vmem:[%s2295 + $0x79] sm:$0xff] %vm2456, %v2381
      %2468 = vst.msk [vmem:[%s2295 + $0x81] sm:$0xff] %vm2456, %v2383
      %2469 = vst.msk [vmem:[%s2295 + $0x91] sm:$0xff] %vm2456, %v2385
      %2470 = vst.msk [vmem:[%s2295 + $0x99] sm:$0xff] %vm2456, %v2387
      %2471 = vst.msk [vmem:[%s2295 + $0xa9] sm:$0xff] %vm2456, %v2389
      %2472 = vst.msk [vmem:[%s2295 + $0xb1] sm:$0xff] %vm2456, %v2391
      %2473 = vst.msk [vmem:[%s2295 + $0xc1] sm:$0xff] %vm2456, %v2393
      %2474 = vst.msk [vmem:[%s2295 + $0xc9] sm:$0xff] %vm2456, %v2395
      %2475 = vst.msk [vmem:[%s2295 + $0xd9] sm:$0xff] %vm2456, %v2397
      %2476 = vst.msk [vmem:[%s2295 + $0xe1] sm:$0xff] %vm2456, %v2399
      %2477 = vst.msk [vmem:[%s2295 + $0xf1] sm:$0xff] %vm2456, %v2401
      %2478 = vst.msk [vmem:[%s2295 + $0xf9] sm:$0xff] %vm2456, %v2403
      %2479 = vst.msk [vmem:[%s2295 + $0x109] sm:$0xff] %vm2456, %v2405
      %2480 = vst.msk [vmem:[%s2295 + $0x111] sm:$0xff] %vm2456, %v2407
      %2481 = vst.msk [vmem:[%s2295 + $0x121] sm:$0xff] %vm2456, %v2409
      %2482 = vst.msk [vmem:[%s2295 + $0x129] sm:$0xff] %vm2456, %v2411
      %2483 = vst.msk [vmem:[%s2295 + $0x139] sm:$0xff] %vm2456, %v2413
      %2484 = vst.msk [vmem:[%s2295 + $0x141] sm:$0xff] %vm2456, %v2415
      %2485 = vst.msk [vmem:[%s2295 + $0x151] sm:$0xff] %vm2456, %v2417
      %2486 = vst.msk [vmem:[%s2295 + $0x159] sm:$0xff] %vm2456, %v2419
      %2487 = vst.msk [vmem:[%s2295 + $0x169] sm:$0xff] %vm2456, %v2421
      %2488 = vst.msk [vmem:[%s2295 + $0x171] sm:$0xff] %vm2456, %v2423
      %v2489 = vld [vmem:[#allocation2] sm:$0xff]
      %v2490 = vld [vmem:[#allocation2 + $0x8] sm:$0xff]
      %v2491 = vld [vmem:[#allocation2 + $0x18] sm:$0xff]
      %v2492 = vld [vmem:[#allocation2 + $0x20] sm:$0xff]
      %v2493 = vld [vmem:[#allocation2 + $0x30] sm:$0xff]
      %v2494 = vld [vmem:[#allocation2 + $0x38] sm:$0xff]
      %v2495 = vld [vmem:[#allocation2 + $0x48] sm:$0xff]
      %v2496 = vld [vmem:[#allocation2 + $0x50] sm:$0xff]
      %v2497 = vld [vmem:[#allocation2 + $0x60] sm:$0xff]
      %v2498 = vld [vmem:[#allocation2 + $0x68] sm:$0xff]
      %v2499 = vld [vmem:[#allocation2 + $0x78] sm:$0xff]
      %v2500 = vld [vmem:[#allocation2 + $0x80] sm:$0xff]
      %v2501 = vld [vmem:[#allocation2 + $0x90] sm:$0xff]
      %v2502 = vld [vmem:[#allocation2 + $0x98] sm:$0xff]
      %v2503 = vld [vmem:[#allocation2 + $0xa8] sm:$0xff]
      %v2504 = vld [vmem:[#allocation2 + $0xb0] sm:$0xff]
      %v2505 = vld [vmem:[#allocation2 + $0xc0] sm:$0xff]
      %v2506 = vld [vmem:[#allocation2 + $0xc8] sm:$0xff]
      %v2507 = vld [vmem:[#allocation2 + $0xd8] sm:$0xff]
      %v2508 = vld [vmem:[#allocation2 + $0xe0] sm:$0xff]
      %v2509 = vld [vmem:[#allocation2 + $0xf0] sm:$0xff]
      %v2510 = vld [vmem:[#allocation2 + $0xf8] sm:$0xff]
      %v2511 = vld [vmem:[#allocation2 + $0x108] sm:$0xff]
      %v2512 = vld [vmem:[#allocation2 + $0x110] sm:$0xff]
      %v2513 = vld [vmem:[#allocation2 + $0x120] sm:$0xff]
      %v2514 = vld [vmem:[#allocation2 + $0x128] sm:$0xff]
      %v2515 = vld [vmem:[#allocation2 + $0x138] sm:$0xff]
      %v2516 = vld [vmem:[#allocation2 + $0x140] sm:$0xff]
      %v2517 = vld [vmem:[#allocation2 + $0x150] sm:$0xff]
      %v2518 = vld [vmem:[#allocation2 + $0x158] sm:$0xff]
      %v2519 = vld [vmem:[#allocation2 + $0x168] sm:$0xff]
      %v2520 = vld [vmem:[#allocation2 + $0x170] sm:$0xff]
      %v2521 = vld [vmem:[%s4] sm:$0xff]
      %v2522 = vld [vmem:[#allocation2 + $0x1] sm:$0xff]
      %v2523 = vld [vmem:[#allocation2 + $0x9] sm:$0xff]
      %v2524 = vld [vmem:[#allocation2 + $0x19] sm:$0xff]
      %v2525 = vld [vmem:[#allocation2 + $0x21] sm:$0xff]
      %v2526 = vld [vmem:[#allocation2 + $0x31] sm:$0xff]
      %v2527 = vld [vmem:[#allocation2 + $0x39] sm:$0xff]
      %v2528 = vld [vmem:[#allocation2 + $0x49] sm:$0xff]
      %v2529 = vld [vmem:[#allocation2 + $0x51] sm:$0xff]
      %v2530 = vld [vmem:[#allocation2 + $0x61] sm:$0xff]
      %v2531 = vld [vmem:[#allocation2 + $0x69] sm:$0xff]
      %v2532 = vld [vmem:[#allocation2 + $0x79] sm:$0xff]
      %v2533 = vld [vmem:[#allocation2 + $0x81] sm:$0xff]
      %v2534 = vld [vmem:[#allocation2 + $0x91] sm:$0xff]
      %v2535 = vld [vmem:[#allocation2 + $0x99] sm:$0xff]
      %v2536 = vld [vmem:[#allocation2 + $0xa9] sm:$0xff]
      %v2537 = vld [vmem:[#allocation2 + $0xb1] sm:$0xff]
      %v2538 = vld [vmem:[#allocation2 + $0xc1] sm:$0xff]
      %v2539 = vld [vmem:[#allocation2 + $0xc9] sm:$0xff]
      %v2540 = vld [vmem:[#allocation2 + $0xd9] sm:$0xff]
      %v2541 = vld [vmem:[#allocation2 + $0xe1] sm:$0xff]
      %v2542 = vld [vmem:[#allocation2 + $0xf1] sm:$0xff]
      %v2543 = vld [vmem:[#allocation2 + $0xf9] sm:$0xff]
      %v2544 = vld [vmem:[#allocation2 + $0x109] sm:$0xff]
      %v2545 = vld [vmem:[#allocation2 + $0x111] sm:$0xff]
      %v2546 = vld [vmem:[#allocation2 + $0x121] sm:$0xff]
      %v2547 = vld [vmem:[#allocation2 + $0x129] sm:$0xff]
      %v2548 = vld [vmem:[#allocation2 + $0x139] sm:$0xff]
      %v2549 = vld [vmem:[#allocation2 + $0x141] sm:$0xff]
      %v2550 = vld [vmem:[#allocation2 + $0x151] sm:$0xff]
      %v2551 = vld [vmem:[#allocation2 + $0x159] sm:$0xff]
      %v2552 = vld [vmem:[#allocation2 + $0x169] sm:$0xff]
      %v2553 = vld [vmem:[#allocation2 + $0x171] sm:$0xff]
      %s2554 = scalar_lea.vmem %s4, 8
      %v2555 = vld [vmem:[%s2554] sm:$0xff]
      %v2557 = vsel %vm380, %v2522, 0
      %v2560 = vsel %vm380, %v2523, 0
      %v2563 = vsel %vm380, %v2524, 0
      %v2566 = vsel %vm380, %v2525, 0
      %v2569 = vsel %vm380, %v2526, 0
      %v2572 = vsel %vm380, %v2527, 0
      %v2575 = vsel %vm380, %v2528, 0
      %v2578 = vsel %vm380, %v2529, 0
      %v2581 = vsel %vm380, %v2530, 0
      %v2584 = vsel %vm380, %v2531, 0
      %v2587 = vsel %vm380, %v2532, 0
      %v2590 = vsel %vm380, %v2533, 0
      %v2593 = vsel %vm380, %v2534, 0
      %v2596 = vsel %vm380, %v2535, 0
      %v2599 = vsel %vm380, %v2536, 0
      %v2602 = vsel %vm380, %v2537, 0
      %v2605 = vsel %vm380, %v2538, 0
      %v2608 = vsel %vm380, %v2539, 0
      %v2611 = vsel %vm380, %v2540, 0
      %v2614 = vsel %vm380, %v2541, 0
      %v2617 = vsel %vm380, %v2542, 0
      %v2620 = vsel %vm380, %v2543, 0
      %v2623 = vsel %vm380, %v2544, 0
      %v2626 = vsel %vm380, %v2545, 0
      %v2629 = vsel %vm380, %v2546, 0
      %v2632 = vsel %vm380, %v2547, 0
      %v2635 = vsel %vm380, %v2548, 0
      %v2638 = vsel %vm380, %v2549, 0
      %v2641 = vsel %vm380, %v2550, 0
      %v2644 = vsel %vm380, %v2551, 0
      %v2647 = vsel %vm380, %v2552, 0
      %v2650 = vsel %vm380, %v2553, 0
      %2652 = vmatprep.subr.mxu0 0.0
      %2653 = vmatpush1.msra.mxu0 %v2555
      %2654 = vmatprep.subr.mxu0 0.0
      %2655 = vmatpush1.msra.mxu0 0.0
      %2656 = vmatprep.subr.mxu0 0.0
      %2657 = vmatpush1.msra.mxu0 0.0
      %2658 = vmatprep.subr.mxu0 0.0
      %2659 = vmatpush1.msra.mxu0 0.0
      %2660 = vmatprep.subr.mxu0 0.0
      %2661 = vmatpush1.msra.mxu0 0.0
      %2662 = vmatprep.subr.mxu0 0.0
      %2663 = vmatpush1.msra.mxu0 0.0
      %2664 = vmatprep.subr.mxu0 0.0
      %2665 = vmatpush1.msra.mxu0 0.0
      %2666 = vmatprep.subr.mxu0 0.0
      %2667 = vmatpush1.msra.mxu0 0.0
      %2668 = vmatprep.subr.mxu0 0.0
      %2669 = vmatpush1.msra.mxu0 0.0
      %2670 = vmatprep.subr.mxu0 0.0
      %2671 = vmatpush1.msra.mxu0 0.0
      %2672 = vmatprep.subr.mxu0 0.0
      %2673 = vmatpush1.msra.mxu0 0.0
      %2674 = vmatprep.subr.mxu0 0.0
      %2675 = vmatpush1.msra.mxu0 0.0
      %2676 = vmatprep.subr.mxu0 0.0
      %2677 = vmatpush1.msra.mxu0 0.0
      %2678 = vmatprep.subr.mxu0 0.0
      %2679 = vmatpush1.msra.mxu0 0.0
      %2680 = vmatprep.subr.mxu0 0.0
      %2681 = vmatpush1.msra.mxu0 0.0
      %2682 = vmatprep.subr.mxu0 0.0
      %2683 = vmatpush1.msra.mxu0 0.0
      %2684 = vmatprep.subr.mxu0 0.0
      %2685 = vmatpush1.msra.mxu0 0.0
      %2686 = vmatprep.subr.mxu0 0.0
      %2687 = vmatpush1.msra.mxu0 0.0
      %2688 = vmatprep.subr.mxu0 0.0
      %2689 = vmatpush1.msra.mxu0 0.0
      %2690 = vmatprep.subr.mxu0 0.0
      %2691 = vmatpush1.msra.mxu0 0.0
      %2692 = vmatprep.subr.mxu0 0.0
      %2693 = vmatpush1.msra.mxu0 0.0
      %2694 = vmatprep.subr.mxu0 0.0
      %2695 = vmatpush1.msra.mxu0 0.0
      %2696 = vmatprep.subr.mxu0 0.0
      %2697 = vmatpush1.msra.mxu0 0.0
      %2698 = vmatprep.subr.mxu0 0.0
      %2699 = vmatpush1.msra.mxu0 0.0
      %2700 = vmatprep.subr.mxu0 0.0
      %2701 = vmatpush1.msra.mxu0 0.0
      %2702 = vmatprep.subr.mxu0 0.0
      %2703 = vmatpush1.msra.mxu0 0.0
      %2704 = vmatprep.subr.mxu0 0.0
      %2705 = vmatpush1.msra.mxu0 0.0
      %2706 = vmatprep.subr.mxu0 0.0
      %2707 = vmatpush1.msra.mxu0 0.0
      %2708 = vmatprep.subr.mxu0 0.0
      %2709 = vmatpush1.msra.mxu0 0.0
      %2710 = vmatprep.subr.mxu0 0.0
      %2711 = vmatpush1.msra.mxu0 0.0
      %2712 = vmatprep.subr.mxu0 0.0
      %2713 = vmatpush1.msra.mxu0 0.0
      %2714 = vmatprep.subr.mxu0 0.0
      %2715 = vmatpush1.msra.mxu0 0.0
      %2716 = vmatprep.mubr.f32.mxu0 0.0
      %2717 = vmatmul.mubr.f32.gmra.mrb[0].mxu0 %v2557
      %v2718 = vpop.f32.mrb[0].mxu0
      %v2719 = vadd.f32 0.0, %v2718
      %v2720 = vpop.f32.mrb[0].mxu0
      %2721 = vmatprep.mubr.f32.mxu0 0.0
      %2722 = vmatmul.mubr.f32.gmra.mrb[0].mxu0 %v2560
      %v2723 = vpop.f32.mrb[0].mxu0
      %v2724 = vadd.f32 0.0, %v2723
      %v2725 = vpop.f32.mrb[0].mxu0
      %2726 = vmatprep.mubr.f32.mxu0 0.0
      %2727 = vmatmul.mubr.f32.gmra.mrb[0].mxu0 %v2563
      %v2728 = vpop.f32.mrb[0].mxu0
      %v2729 = vadd.f32 0.0, %v2728
      %v2730 = vpop.f32.mrb[0].mxu0
      %2731 = vmatprep.mubr.f32.mxu0 0.0
      %2732 = vmatmul.mubr.f32.gmra.mrb[0].mxu0 %v2566
      %v2733 = vpop.f32.mrb[0].mxu0
      %v2734 = vadd.f32 0.0, %v2733
      %v2735 = vpop.f32.mrb[0].mxu0
      %2736 = vmatprep.mubr.f32.mxu0 0.0
      %2737 = vmatmul.mubr.f32.gmra.mrb[0].mxu0 %v2569
      %v2738 = vpop.f32.mrb[0].mxu0
      %v2739 = vadd.f32 0.0, %v2738
      %v2740 = vpop.f32.mrb[0].mxu0
      %2741 = vmatprep.mubr.f32.mxu0 0.0
      %2742 = vmatmul.mubr.f32.gmra.mrb[0].mxu0 %v2572
      %v2743 = vpop.f32.mrb[0].mxu0
      %v2744 = vadd.f32 0.0, %v2743
      %v2745 = vpop.f32.mrb[0].mxu0
      %2746 = vmatprep.mubr.f32.mxu0 0.0
      %2747 = vmatmul.mubr.f32.gmra.mrb[0].mxu0 %v2575
      %v2748 = vpop.f32.mrb[0].mxu0
      %v2749 = vadd.f32 0.0, %v2748
      %v2750 = vpop.f32.mrb[0].mxu0
      %2751 = vmatprep.mubr.f32.mxu0 0.0
      %2752 = vmatmul.mubr.f32.gmra.mrb[0].mxu0 %v2578
      %v2753 = vpop.f32.mrb[0].mxu0
      %v2754 = vadd.f32 0.0, %v2753
      %v2755 = vpop.f32.mrb[0].mxu0
      %2756 = vmatprep.mubr.f32.mxu0 0.0
      %2757 = vmatmul.mubr.f32.gmra.mrb[0].mxu0 %v2581
      %v2758 = vpop.f32.mrb[0].mxu0
      %v2759 = vadd.f32 0.0, %v2758
      %v2760 = vpop.f32.mrb[0].mxu0
      %2761 = vmatprep.mubr.f32.mxu0 0.0
      %2762 = vmatmul.mubr.f32.gmra.mrb[0].mxu0 %v2584
      %v2763 = vpop.f32.mrb[0].mxu0
      %v2764 = vadd.f32 0.0, %v2763
      %v2765 = vpop.f32.mrb[0].mxu0
      %2766 = vmatprep.mubr.f32.mxu0 0.0
      %2767 = vmatmul.mubr.f32.gmra.mrb[0].mxu0 %v2587
      %v2768 = vpop.f32.mrb[0].mxu0
      %v2769 = vadd.f32 0.0, %v2768
      %v2770 = vpop.f32.mrb[0].mxu0
      %2771 = vmatprep.mubr.f32.mxu0 0.0
      %2772 = vmatmul.mubr.f32.gmra.mrb[0].mxu0 %v2590
      %v2773 = vpop.f32.mrb[0].mxu0
      %v2774 = vadd.f32 0.0, %v2773
      %v2775 = vpop.f32.mrb[0].mxu0
      %2776 = vmatprep.mubr.f32.mxu0 0.0
      %2777 = vmatmul.mubr.f32.gmra.mrb[0].mxu0 %v2593
      %v2778 = vpop.f32.mrb[0].mxu0
      %v2779 = vadd.f32 0.0, %v2778
      %v2780 = vpop.f32.mrb[0].mxu0
      %2781 = vmatprep.mubr.f32.mxu0 0.0
      %2782 = vmatmul.mubr.f32.gmra.mrb[0].mxu0 %v2596
      %v2783 = vpop.f32.mrb[0].mxu0
      %v2784 = vadd.f32 0.0, %v2783
      %v2785 = vpop.f32.mrb[0].mxu0
      %2786 = vmatprep.mubr.f32.mxu0 0.0
      %2787 = vmatmul.mubr.f32.gmra.mrb[0].mxu0 %v2599
      %v2788 = vpop.f32.mrb[0].mxu0
      %v2789 = vadd.f32 0.0, %v2788
      %v2790 = vpop.f32.mrb[0].mxu0
      %2791 = vmatprep.mubr.f32.mxu0 0.0
      %2792 = vmatmul.mubr.f32.gmra.mrb[0].mxu0 %v2602
      %v2793 = vpop.f32.mrb[0].mxu0
      %v2794 = vadd.f32 0.0, %v2793
      %v2795 = vpop.f32.mrb[0].mxu0
      %2796 = vmatprep.mubr.f32.mxu0 0.0
      %2797 = vmatmul.mubr.f32.gmra.mrb[0].mxu0 %v2605
      %v2798 = vpop.f32.mrb[0].mxu0
      %v2799 = vadd.f32 0.0, %v2798
      %v2800 = vpop.f32.mrb[0].mxu0
      %2801 = vmatprep.mubr.f32.mxu0 0.0
      %2802 = vmatmul.mubr.f32.gmra.mrb[0].mxu0 %v2608
      %v2803 = vpop.f32.mrb[0].mxu0
      %v2804 = vadd.f32 0.0, %v2803
      %v2805 = vpop.f32.mrb[0].mxu0
      %2806 = vmatprep.mubr.f32.mxu0 0.0
      %2807 = vmatmul.mubr.f32.gmra.mrb[0].mxu0 %v2611
      %v2808 = vpop.f32.mrb[0].mxu0
      %v2809 = vadd.f32 0.0, %v2808
      %v2810 = vpop.f32.mrb[0].mxu0
      %2811 = vmatprep.mubr.f32.mxu0 0.0
      %2812 = vmatmul.mubr.f32.gmra.mrb[0].mxu0 %v2614
      %v2813 = vpop.f32.mrb[0].mxu0
      %v2814 = vadd.f32 0.0, %v2813
      %v2815 = vpop.f32.mrb[0].mxu0
      %2816 = vmatprep.mubr.f32.mxu0 0.0
      %2817 = vmatmul.mubr.f32.gmra.mrb[0].mxu0 %v2617
      %v2818 = vpop.f32.mrb[0].mxu0
      %v2819 = vadd.f32 0.0, %v2818
      %v2820 = vpop.f32.mrb[0].mxu0
      %2821 = vmatprep.mubr.f32.mxu0 0.0
      %2822 = vmatmul.mubr.f32.gmra.mrb[0].mxu0 %v2620
      %v2823 = vpop.f32.mrb[0].mxu0
      %v2824 = vadd.f32 0.0, %v2823
      %v2825 = vpop.f32.mrb[0].mxu0
      %2826 = vmatprep.mubr.f32.mxu0 0.0
      %2827 = vmatmul.mubr.f32.gmra.mrb[0].mxu0 %v2623
      %v2828 = vpop.f32.mrb[0].mxu0
      %v2829 = vadd.f32 0.0, %v2828
      %v2830 = vpop.f32.mrb[0].mxu0
      %2831 = vmatprep.mubr.f32.mxu0 0.0
      %2832 = vmatmul.mubr.f32.gmra.mrb[0].mxu0 %v2626
      %v2833 = vpop.f32.mrb[0].mxu0
      %v2834 = vadd.f32 0.0, %v2833
      %v2835 = vpop.f32.mrb[0].mxu0
      %2836 = vmatprep.mubr.f32.mxu0 0.0
      %2837 = vmatmul.mubr.f32.gmra.mrb[0].mxu0 %v2629
      %v2838 = vpop.f32.mrb[0].mxu0
      %v2839 = vadd.f32 0.0, %v2838
      %v2840 = vpop.f32.mrb[0].mxu0
      %2841 = vmatprep.mubr.f32.mxu0 0.0
      %2842 = vmatmul.mubr.f32.gmra.mrb[0].mxu0 %v2632
      %v2843 = vpop.f32.mrb[0].mxu0
      %v2844 = vadd.f32 0.0, %v2843
      %v2845 = vpop.f32.mrb[0].mxu0
      %2846 = vmatprep.mubr.f32.mxu0 0.0
      %2847 = vmatmul.mubr.f32.gmra.mrb[0].mxu0 %v2635
      %v2848 = vpop.f32.mrb[0].mxu0
      %v2849 = vadd.f32 0.0, %v2848
      %v2850 = vpop.f32.mrb[0].mxu0
      %2851 = vmatprep.mubr.f32.mxu0 0.0
      %2852 = vmatmul.mubr.f32.gmra.mrb[0].mxu0 %v2638
      %v2853 = vpop.f32.mrb[0].mxu0
      %v2854 = vadd.f32 0.0, %v2853
      %v2855 = vpop.f32.mrb[0].mxu0
      %2856 = vmatprep.mubr.f32.mxu0 0.0
      %2857 = vmatmul.mubr.f32.gmra.mrb[0].mxu0 %v2641
      %v2858 = vpop.f32.mrb[0].mxu0
      %v2859 = vadd.f32 0.0, %v2858
      %v2860 = vpop.f32.mrb[0].mxu0
      %2861 = vmatprep.mubr.f32.mxu0 0.0
      %2862 = vmatmul.mubr.f32.gmra.mrb[0].mxu0 %v2644
      %v2863 = vpop.f32.mrb[0].mxu0
      %v2864 = vadd.f32 0.0, %v2863
      %v2865 = vpop.f32.mrb[0].mxu0
      %2866 = vmatprep.mubr.f32.mxu0 0.0
      %2867 = vmatmul.mubr.f32.gmra.mrb[0].mxu0 %v2647
      %v2868 = vpop.f32.mrb[0].mxu0
      %v2869 = vadd.f32 0.0, %v2868
      %v2870 = vpop.f32.mrb[0].mxu0
      %2871 = vmatprep.mubr.f32.mxu0 0.0
      %2872 = vmatmul.mubr.f32.gmra.mrb[0].mxu0 %v2650
      %v2873 = vpop.f32.mrb[0].mxu0
      %v2874 = vadd.f32 0.0, %v2873
      %v2875 = vpop.f32.mrb[0].mxu0
      %2876 = vdwg.mxu0
      %v2878 = vsel %vm380, %v2489, 0
      %v2881 = vsel %vm380, %v2490, 0
      %v2884 = vsel %vm380, %v2491, 0
      %v2887 = vsel %vm380, %v2492, 0
      %v2890 = vsel %vm380, %v2493, 0
      %v2893 = vsel %vm380, %v2494, 0
      %v2896 = vsel %vm380, %v2495, 0
      %v2899 = vsel %vm380, %v2496, 0
      %v2902 = vsel %vm380, %v2497, 0
      %v2905 = vsel %vm380, %v2498, 0
      %v2908 = vsel %vm380, %v2499, 0
      %v2911 = vsel %vm380, %v2500, 0
      %v2914 = vsel %vm380, %v2501, 0
      %v2917 = vsel %vm380, %v2502, 0
      %v2920 = vsel %vm380, %v2503, 0
      %v2923 = vsel %vm380, %v2504, 0
      %v2926 = vsel %vm380, %v2505, 0
      %v2929 = vsel %vm380, %v2506, 0
      %v2932 = vsel %vm380, %v2507, 0
      %v2935 = vsel %vm380, %v2508, 0
      %v2938 = vsel %vm380, %v2509, 0
      %v2941 = vsel %vm380, %v2510, 0
      %v2944 = vsel %vm380, %v2511, 0
      %v2947 = vsel %vm380, %v2512, 0
      %v2950 = vsel %vm380, %v2513, 0
      %v2953 = vsel %vm380, %v2514, 0
      %v2956 = vsel %vm380, %v2515, 0
      %v2959 = vsel %vm380, %v2516, 0
      %v2962 = vsel %vm380, %v2517, 0
      %v2965 = vsel %vm380, %v2518, 0
      %v2968 = vsel %vm380, %v2519, 0
      %v2971 = vsel %vm380, %v2520, 0
      %2973 = vmatprep.subr.mxu0 0.0
      %2974 = vmatpush1.msra.mxu0 %v2521
      %2975 = vmatprep.subr.mxu0 0.0
      %2976 = vmatpush1.msra.mxu0 0.0
      %2977 = vmatprep.subr.mxu0 0.0
      %2978 = vmatpush1.msra.mxu0 0.0
      %2979 = vmatprep.subr.mxu0 0.0
      %2980 = vmatpush1.msra.mxu0 0.0
      %2981 = vmatprep.subr.mxu0 0.0
      %2982 = vmatpush1.msra.mxu0 0.0
      %2983 = vmatprep.subr.mxu0 0.0
      %2984 = vmatpush1.msra.mxu0 0.0
      %2985 = vmatprep.subr.mxu0 0.0
      %2986 = vmatpush1.msra.mxu0 0.0
      %2987 = vmatprep.subr.mxu0 0.0
      %2988 = vmatpush1.msra.mxu0 0.0
      %2989 = vmatprep.subr.mxu0 0.0
      %2990 = vmatpush1.msra.mxu0 0.0
      %2991 = vmatprep.subr.mxu0 0.0
      %2992 = vmatpush1.msra.mxu0 0.0
      %2993 = vmatprep.subr.mxu0 0.0
      %2994 = vmatpush1.msra.mxu0 0.0
      %2995 = vmatprep.subr.mxu0 0.0
      %2996 = vmatpush1.msra.mxu0 0.0
      %2997 = vmatprep.subr.mxu0 0.0
      %2998 = vmatpush1.msra.mxu0 0.0
      %2999 = vmatprep.subr.mxu0 0.0
      %3000 = vmatpush1.msra.mxu0 0.0
      %3001 = vmatprep.subr.mxu0 0.0
      %3002 = vmatpush1.msra.mxu0 0.0
      %3003 = vmatprep.subr.mxu0 0.0
      %3004 = vmatpush1.msra.mxu0 0.0
      %3005 = vmatprep.subr.mxu0 0.0
      %3006 = vmatpush1.msra.mxu0 0.0
      %3007 = vmatprep.subr.mxu0 0.0
      %3008 = vmatpush1.msra.mxu0 0.0
      %3009 = vmatprep.subr.mxu0 0.0
      %3010 = vmatpush1.msra.mxu0 0.0
      %3011 = vmatprep.subr.mxu0 0.0
      %3012 = vmatpush1.msra.mxu0 0.0
      %3013 = vmatprep.subr.mxu0 0.0
      %3014 = vmatpush1.msra.mxu0 0.0
      %3015 = vmatprep.subr.mxu0 0.0
      %3016 = vmatpush1.msra.mxu0 0.0
      %3017 = vmatprep.subr.mxu0 0.0
      %3018 = vmatpush1.msra.mxu0 0.0
      %3019 = vmatprep.subr.mxu0 0.0
      %3020 = vmatpush1.msra.mxu0 0.0
      %3021 = vmatprep.subr.mxu0 0.0
      %3022 = vmatpush1.msra.mxu0 0.0
      %3023 = vmatprep.subr.mxu0 0.0
      %3024 = vmatpush1.msra.mxu0 0.0
      %3025 = vmatprep.subr.mxu0 0.0
      %3026 = vmatpush1.msra.mxu0 0.0
      %3027 = vmatprep.subr.mxu0 0.0
      %3028 = vmatpush1.msra.mxu0 0.0
      %3029 = vmatprep.subr.mxu0 0.0
      %3030 = vmatpush1.msra.mxu0 0.0
      %3031 = vmatprep.subr.mxu0 0.0
      %3032 = vmatpush1.msra.mxu0 0.0
      %3033 = vmatprep.subr.mxu0 0.0
      %3034 = vmatpush1.msra.mxu0 0.0
      %3035 = vmatprep.subr.mxu0 0.0
      %3036 = vmatpush1.msra.mxu0 0.0
      %3037 = vmatprep.mubr.f32.mxu0 0.0
      %3038 = vmatmul.mubr.f32.gmra.mrb[0].mxu0 %v2878
      %v3039 = vpop.f32.mrb[0].mxu0
      %v3040 = vadd.f32 %v2719, %v3039
      %v3041 = vpop.f32.mrb[0].mxu0
      %3042 = vmatprep.mubr.f32.mxu0 0.0
      %3043 = vmatmul.mubr.f32.gmra.mrb[0].mxu0 %v2881
      %v3044 = vpop.f32.mrb[0].mxu0
      %v3045 = vadd.f32 %v2724, %v3044
      %v3046 = vpop.f32.mrb[0].mxu0
      %3047 = vmatprep.mubr.f32.mxu0 0.0
      %3048 = vmatmul.mubr.f32.gmra.mrb[0].mxu0 %v2884
      %v3049 = vpop.f32.mrb[0].mxu0
      %v3050 = vadd.f32 %v2729, %v3049
      %v3051 = vpop.f32.mrb[0].mxu0
      %3052 = vmatprep.mubr.f32.mxu0 0.0
      %3053 = vmatmul.mubr.f32.gmra.mrb[0].mxu0 %v2887
      %v3054 = vpop.f32.mrb[0].mxu0
      %v3055 = vadd.f32 %v2734, %v3054
      %v3056 = vpop.f32.mrb[0].mxu0
      %3057 = vmatprep.mubr.f32.mxu0 0.0
      %3058 = vmatmul.mubr.f32.gmra.mrb[0].mxu0 %v2890
      %v3059 = vpop.f32.mrb[0].mxu0
      %v3060 = vadd.f32 %v2739, %v3059
      %v3061 = vpop.f32.mrb[0].mxu0
      %3062 = vmatprep.mubr.f32.mxu0 0.0
      %3063 = vmatmul.mubr.f32.gmra.mrb[0].mxu0 %v2893
      %v3064 = vpop.f32.mrb[0].mxu0
      %v3065 = vadd.f32 %v2744, %v3064
      %v3066 = vpop.f32.mrb[0].mxu0
      %3067 = vmatprep.mubr.f32.mxu0 0.0
      %3068 = vmatmul.mubr.f32.gmra.mrb[0].mxu0 %v2896
      %v3069 = vpop.f32.mrb[0].mxu0
      %v3070 = vadd.f32 %v2749, %v3069
      %v3071 = vpop.f32.mrb[0].mxu0
      %3072 = vmatprep.mubr.f32.mxu0 0.0
      %3073 = vmatmul.mubr.f32.gmra.mrb[0].mxu0 %v2899
      %v3074 = vpop.f32.mrb[0].mxu0
      %v3075 = vadd.f32 %v2754, %v3074
      %v3076 = vpop.f32.mrb[0].mxu0
      %3077 = vmatprep.mubr.f32.mxu0 0.0
      %3078 = vmatmul.mubr.f32.gmra.mrb[0].mxu0 %v2902
      %v3079 = vpop.f32.mrb[0].mxu0
      %v3080 = vadd.f32 %v2759, %v3079
      %v3081 = vpop.f32.mrb[0].mxu0
      %3082 = vmatprep.mubr.f32.mxu0 0.0
      %3083 = vmatmul.mubr.f32.gmra.mrb[0].mxu0 %v2905
      %v3084 = vpop.f32.mrb[0].mxu0
      %v3085 = vadd.f32 %v2764, %v3084
      %v3086 = vpop.f32.mrb[0].mxu0
      %3087 = vmatprep.mubr.f32.mxu0 0.0
      %3088 = vmatmul.mubr.f32.gmra.mrb[0].mxu0 %v2908
      %v3089 = vpop.f32.mrb[0].mxu0
      %v3090 = vadd.f32 %v2769, %v3089
      %v3091 = vpop.f32.mrb[0].mxu0
      %3092 = vmatprep.mubr.f32.mxu0 0.0
      %3093 = vmatmul.mubr.f32.gmra.mrb[0].mxu0 %v2911
      %v3094 = vpop.f32.mrb[0].mxu0
      %v3095 = vadd.f32 %v2774, %v3094
      %v3096 = vpop.f32.mrb[0].mxu0
      %3097 = vmatprep.mubr.f32.mxu0 0.0
      %3098 = vmatmul.mubr.f32.gmra.mrb[0].mxu0 %v2914
      %v3099 = vpop.f32.mrb[0].mxu0
      %v3100 = vadd.f32 %v2779, %v3099
      %v3101 = vpop.f32.mrb[0].mxu0
      %3102 = vmatprep.mubr.f32.mxu0 0.0
      %3103 = vmatmul.mubr.f32.gmra.mrb[0].mxu0 %v2917
      %v3104 = vpop.f32.mrb[0].mxu0
      %v3105 = vadd.f32 %v2784, %v3104
      %v3106 = vpop.f32.mrb[0].mxu0
      %3107 = vmatprep.mubr.f32.mxu0 0.0
      %3108 = vmatmul.mubr.f32.gmra.mrb[0].mxu0 %v2920
      %v3109 = vpop.f32.mrb[0].mxu0
      %v3110 = vadd.f32 %v2789, %v3109
      %v3111 = vpop.f32.mrb[0].mxu0
      %3112 = vmatprep.mubr.f32.mxu0 0.0
      %3113 = vmatmul.mubr.f32.gmra.mrb[0].mxu0 %v2923
      %v3114 = vpop.f32.mrb[0].mxu0
      %v3115 = vadd.f32 %v2794, %v3114
      %v3116 = vpop.f32.mrb[0].mxu0
      %3117 = vmatprep.mubr.f32.mxu0 0.0
      %3118 = vmatmul.mubr.f32.gmra.mrb[0].mxu0 %v2926
      %v3119 = vpop.f32.mrb[0].mxu0
      %v3120 = vadd.f32 %v2799, %v3119
      %v3121 = vpop.f32.mrb[0].mxu0
      %3122 = vmatprep.mubr.f32.mxu0 0.0
      %3123 = vmatmul.mubr.f32.gmra.mrb[0].mxu0 %v2929
      %v3124 = vpop.f32.mrb[0].mxu0
      %v3125 = vadd.f32 %v2804, %v3124
      %v3126 = vpop.f32.mrb[0].mxu0
      %3127 = vmatprep.mubr.f32.mxu0 0.0
      %3128 = vmatmul.mubr.f32.gmra.mrb[0].mxu0 %v2932
      %v3129 = vpop.f32.mrb[0].mxu0
      %v3130 = vadd.f32 %v2809, %v3129
      %v3131 = vpop.f32.mrb[0].mxu0
      %3132 = vmatprep.mubr.f32.mxu0 0.0
      %3133 = vmatmul.mubr.f32.gmra.mrb[0].mxu0 %v2935
      %v3134 = vpop.f32.mrb[0].mxu0
      %v3135 = vadd.f32 %v2814, %v3134
      %v3136 = vpop.f32.mrb[0].mxu0
      %3137 = vmatprep.mubr.f32.mxu0 0.0
      %3138 = vmatmul.mubr.f32.gmra.mrb[0].mxu0 %v2938
      %v3139 = vpop.f32.mrb[0].mxu0
      %v3140 = vadd.f32 %v2819, %v3139
      %v3141 = vpop.f32.mrb[0].mxu0
      %3142 = vmatprep.mubr.f32.mxu0 0.0
      %3143 = vmatmul.mubr.f32.gmra.mrb[0].mxu0 %v2941
      %v3144 = vpop.f32.mrb[0].mxu0
      %v3145 = vadd.f32 %v2824, %v3144
      %v3146 = vpop.f32.mrb[0].mxu0
      %3147 = vmatprep.mubr.f32.mxu0 0.0
      %3148 = vmatmul.mubr.f32.gmra.mrb[0].mxu0 %v2944
      %v3149 = vpop.f32.mrb[0].mxu0
      %v3150 = vadd.f32 %v2829, %v3149
      %v3151 = vpop.f32.mrb[0].mxu0
      %3152 = vmatprep.mubr.f32.mxu0 0.0
      %3153 = vmatmul.mubr.f32.gmra.mrb[0].mxu0 %v2947
      %v3154 = vpop.f32.mrb[0].mxu0
      %v3155 = vadd.f32 %v2834, %v3154
      %v3156 = vpop.f32.mrb[0].mxu0
      %3157 = vmatprep.mubr.f32.mxu0 0.0
      %3158 = vmatmul.mubr.f32.gmra.mrb[0].mxu0 %v2950
      %v3159 = vpop.f32.mrb[0].mxu0
      %v3160 = vadd.f32 %v2839, %v3159
      %v3161 = vpop.f32.mrb[0].mxu0
      %3162 = vmatprep.mubr.f32.mxu0 0.0
      %3163 = vmatmul.mubr.f32.gmra.mrb[0].mxu0 %v2953
      %v3164 = vpop.f32.mrb[0].mxu0
      %v3165 = vadd.f32 %v2844, %v3164
      %v3166 = vpop.f32.mrb[0].mxu0
      %3167 = vmatprep.mubr.f32.mxu0 0.0
      %3168 = vmatmul.mubr.f32.gmra.mrb[0].mxu0 %v2956
      %v3169 = vpop.f32.mrb[0].mxu0
      %v3170 = vadd.f32 %v2849, %v3169
      %v3171 = vpop.f32.mrb[0].mxu0
      %3172 = vmatprep.mubr.f32.mxu0 0.0
      %3173 = vmatmul.mubr.f32.gmra.mrb[0].mxu0 %v2959
      %v3174 = vpop.f32.mrb[0].mxu0
      %v3175 = vadd.f32 %v2854, %v3174
      %v3176 = vpop.f32.mrb[0].mxu0
      %3177 = vmatprep.mubr.f32.mxu0 0.0
      %3178 = vmatmul.mubr.f32.gmra.mrb[0].mxu0 %v2962
      %v3179 = vpop.f32.mrb[0].mxu0
      %v3180 = vadd.f32 %v2859, %v3179
      %v3181 = vpop.f32.mrb[0].mxu0
      %3182 = vmatprep.mubr.f32.mxu0 0.0
      %3183 = vmatmul.mubr.f32.gmra.mrb[0].mxu0 %v2965
      %v3184 = vpop.f32.mrb[0].mxu0
      %v3185 = vadd.f32 %v2864, %v3184
      %v3186 = vpop.f32.mrb[0].mxu0
      %3187 = vmatprep.mubr.f32.mxu0 0.0
      %3188 = vmatmul.mubr.f32.gmra.mrb[0].mxu0 %v2968
      %v3189 = vpop.f32.mrb[0].mxu0
      %v3190 = vadd.f32 %v2869, %v3189
      %v3191 = vpop.f32.mrb[0].mxu0
      %3192 = vmatprep.mubr.f32.mxu0 0.0
      %3193 = vmatmul.mubr.f32.gmra.mrb[0].mxu0 %v2971
      %v3194 = vpop.f32.mrb[0].mxu0
      %v3195 = vadd.f32 %v2874, %v3194
      %v3196 = vpop.f32.mrb[0].mxu0
      %3197 = vdwg.mxu0
      %v3198 = vld [vmem:[#allocation2 + $0x2] sm:$0xff]
      %v3199 = vld [vmem:[#allocation2 + $0xa] sm:$0xff]
      %v3200 = vld [vmem:[#allocation2 + $0x1a] sm:$0xff]
      %v3201 = vld [vmem:[#allocation2 + $0x22] sm:$0xff]
      %v3202 = vld [vmem:[#allocation2 + $0x32] sm:$0xff]
      %v3203 = vld [vmem:[#allocation2 + $0x3a] sm:$0xff]
      %v3204 = vld [vmem:[#allocation2 + $0x4a] sm:$0xff]
      %v3205 = vld [vmem:[#allocation2 + $0x52] sm:$0xff]
      %v3206 = vld [vmem:[#allocation2 + $0x62] sm:$0xff]
      %v3207 = vld [vmem:[#allocation2 + $0x6a] sm:$0xff]
      %v3208 = vld [vmem:[#allocation2 + $0x7a] sm:$0xff]
      %v3209 = vld [vmem:[#allocation2 + $0x82] sm:$0xff]
      %v3210 = vld [vmem:[#allocation2 + $0x92] sm:$0xff]
      %v3211 = vld [vmem:[#allocation2 + $0x9a] sm:$0xff]
      %v3212 = vld [vmem:[#allocation2 + $0xaa] sm:$0xff]
      %v3213 = vld [vmem:[#allocation2 + $0xb2] sm:$0xff]
      %v3214 = vld [vmem:[#allocation2 + $0xc2] sm:$0xff]
      %v3215 = vld [vmem:[#allocation2 + $0xca] sm:$0xff]
      %v3216 = vld [vmem:[#allocation2 + $0xda] sm:$0xff]
      %v3217 = vld [vmem:[#allocation2 + $0xe2] sm:$0xff]
      %v3218 = vld [vmem:[#allocation2 + $0xf2] sm:$0xff]
      %v3219 = vld [vmem:[#allocation2 + $0xfa] sm:$0xff]
      %v3220 = vld [vmem:[#allocation2 + $0x10a] sm:$0xff]
      %v3221 = vld [vmem:[#allocation2 + $0x112] sm:$0xff]
      %v3222 = vld [vmem:[#allocation2 + $0x122] sm:$0xff]
      %v3223 = vld [vmem:[#allocation2 + $0x12a] sm:$0xff]
      %v3224 = vld [vmem:[#allocation2 + $0x13a] sm:$0xff]
      %v3225 = vld [vmem:[#allocation2 + $0x142] sm:$0xff]
      %v3226 = vld [vmem:[#allocation2 + $0x152] sm:$0xff]
      %v3227 = vld [vmem:[#allocation2 + $0x15a] sm:$0xff]
      %v3228 = vld [vmem:[#allocation2 + $0x16a] sm:$0xff]
      %v3229 = vld [vmem:[#allocation2 + $0x172] sm:$0xff]
      %s3230 = scalar_lea.vmem %s4, 16
      %v3231 = vld [vmem:[%s3230] sm:$0xff]
      %v3233 = vsel %vm380, %v3198, 0
      %v3236 = vsel %vm380, %v3199, 0
      %v3239 = vsel %vm380, %v3200, 0
      %v3242 = vsel %vm380, %v3201, 0
      %v3245 = vsel %vm380, %v3202, 0
      %v3248 = vsel %vm380, %v3203, 0
      %v3251 = vsel %vm380, %v3204, 0
      %v3254 = vsel %vm380, %v3205, 0
      %v3257 = vsel %vm380, %v3206, 0
      %v3260 = vsel %vm380, %v3207, 0
      %v3263 = vsel %vm380, %v3208, 0
      %v3266 = vsel %vm380, %v3209, 0
      %v3269 = vsel %vm380, %v3210, 0
      %v3272 = vsel %vm380, %v3211, 0
      %v3275 = vsel %vm380, %v3212, 0
      %v3278 = vsel %vm380, %v3213, 0
      %v3281 = vsel %vm380, %v3214, 0
      %v3284 = vsel %vm380, %v3215, 0
      %v3287 = vsel %vm380, %v3216, 0
      %v3290 = vsel %vm380, %v3217, 0
      %v3293 = vsel %vm380, %v3218, 0
      %v3296 = vsel %vm380, %v3219, 0
      %v3299 = vsel %vm380, %v3220, 0
      %v3302 = vsel %vm380, %v3221, 0
      %v3305 = vsel %vm380, %v3222, 0
      %v3308 = vsel %vm380, %v3223, 0
      %v3311 = vsel %vm380, %v3224, 0
      %v3314 = vsel %vm380, %v3225, 0
      %v3317 = vsel %vm380, %v3226, 0
      %v3320 = vsel %vm380, %v3227, 0
      %v3323 = vsel %vm380, %v3228, 0
      %v3326 = vsel %vm380, %v3229, 0
      %3328 = vmatprep.subr.mxu0 0.0
      %3329 = vmatpush1.msra.mxu0 %v3231
      %3330 = vmatprep.subr.mxu0 0.0
      %3331 = vmatpush1.msra.mxu0 0.0
      %3332 = vmatprep.subr.mxu0 0.0
      %3333 = vmatpush1.msra.mxu0 0.0
      %3334 = vmatprep.subr.mxu0 0.0
      %3335 = vmatpush1.msra.mxu0 0.0
      %3336 = vmatprep.subr.mxu0 0.0
      %3337 = vmatpush1.msra.mxu0 0.0
      %3338 = vmatprep.subr.mxu0 0.0
      %3339 = vmatpush1.msra.mxu0 0.0
      %3340 = vmatprep.subr.mxu0 0.0
      %3341 = vmatpush1.msra.mxu0 0.0
      %3342 = vmatprep.subr.mxu0 0.0
      %3343 = vmatpush1.msra.mxu0 0.0
      %3344 = vmatprep.subr.mxu0 0.0
      %3345 = vmatpush1.msra.mxu0 0.0
      %3346 = vmatprep.subr.mxu0 0.0
      %3347 = vmatpush1.msra.mxu0 0.0
      %3348 = vmatprep.subr.mxu0 0.0
      %3349 = vmatpush1.msra.mxu0 0.0
      %3350 = vmatprep.subr.mxu0 0.0
      %3351 = vmatpush1.msra.mxu0 0.0
      %3352 = vmatprep.subr.mxu0 0.0
      %3353 = vmatpush1.msra.mxu0 0.0
      %3354 = vmatprep.subr.mxu0 0.0
      %3355 = vmatpush1.msra.mxu0 0.0
      %3356 = vmatprep.subr.mxu0 0.0
      %3357 = vmatpush1.msra.mxu0 0.0
      %3358 = vmatprep.subr.mxu0 0.0
      %3359 = vmatpush1.msra.mxu0 0.0
      %3360 = vmatprep.subr.mxu0 0.0
      %3361 = vmatpush1.msra.mxu0 0.0
      %3362 = vmatprep.subr.mxu0 0.0
      %3363 = vmatpush1.msra.mxu0 0.0
      %3364 = vmatprep.subr.mxu0 0.0
      %3365 = vmatpush1.msra.mxu0 0.0
      %3366 = vmatprep.subr.mxu0 0.0
      %3367 = vmatpush1.msra.mxu0 0.0
      %3368 = vmatprep.subr.mxu0 0.0
      %3369 = vmatpush1.msra.mxu0 0.0
      %3370 = vmatprep.subr.mxu0 0.0
      %3371 = vmatpush1.msra.mxu0 0.0
      %3372 = vmatprep.subr.mxu0 0.0
      %3373 = vmatpush1.msra.mxu0 0.0
      %3374 = vmatprep.subr.mxu0 0.0
      %3375 = vmatpush1.msra.mxu0 0.0
      %3376 = vmatprep.subr.mxu0 0.0
      %3377 = vmatpush1.msra.mxu0 0.0
      %3378 = vmatprep.subr.mxu0 0.0
      %3379 = vmatpush1.msra.mxu0 0.0
      %3380 = vmatprep.subr.mxu0 0.0
      %3381 = vmatpush1.msra.mxu0 0.0
      %3382 = vmatprep.subr.mxu0 0.0
      %3383 = vmatpush1.msra.mxu0 0.0
      %3384 = vmatprep.subr.mxu0 0.0
      %3385 = vmatpush1.msra.mxu0 0.0
      %3386 = vmatprep.subr.mxu0 0.0
      %3387 = vmatpush1.msra.mxu0 0.0
      %3388 = vmatprep.subr.mxu0 0.0
      %3389 = vmatpush1.msra.mxu0 0.0
      %3390 = vmatprep.subr.mxu0 0.0
      %3391 = vmatpush1.msra.mxu0 0.0
      %3392 = vmatprep.mubr.f32.mxu0 0.0
      %3393 = vmatmul.mubr.f32.gmra.mrb[0].mxu0 %v3233
      %v3394 = vpop.f32.mrb[0].mxu0
      %v3395 = vadd.f32 0.0, %v3394
      %v3396 = vpop.f32.mrb[0].mxu0
      %3397 = vmatprep.mubr.f32.mxu0 0.0
      %3398 = vmatmul.mubr.f32.gmra.mrb[0].mxu0 %v3236
      %v3399 = vpop.f32.mrb[0].mxu0
      %v3400 = vadd.f32 0.0, %v3399
      %v3401 = vpop.f32.mrb[0].mxu0
      %3402 = vmatprep.mubr.f32.mxu0 0.0
      %3403 = vmatmul.mubr.f32.gmra.mrb[0].mxu0 %v3239
      %v3404 = vpop.f32.mrb[0].mxu0
      %v3405 = vadd.f32 0.0, %v3404
      %v3406 = vpop.f32.mrb[0].mxu0
      %3407 = vmatprep.mubr.f32.mxu0 0.0
      %3408 = vmatmul.mubr.f32.gmra.mrb[0].mxu0 %v3242
      %v3409 = vpop.f32.mrb[0].mxu0
      %v3410 = vadd.f32 0.0, %v3409
      %v3411 = vpop.f32.mrb[0].mxu0
      %3412 = vmatprep.mubr.f32.mxu0 0.0
      %3413 = vmatmul.mubr.f32.gmra.mrb[0].mxu0 %v3245
      %v3414 = vpop.f32.mrb[0].mxu0
      %v3415 = vadd.f32 0.0, %v3414
      %v3416 = vpop.f32.mrb[0].mxu0
      %3417 = vmatprep.mubr.f32.mxu0 0.0
      %3418 = vmatmul.mubr.f32.gmra.mrb[0].mxu0 %v3248
      %v3419 = vpop.f32.mrb[0].mxu0
      %v3420 = vadd.f32 0.0, %v3419
      %v3421 = vpop.f32.mrb[0].mxu0
      %3422 = vmatprep.mubr.f32.mxu0 0.0
      %3423 = vmatmul.mubr.f32.gmra.mrb[0].mxu0 %v3251
      %v3424 = vpop.f32.mrb[0].mxu0
      %v3425 = vadd.f32 0.0, %v3424
      %v3426 = vpop.f32.mrb[0].mxu0
      %3427 = vmatprep.mubr.f32.mxu0 0.0
      %3428 = vmatmul.mubr.f32.gmra.mrb[0].mxu0 %v3254
      %v3429 = vpop.f32.mrb[0].mxu0
      %v3430 = vadd.f32 0.0, %v3429
      %v3431 = vpop.f32.mrb[0].mxu0
      %3432 = vmatprep.mubr.f32.mxu0 0.0
      %3433 = vmatmul.mubr.f32.gmra.mrb[0].mxu0 %v3257
      %v3434 = vpop.f32.mrb[0].mxu0
      %v3435 = vadd.f32 0.0, %v3434
      %v3436 = vpop.f32.mrb[0].mxu0
      %3437 = vmatprep.mubr.f32.mxu0 0.0
      %3438 = vmatmul.mubr.f32.gmra.mrb[0].mxu0 %v3260
      %v3439 = vpop.f32.mrb[0].mxu0
      %v3440 = vadd.f32 0.0, %v3439
      %v3441 = vpop.f32.mrb[0].mxu0
      %3442 = vmatprep.mubr.f32.mxu0 0.0
      %3443 = vmatmul.mubr.f32.gmra.mrb[0].mxu0 %v3263
      %v3444 = vpop.f32.mrb[0].mxu0
      %v3445 = vadd.f32 0.0, %v3444
      %v3446 = vpop.f32.mrb[0].mxu0
      %3447 = vmatprep.mubr.f32.mxu0 0.0
      %3448 = vmatmul.mubr.f32.gmra.mrb[0].mxu0 %v3266
      %v3449 = vpop.f32.mrb[0].mxu0
      %v3450 = vadd.f32 0.0, %v3449
      %v3451 = vpop.f32.mrb[0].mxu0
      %3452 = vmatprep.mubr.f32.mxu0 0.0
      %3453 = vmatmul.mubr.f32.gmra.mrb[0].mxu0 %v3269
      %v3454 = vpop.f32.mrb[0].mxu0
      %v3455 = vadd.f32 0.0, %v3454
      %v3456 = vpop.f32.mrb[0].mxu0
      %3457 = vmatprep.mubr.f32.mxu0 0.0
      %3458 = vmatmul.mubr.f32.gmra.mrb[0].mxu0 %v3272
      %v3459 = vpop.f32.mrb[0].mxu0
      %v3460 = vadd.f32 0.0, %v3459
      %v3461 = vpop.f32.mrb[0].mxu0
      %3462 = vmatprep.mubr.f32.mxu0 0.0
      %3463 = vmatmul.mubr.f32.gmra.mrb[0].mxu0 %v3275
      %v3464 = vpop.f32.mrb[0].mxu0
      %v3465 = vadd.f32 0.0, %v3464
      %v3466 = vpop.f32.mrb[0].mxu0
      %3467 = vmatprep.mubr.f32.mxu0 0.0
      %3468 = vmatmul.mubr.f32.gmra.mrb[0].mxu0 %v3278
      %v3469 = vpop.f32.mrb[0].mxu0
      %v3470 = vadd.f32 0.0, %v3469
      %v3471 = vpop.f32.mrb[0].mxu0
      %3472 = vmatprep.mubr.f32.mxu0 0.0
      %3473 = vmatmul.mubr.f32.gmra.mrb[0].mxu0 %v3281
      %v3474 = vpop.f32.mrb[0].mxu0
      %v3475 = vadd.f32 0.0, %v3474
      %v3476 = vpop.f32.mrb[0].mxu0
      %3477 = vmatprep.mubr.f32.mxu0 0.0
      %3478 = vmatmul.mubr.f32.gmra.mrb[0].mxu0 %v3284
      %v3479 = vpop.f32.mrb[0].mxu0
      %v3480 = vadd.f32 0.0, %v3479
      %v3481 = vpop.f32.mrb[0].mxu0
      %3482 = vmatprep.mubr.f32.mxu0 0.0
      %3483 = vmatmul.mubr.f32.gmra.mrb[0].mxu0 %v3287
      %v3484 = vpop.f32.mrb[0].mxu0
      %v3485 = vadd.f32 0.0, %v3484
      %v3486 = vpop.f32.mrb[0].mxu0
      %3487 = vmatprep.mubr.f32.mxu0 0.0
      %3488 = vmatmul.mubr.f32.gmra.mrb[0].mxu0 %v3290
      %v3489 = vpop.f32.mrb[0].mxu0
      %v3490 = vadd.f32 0.0, %v3489
      %v3491 = vpop.f32.mrb[0].mxu0
      %3492 = vmatprep.mubr.f32.mxu0 0.0
      %3493 = vmatmul.mubr.f32.gmra.mrb[0].mxu0 %v3293
      %v3494 = vpop.f32.mrb[0].mxu0
      %v3495 = vadd.f32 0.0, %v3494
      %v3496 = vpop.f32.mrb[0].mxu0
      %3497 = vmatprep.mubr.f32.mxu0 0.0
      %3498 = vmatmul.mubr.f32.gmra.mrb[0].mxu0 %v3296
      %v3499 = vpop.f32.mrb[0].mxu0
      %v3500 = vadd.f32 0.0, %v3499
      %v3501 = vpop.f32.mrb[0].mxu0
      %3502 = vmatprep.mubr.f32.mxu0 0.0
      %3503 = vmatmul.mubr.f32.gmra.mrb[0].mxu0 %v3299
      %v3504 = vpop.f32.mrb[0].mxu0
      %v3505 = vadd.f32 0.0, %v3504
      %v3506 = vpop.f32.mrb[0].mxu0
      %3507 = vmatprep.mubr.f32.mxu0 0.0
      %3508 = vmatmul.mubr.f32.gmra.mrb[0].mxu0 %v3302
      %v3509 = vpop.f32.mrb[0].mxu0
      %v3510 = vadd.f32 0.0, %v3509
      %v3511 = vpop.f32.mrb[0].mxu0
      %3512 = vmatprep.mubr.f32.mxu0 0.0
      %3513 = vmatmul.mubr.f32.gmra.mrb[0].mxu0 %v3305
      %v3514 = vpop.f32.mrb[0].mxu0
      %v3515 = vadd.f32 0.0, %v3514
      %v3516 = vpop.f32.mrb[0].mxu0
      %3517 = vmatprep.mubr.f32.mxu0 0.0
      %3518 = vmatmul.mubr.f32.gmra.mrb[0].mxu0 %v3308
      %v3519 = vpop.f32.mrb[0].mxu0
      %v3520 = vadd.f32 0.0, %v3519
      %v3521 = vpop.f32.mrb[0].mxu0
      %3522 = vmatprep.mubr.f32.mxu0 0.0
      %3523 = vmatmul.mubr.f32.gmra.mrb[0].mxu0 %v3311
      %v3524 = vpop.f32.mrb[0].mxu0
      %v3525 = vadd.f32 0.0, %v3524
      %v3526 = vpop.f32.mrb[0].mxu0
      %3527 = vmatprep.mubr.f32.mxu0 0.0
      %3528 = vmatmul.mubr.f32.gmra.mrb[0].mxu0 %v3314
      %v3529 = vpop.f32.mrb[0].mxu0
      %v3530 = vadd.f32 0.0, %v3529
      %v3531 = vpop.f32.mrb[0].mxu0
      %3532 = vmatprep.mubr.f32.mxu0 0.0
      %3533 = vmatmul.mubr.f32.gmra.mrb[0].mxu0 %v3317
      %v3534 = vpop.f32.mrb[0].mxu0
      %v3535 = vadd.f32 0.0, %v3534
      %v3536 = vpop.f32.mrb[0].mxu0
      %3537 = vmatprep.mubr.f32.mxu0 0.0
      %3538 = vmatmul.mubr.f32.gmra.mrb[0].mxu0 %v3320
      %v3539 = vpop.f32.mrb[0].mxu0
      %v3540 = vadd.f32 0.0, %v3539
      %v3541 = vpop.f32.mrb[0].mxu0
      %3542 = vmatprep.mubr.f32.mxu0 0.0
      %3543 = vmatmul.mubr.f32.gmra.mrb[0].mxu0 %v3323
      %v3544 = vpop.f32.mrb[0].mxu0
      %v3545 = vadd.f32 0.0, %v3544
      %v3546 = vpop.f32.mrb[0].mxu0
      %3547 = vmatprep.mubr.f32.mxu0 0.0
      %3548 = vmatmul.mubr.f32.gmra.mrb[0].mxu0 %v3326
      %v3549 = vpop.f32.mrb[0].mxu0
      %v3550 = vadd.f32 0.0, %v3549
      %v3551 = vpop.f32.mrb[0].mxu0
      %3552 = vdwg.mxu0
      %v3553 = vadd.f32 %v3040, %v3395
      %v3554 = vadd.f32 %v3045, %v3400
      %v3555 = vadd.f32 %v3050, %v3405
      %v3556 = vadd.f32 %v3055, %v3410
      %v3557 = vadd.f32 %v3060, %v3415
      %v3558 = vadd.f32 %v3065, %v3420
      %v3559 = vadd.f32 %v3070, %v3425
      %v3560 = vadd.f32 %v3075, %v3430
      %v3561 = vadd.f32 %v3080, %v3435
      %v3562 = vadd.f32 %v3085, %v3440
      %v3563 = vadd.f32 %v3090, %v3445
      %v3564 = vadd.f32 %v3095, %v3450
      %v3565 = vadd.f32 %v3100, %v3455
      %v3566 = vadd.f32 %v3105, %v3460
      %v3567 = vadd.f32 %v3110, %v3465
      %v3568 = vadd.f32 %v3115, %v3470
      %v3569 = vadd.f32 %v3120, %v3475
      %v3570 = vadd.f32 %v3125, %v3480
      %v3571 = vadd.f32 %v3130, %v3485
      %v3572 = vadd.f32 %v3135, %v3490
      %v3573 = vadd.f32 %v3140, %v3495
      %v3574 = vadd.f32 %v3145, %v3500
      %v3575 = vadd.f32 %v3150, %v3505
      %v3576 = vadd.f32 %v3155, %v3510
      %v3577 = vadd.f32 %v3160, %v3515
      %v3578 = vadd.f32 %v3165, %v3520
      %v3579 = vadd.f32 %v3170, %v3525
      %v3580 = vadd.f32 %v3175, %v3530
      %v3581 = vadd.f32 %v3180, %v3535
      %v3582 = vadd.f32 %v3185, %v3540
      %v3583 = vadd.f32 %v3190, %v3545
      %v3584 = vadd.f32 %v3195, %v3550
      %v3585 = vld [vmem:[%s2295] sm:$0xff]
      %v3586 = vld [vmem:[%s2295 + $0x8] sm:$0xff]
      %v3587 = vld [vmem:[%s2295 + $0x18] sm:$0xff]
      %v3588 = vld [vmem:[%s2295 + $0x20] sm:$0xff]
      %v3589 = vld [vmem:[%s2295 + $0x30] sm:$0xff]
      %v3590 = vld [vmem:[%s2295 + $0x38] sm:$0xff]
      %v3591 = vld [vmem:[%s2295 + $0x48] sm:$0xff]
      %v3592 = vld [vmem:[%s2295 + $0x50] sm:$0xff]
      %v3593 = vld [vmem:[%s2295 + $0x60] sm:$0xff]
      %v3594 = vld [vmem:[%s2295 + $0x68] sm:$0xff]
      %v3595 = vld [vmem:[%s2295 + $0x78] sm:$0xff]
      %v3596 = vld [vmem:[%s2295 + $0x80] sm:$0xff]
      %v3597 = vld [vmem:[%s2295 + $0x90] sm:$0xff]
      %v3598 = vld [vmem:[%s2295 + $0x98] sm:$0xff]
      %v3599 = vld [vmem:[%s2295 + $0xa8] sm:$0xff]
      %v3600 = vld [vmem:[%s2295 + $0xb0] sm:$0xff]
      %v3601 = vld [vmem:[%s2295 + $0xc0] sm:$0xff]
      %v3602 = vld [vmem:[%s2295 + $0xc8] sm:$0xff]
      %v3603 = vld [vmem:[%s2295 + $0xd8] sm:$0xff]
      %v3604 = vld [vmem:[%s2295 + $0xe0] sm:$0xff]
      %v3605 = vld [vmem:[%s2295 + $0xf0] sm:$0xff]
      %v3606 = vld [vmem:[%s2295 + $0xf8] sm:$0xff]
      %v3607 = vld [vmem:[%s2295 + $0x108] sm:$0xff]
      %v3608 = vld [vmem:[%s2295 + $0x110] sm:$0xff]
      %v3609 = vld [vmem:[%s2295 + $0x120] sm:$0xff]
      %v3610 = vld [vmem:[%s2295 + $0x128] sm:$0xff]
      %v3611 = vld [vmem:[%s2295 + $0x138] sm:$0xff]
      %v3612 = vld [vmem:[%s2295 + $0x140] sm:$0xff]
      %v3613 = vld [vmem:[%s2295 + $0x150] sm:$0xff]
      %v3614 = vld [vmem:[%s2295 + $0x158] sm:$0xff]
      %v3615 = vld [vmem:[%s2295 + $0x168] sm:$0xff]
      %v3616 = vld [vmem:[%s2295 + $0x170] sm:$0xff]
      %s3617 = scalar_lea.vmem %s4, 24
      %v3618 = vld [vmem:[%s3617] sm:$0xff]
      %v3620 = vsel %vm380, %v3585, 0
      %v3623 = vsel %vm380, %v3586, 0
      %v3626 = vsel %vm380, %v3587, 0
      %v3629 = vsel %vm380, %v3588, 0
      %v3632 = vsel %vm380, %v3589, 0
      %v3635 = vsel %vm380, %v3590, 0
      %v3638 = vsel %vm380, %v3591, 0
      %v3641 = vsel %vm380, %v3592, 0
      %v3644 = vsel %vm380, %v3593, 0
      %v3647 = vsel %vm380, %v3594, 0
      %v3650 = vsel %vm380, %v3595, 0
      %v3653 = vsel %vm380, %v3596, 0
      %v3656 = vsel %vm380, %v3597, 0
      %v3659 = vsel %vm380, %v3598, 0
      %v3662 = vsel %vm380, %v3599, 0
      %v3665 = vsel %vm380, %v3600, 0
      %v3668 = vsel %vm380, %v3601, 0
      %v3671 = vsel %vm380, %v3602, 0
      %v3674 = vsel %vm380, %v3603, 0
      %v3677 = vsel %vm380, %v3604, 0
      %v3680 = vsel %vm380, %v3605, 0
      %v3683 = vsel %vm380, %v3606, 0
      %v3686 = vsel %vm380, %v3607, 0
      %v3689 = vsel %vm380, %v3608, 0
      %v3692 = vsel %vm380, %v3609, 0
      %v3695 = vsel %vm380, %v3610, 0
      %v3698 = vsel %vm380, %v3611, 0
      %v3701 = vsel %vm380, %v3612, 0
      %v3704 = vsel %vm380, %v3613, 0
      %v3707 = vsel %vm380, %v3614, 0
      %v3710 = vsel %vm380, %v3615, 0
      %v3713 = vsel %vm380, %v3616, 0
      %3715 = vmatprep.subr.mxu0 0.0
      %3716 = vmatpush1.msra.mxu0 %v3618
      %3717 = vmatprep.subr.mxu0 0.0
      %3718 = vmatpush1.msra.mxu0 0.0
      %3719 = vmatprep.subr.mxu0 0.0
      %3720 = vmatpush1.msra.mxu0 0.0
      %3721 = vmatprep.subr.mxu0 0.0
      %3722 = vmatpush1.msra.mxu0 0.0
      %3723 = vmatprep.subr.mxu0 0.0
      %3724 = vmatpush1.msra.mxu0 0.0
      %3725 = vmatprep.subr.mxu0 0.0
      %3726 = vmatpush1.msra.mxu0 0.0
      %3727 = vmatprep.subr.mxu0 0.0
      %3728 = vmatpush1.msra.mxu0 0.0
      %3729 = vmatprep.subr.mxu0 0.0
      %3730 = vmatpush1.msra.mxu0 0.0
      %3731 = vmatprep.subr.mxu0 0.0
      %3732 = vmatpush1.msra.mxu0 0.0
      %3733 = vmatprep.subr.mxu0 0.0
      %3734 = vmatpush1.msra.mxu0 0.0
      %3735 = vmatprep.subr.mxu0 0.0
      %3736 = vmatpush1.msra.mxu0 0.0
      %3737 = vmatprep.subr.mxu0 0.0
      %3738 = vmatpush1.msra.mxu0 0.0
      %3739 = vmatprep.subr.mxu0 0.0
      %3740 = vmatpush1.msra.mxu0 0.0
      %3741 = vmatprep.subr.mxu0 0.0
      %3742 = vmatpush1.msra.mxu0 0.0
      %3743 = vmatprep.subr.mxu0 0.0
      %3744 = vmatpush1.msra.mxu0 0.0
      %3745 = vmatprep.subr.mxu0 0.0
      %3746 = vmatpush1.msra.mxu0 0.0
      %3747 = vmatprep.subr.mxu0 0.0
      %3748 = vmatpush1.msra.mxu0 0.0
      %3749 = vmatprep.subr.mxu0 0.0
      %3750 = vmatpush1.msra.mxu0 0.0
      %3751 = vmatprep.subr.mxu0 0.0
      %3752 = vmatpush1.msra.mxu0 0.0
      %3753 = vmatprep.subr.mxu0 0.0
      %3754 = vmatpush1.msra.mxu0 0.0
      %3755 = vmatprep.subr.mxu0 0.0
      %3756 = vmatpush1.msra.mxu0 0.0
      %3757 = vmatprep.subr.mxu0 0.0
      %3758 = vmatpush1.msra.mxu0 0.0
      %3759 = vmatprep.subr.mxu0 0.0
      %3760 = vmatpush1.msra.mxu0 0.0
      %3761 = vmatprep.subr.mxu0 0.0
      %3762 = vmatpush1.msra.mxu0 0.0
      %3763 = vmatprep.subr.mxu0 0.0
      %3764 = vmatpush1.msra.mxu0 0.0
      %3765 = vmatprep.subr.mxu0 0.0
      %3766 = vmatpush1.msra.mxu0 0.0
      %3767 = vmatprep.subr.mxu0 0.0
      %3768 = vmatpush1.msra.mxu0 0.0
      %3769 = vmatprep.subr.mxu0 0.0
      %3770 = vmatpush1.msra.mxu0 0.0
      %3771 = vmatprep.subr.mxu0 0.0
      %3772 = vmatpush1.msra.mxu0 0.0
      %3773 = vmatprep.subr.mxu0 0.0
      %3774 = vmatpush1.msra.mxu0 0.0
      %3775 = vmatprep.subr.mxu0 0.0
      %3776 = vmatpush1.msra.mxu0 0.0
      %3777 = vmatprep.subr.mxu0 0.0
      %3778 = vmatpush1.msra.mxu0 0.0
      %3779 = vmatprep.mubr.f32.mxu0 0.0
      %3780 = vmatmul.mubr.f32.gmra.mrb[0].mxu0 %v3620
      %v3781 = vpop.f32.mrb[0].mxu0
      %v3782 = vadd.f32 0.0, %v3781
      %v3783 = vpop.f32.mrb[0].mxu0
      %3784 = vmatprep.mubr.f32.mxu0 0.0
      %3785 = vmatmul.mubr.f32.gmra.mrb[0].mxu0 %v3623
      %v3786 = vpop.f32.mrb[0].mxu0
      %v3787 = vadd.f32 0.0, %v3786
      %v3788 = vpop.f32.mrb[0].mxu0
      %3789 = vmatprep.mubr.f32.mxu0 0.0
      %3790 = vmatmul.mubr.f32.gmra.mrb[0].mxu0 %v3626
      %v3791 = vpop.f32.mrb[0].mxu0
      %v3792 = vadd.f32 0.0, %v3791
      %v3793 = vpop.f32.mrb[0].mxu0
      %3794 = vmatprep.mubr.f32.mxu0 0.0
      %3795 = vmatmul.mubr.f32.gmra.mrb[0].mxu0 %v3629
      %v3796 = vpop.f32.mrb[0].mxu0
      %v3797 = vadd.f32 0.0, %v3796
      %v3798 = vpop.f32.mrb[0].mxu0
      %3799 = vmatprep.mubr.f32.mxu0 0.0
      %3800 = vmatmul.mubr.f32.gmra.mrb[0].mxu0 %v3632
      %v3801 = vpop.f32.mrb[0].mxu0
      %v3802 = vadd.f32 0.0, %v3801
      %v3803 = vpop.f32.mrb[0].mxu0
      %3804 = vmatprep.mubr.f32.mxu0 0.0
      %3805 = vmatmul.mubr.f32.gmra.mrb[0].mxu0 %v3635
      %v3806 = vpop.f32.mrb[0].mxu0
      %v3807 = vadd.f32 0.0, %v3806
      %v3808 = vpop.f32.mrb[0].mxu0
      %3809 = vmatprep.mubr.f32.mxu0 0.0
      %3810 = vmatmul.mubr.f32.gmra.mrb[0].mxu0 %v3638
      %v3811 = vpop.f32.mrb[0].mxu0
      %v3812 = vadd.f32 0.0, %v3811
      %v3813 = vpop.f32.mrb[0].mxu0
      %3814 = vmatprep.mubr.f32.mxu0 0.0
      %3815 = vmatmul.mubr.f32.gmra.mrb[0].mxu0 %v3641
      %v3816 = vpop.f32.mrb[0].mxu0
      %v3817 = vadd.f32 0.0, %v3816
      %v3818 = vpop.f32.mrb[0].mxu0
      %3819 = vmatprep.mubr.f32.mxu0 0.0
      %3820 = vmatmul.mubr.f32.gmra.mrb[0].mxu0 %v3644
      %v3821 = vpop.f32.mrb[0].mxu0
      %v3822 = vadd.f32 0.0, %v3821
      %v3823 = vpop.f32.mrb[0].mxu0
      %3824 = vmatprep.mubr.f32.mxu0 0.0
      %3825 = vmatmul.mubr.f32.gmra.mrb[0].mxu0 %v3647
      %v3826 = vpop.f32.mrb[0].mxu0
      %v3827 = vadd.f32 0.0, %v3826
      %v3828 = vpop.f32.mrb[0].mxu0
      %3829 = vmatprep.mubr.f32.mxu0 0.0
      %3830 = vmatmul.mubr.f32.gmra.mrb[0].mxu0 %v3650
      %v3831 = vpop.f32.mrb[0].mxu0
      %v3832 = vadd.f32 0.0, %v3831
      %v3833 = vpop.f32.mrb[0].mxu0
      %3834 = vmatprep.mubr.f32.mxu0 0.0
      %3835 = vmatmul.mubr.f32.gmra.mrb[0].mxu0 %v3653
      %v3836 = vpop.f32.mrb[0].mxu0
      %v3837 = vadd.f32 0.0, %v3836
      %v3838 = vpop.f32.mrb[0].mxu0
      %3839 = vmatprep.mubr.f32.mxu0 0.0
      %3840 = vmatmul.mubr.f32.gmra.mrb[0].mxu0 %v3656
      %v3841 = vpop.f32.mrb[0].mxu0
      %v3842 = vadd.f32 0.0, %v3841
      %v3843 = vpop.f32.mrb[0].mxu0
      %3844 = vmatprep.mubr.f32.mxu0 0.0
      %3845 = vmatmul.mubr.f32.gmra.mrb[0].mxu0 %v3659
      %v3846 = vpop.f32.mrb[0].mxu0
      %v3847 = vadd.f32 0.0, %v3846
      %v3848 = vpop.f32.mrb[0].mxu0
      %3849 = vmatprep.mubr.f32.mxu0 0.0
      %3850 = vmatmul.mubr.f32.gmra.mrb[0].mxu0 %v3662
      %v3851 = vpop.f32.mrb[0].mxu0
      %v3852 = vadd.f32 0.0, %v3851
      %v3853 = vpop.f32.mrb[0].mxu0
      %3854 = vmatprep.mubr.f32.mxu0 0.0
      %3855 = vmatmul.mubr.f32.gmra.mrb[0].mxu0 %v3665
      %v3856 = vpop.f32.mrb[0].mxu0
      %v3857 = vadd.f32 0.0, %v3856
      %v3858 = vpop.f32.mrb[0].mxu0
      %3859 = vmatprep.mubr.f32.mxu0 0.0
      %3860 = vmatmul.mubr.f32.gmra.mrb[0].mxu0 %v3668
      %v3861 = vpop.f32.mrb[0].mxu0
      %v3862 = vadd.f32 0.0, %v3861
      %v3863 = vpop.f32.mrb[0].mxu0
      %3864 = vmatprep.mubr.f32.mxu0 0.0
      %3865 = vmatmul.mubr.f32.gmra.mrb[0].mxu0 %v3671
      %v3866 = vpop.f32.mrb[0].mxu0
      %v3867 = vadd.f32 0.0, %v3866
      %v3868 = vpop.f32.mrb[0].mxu0
      %3869 = vmatprep.mubr.f32.mxu0 0.0
      %3870 = vmatmul.mubr.f32.gmra.mrb[0].mxu0 %v3674
      %v3871 = vpop.f32.mrb[0].mxu0
      %v3872 = vadd.f32 0.0, %v3871
      %v3873 = vpop.f32.mrb[0].mxu0
      %3874 = vmatprep.mubr.f32.mxu0 0.0
      %3875 = vmatmul.mubr.f32.gmra.mrb[0].mxu0 %v3677
      %v3876 = vpop.f32.mrb[0].mxu0
      %v3877 = vadd.f32 0.0, %v3876
      %v3878 = vpop.f32.mrb[0].mxu0
      %3879 = vmatprep.mubr.f32.mxu0 0.0
      %3880 = vmatmul.mubr.f32.gmra.mrb[0].mxu0 %v3680
      %v3881 = vpop.f32.mrb[0].mxu0
      %v3882 = vadd.f32 0.0, %v3881
      %v3883 = vpop.f32.mrb[0].mxu0
      %3884 = vmatprep.mubr.f32.mxu0 0.0
      %3885 = vmatmul.mubr.f32.gmra.mrb[0].mxu0 %v3683
      %v3886 = vpop.f32.mrb[0].mxu0
      %v3887 = vadd.f32 0.0, %v3886
      %v3888 = vpop.f32.mrb[0].mxu0
      %3889 = vmatprep.mubr.f32.mxu0 0.0
      %3890 = vmatmul.mubr.f32.gmra.mrb[0].mxu0 %v3686
      %v3891 = vpop.f32.mrb[0].mxu0
      %v3892 = vadd.f32 0.0, %v3891
      %v3893 = vpop.f32.mrb[0].mxu0
      %3894 = vmatprep.mubr.f32.mxu0 0.0
      %3895 = vmatmul.mubr.f32.gmra.mrb[0].mxu0 %v3689
      %v3896 = vpop.f32.mrb[0].mxu0
      %v3897 = vadd.f32 0.0, %v3896
      %v3898 = vpop.f32.mrb[0].mxu0
      %3899 = vmatprep.mubr.f32.mxu0 0.0
      %3900 = vmatmul.mubr.f32.gmra.mrb[0].mxu0 %v3692
      %v3901 = vpop.f32.mrb[0].mxu0
      %v3902 = vadd.f32 0.0, %v3901
      %v3903 = vpop.f32.mrb[0].mxu0
      %3904 = vmatprep.mubr.f32.mxu0 0.0
      %3905 = vmatmul.mubr.f32.gmra.mrb[0].mxu0 %v3695
      %v3906 = vpop.f32.mrb[0].mxu0
      %v3907 = vadd.f32 0.0, %v3906
      %v3908 = vpop.f32.mrb[0].mxu0
      %3909 = vmatprep.mubr.f32.mxu0 0.0
      %3910 = vmatmul.mubr.f32.gmra.mrb[0].mxu0 %v3698
      %v3911 = vpop.f32.mrb[0].mxu0
      %v3912 = vadd.f32 0.0, %v3911
      %v3913 = vpop.f32.mrb[0].mxu0
      %3914 = vmatprep.mubr.f32.mxu0 0.0
      %3915 = vmatmul.mubr.f32.gmra.mrb[0].mxu0 %v3701
      %v3916 = vpop.f32.mrb[0].mxu0
      %v3917 = vadd.f32 0.0, %v3916
      %v3918 = vpop.f32.mrb[0].mxu0
      %3919 = vmatprep.mubr.f32.mxu0 0.0
      %3920 = vmatmul.mubr.f32.gmra.mrb[0].mxu0 %v3704
      %v3921 = vpop.f32.mrb[0].mxu0
      %v3922 = vadd.f32 0.0, %v3921
      %v3923 = vpop.f32.mrb[0].mxu0
      %3924 = vmatprep.mubr.f32.mxu0 0.0
      %3925 = vmatmul.mubr.f32.gmra.mrb[0].mxu0 %v3707
      %v3926 = vpop.f32.mrb[0].mxu0
      %v3927 = vadd.f32 0.0, %v3926
      %v3928 = vpop.f32.mrb[0].mxu0
      %3929 = vmatprep.mubr.f32.mxu0 0.0
      %3930 = vmatmul.mubr.f32.gmra.mrb[0].mxu0 %v3710
      %v3931 = vpop.f32.mrb[0].mxu0
      %v3932 = vadd.f32 0.0, %v3931
      %v3933 = vpop.f32.mrb[0].mxu0
      %3934 = vmatprep.mubr.f32.mxu0 0.0
      %3935 = vmatmul.mubr.f32.gmra.mrb[0].mxu0 %v3713
      %v3936 = vpop.f32.mrb[0].mxu0
      %v3937 = vadd.f32 0.0, %v3936
      %v3938 = vpop.f32.mrb[0].mxu0
      %3939 = vdwg.mxu0
      %v3940 = vadd.f32 %v3553, %v3782
      %v3941 = vadd.f32 %v3554, %v3787
      %v3942 = vadd.f32 %v3555, %v3792
      %v3943 = vadd.f32 %v3556, %v3797
      %v3944 = vadd.f32 %v3557, %v3802
      %v3945 = vadd.f32 %v3558, %v3807
      %v3946 = vadd.f32 %v3559, %v3812
      %v3947 = vadd.f32 %v3560, %v3817
      %v3948 = vadd.f32 %v3561, %v3822
      %v3949 = vadd.f32 %v3562, %v3827
      %v3950 = vadd.f32 %v3563, %v3832
      %v3951 = vadd.f32 %v3564, %v3837
      %v3952 = vadd.f32 %v3565, %v3842
      %v3953 = vadd.f32 %v3566, %v3847
      %v3954 = vadd.f32 %v3567, %v3852
      %v3955 = vadd.f32 %v3568, %v3857
      %v3956 = vadd.f32 %v3569, %v3862
      %v3957 = vadd.f32 %v3570, %v3867
      %v3958 = vadd.f32 %v3571, %v3872
      %v3959 = vadd.f32 %v3572, %v3877
      %v3960 = vadd.f32 %v3573, %v3882
      %v3961 = vadd.f32 %v3574, %v3887
      %v3962 = vadd.f32 %v3575, %v3892
      %v3963 = vadd.f32 %v3576, %v3897
      %v3964 = vadd.f32 %v3577, %v3902
      %v3965 = vadd.f32 %v3578, %v3907
      %v3966 = vadd.f32 %v3579, %v3912
      %v3967 = vadd.f32 %v3580, %v3917
      %v3968 = vadd.f32 %v3581, %v3922
      %v3969 = vadd.f32 %v3582, %v3927
      %v3970 = vadd.f32 %v3583, %v3932
      %v3971 = vadd.f32 %v3584, %v3937
      %v3972 = vld [vmem:[%s2295 + $0x1] sm:$0xff]
      %v3973 = vld [vmem:[%s2295 + $0x9] sm:$0xff]
      %v3974 = vld [vmem:[%s2295 + $0x19] sm:$0xff]
      %v3975 = vld [vmem:[%s2295 + $0x21] sm:$0xff]
      %v3976 = vld [vmem:[%s2295 + $0x31] sm:$0xff]
      %v3977 = vld [vmem:[%s2295 + $0x39] sm:$0xff]
      %v3978 = vld [vmem:[%s2295 + $0x49] sm:$0xff]
      %v3979 = vld [vmem:[%s2295 + $0x51] sm:$0xff]
      %v3980 = vld [vmem:[%s2295 + $0x61] sm:$0xff]
      %v3981 = vld [vmem:[%s2295 + $0x69] sm:$0xff]
      %v3982 = vld [vmem:[%s2295 + $0x79] sm:$0xff]
      %v3983 = vld [vmem:[%s2295 + $0x81] sm:$0xff]
      %v3984 = vld [vmem:[%s2295 + $0x91] sm:$0xff]
      %v3985 = vld [vmem:[%s2295 + $0x99] sm:$0xff]
      %v3986 = vld [vmem:[%s2295 + $0xa9] sm:$0xff]
      %v3987 = vld [vmem:[%s2295 + $0xb1] sm:$0xff]
      %v3988 = vld [vmem:[%s2295 + $0xc1] sm:$0xff]
      %v3989 = vld [vmem:[%s2295 + $0xc9] sm:$0xff]
      %v3990 = vld [vmem:[%s2295 + $0xd9] sm:$0xff]
      %v3991 = vld [vmem:[%s2295 + $0xe1] sm:$0xff]
      %v3992 = vld [vmem:[%s2295 + $0xf1] sm:$0xff]
      %v3993 = vld [vmem:[%s2295 + $0xf9] sm:$0xff]
      %v3994 = vld [vmem:[%s2295 + $0x109] sm:$0xff]
      %v3995 = vld [vmem:[%s2295 + $0x111] sm:$0xff]
      %v3996 = vld [vmem:[%s2295 + $0x121] sm:$0xff]
      %v3997 = vld [vmem:[%s2295 + $0x129] sm:$0xff]
      %v3998 = vld [vmem:[%s2295 + $0x139] sm:$0xff]
      %v3999 = vld [vmem:[%s2295 + $0x141] sm:$0xff]
      %v4000 = vld [vmem:[%s2295 + $0x151] sm:$0xff]
      %v4001 = vld [vmem:[%s2295 + $0x159] sm:$0xff]
      %v4002 = vld [vmem:[%s2295 + $0x169] sm:$0xff]
      %v4003 = vld [vmem:[%s2295 + $0x171] sm:$0xff]
      %s4004 = scalar_lea.vmem %s4, 32
      %v4005 = vld [vmem:[%s4004] sm:$0xff]
      %v4007 = vsel %vm380, %v3972, 0
      %v4010 = vsel %vm380, %v3973, 0
      %v4013 = vsel %vm380, %v3974, 0
      %v4016 = vsel %vm380, %v3975, 0
      %v4019 = vsel %vm380, %v3976, 0
      %v4022 = vsel %vm380, %v3977, 0
      %v4025 = vsel %vm380, %v3978, 0
      %v4028 = vsel %vm380, %v3979, 0
      %v4031 = vsel %vm380, %v3980, 0
      %v4034 = vsel %vm380, %v3981, 0
      %v4037 = vsel %vm380, %v3982, 0
      %v4040 = vsel %vm380, %v3983, 0
      %v4043 = vsel %vm380, %v3984, 0
      %v4046 = vsel %vm380, %v3985, 0
      %v4049 = vsel %vm380, %v3986, 0
      %v4052 = vsel %vm380, %v3987, 0
      %v4055 = vsel %vm380, %v3988, 0
      %v4058 = vsel %vm380, %v3989, 0
      %v4061 = vsel %vm380, %v3990, 0
      %v4064 = vsel %vm380, %v3991, 0
      %v4067 = vsel %vm380, %v3992, 0
      %v4070 = vsel %vm380, %v3993, 0
      %v4073 = vsel %vm380, %v3994, 0
      %v4076 = vsel %vm380, %v3995, 0
      %v4079 = vsel %vm380, %v3996, 0
      %v4082 = vsel %vm380, %v3997, 0
      %v4085 = vsel %vm380, %v3998, 0
      %v4088 = vsel %vm380, %v3999, 0
      %v4091 = vsel %vm380, %v4000, 0
      %v4094 = vsel %vm380, %v4001, 0
      %v4097 = vsel %vm380, %v4002, 0
      %v4100 = vsel %vm380, %v4003, 0
      %4102 = vmatprep.subr.mxu0 0.0
      %4103 = vmatpush1.msra.mxu0 %v4005
      %4104 = vmatprep.subr.mxu0 0.0
      %4105 = vmatpush1.msra.mxu0 0.0
      %4106 = vmatprep.subr.mxu0 0.0
      %4107 = vmatpush1.msra.mxu0 0.0
      %4108 = vmatprep.subr.mxu0 0.0
      %4109 = vmatpush1.msra.mxu0 0.0
      %4110 = vmatprep.subr.mxu0 0.0
      %4111 = vmatpush1.msra.mxu0 0.0
      %4112 = vmatprep.subr.mxu0 0.0
      %4113 = vmatpush1.msra.mxu0 0.0
      %4114 = vmatprep.subr.mxu0 0.0
      %4115 = vmatpush1.msra.mxu0 0.0
      %4116 = vmatprep.subr.mxu0 0.0
      %4117 = vmatpush1.msra.mxu0 0.0
      %4118 = vmatprep.subr.mxu0 0.0
      %4119 = vmatpush1.msra.mxu0 0.0
      %4120 = vmatprep.subr.mxu0 0.0
      %4121 = vmatpush1.msra.mxu0 0.0
      %4122 = vmatprep.subr.mxu0 0.0
      %4123 = vmatpush1.msra.mxu0 0.0
      %4124 = vmatprep.subr.mxu0 0.0
      %4125 = vmatpush1.msra.mxu0 0.0
      %4126 = vmatprep.subr.mxu0 0.0
      %4127 = vmatpush1.msra.mxu0 0.0
      %4128 = vmatprep.subr.mxu0 0.0
      %4129 = vmatpush1.msra.mxu0 0.0
      %4130 = vmatprep.subr.mxu0 0.0
      %4131 = vmatpush1.msra.mxu0 0.0
      %4132 = vmatprep.subr.mxu0 0.0
      %4133 = vmatpush1.msra.mxu0 0.0
      %4134 = vmatprep.subr.mxu0 0.0
      %4135 = vmatpush1.msra.mxu0 0.0
      %4136 = vmatprep.subr.mxu0 0.0
      %4137 = vmatpush1.msra.mxu0 0.0
      %4138 = vmatprep.subr.mxu0 0.0
      %4139 = vmatpush1.msra.mxu0 0.0
      %4140 = vmatprep.subr.mxu0 0.0
      %4141 = vmatpush1.msra.mxu0 0.0
      %4142 = vmatprep.subr.mxu0 0.0
      %4143 = vmatpush1.msra.mxu0 0.0
      %4144 = vmatprep.subr.mxu0 0.0
      %4145 = vmatpush1.msra.mxu0 0.0
      %4146 = vmatprep.subr.mxu0 0.0
      %4147 = vmatpush1.msra.mxu0 0.0
      %4148 = vmatprep.subr.mxu0 0.0
      %4149 = vmatpush1.msra.mxu0 0.0
      %4150 = vmatprep.subr.mxu0 0.0
      %4151 = vmatpush1.msra.mxu0 0.0
      %4152 = vmatprep.subr.mxu0 0.0
      %4153 = vmatpush1.msra.mxu0 0.0
      %4154 = vmatprep.subr.mxu0 0.0
      %4155 = vmatpush1.msra.mxu0 0.0
      %4156 = vmatprep.subr.mxu0 0.0
      %4157 = vmatpush1.msra.mxu0 0.0
      %4158 = vmatprep.subr.mxu0 0.0
      %4159 = vmatpush1.msra.mxu0 0.0
      %4160 = vmatprep.subr.mxu0 0.0
      %4161 = vmatpush1.msra.mxu0 0.0
      %4162 = vmatprep.subr.mxu0 0.0
      %4163 = vmatpush1.msra.mxu0 0.0
      %4164 = vmatprep.subr.mxu0 0.0
      %4165 = vmatpush1.msra.mxu0 0.0
      %4166 = vmatprep.mubr.f32.mxu0 0.0
      %4167 = vmatmul.mubr.f32.gmra.mrb[0].mxu0 %v4007
      %v4168 = vpop.f32.mrb[0].mxu0
      %v4169 = vadd.f32 0.0, %v4168
      %v4170 = vpop.f32.mrb[0].mxu0
      %4171 = vmatprep.mubr.f32.mxu0 0.0
      %4172 = vmatmul.mubr.f32.gmra.mrb[0].mxu0 %v4010
      %v4173 = vpop.f32.mrb[0].mxu0
      %v4174 = vadd.f32 0.0, %v4173
      %v4175 = vpop.f32.mrb[0].mxu0
      %4176 = vmatprep.mubr.f32.mxu0 0.0
      %4177 = vmatmul.mubr.f32.gmra.mrb[0].mxu0 %v4013
      %v4178 = vpop.f32.mrb[0].mxu0
      %v4179 = vadd.f32 0.0, %v4178
      %v4180 = vpop.f32.mrb[0].mxu0
      %4181 = vmatprep.mubr.f32.mxu0 0.0
      %4182 = vmatmul.mubr.f32.gmra.mrb[0].mxu0 %v4016
      %v4183 = vpop.f32.mrb[0].mxu0
      %v4184 = vadd.f32 0.0, %v4183
      %v4185 = vpop.f32.mrb[0].mxu0
      %4186 = vmatprep.mubr.f32.mxu0 0.0
      %4187 = vmatmul.mubr.f32.gmra.mrb[0].mxu0 %v4019
      %v4188 = vpop.f32.mrb[0].mxu0
      %v4189 = vadd.f32 0.0, %v4188
      %v4190 = vpop.f32.mrb[0].mxu0
      %4191 = vmatprep.mubr.f32.mxu0 0.0
      %4192 = vmatmul.mubr.f32.gmra.mrb[0].mxu0 %v4022
      %v4193 = vpop.f32.mrb[0].mxu0
      %v4194 = vadd.f32 0.0, %v4193
      %v4195 = vpop.f32.mrb[0].mxu0
      %4196 = vmatprep.mubr.f32.mxu0 0.0
      %4197 = vmatmul.mubr.f32.gmra.mrb[0].mxu0 %v4025
      %v4198 = vpop.f32.mrb[0].mxu0
      %v4199 = vadd.f32 0.0, %v4198
      %v4200 = vpop.f32.mrb[0].mxu0
      %4201 = vmatprep.mubr.f32.mxu0 0.0
      %4202 = vmatmul.mubr.f32.gmra.mrb[0].mxu0 %v4028
      %v4203 = vpop.f32.mrb[0].mxu0
      %v4204 = vadd.f32 0.0, %v4203
      %v4205 = vpop.f32.mrb[0].mxu0
      %4206 = vmatprep.mubr.f32.mxu0 0.0
      %4207 = vmatmul.mubr.f32.gmra.mrb[0].mxu0 %v4031
      %v4208 = vpop.f32.mrb[0].mxu0
      %v4209 = vadd.f32 0.0, %v4208
      %v4210 = vpop.f32.mrb[0].mxu0
      %4211 = vmatprep.mubr.f32.mxu0 0.0
      %4212 = vmatmul.mubr.f32.gmra.mrb[0].mxu0 %v4034
      %v4213 = vpop.f32.mrb[0].mxu0
      %v4214 = vadd.f32 0.0, %v4213
      %v4215 = vpop.f32.mrb[0].mxu0
      %4216 = vmatprep.mubr.f32.mxu0 0.0
      %4217 = vmatmul.mubr.f32.gmra.mrb[0].mxu0 %v4037
      %v4218 = vpop.f32.mrb[0].mxu0
      %v4219 = vadd.f32 0.0, %v4218
      %v4220 = vpop.f32.mrb[0].mxu0
      %4221 = vmatprep.mubr.f32.mxu0 0.0
      %4222 = vmatmul.mubr.f32.gmra.mrb[0].mxu0 %v4040
      %v4223 = vpop.f32.mrb[0].mxu0
      %v4224 = vadd.f32 0.0, %v4223
      %v4225 = vpop.f32.mrb[0].mxu0
      %4226 = vmatprep.mubr.f32.mxu0 0.0
      %4227 = vmatmul.mubr.f32.gmra.mrb[0].mxu0 %v4043
      %v4228 = vpop.f32.mrb[0].mxu0
      %v4229 = vadd.f32 0.0, %v4228
      %v4230 = vpop.f32.mrb[0].mxu0
      %4231 = vmatprep.mubr.f32.mxu0 0.0
      %4232 = vmatmul.mubr.f32.gmra.mrb[0].mxu0 %v4046
      %v4233 = vpop.f32.mrb[0].mxu0
      %v4234 = vadd.f32 0.0, %v4233
      %v4235 = vpop.f32.mrb[0].mxu0
      %4236 = vmatprep.mubr.f32.mxu0 0.0
      %4237 = vmatmul.mubr.f32.gmra.mrb[0].mxu0 %v4049
      %v4238 = vpop.f32.mrb[0].mxu0
      %v4239 = vadd.f32 0.0, %v4238
      %v4240 = vpop.f32.mrb[0].mxu0
      %4241 = vmatprep.mubr.f32.mxu0 0.0
      %4242 = vmatmul.mubr.f32.gmra.mrb[0].mxu0 %v4052
      %v4243 = vpop.f32.mrb[0].mxu0
      %v4244 = vadd.f32 0.0, %v4243
      %v4245 = vpop.f32.mrb[0].mxu0
      %4246 = vmatprep.mubr.f32.mxu0 0.0
      %4247 = vmatmul.mubr.f32.gmra.mrb[0].mxu0 %v4055
      %v4248 = vpop.f32.mrb[0].mxu0
      %v4249 = vadd.f32 0.0, %v4248
      %v4250 = vpop.f32.mrb[0].mxu0
      %4251 = vmatprep.mubr.f32.mxu0 0.0
      %4252 = vmatmul.mubr.f32.gmra.mrb[0].mxu0 %v4058
      %v4253 = vpop.f32.mrb[0].mxu0
      %v4254 = vadd.f32 0.0, %v4253
      %v4255 = vpop.f32.mrb[0].mxu0
      %4256 = vmatprep.mubr.f32.mxu0 0.0
      %4257 = vmatmul.mubr.f32.gmra.mrb[0].mxu0 %v4061
      %v4258 = vpop.f32.mrb[0].mxu0
      %v4259 = vadd.f32 0.0, %v4258
      %v4260 = vpop.f32.mrb[0].mxu0
      %4261 = vmatprep.mubr.f32.mxu0 0.0
      %4262 = vmatmul.mubr.f32.gmra.mrb[0].mxu0 %v4064
      %v4263 = vpop.f32.mrb[0].mxu0
      %v4264 = vadd.f32 0.0, %v4263
      %v4265 = vpop.f32.mrb[0].mxu0
      %4266 = vmatprep.mubr.f32.mxu0 0.0
      %4267 = vmatmul.mubr.f32.gmra.mrb[0].mxu0 %v4067
      %v4268 = vpop.f32.mrb[0].mxu0
      %v4269 = vadd.f32 0.0, %v4268
      %v4270 = vpop.f32.mrb[0].mxu0
      %4271 = vmatprep.mubr.f32.mxu0 0.0
      %4272 = vmatmul.mubr.f32.gmra.mrb[0].mxu0 %v4070
      %v4273 = vpop.f32.mrb[0].mxu0
      %v4274 = vadd.f32 0.0, %v4273
      %v4275 = vpop.f32.mrb[0].mxu0
      %4276 = vmatprep.mubr.f32.mxu0 0.0
      %4277 = vmatmul.mubr.f32.gmra.mrb[0].mxu0 %v4073
      %v4278 = vpop.f32.mrb[0].mxu0
      %v4279 = vadd.f32 0.0, %v4278
      %v4280 = vpop.f32.mrb[0].mxu0
      %4281 = vmatprep.mubr.f32.mxu0 0.0
      %4282 = vmatmul.mubr.f32.gmra.mrb[0].mxu0 %v4076
      %v4283 = vpop.f32.mrb[0].mxu0
      %v4284 = vadd.f32 0.0, %v4283
      %v4285 = vpop.f32.mrb[0].mxu0
      %4286 = vmatprep.mubr.f32.mxu0 0.0
      %4287 = vmatmul.mubr.f32.gmra.mrb[0].mxu0 %v4079
      %v4288 = vpop.f32.mrb[0].mxu0
      %v4289 = vadd.f32 0.0, %v4288
      %v4290 = vpop.f32.mrb[0].mxu0
      %4291 = vmatprep.mubr.f32.mxu0 0.0
      %4292 = vmatmul.mubr.f32.gmra.mrb[0].mxu0 %v4082
      %v4293 = vpop.f32.mrb[0].mxu0
      %v4294 = vadd.f32 0.0, %v4293
      %v4295 = vpop.f32.mrb[0].mxu0
      %4296 = vmatprep.mubr.f32.mxu0 0.0
      %4297 = vmatmul.mubr.f32.gmra.mrb[0].mxu0 %v4085
      %v4298 = vpop.f32.mrb[0].mxu0
      %v4299 = vadd.f32 0.0, %v4298
      %v4300 = vpop.f32.mrb[0].mxu0
      %4301 = vmatprep.mubr.f32.mxu0 0.0
      %4302 = vmatmul.mubr.f32.gmra.mrb[0].mxu0 %v4088
      %v4303 = vpop.f32.mrb[0].mxu0
      %v4304 = vadd.f32 0.0, %v4303
      %v4305 = vpop.f32.mrb[0].mxu0
      %4306 = vmatprep.mubr.f32.mxu0 0.0
      %4307 = vmatmul.mubr.f32.gmra.mrb[0].mxu0 %v4091
      %v4308 = vpop.f32.mrb[0].mxu0
      %v4309 = vadd.f32 0.0, %v4308
      %v4310 = vpop.f32.mrb[0].mxu0
      %4311 = vmatprep.mubr.f32.mxu0 0.0
      %4312 = vmatmul.mubr.f32.gmra.mrb[0].mxu0 %v4094
      %v4313 = vpop.f32.mrb[0].mxu0
      %v4314 = vadd.f32 0.0, %v4313
      %v4315 = vpop.f32.mrb[0].mxu0
      %4316 = vmatprep.mubr.f32.mxu0 0.0
      %4317 = vmatmul.mubr.f32.gmra.mrb[0].mxu0 %v4097
      %v4318 = vpop.f32.mrb[0].mxu0
      %v4319 = vadd.f32 0.0, %v4318
      %v4320 = vpop.f32.mrb[0].mxu0
      %4321 = vmatprep.mubr.f32.mxu0 0.0
      %4322 = vmatmul.mubr.f32.gmra.mrb[0].mxu0 %v4100
      %v4323 = vpop.f32.mrb[0].mxu0
      %v4324 = vadd.f32 0.0, %v4323
      %v4325 = vpop.f32.mrb[0].mxu0
      %4326 = vdwg.mxu0
      %v4327 = vadd.f32 %v3940, %v4169
      %v4328 = vadd.f32 %v3941, %v4174
      %v4329 = vadd.f32 %v3942, %v4179
      %v4330 = vadd.f32 %v3943, %v4184
      %v4331 = vadd.f32 %v3944, %v4189
      %v4332 = vadd.f32 %v3945, %v4194
      %v4333 = vadd.f32 %v3946, %v4199
      %v4334 = vadd.f32 %v3947, %v4204
      %v4335 = vadd.f32 %v3948, %v4209
      %v4336 = vadd.f32 %v3949, %v4214
      %v4337 = vadd.f32 %v3950, %v4219
      %v4338 = vadd.f32 %v3951, %v4224
      %v4339 = vadd.f32 %v3952, %v4229
      %v4340 = vadd.f32 %v3953, %v4234
      %v4341 = vadd.f32 %v3954, %v4239
      %v4342 = vadd.f32 %v3955, %v4244
      %v4343 = vadd.f32 %v3956, %v4249
      %v4344 = vadd.f32 %v3957, %v4254
      %v4345 = vadd.f32 %v3958, %v4259
      %v4346 = vadd.f32 %v3959, %v4264
      %v4347 = vadd.f32 %v3960, %v4269
      %v4348 = vadd.f32 %v3961, %v4274
      %v4349 = vadd.f32 %v3962, %v4279
      %v4350 = vadd.f32 %v3963, %v4284
      %v4351 = vadd.f32 %v3964, %v4289
      %v4352 = vadd.f32 %v3965, %v4294
      %v4353 = vadd.f32 %v3966, %v4299
      %v4354 = vadd.f32 %v3967, %v4304
      %v4355 = vadd.f32 %v3968, %v4309
      %v4356 = vadd.f32 %v3969, %v4314
      %v4357 = vadd.f32 %v3970, %v4319
      %v4358 = vadd.f32 %v3971, %v4324
      %v4359 = vld [vmem:[%s2295 + $0x2] sm:$0xff]
      %v4360 = vld [vmem:[%s2295 + $0xa] sm:$0xff]
      %v4361 = vld [vmem:[%s2295 + $0x1a] sm:$0xff]
      %v4362 = vld [vmem:[%s2295 + $0x22] sm:$0xff]
      %v4363 = vld [vmem:[%s2295 + $0x32] sm:$0xff]
      %v4364 = vld [vmem:[%s2295 + $0x3a] sm:$0xff]
      %v4365 = vld [vmem:[%s2295 + $0x4a] sm:$0xff]
      %v4366 = vld [vmem:[%s2295 + $0x52] sm:$0xff]
      %v4367 = vld [vmem:[%s2295 + $0x62] sm:$0xff]
      %v4368 = vld [vmem:[%s2295 + $0x6a] sm:$0xff]
      %v4369 = vld [vmem:[%s2295 + $0x7a] sm:$0xff]
      %v4370 = vld [vmem:[%s2295 + $0x82] sm:$0xff]
      %v4371 = vld [vmem:[%s2295 + $0x92] sm:$0xff]
      %v4372 = vld [vmem:[%s2295 + $0x9a] sm:$0xff]
      %v4373 = vld [vmem:[%s2295 + $0xaa] sm:$0xff]
      %v4374 = vld [vmem:[%s2295 + $0xb2] sm:$0xff]
      %v4375 = vld [vmem:[%s2295 + $0xc2] sm:$0xff]
      %v4376 = vld [vmem:[%s2295 + $0xca] sm:$0xff]
      %v4377 = vld [vmem:[%s2295 + $0xda] sm:$0xff]
      %v4378 = vld [vmem:[%s2295 + $0xe2] sm:$0xff]
      %v4379 = vld [vmem:[%s2295 + $0xf2] sm:$0xff]
      %v4380 = vld [vmem:[%s2295 + $0xfa] sm:$0xff]
      %v4381 = vld [vmem:[%s2295 + $0x10a] sm:$0xff]
      %v4382 = vld [vmem:[%s2295 + $0x112] sm:$0xff]
      %v4383 = vld [vmem:[%s2295 + $0x122] sm:$0xff]
      %v4384 = vld [vmem:[%s2295 + $0x12a] sm:$0xff]
      %v4385 = vld [vmem:[%s2295 + $0x13a] sm:$0xff]
      %v4386 = vld [vmem:[%s2295 + $0x142] sm:$0xff]
      %v4387 = vld [vmem:[%s2295 + $0x152] sm:$0xff]
      %v4388 = vld [vmem:[%s2295 + $0x15a] sm:$0xff]
      %v4389 = vld [vmem:[%s2295 + $0x16a] sm:$0xff]
      %v4390 = vld [vmem:[%s2295 + $0x172] sm:$0xff]
      %s4391 = scalar_lea.vmem %s4, 40
      %v4392 = vld [vmem:[%s4391] sm:$0xff]
      %v4394 = vsel %vm380, %v4359, 0
      %v4397 = vsel %vm380, %v4360, 0
      %v4400 = vsel %vm380, %v4361, 0
      %v4403 = vsel %vm380, %v4362, 0
      %v4406 = vsel %vm380, %v4363, 0
      %v4409 = vsel %vm380, %v4364, 0
      %v4412 = vsel %vm380, %v4365, 0
      %v4415 = vsel %vm380, %v4366, 0
      %v4418 = vsel %vm380, %v4367, 0
      %v4421 = vsel %vm380, %v4368, 0
      %v4424 = vsel %vm380, %v4369, 0
      %v4427 = vsel %vm380, %v4370, 0
      %v4430 = vsel %vm380, %v4371, 0
      %v4433 = vsel %vm380, %v4372, 0
      %v4436 = vsel %vm380, %v4373, 0
      %v4439 = vsel %vm380, %v4374, 0
      %v4442 = vsel %vm380, %v4375, 0
      %v4445 = vsel %vm380, %v4376, 0
      %v4448 = vsel %vm380, %v4377, 0
      %v4451 = vsel %vm380, %v4378, 0
      %v4454 = vsel %vm380, %v4379, 0
      %v4457 = vsel %vm380, %v4380, 0
      %v4460 = vsel %vm380, %v4381, 0
      %v4463 = vsel %vm380, %v4382, 0
      %v4466 = vsel %vm380, %v4383, 0
      %v4469 = vsel %vm380, %v4384, 0
      %v4472 = vsel %vm380, %v4385, 0
      %v4475 = vsel %vm380, %v4386, 0
      %v4478 = vsel %vm380, %v4387, 0
      %v4481 = vsel %vm380, %v4388, 0
      %v4484 = vsel %vm380, %v4389, 0
      %v4487 = vsel %vm380, %v4390, 0
      %4489 = vmatprep.subr.mxu0 0.0
      %4490 = vmatpush1.msra.mxu0 %v4392
      %4491 = vmatprep.subr.mxu0 0.0
      %4492 = vmatpush1.msra.mxu0 0.0
      %4493 = vmatprep.subr.mxu0 0.0
      %4494 = vmatpush1.msra.mxu0 0.0
      %4495 = vmatprep.subr.mxu0 0.0
      %4496 = vmatpush1.msra.mxu0 0.0
      %4497 = vmatprep.subr.mxu0 0.0
      %4498 = vmatpush1.msra.mxu0 0.0
      %4499 = vmatprep.subr.mxu0 0.0
      %4500 = vmatpush1.msra.mxu0 0.0
      %4501 = vmatprep.subr.mxu0 0.0
      %4502 = vmatpush1.msra.mxu0 0.0
      %4503 = vmatprep.subr.mxu0 0.0
      %4504 = vmatpush1.msra.mxu0 0.0
      %4505 = vmatprep.subr.mxu0 0.0
      %4506 = vmatpush1.msra.mxu0 0.0
      %4507 = vmatprep.subr.mxu0 0.0
      %4508 = vmatpush1.msra.mxu0 0.0
      %4509 = vmatprep.subr.mxu0 0.0
      %4510 = vmatpush1.msra.mxu0 0.0
      %4511 = vmatprep.subr.mxu0 0.0
      %4512 = vmatpush1.msra.mxu0 0.0
      %4513 = vmatprep.subr.mxu0 0.0
      %4514 = vmatpush1.msra.mxu0 0.0
      %4515 = vmatprep.subr.mxu0 0.0
      %4516 = vmatpush1.msra.mxu0 0.0
      %4517 = vmatprep.subr.mxu0 0.0
      %4518 = vmatpush1.msra.mxu0 0.0
      %4519 = vmatprep.subr.mxu0 0.0
      %4520 = vmatpush1.msra.mxu0 0.0
      %4521 = vmatprep.subr.mxu0 0.0
      %4522 = vmatpush1.msra.mxu0 0.0
      %4523 = vmatprep.subr.mxu0 0.0
      %4524 = vmatpush1.msra.mxu0 0.0
      %4525 = vmatprep.subr.mxu0 0.0
      %4526 = vmatpush1.msra.mxu0 0.0
      %4527 = vmatprep.subr.mxu0 0.0
      %4528 = vmatpush1.msra.mxu0 0.0
      %4529 = vmatprep.subr.mxu0 0.0
      %4530 = vmatpush1.msra.mxu0 0.0
      %4531 = vmatprep.subr.mxu0 0.0
      %4532 = vmatpush1.msra.mxu0 0.0
      %4533 = vmatprep.subr.mxu0 0.0
      %4534 = vmatpush1.msra.mxu0 0.0
      %4535 = vmatprep.subr.mxu0 0.0
      %4536 = vmatpush1.msra.mxu0 0.0
      %4537 = vmatprep.subr.mxu0 0.0
      %4538 = vmatpush1.msra.mxu0 0.0
      %4539 = vmatprep.subr.mxu0 0.0
      %4540 = vmatpush1.msra.mxu0 0.0
      %4541 = vmatprep.subr.mxu0 0.0
      %4542 = vmatpush1.msra.mxu0 0.0
      %4543 = vmatprep.subr.mxu0 0.0
      %4544 = vmatpush1.msra.mxu0 0.0
      %4545 = vmatprep.subr.mxu0 0.0
      %4546 = vmatpush1.msra.mxu0 0.0
      %4547 = vmatprep.subr.mxu0 0.0
      %4548 = vmatpush1.msra.mxu0 0.0
      %4549 = vmatprep.subr.mxu0 0.0
      %4550 = vmatpush1.msra.mxu0 0.0
      %4551 = vmatprep.subr.mxu0 0.0
      %4552 = vmatpush1.msra.mxu0 0.0
      %4553 = vmatprep.mubr.f32.mxu0 0.0
      %4554 = vmatmul.mubr.f32.gmra.mrb[0].mxu0 %v4394
      %v4555 = vpop.f32.mrb[0].mxu0
      %v4556 = vadd.f32 0.0, %v4555
      %v4557 = vpop.f32.mrb[0].mxu0
      %4558 = vmatprep.mubr.f32.mxu0 0.0
      %4559 = vmatmul.mubr.f32.gmra.mrb[0].mxu0 %v4397
      %v4560 = vpop.f32.mrb[0].mxu0
      %v4561 = vadd.f32 0.0, %v4560
      %v4562 = vpop.f32.mrb[0].mxu0
      %4563 = vmatprep.mubr.f32.mxu0 0.0
      %4564 = vmatmul.mubr.f32.gmra.mrb[0].mxu0 %v4400
      %v4565 = vpop.f32.mrb[0].mxu0
      %v4566 = vadd.f32 0.0, %v4565
      %v4567 = vpop.f32.mrb[0].mxu0
      %4568 = vmatprep.mubr.f32.mxu0 0.0
      %4569 = vmatmul.mubr.f32.gmra.mrb[0].mxu0 %v4403
      %v4570 = vpop.f32.mrb[0].mxu0
      %v4571 = vadd.f32 0.0, %v4570
      %v4572 = vpop.f32.mrb[0].mxu0
      %4573 = vmatprep.mubr.f32.mxu0 0.0
      %4574 = vmatmul.mubr.f32.gmra.mrb[0].mxu0 %v4406
      %v4575 = vpop.f32.mrb[0].mxu0
      %v4576 = vadd.f32 0.0, %v4575
      %v4577 = vpop.f32.mrb[0].mxu0
      %4578 = vmatprep.mubr.f32.mxu0 0.0
      %4579 = vmatmul.mubr.f32.gmra.mrb[0].mxu0 %v4409
      %v4580 = vpop.f32.mrb[0].mxu0
      %v4581 = vadd.f32 0.0, %v4580
      %v4582 = vpop.f32.mrb[0].mxu0
      %4583 = vmatprep.mubr.f32.mxu0 0.0
      %4584 = vmatmul.mubr.f32.gmra.mrb[0].mxu0 %v4412
      %v4585 = vpop.f32.mrb[0].mxu0
      %v4586 = vadd.f32 0.0, %v4585
      %v4587 = vpop.f32.mrb[0].mxu0
      %4588 = vmatprep.mubr.f32.mxu0 0.0
      %4589 = vmatmul.mubr.f32.gmra.mrb[0].mxu0 %v4415
      %v4590 = vpop.f32.mrb[0].mxu0
      %v4591 = vadd.f32 0.0, %v4590
      %v4592 = vpop.f32.mrb[0].mxu0
      %4593 = vmatprep.mubr.f32.mxu0 0.0
      %4594 = vmatmul.mubr.f32.gmra.mrb[0].mxu0 %v4418
      %v4595 = vpop.f32.mrb[0].mxu0
      %v4596 = vadd.f32 0.0, %v4595
      %v4597 = vpop.f32.mrb[0].mxu0
      %4598 = vmatprep.mubr.f32.mxu0 0.0
      %4599 = vmatmul.mubr.f32.gmra.mrb[0].mxu0 %v4421
      %v4600 = vpop.f32.mrb[0].mxu0
      %v4601 = vadd.f32 0.0, %v4600
      %v4602 = vpop.f32.mrb[0].mxu0
      %4603 = vmatprep.mubr.f32.mxu0 0.0
      %4604 = vmatmul.mubr.f32.gmra.mrb[0].mxu0 %v4424
      %v4605 = vpop.f32.mrb[0].mxu0
      %v4606 = vadd.f32 0.0, %v4605
      %v4607 = vpop.f32.mrb[0].mxu0
      %4608 = vmatprep.mubr.f32.mxu0 0.0
      %4609 = vmatmul.mubr.f32.gmra.mrb[0].mxu0 %v4427
      %v4610 = vpop.f32.mrb[0].mxu0
      %v4611 = vadd.f32 0.0, %v4610
      %v4612 = vpop.f32.mrb[0].mxu0
      %4613 = vmatprep.mubr.f32.mxu0 0.0
      %4614 = vmatmul.mubr.f32.gmra.mrb[0].mxu0 %v4430
      %v4615 = vpop.f32.mrb[0].mxu0
      %v4616 = vadd.f32 0.0, %v4615
      %v4617 = vpop.f32.mrb[0].mxu0
      %4618 = vmatprep.mubr.f32.mxu0 0.0
      %4619 = vmatmul.mubr.f32.gmra.mrb[0].mxu0 %v4433
      %v4620 = vpop.f32.mrb[0].mxu0
      %v4621 = vadd.f32 0.0, %v4620
      %v4622 = vpop.f32.mrb[0].mxu0
      %4623 = vmatprep.mubr.f32.mxu0 0.0
      %4624 = vmatmul.mubr.f32.gmra.mrb[0].mxu0 %v4436
      %v4625 = vpop.f32.mrb[0].mxu0
      %v4626 = vadd.f32 0.0, %v4625
      %v4627 = vpop.f32.mrb[0].mxu0
      %4628 = vmatprep.mubr.f32.mxu0 0.0
      %4629 = vmatmul.mubr.f32.gmra.mrb[0].mxu0 %v4439
      %v4630 = vpop.f32.mrb[0].mxu0
      %v4631 = vadd.f32 0.0, %v4630
      %v4632 = vpop.f32.mrb[0].mxu0
      %4633 = vmatprep.mubr.f32.mxu0 0.0
      %4634 = vmatmul.mubr.f32.gmra.mrb[0].mxu0 %v4442
      %v4635 = vpop.f32.mrb[0].mxu0
      %v4636 = vadd.f32 0.0, %v4635
      %v4637 = vpop.f32.mrb[0].mxu0
      %4638 = vmatprep.mubr.f32.mxu0 0.0
      %4639 = vmatmul.mubr.f32.gmra.mrb[0].mxu0 %v4445
      %v4640 = vpop.f32.mrb[0].mxu0
      %v4641 = vadd.f32 0.0, %v4640
      %v4642 = vpop.f32.mrb[0].mxu0
      %4643 = vmatprep.mubr.f32.mxu0 0.0
      %4644 = vmatmul.mubr.f32.gmra.mrb[0].mxu0 %v4448
      %v4645 = vpop.f32.mrb[0].mxu0
      %v4646 = vadd.f32 0.0, %v4645
      %v4647 = vpop.f32.mrb[0].mxu0
      %4648 = vmatprep.mubr.f32.mxu0 0.0
      %4649 = vmatmul.mubr.f32.gmra.mrb[0].mxu0 %v4451
      %v4650 = vpop.f32.mrb[0].mxu0
      %v4651 = vadd.f32 0.0, %v4650
      %v4652 = vpop.f32.mrb[0].mxu0
      %4653 = vmatprep.mubr.f32.mxu0 0.0
      %4654 = vmatmul.mubr.f32.gmra.mrb[0].mxu0 %v4454
      %v4655 = vpop.f32.mrb[0].mxu0
      %v4656 = vadd.f32 0.0, %v4655
      %v4657 = vpop.f32.mrb[0].mxu0
      %4658 = vmatprep.mubr.f32.mxu0 0.0
      %4659 = vmatmul.mubr.f32.gmra.mrb[0].mxu0 %v4457
      %v4660 = vpop.f32.mrb[0].mxu0
      %v4661 = vadd.f32 0.0, %v4660
      %v4662 = vpop.f32.mrb[0].mxu0
      %4663 = vmatprep.mubr.f32.mxu0 0.0
      %4664 = vmatmul.mubr.f32.gmra.mrb[0].mxu0 %v4460
      %v4665 = vpop.f32.mrb[0].mxu0
      %v4666 = vadd.f32 0.0, %v4665
      %v4667 = vpop.f32.mrb[0].mxu0
      %4668 = vmatprep.mubr.f32.mxu0 0.0
      %4669 = vmatmul.mubr.f32.gmra.mrb[0].mxu0 %v4463
      %v4670 = vpop.f32.mrb[0].mxu0
      %v4671 = vadd.f32 0.0, %v4670
      %v4672 = vpop.f32.mrb[0].mxu0
      %4673 = vmatprep.mubr.f32.mxu0 0.0
      %4674 = vmatmul.mubr.f32.gmra.mrb[0].mxu0 %v4466
      %v4675 = vpop.f32.mrb[0].mxu0
      %v4676 = vadd.f32 0.0, %v4675
      %v4677 = vpop.f32.mrb[0].mxu0
      %4678 = vmatprep.mubr.f32.mxu0 0.0
      %4679 = vmatmul.mubr.f32.gmra.mrb[0].mxu0 %v4469
      %v4680 = vpop.f32.mrb[0].mxu0
      %v4681 = vadd.f32 0.0, %v4680
      %v4682 = vpop.f32.mrb[0].mxu0
      %4683 = vmatprep.mubr.f32.mxu0 0.0
      %4684 = vmatmul.mubr.f32.gmra.mrb[0].mxu0 %v4472
      %v4685 = vpop.f32.mrb[0].mxu0
      %v4686 = vadd.f32 0.0, %v4685
      %v4687 = vpop.f32.mrb[0].mxu0
      %4688 = vmatprep.mubr.f32.mxu0 0.0
      %4689 = vmatmul.mubr.f32.gmra.mrb[0].mxu0 %v4475
      %v4690 = vpop.f32.mrb[0].mxu0
      %v4691 = vadd.f32 0.0, %v4690
      %v4692 = vpop.f32.mrb[0].mxu0
      %4693 = vmatprep.mubr.f32.mxu0 0.0
      %4694 = vmatmul.mubr.f32.gmra.mrb[0].mxu0 %v4478
      %v4695 = vpop.f32.mrb[0].mxu0
      %v4696 = vadd.f32 0.0, %v4695
      %v4697 = vpop.f32.mrb[0].mxu0
      %4698 = vmatprep.mubr.f32.mxu0 0.0
      %4699 = vmatmul.mubr.f32.gmra.mrb[0].mxu0 %v4481
      %v4700 = vpop.f32.mrb[0].mxu0
      %v4701 = vadd.f32 0.0, %v4700
      %v4702 = vpop.f32.mrb[0].mxu0
      %4703 = vmatprep.mubr.f32.mxu0 0.0
      %4704 = vmatmul.mubr.f32.gmra.mrb[0].mxu0 %v4484
      %v4705 = vpop.f32.mrb[0].mxu0
      %v4706 = vadd.f32 0.0, %v4705
      %v4707 = vpop.f32.mrb[0].mxu0
      %4708 = vmatprep.mubr.f32.mxu0 0.0
      %4709 = vmatmul.mubr.f32.gmra.mrb[0].mxu0 %v4487
      %v4710 = vpop.f32.mrb[0].mxu0
      %v4711 = vadd.f32 0.0, %v4710
      %v4712 = vpop.f32.mrb[0].mxu0
      %4713 = vdwg.mxu0
      %v4714 = vadd.f32 %v4327, %v4556
      %v4715 = vadd.f32 %v4328, %v4561
      %v4716 = vadd.f32 %v4329, %v4566
      %v4717 = vadd.f32 %v4330, %v4571
      %v4718 = vadd.f32 %v4331, %v4576
      %v4719 = vadd.f32 %v4332, %v4581
      %v4720 = vadd.f32 %v4333, %v4586
      %v4721 = vadd.f32 %v4334, %v4591
      %v4722 = vadd.f32 %v4335, %v4596
      %v4723 = vadd.f32 %v4336, %v4601
      %v4724 = vadd.f32 %v4337, %v4606
      %v4725 = vadd.f32 %v4338, %v4611
      %v4726 = vadd.f32 %v4339, %v4616
      %v4727 = vadd.f32 %v4340, %v4621
      %v4728 = vadd.f32 %v4341, %v4626
      %v4729 = vadd.f32 %v4342, %v4631
      %v4730 = vadd.f32 %v4343, %v4636
      %v4731 = vadd.f32 %v4344, %v4641
      %v4732 = vadd.f32 %v4345, %v4646
      %v4733 = vadd.f32 %v4346, %v4651
      %v4734 = vadd.f32 %v4347, %v4656
      %v4735 = vadd.f32 %v4348, %v4661
      %v4736 = vadd.f32 %v4349, %v4666
      %v4737 = vadd.f32 %v4350, %v4671
      %v4738 = vadd.f32 %v4351, %v4676
      %v4739 = vadd.f32 %v4352, %v4681
      %v4740 = vadd.f32 %v4353, %v4686
      %v4741 = vadd.f32 %v4354, %v4691
      %v4742 = vadd.f32 %v4355, %v4696
      %v4743 = vadd.f32 %v4356, %v4701
      %v4744 = vadd.f32 %v4357, %v4706
      %v4745 = vadd.f32 %v4358, %v4711
      %s4746 = scalar_lea.vmem [#allocation2], 48
      %v4747 = vld [vmem:[%s4746] sm:$0xff]
      %v4748 = vld [vmem:[%s4746 + $0x8] sm:$0xff]
      %v4749 = vld [vmem:[%s4746 + $0x18] sm:$0xff]
      %v4750 = vld [vmem:[%s4746 + $0x20] sm:$0xff]
      %v4751 = vld [vmem:[%s4746 + $0x30] sm:$0xff]
      %v4752 = vld [vmem:[%s4746 + $0x38] sm:$0xff]
      %v4753 = vld [vmem:[%s4746 + $0x48] sm:$0xff]
      %v4754 = vld [vmem:[%s4746 + $0x50] sm:$0xff]
      %v4755 = vld [vmem:[%s4746 + $0x60] sm:$0xff]
      %v4756 = vld [vmem:[%s4746 + $0x68] sm:$0xff]
      %v4757 = vld [vmem:[%s4746 + $0x78] sm:$0xff]
      %v4758 = vld [vmem:[%s4746 + $0x80] sm:$0xff]
      %v4759 = vld [vmem:[%s4746 + $0x90] sm:$0xff]
      %v4760 = vld [vmem:[%s4746 + $0x98] sm:$0xff]
      %v4761 = vld [vmem:[%s4746 + $0xa8] sm:$0xff]
      %v4762 = vld [vmem:[%s4746 + $0xb0] sm:$0xff]
      %v4763 = vld [vmem:[%s4746 + $0xc0] sm:$0xff]
      %v4764 = vld [vmem:[%s4746 + $0xc8] sm:$0xff]
      %v4765 = vld [vmem:[%s4746 + $0xd8] sm:$0xff]
      %v4766 = vld [vmem:[%s4746 + $0xe0] sm:$0xff]
      %v4767 = vld [vmem:[%s4746 + $0xf0] sm:$0xff]
      %v4768 = vld [vmem:[%s4746 + $0xf8] sm:$0xff]
      %v4769 = vld [vmem:[%s4746 + $0x108] sm:$0xff]
      %v4770 = vld [vmem:[%s4746 + $0x110] sm:$0xff]
      %v4771 = vld [vmem:[%s4746 + $0x120] sm:$0xff]
      %v4772 = vld [vmem:[%s4746 + $0x128] sm:$0xff]
      %v4773 = vld [vmem:[%s4746 + $0x138] sm:$0xff]
      %v4774 = vld [vmem:[%s4746 + $0x140] sm:$0xff]
      %v4775 = vld [vmem:[%s4746 + $0x150] sm:$0xff]
      %v4776 = vld [vmem:[%s4746 + $0x158] sm:$0xff]
      %v4777 = vld [vmem:[%s4746 + $0x168] sm:$0xff]
      %v4778 = vld [vmem:[%s4746 + $0x170] sm:$0xff]
      %s4779 = scalar_lea.vmem %s4, 48
      %v4780 = vld [vmem:[%s4779] sm:$0xff]
      %v4782 = vsel %vm380, %v4747, 0
      %v4785 = vsel %vm380, %v4748, 0
      %v4788 = vsel %vm380, %v4749, 0
      %v4791 = vsel %vm380, %v4750, 0
      %v4794 = vsel %vm380, %v4751, 0
      %v4797 = vsel %vm380, %v4752, 0
      %v4800 = vsel %vm380, %v4753, 0
      %v4803 = vsel %vm380, %v4754, 0
      %v4806 = vsel %vm380, %v4755, 0
      %v4809 = vsel %vm380, %v4756, 0
      %v4812 = vsel %vm380, %v4757, 0
      %v4815 = vsel %vm380, %v4758, 0
      %v4818 = vsel %vm380, %v4759, 0
      %v4821 = vsel %vm380, %v4760, 0
      %v4824 = vsel %vm380, %v4761, 0
      %v4827 = vsel %vm380, %v4762, 0
      %v4830 = vsel %vm380, %v4763, 0
      %v4833 = vsel %vm380, %v4764, 0
      %v4836 = vsel %vm380, %v4765, 0
      %v4839 = vsel %vm380, %v4766, 0
      %v4842 = vsel %vm380, %v4767, 0
      %v4845 = vsel %vm380, %v4768, 0
      %v4848 = vsel %vm380, %v4769, 0
      %v4851 = vsel %vm380, %v4770, 0
      %v4854 = vsel %vm380, %v4771, 0
      %v4857 = vsel %vm380, %v4772, 0
      %v4860 = vsel %vm380, %v4773, 0
      %v4863 = vsel %vm380, %v4774, 0
      %v4866 = vsel %vm380, %v4775, 0
      %v4869 = vsel %vm380, %v4776, 0
      %v4872 = vsel %vm380, %v4777, 0
      %v4875 = vsel %vm380, %v4778, 0
      %4877 = vmatprep.subr.mxu0 0.0
      %4878 = vmatpush1.msra.mxu0 %v4780
      %4879 = vmatprep.subr.mxu0 0.0
      %4880 = vmatpush1.msra.mxu0 0.0
      %4881 = vmatprep.subr.mxu0 0.0
      %4882 = vmatpush1.msra.mxu0 0.0
      %4883 = vmatprep.subr.mxu0 0.0
      %4884 = vmatpush1.msra.mxu0 0.0
      %4885 = vmatprep.subr.mxu0 0.0
      %4886 = vmatpush1.msra.mxu0 0.0
      %4887 = vmatprep.subr.mxu0 0.0
      %4888 = vmatpush1.msra.mxu0 0.0
      %4889 = vmatprep.subr.mxu0 0.0
      %4890 = vmatpush1.msra.mxu0 0.0
      %4891 = vmatprep.subr.mxu0 0.0
      %4892 = vmatpush1.msra.mxu0 0.0
      %4893 = vmatprep.subr.mxu0 0.0
      %4894 = vmatpush1.msra.mxu0 0.0
      %4895 = vmatprep.subr.mxu0 0.0
      %4896 = vmatpush1.msra.mxu0 0.0
      %4897 = vmatprep.subr.mxu0 0.0
      %4898 = vmatpush1.msra.mxu0 0.0
      %4899 = vmatprep.subr.mxu0 0.0
      %4900 = vmatpush1.msra.mxu0 0.0
      %4901 = vmatprep.subr.mxu0 0.0
      %4902 = vmatpush1.msra.mxu0 0.0
      %4903 = vmatprep.subr.mxu0 0.0
      %4904 = vmatpush1.msra.mxu0 0.0
      %4905 = vmatprep.subr.mxu0 0.0
      %4906 = vmatpush1.msra.mxu0 0.0
      %4907 = vmatprep.subr.mxu0 0.0
      %4908 = vmatpush1.msra.mxu0 0.0
      %4909 = vmatprep.subr.mxu0 0.0
      %4910 = vmatpush1.msra.mxu0 0.0
      %4911 = vmatprep.subr.mxu0 0.0
      %4912 = vmatpush1.msra.mxu0 0.0
      %4913 = vmatprep.subr.mxu0 0.0
      %4914 = vmatpush1.msra.mxu0 0.0
      %4915 = vmatprep.subr.mxu0 0.0
      %4916 = vmatpush1.msra.mxu0 0.0
      %4917 = vmatprep.subr.mxu0 0.0
      %4918 = vmatpush1.msra.mxu0 0.0
      %4919 = vmatprep.subr.mxu0 0.0
      %4920 = vmatpush1.msra.mxu0 0.0
      %4921 = vmatprep.subr.mxu0 0.0
      %4922 = vmatpush1.msra.mxu0 0.0
      %4923 = vmatprep.subr.mxu0 0.0
      %4924 = vmatpush1.msra.mxu0 0.0
      %4925 = vmatprep.subr.mxu0 0.0
      %4926 = vmatpush1.msra.mxu0 0.0
      %4927 = vmatprep.subr.mxu0 0.0
      %4928 = vmatpush1.msra.mxu0 0.0
      %4929 = vmatprep.subr.mxu0 0.0
      %4930 = vmatpush1.msra.mxu0 0.0
      %4931 = vmatprep.subr.mxu0 0.0
      %4932 = vmatpush1.msra.mxu0 0.0
      %4933 = vmatprep.subr.mxu0 0.0
      %4934 = vmatpush1.msra.mxu0 0.0
      %4935 = vmatprep.subr.mxu0 0.0
      %4936 = vmatpush1.msra.mxu0 0.0
      %4937 = vmatprep.subr.mxu0 0.0
      %4938 = vmatpush1.msra.mxu0 0.0
      %4939 = vmatprep.subr.mxu0 0.0
      %4940 = vmatpush1.msra.mxu0 0.0
      %4941 = vmatprep.mubr.f32.mxu0 0.0
      %4942 = vmatmul.mubr.f32.gmra.mrb[0].mxu0 %v4782
      %v4943 = vpop.f32.mrb[0].mxu0
      %v4944 = vadd.f32 0.0, %v4943
      %v4945 = vpop.f32.mrb[0].mxu0
      %4946 = vmatprep.mubr.f32.mxu0 0.0
      %4947 = vmatmul.mubr.f32.gmra.mrb[0].mxu0 %v4785
      %v4948 = vpop.f32.mrb[0].mxu0
      %v4949 = vadd.f32 0.0, %v4948
      %v4950 = vpop.f32.mrb[0].mxu0
      %4951 = vmatprep.mubr.f32.mxu0 0.0
      %4952 = vmatmul.mubr.f32.gmra.mrb[0].mxu0 %v4788
      %v4953 = vpop.f32.mrb[0].mxu0
      %v4954 = vadd.f32 0.0, %v4953
      %v4955 = vpop.f32.mrb[0].mxu0
      %4956 = vmatprep.mubr.f32.mxu0 0.0
      %4957 = vmatmul.mubr.f32.gmra.mrb[0].mxu0 %v4791
      %v4958 = vpop.f32.mrb[0].mxu0
      %v4959 = vadd.f32 0.0, %v4958
      %v4960 = vpop.f32.mrb[0].mxu0
      %4961 = vmatprep.mubr.f32.mxu0 0.0
      %4962 = vmatmul.mubr.f32.gmra.mrb[0].mxu0 %v4794
      %v4963 = vpop.f32.mrb[0].mxu0
      %v4964 = vadd.f32 0.0, %v4963
      %v4965 = vpop.f32.mrb[0].mxu0
      %4966 = vmatprep.mubr.f32.mxu0 0.0
      %4967 = vmatmul.mubr.f32.gmra.mrb[0].mxu0 %v4797
      %v4968 = vpop.f32.mrb[0].mxu0
      %v4969 = vadd.f32 0.0, %v4968
      %v4970 = vpop.f32.mrb[0].mxu0
      %4971 = vmatprep.mubr.f32.mxu0 0.0
      %4972 = vmatmul.mubr.f32.gmra.mrb[0].mxu0 %v4800
      %v4973 = vpop.f32.mrb[0].mxu0
      %v4974 = vadd.f32 0.0, %v4973
      %v4975 = vpop.f32.mrb[0].mxu0
      %4976 = vmatprep.mubr.f32.mxu0 0.0
      %4977 = vmatmul.mubr.f32.gmra.mrb[0].mxu0 %v4803
      %v4978 = vpop.f32.mrb[0].mxu0
      %v4979 = vadd.f32 0.0, %v4978
      %v4980 = vpop.f32.mrb[0].mxu0
      %4981 = vmatprep.mubr.f32.mxu0 0.0
      %4982 = vmatmul.mubr.f32.gmra.mrb[0].mxu0 %v4806
      %v4983 = vpop.f32.mrb[0].mxu0
      %v4984 = vadd.f32 0.0, %v4983
      %v4985 = vpop.f32.mrb[0].mxu0
      %4986 = vmatprep.mubr.f32.mxu0 0.0
      %4987 = vmatmul.mubr.f32.gmra.mrb[0].mxu0 %v4809
      %v4988 = vpop.f32.mrb[0].mxu0
      %v4989 = vadd.f32 0.0, %v4988
      %v4990 = vpop.f32.mrb[0].mxu0
      %4991 = vmatprep.mubr.f32.mxu0 0.0
      %4992 = vmatmul.mubr.f32.gmra.mrb[0].mxu0 %v4812
      %v4993 = vpop.f32.mrb[0].mxu0
      %v4994 = vadd.f32 0.0, %v4993
      %v4995 = vpop.f32.mrb[0].mxu0
      %4996 = vmatprep.mubr.f32.mxu0 0.0
      %4997 = vmatmul.mubr.f32.gmra.mrb[0].mxu0 %v4815
      %v4998 = vpop.f32.mrb[0].mxu0
      %v4999 = vadd.f32 0.0, %v4998
      %v5000 = vpop.f32.mrb[0].mxu0
      %5001 = vmatprep.mubr.f32.mxu0 0.0
      %5002 = vmatmul.mubr.f32.gmra.mrb[0].mxu0 %v4818
      %v5003 = vpop.f32.mrb[0].mxu0
      %v5004 = vadd.f32 0.0, %v5003
      %v5005 = vpop.f32.mrb[0].mxu0
      %5006 = vmatprep.mubr.f32.mxu0 0.0
      %5007 = vmatmul.mubr.f32.gmra.mrb[0].mxu0 %v4821
      %v5008 = vpop.f32.mrb[0].mxu0
      %v5009 = vadd.f32 0.0, %v5008
      %v5010 = vpop.f32.mrb[0].mxu0
      %5011 = vmatprep.mubr.f32.mxu0 0.0
      %5012 = vmatmul.mubr.f32.gmra.mrb[0].mxu0 %v4824
      %v5013 = vpop.f32.mrb[0].mxu0
      %v5014 = vadd.f32 0.0, %v5013
      %v5015 = vpop.f32.mrb[0].mxu0
      %5016 = vmatprep.mubr.f32.mxu0 0.0
      %5017 = vmatmul.mubr.f32.gmra.mrb[0].mxu0 %v4827
      %v5018 = vpop.f32.mrb[0].mxu0
      %v5019 = vadd.f32 0.0, %v5018
      %v5020 = vpop.f32.mrb[0].mxu0
      %5021 = vmatprep.mubr.f32.mxu0 0.0
      %5022 = vmatmul.mubr.f32.gmra.mrb[0].mxu0 %v4830
      %v5023 = vpop.f32.mrb[0].mxu0
      %v5024 = vadd.f32 0.0, %v5023
      %v5025 = vpop.f32.mrb[0].mxu0
      %5026 = vmatprep.mubr.f32.mxu0 0.0
      %5027 = vmatmul.mubr.f32.gmra.mrb[0].mxu0 %v4833
      %v5028 = vpop.f32.mrb[0].mxu0
      %v5029 = vadd.f32 0.0, %v5028
      %v5030 = vpop.f32.mrb[0].mxu0
      %5031 = vmatprep.mubr.f32.mxu0 0.0
      %5032 = vmatmul.mubr.f32.gmra.mrb[0].mxu0 %v4836
      %v5033 = vpop.f32.mrb[0].mxu0
      %v5034 = vadd.f32 0.0, %v5033
      %v5035 = vpop.f32.mrb[0].mxu0
      %5036 = vmatprep.mubr.f32.mxu0 0.0
      %5037 = vmatmul.mubr.f32.gmra.mrb[0].mxu0 %v4839
      %v5038 = vpop.f32.mrb[0].mxu0
      %v5039 = vadd.f32 0.0, %v5038
      %v5040 = vpop.f32.mrb[0].mxu0
      %5041 = vmatprep.mubr.f32.mxu0 0.0
      %5042 = vmatmul.mubr.f32.gmra.mrb[0].mxu0 %v4842
      %v5043 = vpop.f32.mrb[0].mxu0
      %v5044 = vadd.f32 0.0, %v5043
      %v5045 = vpop.f32.mrb[0].mxu0
      %5046 = vmatprep.mubr.f32.mxu0 0.0
      %5047 = vmatmul.mubr.f32.gmra.mrb[0].mxu0 %v4845
      %v5048 = vpop.f32.mrb[0].mxu0
      %v5049 = vadd.f32 0.0, %v5048
      %v5050 = vpop.f32.mrb[0].mxu0
      %5051 = vmatprep.mubr.f32.mxu0 0.0
      %5052 = vmatmul.mubr.f32.gmra.mrb[0].mxu0 %v4848
      %v5053 = vpop.f32.mrb[0].mxu0
      %v5054 = vadd.f32 0.0, %v5053
      %v5055 = vpop.f32.mrb[0].mxu0
      %5056 = vmatprep.mubr.f32.mxu0 0.0
      %5057 = vmatmul.mubr.f32.gmra.mrb[0].mxu0 %v4851
      %v5058 = vpop.f32.mrb[0].mxu0
      %v5059 = vadd.f32 0.0, %v5058
      %v5060 = vpop.f32.mrb[0].mxu0
      %5061 = vmatprep.mubr.f32.mxu0 0.0
      %5062 = vmatmul.mubr.f32.gmra.mrb[0].mxu0 %v4854
      %v5063 = vpop.f32.mrb[0].mxu0
      %v5064 = vadd.f32 0.0, %v5063
      %v5065 = vpop.f32.mrb[0].mxu0
      %5066 = vmatprep.mubr.f32.mxu0 0.0
      %5067 = vmatmul.mubr.f32.gmra.mrb[0].mxu0 %v4857
      %v5068 = vpop.f32.mrb[0].mxu0
      %v5069 = vadd.f32 0.0, %v5068
      %v5070 = vpop.f32.mrb[0].mxu0
      %5071 = vmatprep.mubr.f32.mxu0 0.0
      %5072 = vmatmul.mubr.f32.gmra.mrb[0].mxu0 %v4860
      %v5073 = vpop.f32.mrb[0].mxu0
      %v5074 = vadd.f32 0.0, %v5073
      %v5075 = vpop.f32.mrb[0].mxu0
      %5076 = vmatprep.mubr.f32.mxu0 0.0
      %5077 = vmatmul.mubr.f32.gmra.mrb[0].mxu0 %v4863
      %v5078 = vpop.f32.mrb[0].mxu0
      %v5079 = vadd.f32 0.0, %v5078
      %v5080 = vpop.f32.mrb[0].mxu0
      %5081 = vmatprep.mubr.f32.mxu0 0.0
      %5082 = vmatmul.mubr.f32.gmra.mrb[0].mxu0 %v4866
      %v5083 = vpop.f32.mrb[0].mxu0
      %v5084 = vadd.f32 0.0, %v5083
      %v5085 = vpop.f32.mrb[0].mxu0
      %5086 = vmatprep.mubr.f32.mxu0 0.0
      %5087 = vmatmul.mubr.f32.gmra.mrb[0].mxu0 %v4869
      %v5088 = vpop.f32.mrb[0].mxu0
      %v5089 = vadd.f32 0.0, %v5088
      %v5090 = vpop.f32.mrb[0].mxu0
      %5091 = vmatprep.mubr.f32.mxu0 0.0
      %5092 = vmatmul.mubr.f32.gmra.mrb[0].mxu0 %v4872
      %v5093 = vpop.f32.mrb[0].mxu0
      %v5094 = vadd.f32 0.0, %v5093
      %v5095 = vpop.f32.mrb[0].mxu0
      %5096 = vmatprep.mubr.f32.mxu0 0.0
      %5097 = vmatmul.mubr.f32.gmra.mrb[0].mxu0 %v4875
      %v5098 = vpop.f32.mrb[0].mxu0
      %v5099 = vadd.f32 0.0, %v5098
      %v5100 = vpop.f32.mrb[0].mxu0
      %5101 = vdwg.mxu0
      %v5102 = vadd.f32 %v4714, %v4944
      %v5103 = vadd.f32 %v4715, %v4949
      %v5104 = vadd.f32 %v4716, %v4954
      %v5105 = vadd.f32 %v4717, %v4959
      %v5106 = vadd.f32 %v4718, %v4964
      %v5107 = vadd.f32 %v4719, %v4969
      %v5108 = vadd.f32 %v4720, %v4974
      %v5109 = vadd.f32 %v4721, %v4979
      %v5110 = vadd.f32 %v4722, %v4984
      %v5111 = vadd.f32 %v4723, %v4989
      %v5112 = vadd.f32 %v4724, %v4994
      %v5113 = vadd.f32 %v4725, %v4999
      %v5114 = vadd.f32 %v4726, %v5004
      %v5115 = vadd.f32 %v4727, %v5009
      %v5116 = vadd.f32 %v4728, %v5014
      %v5117 = vadd.f32 %v4729, %v5019
      %v5118 = vadd.f32 %v4730, %v5024
      %v5119 = vadd.f32 %v4731, %v5029
      %v5120 = vadd.f32 %v4732, %v5034
      %v5121 = vadd.f32 %v4733, %v5039
      %v5122 = vadd.f32 %v4734, %v5044
      %v5123 = vadd.f32 %v4735, %v5049
      %v5124 = vadd.f32 %v4736, %v5054
      %v5125 = vadd.f32 %v4737, %v5059
      %v5126 = vadd.f32 %v4738, %v5064
      %v5127 = vadd.f32 %v4739, %v5069
      %v5128 = vadd.f32 %v4740, %v5074
      %v5129 = vadd.f32 %v4741, %v5079
      %v5130 = vadd.f32 %v4742, %v5084
      %v5131 = vadd.f32 %v4743, %v5089
      %v5132 = vadd.f32 %v4744, %v5094
      %v5133 = vadd.f32 %v4745, %v5099
      %v5134 = vld [vmem:[%s4746 + $0x1] sm:$0xff]
      %v5135 = vld [vmem:[%s4746 + $0x9] sm:$0xff]
      %v5136 = vld [vmem:[%s4746 + $0x19] sm:$0xff]
      %v5137 = vld [vmem:[%s4746 + $0x21] sm:$0xff]
      %v5138 = vld [vmem:[%s4746 + $0x31] sm:$0xff]
      %v5139 = vld [vmem:[%s4746 + $0x39] sm:$0xff]
      %v5140 = vld [vmem:[%s4746 + $0x49] sm:$0xff]
      %v5141 = vld [vmem:[%s4746 + $0x51] sm:$0xff]
      %v5142 = vld [vmem:[%s4746 + $0x61] sm:$0xff]
      %v5143 = vld [vmem:[%s4746 + $0x69] sm:$0xff]
      %v5144 = vld [vmem:[%s4746 + $0x79] sm:$0xff]
      %v5145 = vld [vmem:[%s4746 + $0x81] sm:$0xff]
      %v5146 = vld [vmem:[%s4746 + $0x91] sm:$0xff]
      %v5147 = vld [vmem:[%s4746 + $0x99] sm:$0xff]
      %v5148 = vld [vmem:[%s4746 + $0xa9] sm:$0xff]
      %v5149 = vld [vmem:[%s4746 + $0xb1] sm:$0xff]
      %v5150 = vld [vmem:[%s4746 + $0xc1] sm:$0xff]
      %v5151 = vld [vmem:[%s4746 + $0xc9] sm:$0xff]
      %v5152 = vld [vmem:[%s4746 + $0xd9] sm:$0xff]
      %v5153 = vld [vmem:[%s4746 + $0xe1] sm:$0xff]
      %v5154 = vld [vmem:[%s4746 + $0xf1] sm:$0xff]
      %v5155 = vld [vmem:[%s4746 + $0xf9] sm:$0xff]
      %v5156 = vld [vmem:[%s4746 + $0x109] sm:$0xff]
      %v5157 = vld [vmem:[%s4746 + $0x111] sm:$0xff]
      %v5158 = vld [vmem:[%s4746 + $0x121] sm:$0xff]
      %v5159 = vld [vmem:[%s4746 + $0x129] sm:$0xff]
      %v5160 = vld [vmem:[%s4746 + $0x139] sm:$0xff]
      %v5161 = vld [vmem:[%s4746 + $0x141] sm:$0xff]
      %v5162 = vld [vmem:[%s4746 + $0x151] sm:$0xff]
      %v5163 = vld [vmem:[%s4746 + $0x159] sm:$0xff]
      %v5164 = vld [vmem:[%s4746 + $0x169] sm:$0xff]
      %v5165 = vld [vmem:[%s4746 + $0x171] sm:$0xff]
      %s5166 = scalar_lea.vmem %s4, 56
      %v5167 = vld [vmem:[%s5166] sm:$0xff]
      %v5169 = vsel %vm380, %v5134, 0
      %v5172 = vsel %vm380, %v5135, 0
      %v5175 = vsel %vm380, %v5136, 0
      %v5178 = vsel %vm380, %v5137, 0
      %v5181 = vsel %vm380, %v5138, 0
      %v5184 = vsel %vm380, %v5139, 0
      %v5187 = vsel %vm380, %v5140, 0
      %v5190 = vsel %vm380, %v5141, 0
      %v5193 = vsel %vm380, %v5142, 0
      %v5196 = vsel %vm380, %v5143, 0
      %v5199 = vsel %vm380, %v5144, 0
      %v5202 = vsel %vm380, %v5145, 0
      %v5205 = vsel %vm380, %v5146, 0
      %v5208 = vsel %vm380, %v5147, 0
      %v5211 = vsel %vm380, %v5148, 0
      %v5214 = vsel %vm380, %v5149, 0
      %v5217 = vsel %vm380, %v5150, 0
      %v5220 = vsel %vm380, %v5151, 0
      %v5223 = vsel %vm380, %v5152, 0
      %v5226 = vsel %vm380, %v5153, 0
      %v5229 = vsel %vm380, %v5154, 0
      %v5232 = vsel %vm380, %v5155, 0
      %v5235 = vsel %vm380, %v5156, 0
      %v5238 = vsel %vm380, %v5157, 0
      %v5241 = vsel %vm380, %v5158, 0
      %v5244 = vsel %vm380, %v5159, 0
      %v5247 = vsel %vm380, %v5160, 0
      %v5250 = vsel %vm380, %v5161, 0
      %v5253 = vsel %vm380, %v5162, 0
      %v5256 = vsel %vm380, %v5163, 0
      %v5259 = vsel %vm380, %v5164, 0
      %v5262 = vsel %vm380, %v5165, 0
      %5264 = vmatprep.subr.mxu0 0.0
      %5265 = vmatpush1.msra.mxu0 %v5167
      %5266 = vmatprep.subr.mxu0 0.0
      %5267 = vmatpush1.msra.mxu0 0.0
      %5268 = vmatprep.subr.mxu0 0.0
      %5269 = vmatpush1.msra.mxu0 0.0
      %5270 = vmatprep.subr.mxu0 0.0
      %5271 = vmatpush1.msra.mxu0 0.0
      %5272 = vmatprep.subr.mxu0 0.0
      %5273 = vmatpush1.msra.mxu0 0.0
      %5274 = vmatprep.subr.mxu0 0.0
      %5275 = vmatpush1.msra.mxu0 0.0
      %5276 = vmatprep.subr.mxu0 0.0
      %5277 = vmatpush1.msra.mxu0 0.0
      %5278 = vmatprep.subr.mxu0 0.0
      %5279 = vmatpush1.msra.mxu0 0.0
      %5280 = vmatprep.subr.mxu0 0.0
      %5281 = vmatpush1.msra.mxu0 0.0
      %5282 = vmatprep.subr.mxu0 0.0
      %5283 = vmatpush1.msra.mxu0 0.0
      %5284 = vmatprep.subr.mxu0 0.0
      %5285 = vmatpush1.msra.mxu0 0.0
      %5286 = vmatprep.subr.mxu0 0.0
      %5287 = vmatpush1.msra.mxu0 0.0
      %5288 = vmatprep.subr.mxu0 0.0
      %5289 = vmatpush1.msra.mxu0 0.0
      %5290 = vmatprep.subr.mxu0 0.0
      %5291 = vmatpush1.msra.mxu0 0.0
      %5292 = vmatprep.subr.mxu0 0.0
      %5293 = vmatpush1.msra.mxu0 0.0
      %5294 = vmatprep.subr.mxu0 0.0
      %5295 = vmatpush1.msra.mxu0 0.0
      %5296 = vmatprep.subr.mxu0 0.0
      %5297 = vmatpush1.msra.mxu0 0.0
      %5298 = vmatprep.subr.mxu0 0.0
      %5299 = vmatpush1.msra.mxu0 0.0
      %5300 = vmatprep.subr.mxu0 0.0
      %5301 = vmatpush1.msra.mxu0 0.0
      %5302 = vmatprep.subr.mxu0 0.0
      %5303 = vmatpush1.msra.mxu0 0.0
      %5304 = vmatprep.subr.mxu0 0.0
      %5305 = vmatpush1.msra.mxu0 0.0
      %5306 = vmatprep.subr.mxu0 0.0
      %5307 = vmatpush1.msra.mxu0 0.0
      %5308 = vmatprep.subr.mxu0 0.0
      %5309 = vmatpush1.msra.mxu0 0.0
      %5310 = vmatprep.subr.mxu0 0.0
      %5311 = vmatpush1.msra.mxu0 0.0
      %5312 = vmatprep.subr.mxu0 0.0
      %5313 = vmatpush1.msra.mxu0 0.0
      %5314 = vmatprep.subr.mxu0 0.0
      %5315 = vmatpush1.msra.mxu0 0.0
      %5316 = vmatprep.subr.mxu0 0.0
      %5317 = vmatpush1.msra.mxu0 0.0
      %5318 = vmatprep.subr.mxu0 0.0
      %5319 = vmatpush1.msra.mxu0 0.0
      %5320 = vmatprep.subr.mxu0 0.0
      %5321 = vmatpush1.msra.mxu0 0.0
      %5322 = vmatprep.subr.mxu0 0.0
      %5323 = vmatpush1.msra.mxu0 0.0
      %5324 = vmatprep.subr.mxu0 0.0
      %5325 = vmatpush1.msra.mxu0 0.0
      %5326 = vmatprep.subr.mxu0 0.0
      %5327 = vmatpush1.msra.mxu0 0.0
      %5328 = vmatprep.mubr.f32.mxu0 0.0
      %5329 = vmatmul.mubr.f32.gmra.mrb[0].mxu0 %v5169
      %v5330 = vpop.f32.mrb[0].mxu0
      %v5331 = vadd.f32 0.0, %v5330
      %v5332 = vpop.f32.mrb[0].mxu0
      %5333 = vmatprep.mubr.f32.mxu0 0.0
      %5334 = vmatmul.mubr.f32.gmra.mrb[0].mxu0 %v5172
      %v5335 = vpop.f32.mrb[0].mxu0
      %v5336 = vadd.f32 0.0, %v5335
      %v5337 = vpop.f32.mrb[0].mxu0
      %5338 = vmatprep.mubr.f32.mxu0 0.0
      %5339 = vmatmul.mubr.f32.gmra.mrb[0].mxu0 %v5175
      %v5340 = vpop.f32.mrb[0].mxu0
      %v5341 = vadd.f32 0.0, %v5340
      %v5342 = vpop.f32.mrb[0].mxu0
      %5343 = vmatprep.mubr.f32.mxu0 0.0
      %5344 = vmatmul.mubr.f32.gmra.mrb[0].mxu0 %v5178
      %v5345 = vpop.f32.mrb[0].mxu0
      %v5346 = vadd.f32 0.0, %v5345
      %v5347 = vpop.f32.mrb[0].mxu0
      %5348 = vmatprep.mubr.f32.mxu0 0.0
      %5349 = vmatmul.mubr.f32.gmra.mrb[0].mxu0 %v5181
      %v5350 = vpop.f32.mrb[0].mxu0
      %v5351 = vadd.f32 0.0, %v5350
      %v5352 = vpop.f32.mrb[0].mxu0
      %5353 = vmatprep.mubr.f32.mxu0 0.0
      %5354 = vmatmul.mubr.f32.gmra.mrb[0].mxu0 %v5184
      %v5355 = vpop.f32.mrb[0].mxu0
      %v5356 = vadd.f32 0.0, %v5355
      %v5357 = vpop.f32.mrb[0].mxu0
      %5358 = vmatprep.mubr.f32.mxu0 0.0
      %5359 = vmatmul.mubr.f32.gmra.mrb[0].mxu0 %v5187
      %v5360 = vpop.f32.mrb[0].mxu0
      %v5361 = vadd.f32 0.0, %v5360
      %v5362 = vpop.f32.mrb[0].mxu0
      %5363 = vmatprep.mubr.f32.mxu0 0.0
      %5364 = vmatmul.mubr.f32.gmra.mrb[0].mxu0 %v5190
      %v5365 = vpop.f32.mrb[0].mxu0
      %v5366 = vadd.f32 0.0, %v5365
      %v5367 = vpop.f32.mrb[0].mxu0
      %5368 = vmatprep.mubr.f32.mxu0 0.0
      %5369 = vmatmul.mubr.f32.gmra.mrb[0].mxu0 %v5193
      %v5370 = vpop.f32.mrb[0].mxu0
      %v5371 = vadd.f32 0.0, %v5370
      %v5372 = vpop.f32.mrb[0].mxu0
      %5373 = vmatprep.mubr.f32.mxu0 0.0
      %5374 = vmatmul.mubr.f32.gmra.mrb[0].mxu0 %v5196
      %v5375 = vpop.f32.mrb[0].mxu0
      %v5376 = vadd.f32 0.0, %v5375
      %v5377 = vpop.f32.mrb[0].mxu0
      %5378 = vmatprep.mubr.f32.mxu0 0.0
      %5379 = vmatmul.mubr.f32.gmra.mrb[0].mxu0 %v5199
      %v5380 = vpop.f32.mrb[0].mxu0
      %v5381 = vadd.f32 0.0, %v5380
      %v5382 = vpop.f32.mrb[0].mxu0
      %5383 = vmatprep.mubr.f32.mxu0 0.0
      %5384 = vmatmul.mubr.f32.gmra.mrb[0].mxu0 %v5202
      %v5385 = vpop.f32.mrb[0].mxu0
      %v5386 = vadd.f32 0.0, %v5385
      %v5387 = vpop.f32.mrb[0].mxu0
      %5388 = vmatprep.mubr.f32.mxu0 0.0
      %5389 = vmatmul.mubr.f32.gmra.mrb[0].mxu0 %v5205
      %v5390 = vpop.f32.mrb[0].mxu0
      %v5391 = vadd.f32 0.0, %v5390
      %v5392 = vpop.f32.mrb[0].mxu0
      %5393 = vmatprep.mubr.f32.mxu0 0.0
      %5394 = vmatmul.mubr.f32.gmra.mrb[0].mxu0 %v5208
      %v5395 = vpop.f32.mrb[0].mxu0
      %v5396 = vadd.f32 0.0, %v5395
      %v5397 = vpop.f32.mrb[0].mxu0
      %5398 = vmatprep.mubr.f32.mxu0 0.0
      %5399 = vmatmul.mubr.f32.gmra.mrb[0].mxu0 %v5211
      %v5400 = vpop.f32.mrb[0].mxu0
      %v5401 = vadd.f32 0.0, %v5400
      %v5402 = vpop.f32.mrb[0].mxu0
      %5403 = vmatprep.mubr.f32.mxu0 0.0
      %5404 = vmatmul.mubr.f32.gmra.mrb[0].mxu0 %v5214
      %v5405 = vpop.f32.mrb[0].mxu0
      %v5406 = vadd.f32 0.0, %v5405
      %v5407 = vpop.f32.mrb[0].mxu0
      %5408 = vmatprep.mubr.f32.mxu0 0.0
      %5409 = vmatmul.mubr.f32.gmra.mrb[0].mxu0 %v5217
      %v5410 = vpop.f32.mrb[0].mxu0
      %v5411 = vadd.f32 0.0, %v5410
      %v5412 = vpop.f32.mrb[0].mxu0
      %5413 = vmatprep.mubr.f32.mxu0 0.0
      %5414 = vmatmul.mubr.f32.gmra.mrb[0].mxu0 %v5220
      %v5415 = vpop.f32.mrb[0].mxu0
      %v5416 = vadd.f32 0.0, %v5415
      %v5417 = vpop.f32.mrb[0].mxu0
      %5418 = vmatprep.mubr.f32.mxu0 0.0
      %5419 = vmatmul.mubr.f32.gmra.mrb[0].mxu0 %v5223
      %v5420 = vpop.f32.mrb[0].mxu0
      %v5421 = vadd.f32 0.0, %v5420
      %v5422 = vpop.f32.mrb[0].mxu0
      %5423 = vmatprep.mubr.f32.mxu0 0.0
      %5424 = vmatmul.mubr.f32.gmra.mrb[0].mxu0 %v5226
      %v5425 = vpop.f32.mrb[0].mxu0
      %v5426 = vadd.f32 0.0, %v5425
      %v5427 = vpop.f32.mrb[0].mxu0
      %5428 = vmatprep.mubr.f32.mxu0 0.0
      %5429 = vmatmul.mubr.f32.gmra.mrb[0].mxu0 %v5229
      %v5430 = vpop.f32.mrb[0].mxu0
      %v5431 = vadd.f32 0.0, %v5430
      %v5432 = vpop.f32.mrb[0].mxu0
      %5433 = vmatprep.mubr.f32.mxu0 0.0
      %5434 = vmatmul.mubr.f32.gmra.mrb[0].mxu0 %v5232
      %v5435 = vpop.f32.mrb[0].mxu0
      %v5436 = vadd.f32 0.0, %v5435
      %v5437 = vpop.f32.mrb[0].mxu0
      %5438 = vmatprep.mubr.f32.mxu0 0.0
      %5439 = vmatmul.mubr.f32.gmra.mrb[0].mxu0 %v5235
      %v5440 = vpop.f32.mrb[0].mxu0
      %v5441 = vadd.f32 0.0, %v5440
      %v5442 = vpop.f32.mrb[0].mxu0
      %5443 = vmatprep.mubr.f32.mxu0 0.0
      %5444 = vmatmul.mubr.f32.gmra.mrb[0].mxu0 %v5238
      %v5445 = vpop.f32.mrb[0].mxu0
      %v5446 = vadd.f32 0.0, %v5445
      %v5447 = vpop.f32.mrb[0].mxu0
      %5448 = vmatprep.mubr.f32.mxu0 0.0
      %5449 = vmatmul.mubr.f32.gmra.mrb[0].mxu0 %v5241
      %v5450 = vpop.f32.mrb[0].mxu0
      %v5451 = vadd.f32 0.0, %v5450
      %v5452 = vpop.f32.mrb[0].mxu0
      %5453 = vmatprep.mubr.f32.mxu0 0.0
      %5454 = vmatmul.mubr.f32.gmra.mrb[0].mxu0 %v5244
      %v5455 = vpop.f32.mrb[0].mxu0
      %v5456 = vadd.f32 0.0, %v5455
      %v5457 = vpop.f32.mrb[0].mxu0
      %5458 = vmatprep.mubr.f32.mxu0 0.0
      %5459 = vmatmul.mubr.f32.gmra.mrb[0].mxu0 %v5247
      %v5460 = vpop.f32.mrb[0].mxu0
      %v5461 = vadd.f32 0.0, %v5460
      %v5462 = vpop.f32.mrb[0].mxu0
      %5463 = vmatprep.mubr.f32.mxu0 0.0
      %5464 = vmatmul.mubr.f32.gmra.mrb[0].mxu0 %v5250
      %v5465 = vpop.f32.mrb[0].mxu0
      %v5466 = vadd.f32 0.0, %v5465
      %v5467 = vpop.f32.mrb[0].mxu0
      %5468 = vmatprep.mubr.f32.mxu0 0.0
      %5469 = vmatmul.mubr.f32.gmra.mrb[0].mxu0 %v5253
      %v5470 = vpop.f32.mrb[0].mxu0
      %v5471 = vadd.f32 0.0, %v5470
      %v5472 = vpop.f32.mrb[0].mxu0
      %5473 = vmatprep.mubr.f32.mxu0 0.0
      %5474 = vmatmul.mubr.f32.gmra.mrb[0].mxu0 %v5256
      %v5475 = vpop.f32.mrb[0].mxu0
      %v5476 = vadd.f32 0.0, %v5475
      %v5477 = vpop.f32.mrb[0].mxu0
      %5478 = vmatprep.mubr.f32.mxu0 0.0
      %5479 = vmatmul.mubr.f32.gmra.mrb[0].mxu0 %v5259
      %v5480 = vpop.f32.mrb[0].mxu0
      %v5481 = vadd.f32 0.0, %v5480
      %v5482 = vpop.f32.mrb[0].mxu0
      %5483 = vmatprep.mubr.f32.mxu0 0.0
      %5484 = vmatmul.mubr.f32.gmra.mrb[0].mxu0 %v5262
      %v5485 = vpop.f32.mrb[0].mxu0
      %v5486 = vadd.f32 0.0, %v5485
      %v5487 = vpop.f32.mrb[0].mxu0
      %5488 = vdwg.mxu0
      %v5489 = vadd.f32 %v5102, %v5331
      %v5490 = vadd.f32 %v5103, %v5336
      %v5491 = vadd.f32 %v5104, %v5341
      %v5492 = vadd.f32 %v5105, %v5346
      %v5493 = vadd.f32 %v5106, %v5351
      %v5494 = vadd.f32 %v5107, %v5356
      %v5495 = vadd.f32 %v5108, %v5361
      %v5496 = vadd.f32 %v5109, %v5366
      %v5497 = vadd.f32 %v5110, %v5371
      %v5498 = vadd.f32 %v5111, %v5376
      %v5499 = vadd.f32 %v5112, %v5381
      %v5500 = vadd.f32 %v5113, %v5386
      %v5501 = vadd.f32 %v5114, %v5391
      %v5502 = vadd.f32 %v5115, %v5396
      %v5503 = vadd.f32 %v5116, %v5401
      %v5504 = vadd.f32 %v5117, %v5406
      %v5505 = vadd.f32 %v5118, %v5411
      %v5506 = vadd.f32 %v5119, %v5416
      %v5507 = vadd.f32 %v5120, %v5421
      %v5508 = vadd.f32 %v5121, %v5426
      %v5509 = vadd.f32 %v5122, %v5431
      %v5510 = vadd.f32 %v5123, %v5436
      %v5511 = vadd.f32 %v5124, %v5441
      %v5512 = vadd.f32 %v5125, %v5446
      %v5513 = vadd.f32 %v5126, %v5451
      %v5514 = vadd.f32 %v5127, %v5456
      %v5515 = vadd.f32 %v5128, %v5461
      %v5516 = vadd.f32 %v5129, %v5466
      %v5517 = vadd.f32 %v5130, %v5471
      %v5518 = vadd.f32 %v5131, %v5476
      %v5519 = vadd.f32 %v5132, %v5481
      %v5520 = vadd.f32 %v5133, %v5486
      %v5521 = vld [vmem:[%s4746 + $0x2] sm:$0xff]
      %v5522 = vld [vmem:[%s4746 + $0xa] sm:$0xff]
      %v5523 = vld [vmem:[%s4746 + $0x1a] sm:$0xff]
      %v5524 = vld [vmem:[%s4746 + $0x22] sm:$0xff]
      %v5525 = vld [vmem:[%s4746 + $0x32] sm:$0xff]
      %v5526 = vld [vmem:[%s4746 + $0x3a] sm:$0xff]
      %v5527 = vld [vmem:[%s4746 + $0x4a] sm:$0xff]
      %v5528 = vld [vmem:[%s4746 + $0x52] sm:$0xff]
      %v5529 = vld [vmem:[%s4746 + $0x62] sm:$0xff]
      %v5530 = vld [vmem:[%s4746 + $0x6a] sm:$0xff]
      %v5531 = vld [vmem:[%s4746 + $0x7a] sm:$0xff]
      %v5532 = vld [vmem:[%s4746 + $0x82] sm:$0xff]
      %v5533 = vld [vmem:[%s4746 + $0x92] sm:$0xff]
      %v5534 = vld [vmem:[%s4746 + $0x9a] sm:$0xff]
      %v5535 = vld [vmem:[%s4746 + $0xaa] sm:$0xff]
      %v5536 = vld [vmem:[%s4746 + $0xb2] sm:$0xff]
      %v5537 = vld [vmem:[%s4746 + $0xc2] sm:$0xff]
      %v5538 = vld [vmem:[%s4746 + $0xca] sm:$0xff]
      %v5539 = vld [vmem:[%s4746 + $0xda] sm:$0xff]
      %v5540 = vld [vmem:[%s4746 + $0xe2] sm:$0xff]
      %v5541 = vld [vmem:[%s4746 + $0xf2] sm:$0xff]
      %v5542 = vld [vmem:[%s4746 + $0xfa] sm:$0xff]
      %v5543 = vld [vmem:[%s4746 + $0x10a] sm:$0xff]
      %v5544 = vld [vmem:[%s4746 + $0x112] sm:$0xff]
      %v5545 = vld [vmem:[%s4746 + $0x122] sm:$0xff]
      %v5546 = vld [vmem:[%s4746 + $0x12a] sm:$0xff]
      %v5547 = vld [vmem:[%s4746 + $0x13a] sm:$0xff]
      %v5548 = vld [vmem:[%s4746 + $0x142] sm:$0xff]
      %v5549 = vld [vmem:[%s4746 + $0x152] sm:$0xff]
      %v5550 = vld [vmem:[%s4746 + $0x15a] sm:$0xff]
      %v5551 = vld [vmem:[%s4746 + $0x16a] sm:$0xff]
      %v5552 = vld [vmem:[%s4746 + $0x172] sm:$0xff]
      %s5553 = scalar_lea.vmem %s4, 64
      %v5554 = vld [vmem:[%s5553] sm:$0xff]
      %v5556 = vsel %vm380, %v5521, 0
      %v5559 = vsel %vm380, %v5522, 0
      %v5562 = vsel %vm380, %v5523, 0
      %v5565 = vsel %vm380, %v5524, 0
      %v5568 = vsel %vm380, %v5525, 0
      %v5571 = vsel %vm380, %v5526, 0
      %v5574 = vsel %vm380, %v5527, 0
      %v5577 = vsel %vm380, %v5528, 0
      %v5580 = vsel %vm380, %v5529, 0
      %v5583 = vsel %vm380, %v5530, 0
      %v5586 = vsel %vm380, %v5531, 0
      %v5589 = vsel %vm380, %v5532, 0
      %v5592 = vsel %vm380, %v5533, 0
      %v5595 = vsel %vm380, %v5534, 0
      %v5598 = vsel %vm380, %v5535, 0
      %v5601 = vsel %vm380, %v5536, 0
      %v5604 = vsel %vm380, %v5537, 0
      %v5607 = vsel %vm380, %v5538, 0
      %v5610 = vsel %vm380, %v5539, 0
      %v5613 = vsel %vm380, %v5540, 0
      %v5616 = vsel %vm380, %v5541, 0
      %v5619 = vsel %vm380, %v5542, 0
      %v5622 = vsel %vm380, %v5543, 0
      %v5625 = vsel %vm380, %v5544, 0
      %v5628 = vsel %vm380, %v5545, 0
      %v5631 = vsel %vm380, %v5546, 0
      %v5634 = vsel %vm380, %v5547, 0
      %v5637 = vsel %vm380, %v5548, 0
      %v5640 = vsel %vm380, %v5549, 0
      %v5643 = vsel %vm380, %v5550, 0
      %v5646 = vsel %vm380, %v5551, 0
      %v5649 = vsel %vm380, %v5552, 0
      %5651 = vmatprep.subr.mxu0 0.0
      %5652 = vmatpush1.msra.mxu0 %v5554
      %5653 = vmatprep.subr.mxu0 0.0
      %5654 = vmatpush1.msra.mxu0 0.0
      %5655 = vmatprep.subr.mxu0 0.0
      %5656 = vmatpush1.msra.mxu0 0.0
      %5657 = vmatprep.subr.mxu0 0.0
      %5658 = vmatpush1.msra.mxu0 0.0
      %5659 = vmatprep.subr.mxu0 0.0
      %5660 = vmatpush1.msra.mxu0 0.0
      %5661 = vmatprep.subr.mxu0 0.0
      %5662 = vmatpush1.msra.mxu0 0.0
      %5663 = vmatprep.subr.mxu0 0.0
      %5664 = vmatpush1.msra.mxu0 0.0
      %5665 = vmatprep.subr.mxu0 0.0
      %5666 = vmatpush1.msra.mxu0 0.0
      %5667 = vmatprep.subr.mxu0 0.0
      %5668 = vmatpush1.msra.mxu0 0.0
      %5669 = vmatprep.subr.mxu0 0.0
      %5670 = vmatpush1.msra.mxu0 0.0
      %5671 = vmatprep.subr.mxu0 0.0
      %5672 = vmatpush1.msra.mxu0 0.0
      %5673 = vmatprep.subr.mxu0 0.0
      %5674 = vmatpush1.msra.mxu0 0.0
      %5675 = vmatprep.subr.mxu0 0.0
      %5676 = vmatpush1.msra.mxu0 0.0
      %5677 = vmatprep.subr.mxu0 0.0
      %5678 = vmatpush1.msra.mxu0 0.0
      %5679 = vmatprep.subr.mxu0 0.0
      %5680 = vmatpush1.msra.mxu0 0.0
      %5681 = vmatprep.subr.mxu0 0.0
      %5682 = vmatpush1.msra.mxu0 0.0
      %5683 = vmatprep.subr.mxu0 0.0
      %5684 = vmatpush1.msra.mxu0 0.0
      %5685 = vmatprep.subr.mxu0 0.0
      %5686 = vmatpush1.msra.mxu0 0.0
      %5687 = vmatprep.subr.mxu0 0.0
      %5688 = vmatpush1.msra.mxu0 0.0
      %5689 = vmatprep.subr.mxu0 0.0
      %5690 = vmatpush1.msra.mxu0 0.0
      %5691 = vmatprep.subr.mxu0 0.0
      %5692 = vmatpush1.msra.mxu0 0.0
      %5693 = vmatprep.subr.mxu0 0.0
      %5694 = vmatpush1.msra.mxu0 0.0
      %5695 = vmatprep.subr.mxu0 0.0
      %5696 = vmatpush1.msra.mxu0 0.0
      %5697 = vmatprep.subr.mxu0 0.0
      %5698 = vmatpush1.msra.mxu0 0.0
      %5699 = vmatprep.subr.mxu0 0.0
      %5700 = vmatpush1.msra.mxu0 0.0
      %5701 = vmatprep.subr.mxu0 0.0
      %5702 = vmatpush1.msra.mxu0 0.0
      %5703 = vmatprep.subr.mxu0 0.0
      %5704 = vmatpush1.msra.mxu0 0.0
      %5705 = vmatprep.subr.mxu0 0.0
      %5706 = vmatpush1.msra.mxu0 0.0
      %5707 = vmatprep.subr.mxu0 0.0
      %5708 = vmatpush1.msra.mxu0 0.0
      %5709 = vmatprep.subr.mxu0 0.0
      %5710 = vmatpush1.msra.mxu0 0.0
      %5711 = vmatprep.subr.mxu0 0.0
      %5712 = vmatpush1.msra.mxu0 0.0
      %5713 = vmatprep.subr.mxu0 0.0
      %5714 = vmatpush1.msra.mxu0 0.0
      %5715 = vmatprep.mubr.f32.mxu0 0.0
      %5716 = vmatmul.mubr.f32.gmra.mrb[0].mxu0 %v5556
      %v5717 = vpop.f32.mrb[0].mxu0
      %v5718 = vadd.f32 0.0, %v5717
      %v5719 = vpop.f32.mrb[0].mxu0
      %5720 = vmatprep.mubr.f32.mxu0 0.0
      %5721 = vmatmul.mubr.f32.gmra.mrb[0].mxu0 %v5559
      %v5722 = vpop.f32.mrb[0].mxu0
      %v5723 = vadd.f32 0.0, %v5722
      %v5724 = vpop.f32.mrb[0].mxu0
      %5725 = vmatprep.mubr.f32.mxu0 0.0
      %5726 = vmatmul.mubr.f32.gmra.mrb[0].mxu0 %v5562
      %v5727 = vpop.f32.mrb[0].mxu0
      %v5728 = vadd.f32 0.0, %v5727
      %v5729 = vpop.f32.mrb[0].mxu0
      %5730 = vmatprep.mubr.f32.mxu0 0.0
      %5731 = vmatmul.mubr.f32.gmra.mrb[0].mxu0 %v5565
      %v5732 = vpop.f32.mrb[0].mxu0
      %v5733 = vadd.f32 0.0, %v5732
      %v5734 = vpop.f32.mrb[0].mxu0
      %5735 = vmatprep.mubr.f32.mxu0 0.0
      %5736 = vmatmul.mubr.f32.gmra.mrb[0].mxu0 %v5568
      %v5737 = vpop.f32.mrb[0].mxu0
      %v5738 = vadd.f32 0.0, %v5737
      %v5739 = vpop.f32.mrb[0].mxu0
      %5740 = vmatprep.mubr.f32.mxu0 0.0
      %5741 = vmatmul.mubr.f32.gmra.mrb[0].mxu0 %v5571
      %v5742 = vpop.f32.mrb[0].mxu0
      %v5743 = vadd.f32 0.0, %v5742
      %v5744 = vpop.f32.mrb[0].mxu0
      %5745 = vmatprep.mubr.f32.mxu0 0.0
      %5746 = vmatmul.mubr.f32.gmra.mrb[0].mxu0 %v5574
      %v5747 = vpop.f32.mrb[0].mxu0
      %v5748 = vadd.f32 0.0, %v5747
      %v5749 = vpop.f32.mrb[0].mxu0
      %5750 = vmatprep.mubr.f32.mxu0 0.0
      %5751 = vmatmul.mubr.f32.gmra.mrb[0].mxu0 %v5577
      %v5752 = vpop.f32.mrb[0].mxu0
      %v5753 = vadd.f32 0.0, %v5752
      %v5754 = vpop.f32.mrb[0].mxu0
      %5755 = vmatprep.mubr.f32.mxu0 0.0
      %5756 = vmatmul.mubr.f32.gmra.mrb[0].mxu0 %v5580
      %v5757 = vpop.f32.mrb[0].mxu0
      %v5758 = vadd.f32 0.0, %v5757
      %v5759 = vpop.f32.mrb[0].mxu0
      %5760 = vmatprep.mubr.f32.mxu0 0.0
      %5761 = vmatmul.mubr.f32.gmra.mrb[0].mxu0 %v5583
      %v5762 = vpop.f32.mrb[0].mxu0
      %v5763 = vadd.f32 0.0, %v5762
      %v5764 = vpop.f32.mrb[0].mxu0
      %5765 = vmatprep.mubr.f32.mxu0 0.0
      %5766 = vmatmul.mubr.f32.gmra.mrb[0].mxu0 %v5586
      %v5767 = vpop.f32.mrb[0].mxu0
      %v5768 = vadd.f32 0.0, %v5767
      %v5769 = vpop.f32.mrb[0].mxu0
      %5770 = vmatprep.mubr.f32.mxu0 0.0
      %5771 = vmatmul.mubr.f32.gmra.mrb[0].mxu0 %v5589
      %v5772 = vpop.f32.mrb[0].mxu0
      %v5773 = vadd.f32 0.0, %v5772
      %v5774 = vpop.f32.mrb[0].mxu0
      %5775 = vmatprep.mubr.f32.mxu0 0.0
      %5776 = vmatmul.mubr.f32.gmra.mrb[0].mxu0 %v5592
      %v5777 = vpop.f32.mrb[0].mxu0
      %v5778 = vadd.f32 0.0, %v5777
      %v5779 = vpop.f32.mrb[0].mxu0
      %5780 = vmatprep.mubr.f32.mxu0 0.0
      %5781 = vmatmul.mubr.f32.gmra.mrb[0].mxu0 %v5595
      %v5782 = vpop.f32.mrb[0].mxu0
      %v5783 = vadd.f32 0.0, %v5782
      %v5784 = vpop.f32.mrb[0].mxu0
      %5785 = vmatprep.mubr.f32.mxu0 0.0
      %5786 = vmatmul.mubr.f32.gmra.mrb[0].mxu0 %v5598
      %v5787 = vpop.f32.mrb[0].mxu0
      %v5788 = vadd.f32 0.0, %v5787
      %v5789 = vpop.f32.mrb[0].mxu0
      %5790 = vmatprep.mubr.f32.mxu0 0.0
      %5791 = vmatmul.mubr.f32.gmra.mrb[0].mxu0 %v5601
      %v5792 = vpop.f32.mrb[0].mxu0
      %v5793 = vadd.f32 0.0, %v5792
      %v5794 = vpop.f32.mrb[0].mxu0
      %5795 = vmatprep.mubr.f32.mxu0 0.0
      %5796 = vmatmul.mubr.f32.gmra.mrb[0].mxu0 %v5604
      %v5797 = vpop.f32.mrb[0].mxu0
      %v5798 = vadd.f32 0.0, %v5797
      %v5799 = vpop.f32.mrb[0].mxu0
      %5800 = vmatprep.mubr.f32.mxu0 0.0
      %5801 = vmatmul.mubr.f32.gmra.mrb[0].mxu0 %v5607
      %v5802 = vpop.f32.mrb[0].mxu0
      %v5803 = vadd.f32 0.0, %v5802
      %v5804 = vpop.f32.mrb[0].mxu0
      %5805 = vmatprep.mubr.f32.mxu0 0.0
      %5806 = vmatmul.mubr.f32.gmra.mrb[0].mxu0 %v5610
      %v5807 = vpop.f32.mrb[0].mxu0
      %v5808 = vadd.f32 0.0, %v5807
      %v5809 = vpop.f32.mrb[0].mxu0
      %5810 = vmatprep.mubr.f32.mxu0 0.0
      %5811 = vmatmul.mubr.f32.gmra.mrb[0].mxu0 %v5613
      %v5812 = vpop.f32.mrb[0].mxu0
      %v5813 = vadd.f32 0.0, %v5812
      %v5814 = vpop.f32.mrb[0].mxu0
      %5815 = vmatprep.mubr.f32.mxu0 0.0
      %5816 = vmatmul.mubr.f32.gmra.mrb[0].mxu0 %v5616
      %v5817 = vpop.f32.mrb[0].mxu0
      %v5818 = vadd.f32 0.0, %v5817
      %v5819 = vpop.f32.mrb[0].mxu0
      %5820 = vmatprep.mubr.f32.mxu0 0.0
      %5821 = vmatmul.mubr.f32.gmra.mrb[0].mxu0 %v5619
      %v5822 = vpop.f32.mrb[0].mxu0
      %v5823 = vadd.f32 0.0, %v5822
      %v5824 = vpop.f32.mrb[0].mxu0
      %5825 = vmatprep.mubr.f32.mxu0 0.0
      %5826 = vmatmul.mubr.f32.gmra.mrb[0].mxu0 %v5622
      %v5827 = vpop.f32.mrb[0].mxu0
      %v5828 = vadd.f32 0.0, %v5827
      %v5829 = vpop.f32.mrb[0].mxu0
      %5830 = vmatprep.mubr.f32.mxu0 0.0
      %5831 = vmatmul.mubr.f32.gmra.mrb[0].mxu0 %v5625
      %v5832 = vpop.f32.mrb[0].mxu0
      %v5833 = vadd.f32 0.0, %v5832
      %v5834 = vpop.f32.mrb[0].mxu0
      %5835 = vmatprep.mubr.f32.mxu0 0.0
      %5836 = vmatmul.mubr.f32.gmra.mrb[0].mxu0 %v5628
      %v5837 = vpop.f32.mrb[0].mxu0
      %v5838 = vadd.f32 0.0, %v5837
      %v5839 = vpop.f32.mrb[0].mxu0
      %5840 = vmatprep.mubr.f32.mxu0 0.0
      %5841 = vmatmul.mubr.f32.gmra.mrb[0].mxu0 %v5631
      %v5842 = vpop.f32.mrb[0].mxu0
      %v5843 = vadd.f32 0.0, %v5842
      %v5844 = vpop.f32.mrb[0].mxu0
      %5845 = vmatprep.mubr.f32.mxu0 0.0
      %5846 = vmatmul.mubr.f32.gmra.mrb[0].mxu0 %v5634
      %v5847 = vpop.f32.mrb[0].mxu0
      %v5848 = vadd.f32 0.0, %v5847
      %v5849 = vpop.f32.mrb[0].mxu0
      %5850 = vmatprep.mubr.f32.mxu0 0.0
      %5851 = vmatmul.mubr.f32.gmra.mrb[0].mxu0 %v5637
      %v5852 = vpop.f32.mrb[0].mxu0
      %v5853 = vadd.f32 0.0, %v5852
      %v5854 = vpop.f32.mrb[0].mxu0
      %5855 = vmatprep.mubr.f32.mxu0 0.0
      %5856 = vmatmul.mubr.f32.gmra.mrb[0].mxu0 %v5640
      %v5857 = vpop.f32.mrb[0].mxu0
      %v5858 = vadd.f32 0.0, %v5857
      %v5859 = vpop.f32.mrb[0].mxu0
      %5860 = vmatprep.mubr.f32.mxu0 0.0
      %5861 = vmatmul.mubr.f32.gmra.mrb[0].mxu0 %v5643
      %v5862 = vpop.f32.mrb[0].mxu0
      %v5863 = vadd.f32 0.0, %v5862
      %v5864 = vpop.f32.mrb[0].mxu0
      %5865 = vmatprep.mubr.f32.mxu0 0.0
      %5866 = vmatmul.mubr.f32.gmra.mrb[0].mxu0 %v5646
      %v5867 = vpop.f32.mrb[0].mxu0
      %v5868 = vadd.f32 0.0, %v5867
      %v5869 = vpop.f32.mrb[0].mxu0
      %5870 = vmatprep.mubr.f32.mxu0 0.0
      %5871 = vmatmul.mubr.f32.gmra.mrb[0].mxu0 %v5649
      %v5872 = vpop.f32.mrb[0].mxu0
      %v5873 = vadd.f32 0.0, %v5872
      %v5874 = vpop.f32.mrb[0].mxu0
      %5875 = vdwg.mxu0
      %v5876 = vadd.f32 %v5489, %v5718
      %v5877 = vadd.f32 %v5490, %v5723
      %v5878 = vadd.f32 %v5491, %v5728
      %v5879 = vadd.f32 %v5492, %v5733
      %v5880 = vadd.f32 %v5493, %v5738
      %v5881 = vadd.f32 %v5494, %v5743
      %v5882 = vadd.f32 %v5495, %v5748
      %v5883 = vadd.f32 %v5496, %v5753
      %v5884 = vadd.f32 %v5497, %v5758
      %v5885 = vadd.f32 %v5498, %v5763
      %v5886 = vadd.f32 %v5499, %v5768
      %v5887 = vadd.f32 %v5500, %v5773
      %v5888 = vadd.f32 %v5501, %v5778
      %v5889 = vadd.f32 %v5502, %v5783
      %v5890 = vadd.f32 %v5503, %v5788
      %v5891 = vadd.f32 %v5504, %v5793
      %v5892 = vadd.f32 %v5505, %v5798
      %v5893 = vadd.f32 %v5506, %v5803
      %v5894 = vadd.f32 %v5507, %v5808
      %v5895 = vadd.f32 %v5508, %v5813
      %v5896 = vadd.f32 %v5509, %v5818
      %v5897 = vadd.f32 %v5510, %v5823
      %v5898 = vadd.f32 %v5511, %v5828
      %v5899 = vadd.f32 %v5512, %v5833
      %v5900 = vadd.f32 %v5513, %v5838
      %v5901 = vadd.f32 %v5514, %v5843
      %v5902 = vadd.f32 %v5515, %v5848
      %v5903 = vadd.f32 %v5516, %v5853
      %v5904 = vadd.f32 %v5517, %v5858
      %v5905 = vadd.f32 %v5518, %v5863
      %v5906 = vadd.f32 %v5519, %v5868
      %v5907 = vadd.f32 %v5520, %v5873
      %v5908 = vld [vmem:[%s5] sm:$0x1]
      %v5910 = vlaneseq
      %v5911 = vshrl.u32 %v5910, 7
      %v5912 = vsub.s32 0, %v5911
      %v5913 = vrot.slane %v5908, %v5912
      %v5915 = vmul.f32 %v5876, %v5913
      %v5916 = vmul.f32 %v5877, %v5913
      %v5917 = vmul.f32 %v5878, %v5913
      %v5918 = vmul.f32 %v5879, %v5913
      %v5919 = vmul.f32 %v5880, %v5913
      %v5920 = vmul.f32 %v5881, %v5913
      %v5921 = vmul.f32 %v5882, %v5913
      %v5922 = vmul.f32 %v5883, %v5913
      %v5923 = vmul.f32 %v5884, %v5913
      %v5924 = vmul.f32 %v5885, %v5913
      %v5925 = vmul.f32 %v5886, %v5913
      %v5926 = vmul.f32 %v5887, %v5913
      %v5927 = vmul.f32 %v5888, %v5913
      %v5928 = vmul.f32 %v5889, %v5913
      %v5929 = vmul.f32 %v5890, %v5913
      %v5930 = vmul.f32 %v5891, %v5913
      %v5931 = vmul.f32 %v5892, %v5913
      %v5932 = vmul.f32 %v5893, %v5913
      %v5933 = vmul.f32 %v5894, %v5913
      %v5934 = vmul.f32 %v5895, %v5913
      %v5935 = vmul.f32 %v5896, %v5913
      %v5936 = vmul.f32 %v5897, %v5913
      %v5937 = vmul.f32 %v5898, %v5913
      %v5938 = vmul.f32 %v5899, %v5913
      %v5939 = vmul.f32 %v5900, %v5913
      %v5940 = vmul.f32 %v5901, %v5913
      %v5941 = vmul.f32 %v5902, %v5913
      %v5942 = vmul.f32 %v5903, %v5913
      %v5943 = vmul.f32 %v5904, %v5913
      %v5944 = vmul.f32 %v5905, %v5913
      %v5945 = vmul.f32 %v5906, %v5913
      %v5946 = vmul.f32 %v5907, %v5913
      %v5947 = vld [vmem:[%s6] sm:$0x1]
      %v5949 = vlaneseq
      %v5950 = vshrl.u32 %v5949, 7
      %v5951 = vsub.s32 0, %v5950
      %v5952 = vrot.slane %v5947, %v5951
      %v5954 = vadd.f32 %v5915, %v5952
      %v5955 = vadd.f32 %v5916, %v5952
      %v5956 = vadd.f32 %v5917, %v5952
      %v5957 = vadd.f32 %v5918, %v5952
      %v5958 = vadd.f32 %v5919, %v5952
      %v5959 = vadd.f32 %v5920, %v5952
      %v5960 = vadd.f32 %v5921, %v5952
      %v5961 = vadd.f32 %v5922, %v5952
      %v5962 = vadd.f32 %v5923, %v5952
      %v5963 = vadd.f32 %v5924, %v5952
      %v5964 = vadd.f32 %v5925, %v5952
      %v5965 = vadd.f32 %v5926, %v5952
      %v5966 = vadd.f32 %v5927, %v5952
      %v5967 = vadd.f32 %v5928, %v5952
      %v5968 = vadd.f32 %v5929, %v5952
      %v5969 = vadd.f32 %v5930, %v5952
      %v5970 = vadd.f32 %v5931, %v5952
      %v5971 = vadd.f32 %v5932, %v5952
      %v5972 = vadd.f32 %v5933, %v5952
      %v5973 = vadd.f32 %v5934, %v5952
      %v5974 = vadd.f32 %v5935, %v5952
      %v5975 = vadd.f32 %v5936, %v5952
      %v5976 = vadd.f32 %v5937, %v5952
      %v5977 = vadd.f32 %v5938, %v5952
      %v5978 = vadd.f32 %v5939, %v5952
      %v5979 = vadd.f32 %v5940, %v5952
      %v5980 = vadd.f32 %v5941, %v5952
      %v5981 = vadd.f32 %v5942, %v5952
      %v5982 = vadd.f32 %v5943, %v5952
      %v5983 = vadd.f32 %v5944, %v5952
      %v5984 = vadd.f32 %v5945, %v5952
      %v5985 = vadd.f32 %v5946, %v5952
      %v5986 = vmax.f32 %v5954, 0.0
      %v5987 = vmax.f32 %v5955, 0.0
      %v5988 = vmax.f32 %v5956, 0.0
      %v5989 = vmax.f32 %v5957, 0.0
      %v5990 = vmax.f32 %v5958, 0.0
      %v5991 = vmax.f32 %v5959, 0.0
      %v5992 = vmax.f32 %v5960, 0.0
      %v5993 = vmax.f32 %v5961, 0.0
      %v5994 = vmax.f32 %v5962, 0.0
      %v5995 = vmax.f32 %v5963, 0.0
      %v5996 = vmax.f32 %v5964, 0.0
      %v5997 = vmax.f32 %v5965, 0.0
      %v5998 = vmax.f32 %v5966, 0.0
      %v5999 = vmax.f32 %v5967, 0.0
      %v6000 = vmax.f32 %v5968, 0.0
      %v6001 = vmax.f32 %v5969, 0.0
      %v6002 = vmax.f32 %v5970, 0.0
      %v6003 = vmax.f32 %v5971, 0.0
      %v6004 = vmax.f32 %v5972, 0.0
      %v6005 = vmax.f32 %v5973, 0.0
      %v6006 = vmax.f32 %v5974, 0.0
      %v6007 = vmax.f32 %v5975, 0.0
      %v6008 = vmax.f32 %v5976, 0.0
      %v6009 = vmax.f32 %v5977, 0.0
      %v6010 = vmax.f32 %v5978, 0.0
      %v6011 = vmax.f32 %v5979, 0.0
      %v6012 = vmax.f32 %v5980, 0.0
      %v6013 = vmax.f32 %v5981, 0.0
      %v6014 = vmax.f32 %v5982, 0.0
      %v6015 = vmax.f32 %v5983, 0.0
      %v6016 = vmax.f32 %v5984, 0.0
      %v6017 = vmax.f32 %v5985, 0.0
      %s6018 = scalar_lea.vmem [#allocation3], 24
      %6019 = vst.msk [vmem:[%s6018 + $0x1] sm:$0xff] %vm426, %v5986
      %6020 = vst.msk [vmem:[%s6018 + $0x9] sm:$0xff] %vm426, %v5987
      %6021 = vst.msk [vmem:[%s6018 + $0x19] sm:$0xff] %vm426, %v5988
      %6022 = vst.msk [vmem:[%s6018 + $0x21] sm:$0xff] %vm426, %v5989
      %6023 = vst.msk [vmem:[%s6018 + $0x31] sm:$0xff] %vm426, %v5990
      %6024 = vst.msk [vmem:[%s6018 + $0x39] sm:$0xff] %vm426, %v5991
      %6025 = vst.msk [vmem:[%s6018 + $0x49] sm:$0xff] %vm426, %v5992
      %6026 = vst.msk [vmem:[%s6018 + $0x51] sm:$0xff] %vm426, %v5993
      %6027 = vst.msk [vmem:[%s6018 + $0x61] sm:$0xff] %vm426, %v5994
      %6028 = vst.msk [vmem:[%s6018 + $0x69] sm:$0xff] %vm426, %v5995
      %6029 = vst.msk [vmem:[%s6018 + $0x79] sm:$0xff] %vm426, %v5996
      %6030 = vst.msk [vmem:[%s6018 + $0x81] sm:$0xff] %vm426, %v5997
      %6031 = vst.msk [vmem:[%s6018 + $0x91] sm:$0xff] %vm426, %v5998
      %6032 = vst.msk [vmem:[%s6018 + $0x99] sm:$0xff] %vm426, %v5999
      %6033 = vst.msk [vmem:[%s6018 + $0xa9] sm:$0xff] %vm426, %v6000
      %6034 = vst.msk [vmem:[%s6018 + $0xb1] sm:$0xff] %vm426, %v6001
      %6035 = vst.msk [vmem:[%s6018 + $0xc1] sm:$0xff] %vm426, %v6002
      %6036 = vst.msk [vmem:[%s6018 + $0xc9] sm:$0xff] %vm426, %v6003
      %6037 = vst.msk [vmem:[%s6018 + $0xd9] sm:$0xff] %vm426, %v6004
      %6038 = vst.msk [vmem:[%s6018 + $0xe1] sm:$0xff] %vm426, %v6005
      %6039 = vst.msk [vmem:[%s6018 + $0xf1] sm:$0xff] %vm426, %v6006
      %6040 = vst.msk [vmem:[%s6018 + $0xf9] sm:$0xff] %vm426, %v6007
      %6041 = vst.msk [vmem:[%s6018 + $0x109] sm:$0xff] %vm426, %v6008
      %6042 = vst.msk [vmem:[%s6018 + $0x111] sm:$0xff] %vm426, %v6009
      %6043 = vst.msk [vmem:[%s6018 + $0x121] sm:$0xff] %vm426, %v6010
      %6044 = vst.msk [vmem:[%s6018 + $0x129] sm:$0xff] %vm426, %v6011
      %6045 = vst.msk [vmem:[%s6018 + $0x139] sm:$0xff] %vm426, %v6012
      %6046 = vst.msk [vmem:[%s6018 + $0x141] sm:$0xff] %vm426, %v6013
      %6047 = vst.msk [vmem:[%s6018 + $0x151] sm:$0xff] %vm426, %v6014
      %6048 = vst.msk [vmem:[%s6018 + $0x159] sm:$0xff] %vm426, %v6015
      %6049 = vst.msk [vmem:[%s6018 + $0x169] sm:$0xff] %vm426, %v6016
      %6050 = vst.msk [vmem:[%s6018 + $0x171] sm:$0xff] %vm426, %v6017
      %v6051 = vld [vmem:[#allocation3] sm:$0xff]
      %v6052 = vld [vmem:[#allocation3 + $0x8] sm:$0xff]
      %v6053 = vld [vmem:[#allocation3 + $0x18] sm:$0xff]
      %v6054 = vld [vmem:[#allocation3 + $0x20] sm:$0xff]
      %v6055 = vld [vmem:[#allocation3 + $0x30] sm:$0xff]
      %v6056 = vld [vmem:[#allocation3 + $0x38] sm:$0xff]
      %v6057 = vld [vmem:[#allocation3 + $0x48] sm:$0xff]
      %v6058 = vld [vmem:[#allocation3 + $0x50] sm:$0xff]
      %v6059 = vld [vmem:[#allocation3 + $0x60] sm:$0xff]
      %v6060 = vld [vmem:[#allocation3 + $0x68] sm:$0xff]
      %v6061 = vld [vmem:[#allocation3 + $0x78] sm:$0xff]
      %v6062 = vld [vmem:[#allocation3 + $0x80] sm:$0xff]
      %v6063 = vld [vmem:[#allocation3 + $0x90] sm:$0xff]
      %v6064 = vld [vmem:[#allocation3 + $0x98] sm:$0xff]
      %v6065 = vld [vmem:[#allocation3 + $0xa8] sm:$0xff]
      %v6066 = vld [vmem:[#allocation3 + $0xb0] sm:$0xff]
      %v6067 = vld [vmem:[#allocation3 + $0xc0] sm:$0xff]
      %v6068 = vld [vmem:[#allocation3 + $0xc8] sm:$0xff]
      %v6069 = vld [vmem:[#allocation3 + $0xd8] sm:$0xff]
      %v6070 = vld [vmem:[#allocation3 + $0xe0] sm:$0xff]
      %v6071 = vld [vmem:[#allocation3 + $0xf0] sm:$0xff]
      %v6072 = vld [vmem:[#allocation3 + $0xf8] sm:$0xff]
      %v6073 = vld [vmem:[#allocation3 + $0x108] sm:$0xff]
      %v6074 = vld [vmem:[#allocation3 + $0x110] sm:$0xff]
      %v6075 = vld [vmem:[#allocation3 + $0x120] sm:$0xff]
      %v6076 = vld [vmem:[#allocation3 + $0x128] sm:$0xff]
      %v6077 = vld [vmem:[#allocation3 + $0x138] sm:$0xff]
      %v6078 = vld [vmem:[#allocation3 + $0x140] sm:$0xff]
      %v6079 = vld [vmem:[#allocation3 + $0x150] sm:$0xff]
      %v6080 = vld [vmem:[#allocation3 + $0x158] sm:$0xff]
      %v6081 = vld [vmem:[#allocation3 + $0x168] sm:$0xff]
      %v6082 = vld [vmem:[#allocation3 + $0x170] sm:$0xff]
      %v6083 = vld [vmem:[%s7] sm:$0xf]
      %v6084 = vld [vmem:[#allocation3 + $0x1] sm:$0xff]
      %v6085 = vld [vmem:[#allocation3 + $0x9] sm:$0xff]
      %v6086 = vld [vmem:[#allocation3 + $0x19] sm:$0xff]
      %v6087 = vld [vmem:[#allocation3 + $0x21] sm:$0xff]
      %v6088 = vld [vmem:[#allocation3 + $0x31] sm:$0xff]
      %v6089 = vld [vmem:[#allocation3 + $0x39] sm:$0xff]
      %v6090 = vld [vmem:[#allocation3 + $0x49] sm:$0xff]
      %v6091 = vld [vmem:[#allocation3 + $0x51] sm:$0xff]
      %v6092 = vld [vmem:[#allocation3 + $0x61] sm:$0xff]
      %v6093 = vld [vmem:[#allocation3 + $0x69] sm:$0xff]
      %v6094 = vld [vmem:[#allocation3 + $0x79] sm:$0xff]
      %v6095 = vld [vmem:[#allocation3 + $0x81] sm:$0xff]
      %v6096 = vld [vmem:[#allocation3 + $0x91] sm:$0xff]
      %v6097 = vld [vmem:[#allocation3 + $0x99] sm:$0xff]
      %v6098 = vld [vmem:[#allocation3 + $0xa9] sm:$0xff]
      %v6099 = vld [vmem:[#allocation3 + $0xb1] sm:$0xff]
      %v6100 = vld [vmem:[#allocation3 + $0xc1] sm:$0xff]
      %v6101 = vld [vmem:[#allocation3 + $0xc9] sm:$0xff]
      %v6102 = vld [vmem:[#allocation3 + $0xd9] sm:$0xff]
      %v6103 = vld [vmem:[#allocation3 + $0xe1] sm:$0xff]
      %v6104 = vld [vmem:[#allocation3 + $0xf1] sm:$0xff]
      %v6105 = vld [vmem:[#allocation3 + $0xf9] sm:$0xff]
      %v6106 = vld [vmem:[#allocation3 + $0x109] sm:$0xff]
      %v6107 = vld [vmem:[#allocation3 + $0x111] sm:$0xff]
      %v6108 = vld [vmem:[#allocation3 + $0x121] sm:$0xff]
      %v6109 = vld [vmem:[#allocation3 + $0x129] sm:$0xff]
      %v6110 = vld [vmem:[#allocation3 + $0x139] sm:$0xff]
      %v6111 = vld [vmem:[#allocation3 + $0x141] sm:$0xff]
      %v6112 = vld [vmem:[#allocation3 + $0x151] sm:$0xff]
      %v6113 = vld [vmem:[#allocation3 + $0x159] sm:$0xff]
      %v6114 = vld [vmem:[#allocation3 + $0x169] sm:$0xff]
      %v6115 = vld [vmem:[#allocation3 + $0x171] sm:$0xff]
      %s6116 = scalar_lea.vmem %s7, 4
      %v6117 = vld [vmem:[%s6116] sm:$0xf]
      %v6119 = vsel %vm426, %v6084, 0
      %v6122 = vsel %vm426, %v6085, 0
      %v6125 = vsel %vm426, %v6086, 0
      %v6128 = vsel %vm426, %v6087, 0
      %v6131 = vsel %vm426, %v6088, 0
      %v6134 = vsel %vm426, %v6089, 0
      %v6137 = vsel %vm426, %v6090, 0
      %v6140 = vsel %vm426, %v6091, 0
      %v6143 = vsel %vm426, %v6092, 0
      %v6146 = vsel %vm426, %v6093, 0
      %v6149 = vsel %vm426, %v6094, 0
      %v6152 = vsel %vm426, %v6095, 0
      %v6155 = vsel %vm426, %v6096, 0
      %v6158 = vsel %vm426, %v6097, 0
      %v6161 = vsel %vm426, %v6098, 0
      %v6164 = vsel %vm426, %v6099, 0
      %v6167 = vsel %vm426, %v6100, 0
      %v6170 = vsel %vm426, %v6101, 0
      %v6173 = vsel %vm426, %v6102, 0
      %v6176 = vsel %vm426, %v6103, 0
      %v6179 = vsel %vm426, %v6104, 0
      %v6182 = vsel %vm426, %v6105, 0
      %v6185 = vsel %vm426, %v6106, 0
      %v6188 = vsel %vm426, %v6107, 0
      %v6191 = vsel %vm426, %v6108, 0
      %v6194 = vsel %vm426, %v6109, 0
      %v6197 = vsel %vm426, %v6110, 0
      %v6200 = vsel %vm426, %v6111, 0
      %v6203 = vsel %vm426, %v6112, 0
      %v6206 = vsel %vm426, %v6113, 0
      %v6209 = vsel %vm426, %v6114, 0
      %v6212 = vsel %vm426, %v6115, 0
      %vm6214 = vcmask 1043456
      %v6216 = vsel %vm6214, %v6117, 0
      %6218 = vmatprep.subr.mxu0 0.0
      %6219 = vmatpush1.msra.mxu0 %v6216
      %6220 = vmatprep.subr.mxu0 0.0
      %6221 = vmatpush1.msra.mxu0 0.0
      %6222 = vmatprep.subr.mxu0 0.0
      %6223 = vmatpush1.msra.mxu0 0.0
      %6224 = vmatprep.subr.mxu0 0.0
      %6225 = vmatpush1.msra.mxu0 0.0
      %6226 = vmatprep.subr.mxu0 0.0
      %6227 = vmatpush1.msra.mxu0 0.0
      %6228 = vmatprep.subr.mxu0 0.0
      %6229 = vmatpush1.msra.mxu0 0.0
      %6230 = vmatprep.subr.mxu0 0.0
      %6231 = vmatpush1.msra.mxu0 0.0
      %6232 = vmatprep.subr.mxu0 0.0
      %6233 = vmatpush1.msra.mxu0 0.0
      %6234 = vmatprep.subr.mxu0 0.0
      %6235 = vmatpush1.msra.mxu0 0.0
      %6236 = vmatprep.subr.mxu0 0.0
      %6237 = vmatpush1.msra.mxu0 0.0
      %6238 = vmatprep.subr.mxu0 0.0
      %6239 = vmatpush1.msra.mxu0 0.0
      %6240 = vmatprep.subr.mxu0 0.0
      %6241 = vmatpush1.msra.mxu0 0.0
      %6242 = vmatprep.subr.mxu0 0.0
      %6243 = vmatpush1.msra.mxu0 0.0
      %6244 = vmatprep.subr.mxu0 0.0
      %6245 = vmatpush1.msra.mxu0 0.0
      %6246 = vmatprep.subr.mxu0 0.0
      %6247 = vmatpush1.msra.mxu0 0.0
      %6248 = vmatprep.subr.mxu0 0.0
      %6249 = vmatpush1.msra.mxu0 0.0
      %6250 = vmatprep.subr.mxu0 0.0
      %6251 = vmatpush1.msra.mxu0 0.0
      %6252 = vmatprep.subr.mxu0 0.0
      %6253 = vmatpush1.msra.mxu0 0.0
      %6254 = vmatprep.subr.mxu0 0.0
      %6255 = vmatpush1.msra.mxu0 0.0
      %6256 = vmatprep.subr.mxu0 0.0
      %6257 = vmatpush1.msra.mxu0 0.0
      %6258 = vmatprep.subr.mxu0 0.0
      %6259 = vmatpush1.msra.mxu0 0.0
      %6260 = vmatprep.subr.mxu0 0.0
      %6261 = vmatpush1.msra.mxu0 0.0
      %6262 = vmatprep.subr.mxu0 0.0
      %6263 = vmatpush1.msra.mxu0 0.0
      %6264 = vmatprep.subr.mxu0 0.0
      %6265 = vmatpush1.msra.mxu0 0.0
      %6266 = vmatprep.subr.mxu0 0.0
      %6267 = vmatpush1.msra.mxu0 0.0
      %6268 = vmatprep.subr.mxu0 0.0
      %6269 = vmatpush1.msra.mxu0 0.0
      %6270 = vmatprep.subr.mxu0 0.0
      %6271 = vmatpush1.msra.mxu0 0.0
      %6272 = vmatprep.subr.mxu0 0.0
      %6273 = vmatpush1.msra.mxu0 0.0
      %6274 = vmatprep.subr.mxu0 0.0
      %6275 = vmatpush1.msra.mxu0 0.0
      %6276 = vmatprep.subr.mxu0 0.0
      %6277 = vmatpush1.msra.mxu0 0.0
      %6278 = vmatprep.subr.mxu0 0.0
      %6279 = vmatpush1.msra.mxu0 0.0
      %6280 = vmatprep.subr.mxu0 0.0
      %6281 = vmatpush1.msra.mxu0 0.0
      %6282 = vmatprep.mubr.f32.mxu0 0.0
      %6283 = vmatmul.mubr.f32.gmra.mrb[0].mxu0 %v6119
      %v6284 = vpop.f32.mrb[0].mxu0
      %v6285 = vadd.f32 0.0, %v6284
      %v6286 = vpop.f32.mrb[0].mxu0
      %6287 = vmatprep.mubr.f32.mxu0 0.0
      %6288 = vmatmul.mubr.f32.gmra.mrb[0].mxu0 %v6122
      %v6289 = vpop.f32.mrb[0].mxu0
      %v6290 = vadd.f32 0.0, %v6289
      %v6291 = vpop.f32.mrb[0].mxu0
      %6292 = vmatprep.mubr.f32.mxu0 0.0
      %6293 = vmatmul.mubr.f32.gmra.mrb[0].mxu0 %v6125
      %v6294 = vpop.f32.mrb[0].mxu0
      %v6295 = vadd.f32 0.0, %v6294
      %v6296 = vpop.f32.mrb[0].mxu0
      %6297 = vmatprep.mubr.f32.mxu0 0.0
      %6298 = vmatmul.mubr.f32.gmra.mrb[0].mxu0 %v6128
      %v6299 = vpop.f32.mrb[0].mxu0
      %v6300 = vadd.f32 0.0, %v6299
      %v6301 = vpop.f32.mrb[0].mxu0
      %6302 = vmatprep.mubr.f32.mxu0 0.0
      %6303 = vmatmul.mubr.f32.gmra.mrb[0].mxu0 %v6131
      %v6304 = vpop.f32.mrb[0].mxu0
      %v6305 = vadd.f32 0.0, %v6304
      %v6306 = vpop.f32.mrb[0].mxu0
      %6307 = vmatprep.mubr.f32.mxu0 0.0
      %6308 = vmatmul.mubr.f32.gmra.mrb[0].mxu0 %v6134
      %v6309 = vpop.f32.mrb[0].mxu0
      %v6310 = vadd.f32 0.0, %v6309
      %v6311 = vpop.f32.mrb[0].mxu0
      %6312 = vmatprep.mubr.f32.mxu0 0.0
      %6313 = vmatmul.mubr.f32.gmra.mrb[0].mxu0 %v6137
      %v6314 = vpop.f32.mrb[0].mxu0
      %v6315 = vadd.f32 0.0, %v6314
      %v6316 = vpop.f32.mrb[0].mxu0
      %6317 = vmatprep.mubr.f32.mxu0 0.0
      %6318 = vmatmul.mubr.f32.gmra.mrb[0].mxu0 %v6140
      %v6319 = vpop.f32.mrb[0].mxu0
      %v6320 = vadd.f32 0.0, %v6319
      %v6321 = vpop.f32.mrb[0].mxu0
      %6322 = vmatprep.mubr.f32.mxu0 0.0
      %6323 = vmatmul.mubr.f32.gmra.mrb[0].mxu0 %v6143
      %v6324 = vpop.f32.mrb[0].mxu0
      %v6325 = vadd.f32 0.0, %v6324
      %v6326 = vpop.f32.mrb[0].mxu0
      %6327 = vmatprep.mubr.f32.mxu0 0.0
      %6328 = vmatmul.mubr.f32.gmra.mrb[0].mxu0 %v6146
      %v6329 = vpop.f32.mrb[0].mxu0
      %v6330 = vadd.f32 0.0, %v6329
      %v6331 = vpop.f32.mrb[0].mxu0
      %6332 = vmatprep.mubr.f32.mxu0 0.0
      %6333 = vmatmul.mubr.f32.gmra.mrb[0].mxu0 %v6149
      %v6334 = vpop.f32.mrb[0].mxu0
      %v6335 = vadd.f32 0.0, %v6334
      %v6336 = vpop.f32.mrb[0].mxu0
      %6337 = vmatprep.mubr.f32.mxu0 0.0
      %6338 = vmatmul.mubr.f32.gmra.mrb[0].mxu0 %v6152
      %v6339 = vpop.f32.mrb[0].mxu0
      %v6340 = vadd.f32 0.0, %v6339
      %v6341 = vpop.f32.mrb[0].mxu0
      %6342 = vmatprep.mubr.f32.mxu0 0.0
      %6343 = vmatmul.mubr.f32.gmra.mrb[0].mxu0 %v6155
      %v6344 = vpop.f32.mrb[0].mxu0
      %v6345 = vadd.f32 0.0, %v6344
      %v6346 = vpop.f32.mrb[0].mxu0
      %6347 = vmatprep.mubr.f32.mxu0 0.0
      %6348 = vmatmul.mubr.f32.gmra.mrb[0].mxu0 %v6158
      %v6349 = vpop.f32.mrb[0].mxu0
      %v6350 = vadd.f32 0.0, %v6349
      %v6351 = vpop.f32.mrb[0].mxu0
      %6352 = vmatprep.mubr.f32.mxu0 0.0
      %6353 = vmatmul.mubr.f32.gmra.mrb[0].mxu0 %v6161
      %v6354 = vpop.f32.mrb[0].mxu0
      %v6355 = vadd.f32 0.0, %v6354
      %v6356 = vpop.f32.mrb[0].mxu0
      %6357 = vmatprep.mubr.f32.mxu0 0.0
      %6358 = vmatmul.mubr.f32.gmra.mrb[0].mxu0 %v6164
      %v6359 = vpop.f32.mrb[0].mxu0
      %v6360 = vadd.f32 0.0, %v6359
      %v6361 = vpop.f32.mrb[0].mxu0
      %6362 = vmatprep.mubr.f32.mxu0 0.0
      %6363 = vmatmul.mubr.f32.gmra.mrb[0].mxu0 %v6167
      %v6364 = vpop.f32.mrb[0].mxu0
      %v6365 = vadd.f32 0.0, %v6364
      %v6366 = vpop.f32.mrb[0].mxu0
      %6367 = vmatprep.mubr.f32.mxu0 0.0
      %6368 = vmatmul.mubr.f32.gmra.mrb[0].mxu0 %v6170
      %v6369 = vpop.f32.mrb[0].mxu0
      %v6370 = vadd.f32 0.0, %v6369
      %v6371 = vpop.f32.mrb[0].mxu0
      %6372 = vmatprep.mubr.f32.mxu0 0.0
      %6373 = vmatmul.mubr.f32.gmra.mrb[0].mxu0 %v6173
      %v6374 = vpop.f32.mrb[0].mxu0
      %v6375 = vadd.f32 0.0, %v6374
      %v6376 = vpop.f32.mrb[0].mxu0
      %6377 = vmatprep.mubr.f32.mxu0 0.0
      %6378 = vmatmul.mubr.f32.gmra.mrb[0].mxu0 %v6176
      %v6379 = vpop.f32.mrb[0].mxu0
      %v6380 = vadd.f32 0.0, %v6379
      %v6381 = vpop.f32.mrb[0].mxu0
      %6382 = vmatprep.mubr.f32.mxu0 0.0
      %6383 = vmatmul.mubr.f32.gmra.mrb[0].mxu0 %v6179
      %v6384 = vpop.f32.mrb[0].mxu0
      %v6385 = vadd.f32 0.0, %v6384
      %v6386 = vpop.f32.mrb[0].mxu0
      %6387 = vmatprep.mubr.f32.mxu0 0.0
      %6388 = vmatmul.mubr.f32.gmra.mrb[0].mxu0 %v6182
      %v6389 = vpop.f32.mrb[0].mxu0
      %v6390 = vadd.f32 0.0, %v6389
      %v6391 = vpop.f32.mrb[0].mxu0
      %6392 = vmatprep.mubr.f32.mxu0 0.0
      %6393 = vmatmul.mubr.f32.gmra.mrb[0].mxu0 %v6185
      %v6394 = vpop.f32.mrb[0].mxu0
      %v6395 = vadd.f32 0.0, %v6394
      %v6396 = vpop.f32.mrb[0].mxu0
      %6397 = vmatprep.mubr.f32.mxu0 0.0
      %6398 = vmatmul.mubr.f32.gmra.mrb[0].mxu0 %v6188
      %v6399 = vpop.f32.mrb[0].mxu0
      %v6400 = vadd.f32 0.0, %v6399
      %v6401 = vpop.f32.mrb[0].mxu0
      %6402 = vmatprep.mubr.f32.mxu0 0.0
      %6403 = vmatmul.mubr.f32.gmra.mrb[0].mxu0 %v6191
      %v6404 = vpop.f32.mrb[0].mxu0
      %v6405 = vadd.f32 0.0, %v6404
      %v6406 = vpop.f32.mrb[0].mxu0
      %6407 = vmatprep.mubr.f32.mxu0 0.0
      %6408 = vmatmul.mubr.f32.gmra.mrb[0].mxu0 %v6194
      %v6409 = vpop.f32.mrb[0].mxu0
      %v6410 = vadd.f32 0.0, %v6409
      %v6411 = vpop.f32.mrb[0].mxu0
      %6412 = vmatprep.mubr.f32.mxu0 0.0
      %6413 = vmatmul.mubr.f32.gmra.mrb[0].mxu0 %v6197
      %v6414 = vpop.f32.mrb[0].mxu0
      %v6415 = vadd.f32 0.0, %v6414
      %v6416 = vpop.f32.mrb[0].mxu0
      %6417 = vmatprep.mubr.f32.mxu0 0.0
      %6418 = vmatmul.mubr.f32.gmra.mrb[0].mxu0 %v6200
      %v6419 = vpop.f32.mrb[0].mxu0
      %v6420 = vadd.f32 0.0, %v6419
      %v6421 = vpop.f32.mrb[0].mxu0
      %6422 = vmatprep.mubr.f32.mxu0 0.0
      %6423 = vmatmul.mubr.f32.gmra.mrb[0].mxu0 %v6203
      %v6424 = vpop.f32.mrb[0].mxu0
      %v6425 = vadd.f32 0.0, %v6424
      %v6426 = vpop.f32.mrb[0].mxu0
      %6427 = vmatprep.mubr.f32.mxu0 0.0
      %6428 = vmatmul.mubr.f32.gmra.mrb[0].mxu0 %v6206
      %v6429 = vpop.f32.mrb[0].mxu0
      %v6430 = vadd.f32 0.0, %v6429
      %v6431 = vpop.f32.mrb[0].mxu0
      %6432 = vmatprep.mubr.f32.mxu0 0.0
      %6433 = vmatmul.mubr.f32.gmra.mrb[0].mxu0 %v6209
      %v6434 = vpop.f32.mrb[0].mxu0
      %v6435 = vadd.f32 0.0, %v6434
      %v6436 = vpop.f32.mrb[0].mxu0
      %6437 = vmatprep.mubr.f32.mxu0 0.0
      %6438 = vmatmul.mubr.f32.gmra.mrb[0].mxu0 %v6212
      %v6439 = vpop.f32.mrb[0].mxu0
      %v6440 = vadd.f32 0.0, %v6439
      %v6441 = vpop.f32.mrb[0].mxu0
      %6442 = vdwg.mxu0
      %v6444 = vsel %vm426, %v6051, 0
      %v6447 = vsel %vm426, %v6052, 0
      %v6450 = vsel %vm426, %v6053, 0
      %v6453 = vsel %vm426, %v6054, 0
      %v6456 = vsel %vm426, %v6055, 0
      %v6459 = vsel %vm426, %v6056, 0
      %v6462 = vsel %vm426, %v6057, 0
      %v6465 = vsel %vm426, %v6058, 0
      %v6468 = vsel %vm426, %v6059, 0
      %v6471 = vsel %vm426, %v6060, 0
      %v6474 = vsel %vm426, %v6061, 0
      %v6477 = vsel %vm426, %v6062, 0
      %v6480 = vsel %vm426, %v6063, 0
      %v6483 = vsel %vm426, %v6064, 0
      %v6486 = vsel %vm426, %v6065, 0
      %v6489 = vsel %vm426, %v6066, 0
      %v6492 = vsel %vm426, %v6067, 0
      %v6495 = vsel %vm426, %v6068, 0
      %v6498 = vsel %vm426, %v6069, 0
      %v6501 = vsel %vm426, %v6070, 0
      %v6504 = vsel %vm426, %v6071, 0
      %v6507 = vsel %vm426, %v6072, 0
      %v6510 = vsel %vm426, %v6073, 0
      %v6513 = vsel %vm426, %v6074, 0
      %v6516 = vsel %vm426, %v6075, 0
      %v6519 = vsel %vm426, %v6076, 0
      %v6522 = vsel %vm426, %v6077, 0
      %v6525 = vsel %vm426, %v6078, 0
      %v6528 = vsel %vm426, %v6079, 0
      %v6531 = vsel %vm426, %v6080, 0
      %v6534 = vsel %vm426, %v6081, 0
      %v6537 = vsel %vm426, %v6082, 0
      %v6540 = vsel %vm6214, %v6083, 0
      %6542 = vmatprep.subr.mxu0 0.0
      %6543 = vmatpush1.msra.mxu0 %v6540
      %6544 = vmatprep.subr.mxu0 0.0
      %6545 = vmatpush1.msra.mxu0 0.0
      %6546 = vmatprep.subr.mxu0 0.0
      %6547 = vmatpush1.msra.mxu0 0.0
      %6548 = vmatprep.subr.mxu0 0.0
      %6549 = vmatpush1.msra.mxu0 0.0
      %6550 = vmatprep.subr.mxu0 0.0
      %6551 = vmatpush1.msra.mxu0 0.0
      %6552 = vmatprep.subr.mxu0 0.0
      %6553 = vmatpush1.msra.mxu0 0.0
      %6554 = vmatprep.subr.mxu0 0.0
      %6555 = vmatpush1.msra.mxu0 0.0
      %6556 = vmatprep.subr.mxu0 0.0
      %6557 = vmatpush1.msra.mxu0 0.0
      %6558 = vmatprep.subr.mxu0 0.0
      %6559 = vmatpush1.msra.mxu0 0.0
      %6560 = vmatprep.subr.mxu0 0.0
      %6561 = vmatpush1.msra.mxu0 0.0
      %6562 = vmatprep.subr.mxu0 0.0
      %6563 = vmatpush1.msra.mxu0 0.0
      %6564 = vmatprep.subr.mxu0 0.0
      %6565 = vmatpush1.msra.mxu0 0.0
      %6566 = vmatprep.subr.mxu0 0.0
      %6567 = vmatpush1.msra.mxu0 0.0
      %6568 = vmatprep.subr.mxu0 0.0
      %6569 = vmatpush1.msra.mxu0 0.0
      %6570 = vmatprep.subr.mxu0 0.0
      %6571 = vmatpush1.msra.mxu0 0.0
      %6572 = vmatprep.subr.mxu0 0.0
      %6573 = vmatpush1.msra.mxu0 0.0
      %6574 = vmatprep.subr.mxu0 0.0
      %6575 = vmatpush1.msra.mxu0 0.0
      %6576 = vmatprep.subr.mxu0 0.0
      %6577 = vmatpush1.msra.mxu0 0.0
      %6578 = vmatprep.subr.mxu0 0.0
      %6579 = vmatpush1.msra.mxu0 0.0
      %6580 = vmatprep.subr.mxu0 0.0
      %6581 = vmatpush1.msra.mxu0 0.0
      %6582 = vmatprep.subr.mxu0 0.0
      %6583 = vmatpush1.msra.mxu0 0.0
      %6584 = vmatprep.subr.mxu0 0.0
      %6585 = vmatpush1.msra.mxu0 0.0
      %6586 = vmatprep.subr.mxu0 0.0
      %6587 = vmatpush1.msra.mxu0 0.0
      %6588 = vmatprep.subr.mxu0 0.0
      %6589 = vmatpush1.msra.mxu0 0.0
      %6590 = vmatprep.subr.mxu0 0.0
      %6591 = vmatpush1.msra.mxu0 0.0
      %6592 = vmatprep.subr.mxu0 0.0
      %6593 = vmatpush1.msra.mxu0 0.0
      %6594 = vmatprep.subr.mxu0 0.0
      %6595 = vmatpush1.msra.mxu0 0.0
      %6596 = vmatprep.subr.mxu0 0.0
      %6597 = vmatpush1.msra.mxu0 0.0
      %6598 = vmatprep.subr.mxu0 0.0
      %6599 = vmatpush1.msra.mxu0 0.0
      %6600 = vmatprep.subr.mxu0 0.0
      %6601 = vmatpush1.msra.mxu0 0.0
      %6602 = vmatprep.subr.mxu0 0.0
      %6603 = vmatpush1.msra.mxu0 0.0
      %6604 = vmatprep.subr.mxu0 0.0
      %6605 = vmatpush1.msra.mxu0 0.0
      %6606 = vmatprep.mubr.f32.mxu0 0.0
      %6607 = vmatmul.mubr.f32.gmra.mrb[0].mxu0 %v6444
      %v6608 = vpop.f32.mrb[0].mxu0
      %v6609 = vadd.f32 %v6285, %v6608
      %v6610 = vpop.f32.mrb[0].mxu0
      %6611 = vmatprep.mubr.f32.mxu0 0.0
      %6612 = vmatmul.mubr.f32.gmra.mrb[0].mxu0 %v6447
      %v6613 = vpop.f32.mrb[0].mxu0
      %v6614 = vadd.f32 %v6290, %v6613
      %v6615 = vpop.f32.mrb[0].mxu0
      %6616 = vmatprep.mubr.f32.mxu0 0.0
      %6617 = vmatmul.mubr.f32.gmra.mrb[0].mxu0 %v6450
      %v6618 = vpop.f32.mrb[0].mxu0
      %v6619 = vadd.f32 %v6295, %v6618
      %v6620 = vpop.f32.mrb[0].mxu0
      %6621 = vmatprep.mubr.f32.mxu0 0.0
      %6622 = vmatmul.mubr.f32.gmra.mrb[0].mxu0 %v6453
      %v6623 = vpop.f32.mrb[0].mxu0
      %v6624 = vadd.f32 %v6300, %v6623
      %v6625 = vpop.f32.mrb[0].mxu0
      %6626 = vmatprep.mubr.f32.mxu0 0.0
      %6627 = vmatmul.mubr.f32.gmra.mrb[0].mxu0 %v6456
      %v6628 = vpop.f32.mrb[0].mxu0
      %v6629 = vadd.f32 %v6305, %v6628
      %v6630 = vpop.f32.mrb[0].mxu0
      %6631 = vmatprep.mubr.f32.mxu0 0.0
      %6632 = vmatmul.mubr.f32.gmra.mrb[0].mxu0 %v6459
      %v6633 = vpop.f32.mrb[0].mxu0
      %v6634 = vadd.f32 %v6310, %v6633
      %v6635 = vpop.f32.mrb[0].mxu0
      %6636 = vmatprep.mubr.f32.mxu0 0.0
      %6637 = vmatmul.mubr.f32.gmra.mrb[0].mxu0 %v6462
      %v6638 = vpop.f32.mrb[0].mxu0
      %v6639 = vadd.f32 %v6315, %v6638
      %v6640 = vpop.f32.mrb[0].mxu0
      %6641 = vmatprep.mubr.f32.mxu0 0.0
      %6642 = vmatmul.mubr.f32.gmra.mrb[0].mxu0 %v6465
      %v6643 = vpop.f32.mrb[0].mxu0
      %v6644 = vadd.f32 %v6320, %v6643
      %v6645 = vpop.f32.mrb[0].mxu0
      %6646 = vmatprep.mubr.f32.mxu0 0.0
      %6647 = vmatmul.mubr.f32.gmra.mrb[0].mxu0 %v6468
      %v6648 = vpop.f32.mrb[0].mxu0
      %v6649 = vadd.f32 %v6325, %v6648
      %v6650 = vpop.f32.mrb[0].mxu0
      %6651 = vmatprep.mubr.f32.mxu0 0.0
      %6652 = vmatmul.mubr.f32.gmra.mrb[0].mxu0 %v6471
      %v6653 = vpop.f32.mrb[0].mxu0
      %v6654 = vadd.f32 %v6330, %v6653
      %v6655 = vpop.f32.mrb[0].mxu0
      %6656 = vmatprep.mubr.f32.mxu0 0.0
      %6657 = vmatmul.mubr.f32.gmra.mrb[0].mxu0 %v6474
      %v6658 = vpop.f32.mrb[0].mxu0
      %v6659 = vadd.f32 %v6335, %v6658
      %v6660 = vpop.f32.mrb[0].mxu0
      %6661 = vmatprep.mubr.f32.mxu0 0.0
      %6662 = vmatmul.mubr.f32.gmra.mrb[0].mxu0 %v6477
      %v6663 = vpop.f32.mrb[0].mxu0
      %v6664 = vadd.f32 %v6340, %v6663
      %v6665 = vpop.f32.mrb[0].mxu0
      %6666 = vmatprep.mubr.f32.mxu0 0.0
      %6667 = vmatmul.mubr.f32.gmra.mrb[0].mxu0 %v6480
      %v6668 = vpop.f32.mrb[0].mxu0
      %v6669 = vadd.f32 %v6345, %v6668
      %v6670 = vpop.f32.mrb[0].mxu0
      %6671 = vmatprep.mubr.f32.mxu0 0.0
      %6672 = vmatmul.mubr.f32.gmra.mrb[0].mxu0 %v6483
      %v6673 = vpop.f32.mrb[0].mxu0
      %v6674 = vadd.f32 %v6350, %v6673
      %v6675 = vpop.f32.mrb[0].mxu0
      %6676 = vmatprep.mubr.f32.mxu0 0.0
      %6677 = vmatmul.mubr.f32.gmra.mrb[0].mxu0 %v6486
      %v6678 = vpop.f32.mrb[0].mxu0
      %v6679 = vadd.f32 %v6355, %v6678
      %v6680 = vpop.f32.mrb[0].mxu0
      %6681 = vmatprep.mubr.f32.mxu0 0.0
      %6682 = vmatmul.mubr.f32.gmra.mrb[0].mxu0 %v6489
      %v6683 = vpop.f32.mrb[0].mxu0
      %v6684 = vadd.f32 %v6360, %v6683
      %v6685 = vpop.f32.mrb[0].mxu0
      %6686 = vmatprep.mubr.f32.mxu0 0.0
      %6687 = vmatmul.mubr.f32.gmra.mrb[0].mxu0 %v6492
      %v6688 = vpop.f32.mrb[0].mxu0
      %v6689 = vadd.f32 %v6365, %v6688
      %v6690 = vpop.f32.mrb[0].mxu0
      %6691 = vmatprep.mubr.f32.mxu0 0.0
      %6692 = vmatmul.mubr.f32.gmra.mrb[0].mxu0 %v6495
      %v6693 = vpop.f32.mrb[0].mxu0
      %v6694 = vadd.f32 %v6370, %v6693
      %v6695 = vpop.f32.mrb[0].mxu0
      %6696 = vmatprep.mubr.f32.mxu0 0.0
      %6697 = vmatmul.mubr.f32.gmra.mrb[0].mxu0 %v6498
      %v6698 = vpop.f32.mrb[0].mxu0
      %v6699 = vadd.f32 %v6375, %v6698
      %v6700 = vpop.f32.mrb[0].mxu0
      %6701 = vmatprep.mubr.f32.mxu0 0.0
      %6702 = vmatmul.mubr.f32.gmra.mrb[0].mxu0 %v6501
      %v6703 = vpop.f32.mrb[0].mxu0
      %v6704 = vadd.f32 %v6380, %v6703
      %v6705 = vpop.f32.mrb[0].mxu0
      %6706 = vmatprep.mubr.f32.mxu0 0.0
      %6707 = vmatmul.mubr.f32.gmra.mrb[0].mxu0 %v6504
      %v6708 = vpop.f32.mrb[0].mxu0
      %v6709 = vadd.f32 %v6385, %v6708
      %v6710 = vpop.f32.mrb[0].mxu0
      %6711 = vmatprep.mubr.f32.mxu0 0.0
      %6712 = vmatmul.mubr.f32.gmra.mrb[0].mxu0 %v6507
      %v6713 = vpop.f32.mrb[0].mxu0
      %v6714 = vadd.f32 %v6390, %v6713
      %v6715 = vpop.f32.mrb[0].mxu0
      %6716 = vmatprep.mubr.f32.mxu0 0.0
      %6717 = vmatmul.mubr.f32.gmra.mrb[0].mxu0 %v6510
      %v6718 = vpop.f32.mrb[0].mxu0
      %v6719 = vadd.f32 %v6395, %v6718
      %v6720 = vpop.f32.mrb[0].mxu0
      %6721 = vmatprep.mubr.f32.mxu0 0.0
      %6722 = vmatmul.mubr.f32.gmra.mrb[0].mxu0 %v6513
      %v6723 = vpop.f32.mrb[0].mxu0
      %v6724 = vadd.f32 %v6400, %v6723
      %v6725 = vpop.f32.mrb[0].mxu0
      %6726 = vmatprep.mubr.f32.mxu0 0.0
      %6727 = vmatmul.mubr.f32.gmra.mrb[0].mxu0 %v6516
      %v6728 = vpop.f32.mrb[0].mxu0
      %v6729 = vadd.f32 %v6405, %v6728
      %v6730 = vpop.f32.mrb[0].mxu0
      %6731 = vmatprep.mubr.f32.mxu0 0.0
      %6732 = vmatmul.mubr.f32.gmra.mrb[0].mxu0 %v6519
      %v6733 = vpop.f32.mrb[0].mxu0
      %v6734 = vadd.f32 %v6410, %v6733
      %v6735 = vpop.f32.mrb[0].mxu0
      %6736 = vmatprep.mubr.f32.mxu0 0.0
      %6737 = vmatmul.mubr.f32.gmra.mrb[0].mxu0 %v6522
      %v6738 = vpop.f32.mrb[0].mxu0
      %v6739 = vadd.f32 %v6415, %v6738
      %v6740 = vpop.f32.mrb[0].mxu0
      %6741 = vmatprep.mubr.f32.mxu0 0.0
      %6742 = vmatmul.mubr.f32.gmra.mrb[0].mxu0 %v6525
      %v6743 = vpop.f32.mrb[0].mxu0
      %v6744 = vadd.f32 %v6420, %v6743
      %v6745 = vpop.f32.mrb[0].mxu0
      %6746 = vmatprep.mubr.f32.mxu0 0.0
      %6747 = vmatmul.mubr.f32.gmra.mrb[0].mxu0 %v6528
      %v6748 = vpop.f32.mrb[0].mxu0
      %v6749 = vadd.f32 %v6425, %v6748
      %v6750 = vpop.f32.mrb[0].mxu0
      %6751 = vmatprep.mubr.f32.mxu0 0.0
      %6752 = vmatmul.mubr.f32.gmra.mrb[0].mxu0 %v6531
      %v6753 = vpop.f32.mrb[0].mxu0
      %v6754 = vadd.f32 %v6430, %v6753
      %v6755 = vpop.f32.mrb[0].mxu0
      %6756 = vmatprep.mubr.f32.mxu0 0.0
      %6757 = vmatmul.mubr.f32.gmra.mrb[0].mxu0 %v6534
      %v6758 = vpop.f32.mrb[0].mxu0
      %v6759 = vadd.f32 %v6435, %v6758
      %v6760 = vpop.f32.mrb[0].mxu0
      %6761 = vmatprep.mubr.f32.mxu0 0.0
      %6762 = vmatmul.mubr.f32.gmra.mrb[0].mxu0 %v6537
      %v6763 = vpop.f32.mrb[0].mxu0
      %v6764 = vadd.f32 %v6440, %v6763
      %v6765 = vpop.f32.mrb[0].mxu0
      %6766 = vdwg.mxu0
      %v6767 = vld [vmem:[#allocation3 + $0x2] sm:$0xff]
      %v6768 = vld [vmem:[#allocation3 + $0xa] sm:$0xff]
      %v6769 = vld [vmem:[#allocation3 + $0x1a] sm:$0xff]
      %v6770 = vld [vmem:[#allocation3 + $0x22] sm:$0xff]
      %v6771 = vld [vmem:[#allocation3 + $0x32] sm:$0xff]
      %v6772 = vld [vmem:[#allocation3 + $0x3a] sm:$0xff]
      %v6773 = vld [vmem:[#allocation3 + $0x4a] sm:$0xff]
      %v6774 = vld [vmem:[#allocation3 + $0x52] sm:$0xff]
      %v6775 = vld [vmem:[#allocation3 + $0x62] sm:$0xff]
      %v6776 = vld [vmem:[#allocation3 + $0x6a] sm:$0xff]
      %v6777 = vld [vmem:[#allocation3 + $0x7a] sm:$0xff]
      %v6778 = vld [vmem:[#allocation3 + $0x82] sm:$0xff]
      %v6779 = vld [vmem:[#allocation3 + $0x92] sm:$0xff]
      %v6780 = vld [vmem:[#allocation3 + $0x9a] sm:$0xff]
      %v6781 = vld [vmem:[#allocation3 + $0xaa] sm:$0xff]
      %v6782 = vld [vmem:[#allocation3 + $0xb2] sm:$0xff]
      %v6783 = vld [vmem:[#allocation3 + $0xc2] sm:$0xff]
      %v6784 = vld [vmem:[#allocation3 + $0xca] sm:$0xff]
      %v6785 = vld [vmem:[#allocation3 + $0xda] sm:$0xff]
      %v6786 = vld [vmem:[#allocation3 + $0xe2] sm:$0xff]
      %v6787 = vld [vmem:[#allocation3 + $0xf2] sm:$0xff]
      %v6788 = vld [vmem:[#allocation3 + $0xfa] sm:$0xff]
      %v6789 = vld [vmem:[#allocation3 + $0x10a] sm:$0xff]
      %v6790 = vld [vmem:[#allocation3 + $0x112] sm:$0xff]
      %v6791 = vld [vmem:[#allocation3 + $0x122] sm:$0xff]
      %v6792 = vld [vmem:[#allocation3 + $0x12a] sm:$0xff]
      %v6793 = vld [vmem:[#allocation3 + $0x13a] sm:$0xff]
      %v6794 = vld [vmem:[#allocation3 + $0x142] sm:$0xff]
      %v6795 = vld [vmem:[#allocation3 + $0x152] sm:$0xff]
      %v6796 = vld [vmem:[#allocation3 + $0x15a] sm:$0xff]
      %v6797 = vld [vmem:[#allocation3 + $0x16a] sm:$0xff]
      %v6798 = vld [vmem:[#allocation3 + $0x172] sm:$0xff]
      %s6799 = scalar_lea.vmem %s7, 8
      %v6800 = vld [vmem:[%s6799] sm:$0xf]
      %v6802 = vsel %vm426, %v6767, 0
      %v6805 = vsel %vm426, %v6768, 0
      %v6808 = vsel %vm426, %v6769, 0
      %v6811 = vsel %vm426, %v6770, 0
      %v6814 = vsel %vm426, %v6771, 0
      %v6817 = vsel %vm426, %v6772, 0
      %v6820 = vsel %vm426, %v6773, 0
      %v6823 = vsel %vm426, %v6774, 0
      %v6826 = vsel %vm426, %v6775, 0
      %v6829 = vsel %vm426, %v6776, 0
      %v6832 = vsel %vm426, %v6777, 0
      %v6835 = vsel %vm426, %v6778, 0
      %v6838 = vsel %vm426, %v6779, 0
      %v6841 = vsel %vm426, %v6780, 0
      %v6844 = vsel %vm426, %v6781, 0
      %v6847 = vsel %vm426, %v6782, 0
      %v6850 = vsel %vm426, %v6783, 0
      %v6853 = vsel %vm426, %v6784, 0
      %v6856 = vsel %vm426, %v6785, 0
      %v6859 = vsel %vm426, %v6786, 0
      %v6862 = vsel %vm426, %v6787, 0
      %v6865 = vsel %vm426, %v6788, 0
      %v6868 = vsel %vm426, %v6789, 0
      %v6871 = vsel %vm426, %v6790, 0
      %v6874 = vsel %vm426, %v6791, 0
      %v6877 = vsel %vm426, %v6792, 0
      %v6880 = vsel %vm426, %v6793, 0
      %v6883 = vsel %vm426, %v6794, 0
      %v6886 = vsel %vm426, %v6795, 0
      %v6889 = vsel %vm426, %v6796, 0
      %v6892 = vsel %vm426, %v6797, 0
      %v6895 = vsel %vm426, %v6798, 0
      %v6898 = vsel %vm6214, %v6800, 0
      %6900 = vmatprep.subr.mxu0 0.0
      %6901 = vmatpush1.msra.mxu0 %v6898
      %6902 = vmatprep.subr.mxu0 0.0
      %6903 = vmatpush1.msra.mxu0 0.0
      %6904 = vmatprep.subr.mxu0 0.0
      %6905 = vmatpush1.msra.mxu0 0.0
      %6906 = vmatprep.subr.mxu0 0.0
      %6907 = vmatpush1.msra.mxu0 0.0
      %6908 = vmatprep.subr.mxu0 0.0
      %6909 = vmatpush1.msra.mxu0 0.0
      %6910 = vmatprep.subr.mxu0 0.0
      %6911 = vmatpush1.msra.mxu0 0.0
      %6912 = vmatprep.subr.mxu0 0.0
      %6913 = vmatpush1.msra.mxu0 0.0
      %6914 = vmatprep.subr.mxu0 0.0
      %6915 = vmatpush1.msra.mxu0 0.0
      %6916 = vmatprep.subr.mxu0 0.0
      %6917 = vmatpush1.msra.mxu0 0.0
      %6918 = vmatprep.subr.mxu0 0.0
      %6919 = vmatpush1.msra.mxu0 0.0
      %6920 = vmatprep.subr.mxu0 0.0
      %6921 = vmatpush1.msra.mxu0 0.0
      %6922 = vmatprep.subr.mxu0 0.0
      %6923 = vmatpush1.msra.mxu0 0.0
      %6924 = vmatprep.subr.mxu0 0.0
      %6925 = vmatpush1.msra.mxu0 0.0
      %6926 = vmatprep.subr.mxu0 0.0
      %6927 = vmatpush1.msra.mxu0 0.0
      %6928 = vmatprep.subr.mxu0 0.0
      %6929 = vmatpush1.msra.mxu0 0.0
      %6930 = vmatprep.subr.mxu0 0.0
      %6931 = vmatpush1.msra.mxu0 0.0
      %6932 = vmatprep.subr.mxu0 0.0
      %6933 = vmatpush1.msra.mxu0 0.0
      %6934 = vmatprep.subr.mxu0 0.0
      %6935 = vmatpush1.msra.mxu0 0.0
      %6936 = vmatprep.subr.mxu0 0.0
      %6937 = vmatpush1.msra.mxu0 0.0
      %6938 = vmatprep.subr.mxu0 0.0
      %6939 = vmatpush1.msra.mxu0 0.0
      %6940 = vmatprep.subr.mxu0 0.0
      %6941 = vmatpush1.msra.mxu0 0.0
      %6942 = vmatprep.subr.mxu0 0.0
      %6943 = vmatpush1.msra.mxu0 0.0
      %6944 = vmatprep.subr.mxu0 0.0
      %6945 = vmatpush1.msra.mxu0 0.0
      %6946 = vmatprep.subr.mxu0 0.0
      %6947 = vmatpush1.msra.mxu0 0.0
      %6948 = vmatprep.subr.mxu0 0.0
      %6949 = vmatpush1.msra.mxu0 0.0
      %6950 = vmatprep.subr.mxu0 0.0
      %6951 = vmatpush1.msra.mxu0 0.0
      %6952 = vmatprep.subr.mxu0 0.0
      %6953 = vmatpush1.msra.mxu0 0.0
      %6954 = vmatprep.subr.mxu0 0.0
      %6955 = vmatpush1.msra.mxu0 0.0
      %6956 = vmatprep.subr.mxu0 0.0
      %6957 = vmatpush1.msra.mxu0 0.0
      %6958 = vmatprep.subr.mxu0 0.0
      %6959 = vmatpush1.msra.mxu0 0.0
      %6960 = vmatprep.subr.mxu0 0.0
      %6961 = vmatpush1.msra.mxu0 0.0
      %6962 = vmatprep.subr.mxu0 0.0
      %6963 = vmatpush1.msra.mxu0 0.0
      %6964 = vmatprep.mubr.f32.mxu0 0.0
      %6965 = vmatmul.mubr.f32.gmra.mrb[0].mxu0 %v6802
      %v6966 = vpop.f32.mrb[0].mxu0
      %v6967 = vadd.f32 0.0, %v6966
      %v6968 = vpop.f32.mrb[0].mxu0
      %6969 = vmatprep.mubr.f32.mxu0 0.0
      %6970 = vmatmul.mubr.f32.gmra.mrb[0].mxu0 %v6805
      %v6971 = vpop.f32.mrb[0].mxu0
      %v6972 = vadd.f32 0.0, %v6971
      %v6973 = vpop.f32.mrb[0].mxu0
      %6974 = vmatprep.mubr.f32.mxu0 0.0
      %6975 = vmatmul.mubr.f32.gmra.mrb[0].mxu0 %v6808
      %v6976 = vpop.f32.mrb[0].mxu0
      %v6977 = vadd.f32 0.0, %v6976
      %v6978 = vpop.f32.mrb[0].mxu0
      %6979 = vmatprep.mubr.f32.mxu0 0.0
      %6980 = vmatmul.mubr.f32.gmra.mrb[0].mxu0 %v6811
      %v6981 = vpop.f32.mrb[0].mxu0
      %v6982 = vadd.f32 0.0, %v6981
      %v6983 = vpop.f32.mrb[0].mxu0
      %6984 = vmatprep.mubr.f32.mxu0 0.0
      %6985 = vmatmul.mubr.f32.gmra.mrb[0].mxu0 %v6814
      %v6986 = vpop.f32.mrb[0].mxu0
      %v6987 = vadd.f32 0.0, %v6986
      %v6988 = vpop.f32.mrb[0].mxu0
      %6989 = vmatprep.mubr.f32.mxu0 0.0
      %6990 = vmatmul.mubr.f32.gmra.mrb[0].mxu0 %v6817
      %v6991 = vpop.f32.mrb[0].mxu0
      %v6992 = vadd.f32 0.0, %v6991
      %v6993 = vpop.f32.mrb[0].mxu0
      %6994 = vmatprep.mubr.f32.mxu0 0.0
      %6995 = vmatmul.mubr.f32.gmra.mrb[0].mxu0 %v6820
      %v6996 = vpop.f32.mrb[0].mxu0
      %v6997 = vadd.f32 0.0, %v6996
      %v6998 = vpop.f32.mrb[0].mxu0
      %6999 = vmatprep.mubr.f32.mxu0 0.0
      %7000 = vmatmul.mubr.f32.gmra.mrb[0].mxu0 %v6823
      %v7001 = vpop.f32.mrb[0].mxu0
      %v7002 = vadd.f32 0.0, %v7001
      %v7003 = vpop.f32.mrb[0].mxu0
      %7004 = vmatprep.mubr.f32.mxu0 0.0
      %7005 = vmatmul.mubr.f32.gmra.mrb[0].mxu0 %v6826
      %v7006 = vpop.f32.mrb[0].mxu0
      %v7007 = vadd.f32 0.0, %v7006
      %v7008 = vpop.f32.mrb[0].mxu0
      %7009 = vmatprep.mubr.f32.mxu0 0.0
      %7010 = vmatmul.mubr.f32.gmra.mrb[0].mxu0 %v6829
      %v7011 = vpop.f32.mrb[0].mxu0
      %v7012 = vadd.f32 0.0, %v7011
      %v7013 = vpop.f32.mrb[0].mxu0
      %7014 = vmatprep.mubr.f32.mxu0 0.0
      %7015 = vmatmul.mubr.f32.gmra.mrb[0].mxu0 %v6832
      %v7016 = vpop.f32.mrb[0].mxu0
      %v7017 = vadd.f32 0.0, %v7016
      %v7018 = vpop.f32.mrb[0].mxu0
      %7019 = vmatprep.mubr.f32.mxu0 0.0
      %7020 = vmatmul.mubr.f32.gmra.mrb[0].mxu0 %v6835
      %v7021 = vpop.f32.mrb[0].mxu0
      %v7022 = vadd.f32 0.0, %v7021
      %v7023 = vpop.f32.mrb[0].mxu0
      %7024 = vmatprep.mubr.f32.mxu0 0.0
      %7025 = vmatmul.mubr.f32.gmra.mrb[0].mxu0 %v6838
      %v7026 = vpop.f32.mrb[0].mxu0
      %v7027 = vadd.f32 0.0, %v7026
      %v7028 = vpop.f32.mrb[0].mxu0
      %7029 = vmatprep.mubr.f32.mxu0 0.0
      %7030 = vmatmul.mubr.f32.gmra.mrb[0].mxu0 %v6841
      %v7031 = vpop.f32.mrb[0].mxu0
      %v7032 = vadd.f32 0.0, %v7031
      %v7033 = vpop.f32.mrb[0].mxu0
      %7034 = vmatprep.mubr.f32.mxu0 0.0
      %7035 = vmatmul.mubr.f32.gmra.mrb[0].mxu0 %v6844
      %v7036 = vpop.f32.mrb[0].mxu0
      %v7037 = vadd.f32 0.0, %v7036
      %v7038 = vpop.f32.mrb[0].mxu0
      %7039 = vmatprep.mubr.f32.mxu0 0.0
      %7040 = vmatmul.mubr.f32.gmra.mrb[0].mxu0 %v6847
      %v7041 = vpop.f32.mrb[0].mxu0
      %v7042 = vadd.f32 0.0, %v7041
      %v7043 = vpop.f32.mrb[0].mxu0
      %7044 = vmatprep.mubr.f32.mxu0 0.0
      %7045 = vmatmul.mubr.f32.gmra.mrb[0].mxu0 %v6850
      %v7046 = vpop.f32.mrb[0].mxu0
      %v7047 = vadd.f32 0.0, %v7046
      %v7048 = vpop.f32.mrb[0].mxu0
      %7049 = vmatprep.mubr.f32.mxu0 0.0
      %7050 = vmatmul.mubr.f32.gmra.mrb[0].mxu0 %v6853
      %v7051 = vpop.f32.mrb[0].mxu0
      %v7052 = vadd.f32 0.0, %v7051
      %v7053 = vpop.f32.mrb[0].mxu0
      %7054 = vmatprep.mubr.f32.mxu0 0.0
      %7055 = vmatmul.mubr.f32.gmra.mrb[0].mxu0 %v6856
      %v7056 = vpop.f32.mrb[0].mxu0
      %v7057 = vadd.f32 0.0, %v7056
      %v7058 = vpop.f32.mrb[0].mxu0
      %7059 = vmatprep.mubr.f32.mxu0 0.0
      %7060 = vmatmul.mubr.f32.gmra.mrb[0].mxu0 %v6859
      %v7061 = vpop.f32.mrb[0].mxu0
      %v7062 = vadd.f32 0.0, %v7061
      %v7063 = vpop.f32.mrb[0].mxu0
      %7064 = vmatprep.mubr.f32.mxu0 0.0
      %7065 = vmatmul.mubr.f32.gmra.mrb[0].mxu0 %v6862
      %v7066 = vpop.f32.mrb[0].mxu0
      %v7067 = vadd.f32 0.0, %v7066
      %v7068 = vpop.f32.mrb[0].mxu0
      %7069 = vmatprep.mubr.f32.mxu0 0.0
      %7070 = vmatmul.mubr.f32.gmra.mrb[0].mxu0 %v6865
      %v7071 = vpop.f32.mrb[0].mxu0
      %v7072 = vadd.f32 0.0, %v7071
      %v7073 = vpop.f32.mrb[0].mxu0
      %7074 = vmatprep.mubr.f32.mxu0 0.0
      %7075 = vmatmul.mubr.f32.gmra.mrb[0].mxu0 %v6868
      %v7076 = vpop.f32.mrb[0].mxu0
      %v7077 = vadd.f32 0.0, %v7076
      %v7078 = vpop.f32.mrb[0].mxu0
      %7079 = vmatprep.mubr.f32.mxu0 0.0
      %7080 = vmatmul.mubr.f32.gmra.mrb[0].mxu0 %v6871
      %v7081 = vpop.f32.mrb[0].mxu0
      %v7082 = vadd.f32 0.0, %v7081
      %v7083 = vpop.f32.mrb[0].mxu0
      %7084 = vmatprep.mubr.f32.mxu0 0.0
      %7085 = vmatmul.mubr.f32.gmra.mrb[0].mxu0 %v6874
      %v7086 = vpop.f32.mrb[0].mxu0
      %v7087 = vadd.f32 0.0, %v7086
      %v7088 = vpop.f32.mrb[0].mxu0
      %7089 = vmatprep.mubr.f32.mxu0 0.0
      %7090 = vmatmul.mubr.f32.gmra.mrb[0].mxu0 %v6877
      %v7091 = vpop.f32.mrb[0].mxu0
      %v7092 = vadd.f32 0.0, %v7091
      %v7093 = vpop.f32.mrb[0].mxu0
      %7094 = vmatprep.mubr.f32.mxu0 0.0
      %7095 = vmatmul.mubr.f32.gmra.mrb[0].mxu0 %v6880
      %v7096 = vpop.f32.mrb[0].mxu0
      %v7097 = vadd.f32 0.0, %v7096
      %v7098 = vpop.f32.mrb[0].mxu0
      %7099 = vmatprep.mubr.f32.mxu0 0.0
      %7100 = vmatmul.mubr.f32.gmra.mrb[0].mxu0 %v6883
      %v7101 = vpop.f32.mrb[0].mxu0
      %v7102 = vadd.f32 0.0, %v7101
      %v7103 = vpop.f32.mrb[0].mxu0
      %7104 = vmatprep.mubr.f32.mxu0 0.0
      %7105 = vmatmul.mubr.f32.gmra.mrb[0].mxu0 %v6886
      %v7106 = vpop.f32.mrb[0].mxu0
      %v7107 = vadd.f32 0.0, %v7106
      %v7108 = vpop.f32.mrb[0].mxu0
      %7109 = vmatprep.mubr.f32.mxu0 0.0
      %7110 = vmatmul.mubr.f32.gmra.mrb[0].mxu0 %v6889
      %v7111 = vpop.f32.mrb[0].mxu0
      %v7112 = vadd.f32 0.0, %v7111
      %v7113 = vpop.f32.mrb[0].mxu0
      %7114 = vmatprep.mubr.f32.mxu0 0.0
      %7115 = vmatmul.mubr.f32.gmra.mrb[0].mxu0 %v6892
      %v7116 = vpop.f32.mrb[0].mxu0
      %v7117 = vadd.f32 0.0, %v7116
      %v7118 = vpop.f32.mrb[0].mxu0
      %7119 = vmatprep.mubr.f32.mxu0 0.0
      %7120 = vmatmul.mubr.f32.gmra.mrb[0].mxu0 %v6895
      %v7121 = vpop.f32.mrb[0].mxu0
      %v7122 = vadd.f32 0.0, %v7121
      %v7123 = vpop.f32.mrb[0].mxu0
      %7124 = vdwg.mxu0
      %v7125 = vadd.f32 %v6609, %v6967
      %v7126 = vadd.f32 %v6614, %v6972
      %v7127 = vadd.f32 %v6619, %v6977
      %v7128 = vadd.f32 %v6624, %v6982
      %v7129 = vadd.f32 %v6629, %v6987
      %v7130 = vadd.f32 %v6634, %v6992
      %v7131 = vadd.f32 %v6639, %v6997
      %v7132 = vadd.f32 %v6644, %v7002
      %v7133 = vadd.f32 %v6649, %v7007
      %v7134 = vadd.f32 %v6654, %v7012
      %v7135 = vadd.f32 %v6659, %v7017
      %v7136 = vadd.f32 %v6664, %v7022
      %v7137 = vadd.f32 %v6669, %v7027
      %v7138 = vadd.f32 %v6674, %v7032
      %v7139 = vadd.f32 %v6679, %v7037
      %v7140 = vadd.f32 %v6684, %v7042
      %v7141 = vadd.f32 %v6689, %v7047
      %v7142 = vadd.f32 %v6694, %v7052
      %v7143 = vadd.f32 %v6699, %v7057
      %v7144 = vadd.f32 %v6704, %v7062
      %v7145 = vadd.f32 %v6709, %v7067
      %v7146 = vadd.f32 %v6714, %v7072
      %v7147 = vadd.f32 %v6719, %v7077
      %v7148 = vadd.f32 %v6724, %v7082
      %v7149 = vadd.f32 %v6729, %v7087
      %v7150 = vadd.f32 %v6734, %v7092
      %v7151 = vadd.f32 %v6739, %v7097
      %v7152 = vadd.f32 %v6744, %v7102
      %v7153 = vadd.f32 %v6749, %v7107
      %v7154 = vadd.f32 %v6754, %v7112
      %v7155 = vadd.f32 %v6759, %v7117
      %v7156 = vadd.f32 %v6764, %v7122
      %v7157 = vld [vmem:[%s6018] sm:$0xff]
      %v7158 = vld [vmem:[%s6018 + $0x8] sm:$0xff]
      %v7159 = vld [vmem:[%s6018 + $0x18] sm:$0xff]
      %v7160 = vld [vmem:[%s6018 + $0x20] sm:$0xff]
      %v7161 = vld [vmem:[%s6018 + $0x30] sm:$0xff]
      %v7162 = vld [vmem:[%s6018 + $0x38] sm:$0xff]
      %v7163 = vld [vmem:[%s6018 + $0x48] sm:$0xff]
      %v7164 = vld [vmem:[%s6018 + $0x50] sm:$0xff]
      %v7165 = vld [vmem:[%s6018 + $0x60] sm:$0xff]
      %v7166 = vld [vmem:[%s6018 + $0x68] sm:$0xff]
      %v7167 = vld [vmem:[%s6018 + $0x78] sm:$0xff]
      %v7168 = vld [vmem:[%s6018 + $0x80] sm:$0xff]
      %v7169 = vld [vmem:[%s6018 + $0x90] sm:$0xff]
      %v7170 = vld [vmem:[%s6018 + $0x98] sm:$0xff]
      %v7171 = vld [vmem:[%s6018 + $0xa8] sm:$0xff]
      %v7172 = vld [vmem:[%s6018 + $0xb0] sm:$0xff]
      %v7173 = vld [vmem:[%s6018 + $0xc0] sm:$0xff]
      %v7174 = vld [vmem:[%s6018 + $0xc8] sm:$0xff]
      %v7175 = vld [vmem:[%s6018 + $0xd8] sm:$0xff]
      %v7176 = vld [vmem:[%s6018 + $0xe0] sm:$0xff]
      %v7177 = vld [vmem:[%s6018 + $0xf0] sm:$0xff]
      %v7178 = vld [vmem:[%s6018 + $0xf8] sm:$0xff]
      %v7179 = vld [vmem:[%s6018 + $0x108] sm:$0xff]
      %v7180 = vld [vmem:[%s6018 + $0x110] sm:$0xff]
      %v7181 = vld [vmem:[%s6018 + $0x120] sm:$0xff]
      %v7182 = vld [vmem:[%s6018 + $0x128] sm:$0xff]
      %v7183 = vld [vmem:[%s6018 + $0x138] sm:$0xff]
      %v7184 = vld [vmem:[%s6018 + $0x140] sm:$0xff]
      %v7185 = vld [vmem:[%s6018 + $0x150] sm:$0xff]
      %v7186 = vld [vmem:[%s6018 + $0x158] sm:$0xff]
      %v7187 = vld [vmem:[%s6018 + $0x168] sm:$0xff]
      %v7188 = vld [vmem:[%s6018 + $0x170] sm:$0xff]
      %s7189 = scalar_lea.vmem %s7, 12
      %v7190 = vld [vmem:[%s7189] sm:$0xf]
      %v7192 = vsel %vm426, %v7157, 0
      %v7195 = vsel %vm426, %v7158, 0
      %v7198 = vsel %vm426, %v7159, 0
      %v7201 = vsel %vm426, %v7160, 0
      %v7204 = vsel %vm426, %v7161, 0
      %v7207 = vsel %vm426, %v7162, 0
      %v7210 = vsel %vm426, %v7163, 0
      %v7213 = vsel %vm426, %v7164, 0
      %v7216 = vsel %vm426, %v7165, 0
      %v7219 = vsel %vm426, %v7166, 0
      %v7222 = vsel %vm426, %v7167, 0
      %v7225 = vsel %vm426, %v7168, 0
      %v7228 = vsel %vm426, %v7169, 0
      %v7231 = vsel %vm426, %v7170, 0
      %v7234 = vsel %vm426, %v7171, 0
      %v7237 = vsel %vm426, %v7172, 0
      %v7240 = vsel %vm426, %v7173, 0
      %v7243 = vsel %vm426, %v7174, 0
      %v7246 = vsel %vm426, %v7175, 0
      %v7249 = vsel %vm426, %v7176, 0
      %v7252 = vsel %vm426, %v7177, 0
      %v7255 = vsel %vm426, %v7178, 0
      %v7258 = vsel %vm426, %v7179, 0
      %v7261 = vsel %vm426, %v7180, 0
      %v7264 = vsel %vm426, %v7181, 0
      %v7267 = vsel %vm426, %v7182, 0
      %v7270 = vsel %vm426, %v7183, 0
      %v7273 = vsel %vm426, %v7184, 0
      %v7276 = vsel %vm426, %v7185, 0
      %v7279 = vsel %vm426, %v7186, 0
      %v7282 = vsel %vm426, %v7187, 0
      %v7285 = vsel %vm426, %v7188, 0
      %v7288 = vsel %vm6214, %v7190, 0
      %7290 = vmatprep.subr.mxu0 0.0
      %7291 = vmatpush1.msra.mxu0 %v7288
      %7292 = vmatprep.subr.mxu0 0.0
      %7293 = vmatpush1.msra.mxu0 0.0
      %7294 = vmatprep.subr.mxu0 0.0
      %7295 = vmatpush1.msra.mxu0 0.0
      %7296 = vmatprep.subr.mxu0 0.0
      %7297 = vmatpush1.msra.mxu0 0.0
      %7298 = vmatprep.subr.mxu0 0.0
      %7299 = vmatpush1.msra.mxu0 0.0
      %7300 = vmatprep.subr.mxu0 0.0
      %7301 = vmatpush1.msra.mxu0 0.0
      %7302 = vmatprep.subr.mxu0 0.0
      %7303 = vmatpush1.msra.mxu0 0.0
      %7304 = vmatprep.subr.mxu0 0.0
      %7305 = vmatpush1.msra.mxu0 0.0
      %7306 = vmatprep.subr.mxu0 0.0
      %7307 = vmatpush1.msra.mxu0 0.0
      %7308 = vmatprep.subr.mxu0 0.0
      %7309 = vmatpush1.msra.mxu0 0.0
      %7310 = vmatprep.subr.mxu0 0.0
      %7311 = vmatpush1.msra.mxu0 0.0
      %7312 = vmatprep.subr.mxu0 0.0
      %7313 = vmatpush1.msra.mxu0 0.0
      %7314 = vmatprep.subr.mxu0 0.0
      %7315 = vmatpush1.msra.mxu0 0.0
      %7316 = vmatprep.subr.mxu0 0.0
      %7317 = vmatpush1.msra.mxu0 0.0
      %7318 = vmatprep.subr.mxu0 0.0
      %7319 = vmatpush1.msra.mxu0 0.0
      %7320 = vmatprep.subr.mxu0 0.0
      %7321 = vmatpush1.msra.mxu0 0.0
      %7322 = vmatprep.subr.mxu0 0.0
      %7323 = vmatpush1.msra.mxu0 0.0
      %7324 = vmatprep.subr.mxu0 0.0
      %7325 = vmatpush1.msra.mxu0 0.0
      %7326 = vmatprep.subr.mxu0 0.0
      %7327 = vmatpush1.msra.mxu0 0.0
      %7328 = vmatprep.subr.mxu0 0.0
      %7329 = vmatpush1.msra.mxu0 0.0
      %7330 = vmatprep.subr.mxu0 0.0
      %7331 = vmatpush1.msra.mxu0 0.0
      %7332 = vmatprep.subr.mxu0 0.0
      %7333 = vmatpush1.msra.mxu0 0.0
      %7334 = vmatprep.subr.mxu0 0.0
      %7335 = vmatpush1.msra.mxu0 0.0
      %7336 = vmatprep.subr.mxu0 0.0
      %7337 = vmatpush1.msra.mxu0 0.0
      %7338 = vmatprep.subr.mxu0 0.0
      %7339 = vmatpush1.msra.mxu0 0.0
      %7340 = vmatprep.subr.mxu0 0.0
      %7341 = vmatpush1.msra.mxu0 0.0
      %7342 = vmatprep.subr.mxu0 0.0
      %7343 = vmatpush1.msra.mxu0 0.0
      %7344 = vmatprep.subr.mxu0 0.0
      %7345 = vmatpush1.msra.mxu0 0.0
      %7346 = vmatprep.subr.mxu0 0.0
      %7347 = vmatpush1.msra.mxu0 0.0
      %7348 = vmatprep.subr.mxu0 0.0
      %7349 = vmatpush1.msra.mxu0 0.0
      %7350 = vmatprep.subr.mxu0 0.0
      %7351 = vmatpush1.msra.mxu0 0.0
      %7352 = vmatprep.subr.mxu0 0.0
      %7353 = vmatpush1.msra.mxu0 0.0
      %7354 = vmatprep.mubr.f32.mxu0 0.0
      %7355 = vmatmul.mubr.f32.gmra.mrb[0].mxu0 %v7192
      %v7356 = vpop.f32.mrb[0].mxu0
      %v7357 = vadd.f32 0.0, %v7356
      %v7358 = vpop.f32.mrb[0].mxu0
      %7359 = vmatprep.mubr.f32.mxu0 0.0
      %7360 = vmatmul.mubr.f32.gmra.mrb[0].mxu0 %v7195
      %v7361 = vpop.f32.mrb[0].mxu0
      %v7362 = vadd.f32 0.0, %v7361
      %v7363 = vpop.f32.mrb[0].mxu0
      %7364 = vmatprep.mubr.f32.mxu0 0.0
      %7365 = vmatmul.mubr.f32.gmra.mrb[0].mxu0 %v7198
      %v7366 = vpop.f32.mrb[0].mxu0
      %v7367 = vadd.f32 0.0, %v7366
      %v7368 = vpop.f32.mrb[0].mxu0
      %7369 = vmatprep.mubr.f32.mxu0 0.0
      %7370 = vmatmul.mubr.f32.gmra.mrb[0].mxu0 %v7201
      %v7371 = vpop.f32.mrb[0].mxu0
      %v7372 = vadd.f32 0.0, %v7371
      %v7373 = vpop.f32.mrb[0].mxu0
      %7374 = vmatprep.mubr.f32.mxu0 0.0
      %7375 = vmatmul.mubr.f32.gmra.mrb[0].mxu0 %v7204
      %v7376 = vpop.f32.mrb[0].mxu0
      %v7377 = vadd.f32 0.0, %v7376
      %v7378 = vpop.f32.mrb[0].mxu0
      %7379 = vmatprep.mubr.f32.mxu0 0.0
      %7380 = vmatmul.mubr.f32.gmra.mrb[0].mxu0 %v7207
      %v7381 = vpop.f32.mrb[0].mxu0
      %v7382 = vadd.f32 0.0, %v7381
      %v7383 = vpop.f32.mrb[0].mxu0
      %7384 = vmatprep.mubr.f32.mxu0 0.0
      %7385 = vmatmul.mubr.f32.gmra.mrb[0].mxu0 %v7210
      %v7386 = vpop.f32.mrb[0].mxu0
      %v7387 = vadd.f32 0.0, %v7386
      %v7388 = vpop.f32.mrb[0].mxu0
      %7389 = vmatprep.mubr.f32.mxu0 0.0
      %7390 = vmatmul.mubr.f32.gmra.mrb[0].mxu0 %v7213
      %v7391 = vpop.f32.mrb[0].mxu0
      %v7392 = vadd.f32 0.0, %v7391
      %v7393 = vpop.f32.mrb[0].mxu0
      %7394 = vmatprep.mubr.f32.mxu0 0.0
      %7395 = vmatmul.mubr.f32.gmra.mrb[0].mxu0 %v7216
      %v7396 = vpop.f32.mrb[0].mxu0
      %v7397 = vadd.f32 0.0, %v7396
      %v7398 = vpop.f32.mrb[0].mxu0
      %7399 = vmatprep.mubr.f32.mxu0 0.0
      %7400 = vmatmul.mubr.f32.gmra.mrb[0].mxu0 %v7219
      %v7401 = vpop.f32.mrb[0].mxu0
      %v7402 = vadd.f32 0.0, %v7401
      %v7403 = vpop.f32.mrb[0].mxu0
      %7404 = vmatprep.mubr.f32.mxu0 0.0
      %7405 = vmatmul.mubr.f32.gmra.mrb[0].mxu0 %v7222
      %v7406 = vpop.f32.mrb[0].mxu0
      %v7407 = vadd.f32 0.0, %v7406
      %v7408 = vpop.f32.mrb[0].mxu0
      %7409 = vmatprep.mubr.f32.mxu0 0.0
      %7410 = vmatmul.mubr.f32.gmra.mrb[0].mxu0 %v7225
      %v7411 = vpop.f32.mrb[0].mxu0
      %v7412 = vadd.f32 0.0, %v7411
      %v7413 = vpop.f32.mrb[0].mxu0
      %7414 = vmatprep.mubr.f32.mxu0 0.0
      %7415 = vmatmul.mubr.f32.gmra.mrb[0].mxu0 %v7228
      %v7416 = vpop.f32.mrb[0].mxu0
      %v7417 = vadd.f32 0.0, %v7416
      %v7418 = vpop.f32.mrb[0].mxu0
      %7419 = vmatprep.mubr.f32.mxu0 0.0
      %7420 = vmatmul.mubr.f32.gmra.mrb[0].mxu0 %v7231
      %v7421 = vpop.f32.mrb[0].mxu0
      %v7422 = vadd.f32 0.0, %v7421
      %v7423 = vpop.f32.mrb[0].mxu0
      %7424 = vmatprep.mubr.f32.mxu0 0.0
      %7425 = vmatmul.mubr.f32.gmra.mrb[0].mxu0 %v7234
      %v7426 = vpop.f32.mrb[0].mxu0
      %v7427 = vadd.f32 0.0, %v7426
      %v7428 = vpop.f32.mrb[0].mxu0
      %7429 = vmatprep.mubr.f32.mxu0 0.0
      %7430 = vmatmul.mubr.f32.gmra.mrb[0].mxu0 %v7237
      %v7431 = vpop.f32.mrb[0].mxu0
      %v7432 = vadd.f32 0.0, %v7431
      %v7433 = vpop.f32.mrb[0].mxu0
      %7434 = vmatprep.mubr.f32.mxu0 0.0
      %7435 = vmatmul.mubr.f32.gmra.mrb[0].mxu0 %v7240
      %v7436 = vpop.f32.mrb[0].mxu0
      %v7437 = vadd.f32 0.0, %v7436
      %v7438 = vpop.f32.mrb[0].mxu0
      %7439 = vmatprep.mubr.f32.mxu0 0.0
      %7440 = vmatmul.mubr.f32.gmra.mrb[0].mxu0 %v7243
      %v7441 = vpop.f32.mrb[0].mxu0
      %v7442 = vadd.f32 0.0, %v7441
      %v7443 = vpop.f32.mrb[0].mxu0
      %7444 = vmatprep.mubr.f32.mxu0 0.0
      %7445 = vmatmul.mubr.f32.gmra.mrb[0].mxu0 %v7246
      %v7446 = vpop.f32.mrb[0].mxu0
      %v7447 = vadd.f32 0.0, %v7446
      %v7448 = vpop.f32.mrb[0].mxu0
      %7449 = vmatprep.mubr.f32.mxu0 0.0
      %7450 = vmatmul.mubr.f32.gmra.mrb[0].mxu0 %v7249
      %v7451 = vpop.f32.mrb[0].mxu0
      %v7452 = vadd.f32 0.0, %v7451
      %v7453 = vpop.f32.mrb[0].mxu0
      %7454 = vmatprep.mubr.f32.mxu0 0.0
      %7455 = vmatmul.mubr.f32.gmra.mrb[0].mxu0 %v7252
      %v7456 = vpop.f32.mrb[0].mxu0
      %v7457 = vadd.f32 0.0, %v7456
      %v7458 = vpop.f32.mrb[0].mxu0
      %7459 = vmatprep.mubr.f32.mxu0 0.0
      %7460 = vmatmul.mubr.f32.gmra.mrb[0].mxu0 %v7255
      %v7461 = vpop.f32.mrb[0].mxu0
      %v7462 = vadd.f32 0.0, %v7461
      %v7463 = vpop.f32.mrb[0].mxu0
      %7464 = vmatprep.mubr.f32.mxu0 0.0
      %7465 = vmatmul.mubr.f32.gmra.mrb[0].mxu0 %v7258
      %v7466 = vpop.f32.mrb[0].mxu0
      %v7467 = vadd.f32 0.0, %v7466
      %v7468 = vpop.f32.mrb[0].mxu0
      %7469 = vmatprep.mubr.f32.mxu0 0.0
      %7470 = vmatmul.mubr.f32.gmra.mrb[0].mxu0 %v7261
      %v7471 = vpop.f32.mrb[0].mxu0
      %v7472 = vadd.f32 0.0, %v7471
      %v7473 = vpop.f32.mrb[0].mxu0
      %7474 = vmatprep.mubr.f32.mxu0 0.0
      %7475 = vmatmul.mubr.f32.gmra.mrb[0].mxu0 %v7264
      %v7476 = vpop.f32.mrb[0].mxu0
      %v7477 = vadd.f32 0.0, %v7476
      %v7478 = vpop.f32.mrb[0].mxu0
      %7479 = vmatprep.mubr.f32.mxu0 0.0
      %7480 = vmatmul.mubr.f32.gmra.mrb[0].mxu0 %v7267
      %v7481 = vpop.f32.mrb[0].mxu0
      %v7482 = vadd.f32 0.0, %v7481
      %v7483 = vpop.f32.mrb[0].mxu0
      %7484 = vmatprep.mubr.f32.mxu0 0.0
      %7485 = vmatmul.mubr.f32.gmra.mrb[0].mxu0 %v7270
      %v7486 = vpop.f32.mrb[0].mxu0
      %v7487 = vadd.f32 0.0, %v7486
      %v7488 = vpop.f32.mrb[0].mxu0
      %7489 = vmatprep.mubr.f32.mxu0 0.0
      %7490 = vmatmul.mubr.f32.gmra.mrb[0].mxu0 %v7273
      %v7491 = vpop.f32.mrb[0].mxu0
      %v7492 = vadd.f32 0.0, %v7491
      %v7493 = vpop.f32.mrb[0].mxu0
      %7494 = vmatprep.mubr.f32.mxu0 0.0
      %7495 = vmatmul.mubr.f32.gmra.mrb[0].mxu0 %v7276
      %v7496 = vpop.f32.mrb[0].mxu0
      %v7497 = vadd.f32 0.0, %v7496
      %v7498 = vpop.f32.mrb[0].mxu0
      %7499 = vmatprep.mubr.f32.mxu0 0.0
      %7500 = vmatmul.mubr.f32.gmra.mrb[0].mxu0 %v7279
      %v7501 = vpop.f32.mrb[0].mxu0
      %v7502 = vadd.f32 0.0, %v7501
      %v7503 = vpop.f32.mrb[0].mxu0
      %7504 = vmatprep.mubr.f32.mxu0 0.0
      %7505 = vmatmul.mubr.f32.gmra.mrb[0].mxu0 %v7282
      %v7506 = vpop.f32.mrb[0].mxu0
      %v7507 = vadd.f32 0.0, %v7506
      %v7508 = vpop.f32.mrb[0].mxu0
      %7509 = vmatprep.mubr.f32.mxu0 0.0
      %7510 = vmatmul.mubr.f32.gmra.mrb[0].mxu0 %v7285
      %v7511 = vpop.f32.mrb[0].mxu0
      %v7512 = vadd.f32 0.0, %v7511
      %v7513 = vpop.f32.mrb[0].mxu0
      %7514 = vdwg.mxu0
      %v7515 = vadd.f32 %v7125, %v7357
      %v7516 = vadd.f32 %v7126, %v7362
      %v7517 = vadd.f32 %v7127, %v7367
      %v7518 = vadd.f32 %v7128, %v7372
      %v7519 = vadd.f32 %v7129, %v7377
      %v7520 = vadd.f32 %v7130, %v7382
      %v7521 = vadd.f32 %v7131, %v7387
      %v7522 = vadd.f32 %v7132, %v7392
      %v7523 = vadd.f32 %v7133, %v7397
      %v7524 = vadd.f32 %v7134, %v7402
      %v7525 = vadd.f32 %v7135, %v7407
      %v7526 = vadd.f32 %v7136, %v7412
      %v7527 = vadd.f32 %v7137, %v7417
      %v7528 = vadd.f32 %v7138, %v7422
      %v7529 = vadd.f32 %v7139, %v7427
      %v7530 = vadd.f32 %v7140, %v7432
      %v7531 = vadd.f32 %v7141, %v7437
      %v7532 = vadd.f32 %v7142, %v7442
      %v7533 = vadd.f32 %v7143, %v7447
      %v7534 = vadd.f32 %v7144, %v7452
      %v7535 = vadd.f32 %v7145, %v7457
      %v7536 = vadd.f32 %v7146, %v7462
      %v7537 = vadd.f32 %v7147, %v7467
      %v7538 = vadd.f32 %v7148, %v7472
      %v7539 = vadd.f32 %v7149, %v7477
      %v7540 = vadd.f32 %v7150, %v7482
      %v7541 = vadd.f32 %v7151, %v7487
      %v7542 = vadd.f32 %v7152, %v7492
      %v7543 = vadd.f32 %v7153, %v7497
      %v7544 = vadd.f32 %v7154, %v7502
      %v7545 = vadd.f32 %v7155, %v7507
      %v7546 = vadd.f32 %v7156, %v7512
      %v7547 = vld [vmem:[%s6018 + $0x1] sm:$0xff]
      %v7548 = vld [vmem:[%s6018 + $0x9] sm:$0xff]
      %v7549 = vld [vmem:[%s6018 + $0x19] sm:$0xff]
      %v7550 = vld [vmem:[%s6018 + $0x21] sm:$0xff]
      %v7551 = vld [vmem:[%s6018 + $0x31] sm:$0xff]
      %v7552 = vld [vmem:[%s6018 + $0x39] sm:$0xff]
      %v7553 = vld [vmem:[%s6018 + $0x49] sm:$0xff]
      %v7554 = vld [vmem:[%s6018 + $0x51] sm:$0xff]
      %v7555 = vld [vmem:[%s6018 + $0x61] sm:$0xff]
      %v7556 = vld [vmem:[%s6018 + $0x69] sm:$0xff]
      %v7557 = vld [vmem:[%s6018 + $0x79] sm:$0xff]
      %v7558 = vld [vmem:[%s6018 + $0x81] sm:$0xff]
      %v7559 = vld [vmem:[%s6018 + $0x91] sm:$0xff]
      %v7560 = vld [vmem:[%s6018 + $0x99] sm:$0xff]
      %v7561 = vld [vmem:[%s6018 + $0xa9] sm:$0xff]
      %v7562 = vld [vmem:[%s6018 + $0xb1] sm:$0xff]
      %v7563 = vld [vmem:[%s6018 + $0xc1] sm:$0xff]
      %v7564 = vld [vmem:[%s6018 + $0xc9] sm:$0xff]
      %v7565 = vld [vmem:[%s6018 + $0xd9] sm:$0xff]
      %v7566 = vld [vmem:[%s6018 + $0xe1] sm:$0xff]
      %v7567 = vld [vmem:[%s6018 + $0xf1] sm:$0xff]
      %v7568 = vld [vmem:[%s6018 + $0xf9] sm:$0xff]
      %v7569 = vld [vmem:[%s6018 + $0x109] sm:$0xff]
      %v7570 = vld [vmem:[%s6018 + $0x111] sm:$0xff]
      %v7571 = vld [vmem:[%s6018 + $0x121] sm:$0xff]
      %v7572 = vld [vmem:[%s6018 + $0x129] sm:$0xff]
      %v7573 = vld [vmem:[%s6018 + $0x139] sm:$0xff]
      %v7574 = vld [vmem:[%s6018 + $0x141] sm:$0xff]
      %v7575 = vld [vmem:[%s6018 + $0x151] sm:$0xff]
      %v7576 = vld [vmem:[%s6018 + $0x159] sm:$0xff]
      %v7577 = vld [vmem:[%s6018 + $0x169] sm:$0xff]
      %v7578 = vld [vmem:[%s6018 + $0x171] sm:$0xff]
      %s7579 = scalar_lea.vmem %s7, 16
      %v7580 = vld [vmem:[%s7579] sm:$0xf]
      %v7582 = vsel %vm426, %v7547, 0
      %v7585 = vsel %vm426, %v7548, 0
      %v7588 = vsel %vm426, %v7549, 0
      %v7591 = vsel %vm426, %v7550, 0
      %v7594 = vsel %vm426, %v7551, 0
      %v7597 = vsel %vm426, %v7552, 0
      %v7600 = vsel %vm426, %v7553, 0
      %v7603 = vsel %vm426, %v7554, 0
      %v7606 = vsel %vm426, %v7555, 0
      %v7609 = vsel %vm426, %v7556, 0
      %v7612 = vsel %vm426, %v7557, 0
      %v7615 = vsel %vm426, %v7558, 0
      %v7618 = vsel %vm426, %v7559, 0
      %v7621 = vsel %vm426, %v7560, 0
      %v7624 = vsel %vm426, %v7561, 0
      %v7627 = vsel %vm426, %v7562, 0
      %v7630 = vsel %vm426, %v7563, 0
      %v7633 = vsel %vm426, %v7564, 0
      %v7636 = vsel %vm426, %v7565, 0
      %v7639 = vsel %vm426, %v7566, 0
      %v7642 = vsel %vm426, %v7567, 0
      %v7645 = vsel %vm426, %v7568, 0
      %v7648 = vsel %vm426, %v7569, 0
      %v7651 = vsel %vm426, %v7570, 0
      %v7654 = vsel %vm426, %v7571, 0
      %v7657 = vsel %vm426, %v7572, 0
      %v7660 = vsel %vm426, %v7573, 0
      %v7663 = vsel %vm426, %v7574, 0
      %v7666 = vsel %vm426, %v7575, 0
      %v7669 = vsel %vm426, %v7576, 0
      %v7672 = vsel %vm426, %v7577, 0
      %v7675 = vsel %vm426, %v7578, 0
      %v7678 = vsel %vm6214, %v7580, 0
      %7680 = vmatprep.subr.mxu0 0.0
      %7681 = vmatpush1.msra.mxu0 %v7678
      %7682 = vmatprep.subr.mxu0 0.0
      %7683 = vmatpush1.msra.mxu0 0.0
      %7684 = vmatprep.subr.mxu0 0.0
      %7685 = vmatpush1.msra.mxu0 0.0
      %7686 = vmatprep.subr.mxu0 0.0
      %7687 = vmatpush1.msra.mxu0 0.0
      %7688 = vmatprep.subr.mxu0 0.0
      %7689 = vmatpush1.msra.mxu0 0.0
      %7690 = vmatprep.subr.mxu0 0.0
      %7691 = vmatpush1.msra.mxu0 0.0
      %7692 = vmatprep.subr.mxu0 0.0
      %7693 = vmatpush1.msra.mxu0 0.0
      %7694 = vmatprep.subr.mxu0 0.0
      %7695 = vmatpush1.msra.mxu0 0.0
      %7696 = vmatprep.subr.mxu0 0.0
      %7697 = vmatpush1.msra.mxu0 0.0
      %7698 = vmatprep.subr.mxu0 0.0
      %7699 = vmatpush1.msra.mxu0 0.0
      %7700 = vmatprep.subr.mxu0 0.0
      %7701 = vmatpush1.msra.mxu0 0.0
      %7702 = vmatprep.subr.mxu0 0.0
      %7703 = vmatpush1.msra.mxu0 0.0
      %7704 = vmatprep.subr.mxu0 0.0
      %7705 = vmatpush1.msra.mxu0 0.0
      %7706 = vmatprep.subr.mxu0 0.0
      %7707 = vmatpush1.msra.mxu0 0.0
      %7708 = vmatprep.subr.mxu0 0.0
      %7709 = vmatpush1.msra.mxu0 0.0
      %7710 = vmatprep.subr.mxu0 0.0
      %7711 = vmatpush1.msra.mxu0 0.0
      %7712 = vmatprep.subr.mxu0 0.0
      %7713 = vmatpush1.msra.mxu0 0.0
      %7714 = vmatprep.subr.mxu0 0.0
      %7715 = vmatpush1.msra.mxu0 0.0
      %7716 = vmatprep.subr.mxu0 0.0
      %7717 = vmatpush1.msra.mxu0 0.0
      %7718 = vmatprep.subr.mxu0 0.0
      %7719 = vmatpush1.msra.mxu0 0.0
      %7720 = vmatprep.subr.mxu0 0.0
      %7721 = vmatpush1.msra.mxu0 0.0
      %7722 = vmatprep.subr.mxu0 0.0
      %7723 = vmatpush1.msra.mxu0 0.0
      %7724 = vmatprep.subr.mxu0 0.0
      %7725 = vmatpush1.msra.mxu0 0.0
      %7726 = vmatprep.subr.mxu0 0.0
      %7727 = vmatpush1.msra.mxu0 0.0
      %7728 = vmatprep.subr.mxu0 0.0
      %7729 = vmatpush1.msra.mxu0 0.0
      %7730 = vmatprep.subr.mxu0 0.0
      %7731 = vmatpush1.msra.mxu0 0.0
      %7732 = vmatprep.subr.mxu0 0.0
      %7733 = vmatpush1.msra.mxu0 0.0
      %7734 = vmatprep.subr.mxu0 0.0
      %7735 = vmatpush1.msra.mxu0 0.0
      %7736 = vmatprep.subr.mxu0 0.0
      %7737 = vmatpush1.msra.mxu0 0.0
      %7738 = vmatprep.subr.mxu0 0.0
      %7739 = vmatpush1.msra.mxu0 0.0
      %7740 = vmatprep.subr.mxu0 0.0
      %7741 = vmatpush1.msra.mxu0 0.0
      %7742 = vmatprep.subr.mxu0 0.0
      %7743 = vmatpush1.msra.mxu0 0.0
      %7744 = vmatprep.mubr.f32.mxu0 0.0
      %7745 = vmatmul.mubr.f32.gmra.mrb[0].mxu0 %v7582
      %v7746 = vpop.f32.mrb[0].mxu0
      %v7747 = vadd.f32 0.0, %v7746
      %v7748 = vpop.f32.mrb[0].mxu0
      %7749 = vmatprep.mubr.f32.mxu0 0.0
      %7750 = vmatmul.mubr.f32.gmra.mrb[0].mxu0 %v7585
      %v7751 = vpop.f32.mrb[0].mxu0
      %v7752 = vadd.f32 0.0, %v7751
      %v7753 = vpop.f32.mrb[0].mxu0
      %7754 = vmatprep.mubr.f32.mxu0 0.0
      %7755 = vmatmul.mubr.f32.gmra.mrb[0].mxu0 %v7588
      %v7756 = vpop.f32.mrb[0].mxu0
      %v7757 = vadd.f32 0.0, %v7756
      %v7758 = vpop.f32.mrb[0].mxu0
      %7759 = vmatprep.mubr.f32.mxu0 0.0
      %7760 = vmatmul.mubr.f32.gmra.mrb[0].mxu0 %v7591
      %v7761 = vpop.f32.mrb[0].mxu0
      %v7762 = vadd.f32 0.0, %v7761
      %v7763 = vpop.f32.mrb[0].mxu0
      %7764 = vmatprep.mubr.f32.mxu0 0.0
      %7765 = vmatmul.mubr.f32.gmra.mrb[0].mxu0 %v7594
      %v7766 = vpop.f32.mrb[0].mxu0
      %v7767 = vadd.f32 0.0, %v7766
      %v7768 = vpop.f32.mrb[0].mxu0
      %7769 = vmatprep.mubr.f32.mxu0 0.0
      %7770 = vmatmul.mubr.f32.gmra.mrb[0].mxu0 %v7597
      %v7771 = vpop.f32.mrb[0].mxu0
      %v7772 = vadd.f32 0.0, %v7771
      %v7773 = vpop.f32.mrb[0].mxu0
      %7774 = vmatprep.mubr.f32.mxu0 0.0
      %7775 = vmatmul.mubr.f32.gmra.mrb[0].mxu0 %v7600
      %v7776 = vpop.f32.mrb[0].mxu0
      %v7777 = vadd.f32 0.0, %v7776
      %v7778 = vpop.f32.mrb[0].mxu0
      %7779 = vmatprep.mubr.f32.mxu0 0.0
      %7780 = vmatmul.mubr.f32.gmra.mrb[0].mxu0 %v7603
      %v7781 = vpop.f32.mrb[0].mxu0
      %v7782 = vadd.f32 0.0, %v7781
      %v7783 = vpop.f32.mrb[0].mxu0
      %7784 = vmatprep.mubr.f32.mxu0 0.0
      %7785 = vmatmul.mubr.f32.gmra.mrb[0].mxu0 %v7606
      %v7786 = vpop.f32.mrb[0].mxu0
      %v7787 = vadd.f32 0.0, %v7786
      %v7788 = vpop.f32.mrb[0].mxu0
      %7789 = vmatprep.mubr.f32.mxu0 0.0
      %7790 = vmatmul.mubr.f32.gmra.mrb[0].mxu0 %v7609
      %v7791 = vpop.f32.mrb[0].mxu0
      %v7792 = vadd.f32 0.0, %v7791
      %v7793 = vpop.f32.mrb[0].mxu0
      %7794 = vmatprep.mubr.f32.mxu0 0.0
      %7795 = vmatmul.mubr.f32.gmra.mrb[0].mxu0 %v7612
      %v7796 = vpop.f32.mrb[0].mxu0
      %v7797 = vadd.f32 0.0, %v7796
      %v7798 = vpop.f32.mrb[0].mxu0
      %7799 = vmatprep.mubr.f32.mxu0 0.0
      %7800 = vmatmul.mubr.f32.gmra.mrb[0].mxu0 %v7615
      %v7801 = vpop.f32.mrb[0].mxu0
      %v7802 = vadd.f32 0.0, %v7801
      %v7803 = vpop.f32.mrb[0].mxu0
      %7804 = vmatprep.mubr.f32.mxu0 0.0
      %7805 = vmatmul.mubr.f32.gmra.mrb[0].mxu0 %v7618
      %v7806 = vpop.f32.mrb[0].mxu0
      %v7807 = vadd.f32 0.0, %v7806
      %v7808 = vpop.f32.mrb[0].mxu0
      %7809 = vmatprep.mubr.f32.mxu0 0.0
      %7810 = vmatmul.mubr.f32.gmra.mrb[0].mxu0 %v7621
      %v7811 = vpop.f32.mrb[0].mxu0
      %v7812 = vadd.f32 0.0, %v7811
      %v7813 = vpop.f32.mrb[0].mxu0
      %7814 = vmatprep.mubr.f32.mxu0 0.0
      %7815 = vmatmul.mubr.f32.gmra.mrb[0].mxu0 %v7624
      %v7816 = vpop.f32.mrb[0].mxu0
      %v7817 = vadd.f32 0.0, %v7816
      %v7818 = vpop.f32.mrb[0].mxu0
      %7819 = vmatprep.mubr.f32.mxu0 0.0
      %7820 = vmatmul.mubr.f32.gmra.mrb[0].mxu0 %v7627
      %v7821 = vpop.f32.mrb[0].mxu0
      %v7822 = vadd.f32 0.0, %v7821
      %v7823 = vpop.f32.mrb[0].mxu0
      %7824 = vmatprep.mubr.f32.mxu0 0.0
      %7825 = vmatmul.mubr.f32.gmra.mrb[0].mxu0 %v7630
      %v7826 = vpop.f32.mrb[0].mxu0
      %v7827 = vadd.f32 0.0, %v7826
      %v7828 = vpop.f32.mrb[0].mxu0
      %7829 = vmatprep.mubr.f32.mxu0 0.0
      %7830 = vmatmul.mubr.f32.gmra.mrb[0].mxu0 %v7633
      %v7831 = vpop.f32.mrb[0].mxu0
      %v7832 = vadd.f32 0.0, %v7831
      %v7833 = vpop.f32.mrb[0].mxu0
      %7834 = vmatprep.mubr.f32.mxu0 0.0
      %7835 = vmatmul.mubr.f32.gmra.mrb[0].mxu0 %v7636
      %v7836 = vpop.f32.mrb[0].mxu0
      %v7837 = vadd.f32 0.0, %v7836
      %v7838 = vpop.f32.mrb[0].mxu0
      %7839 = vmatprep.mubr.f32.mxu0 0.0
      %7840 = vmatmul.mubr.f32.gmra.mrb[0].mxu0 %v7639
      %v7841 = vpop.f32.mrb[0].mxu0
      %v7842 = vadd.f32 0.0, %v7841
      %v7843 = vpop.f32.mrb[0].mxu0
      %7844 = vmatprep.mubr.f32.mxu0 0.0
      %7845 = vmatmul.mubr.f32.gmra.mrb[0].mxu0 %v7642
      %v7846 = vpop.f32.mrb[0].mxu0
      %v7847 = vadd.f32 0.0, %v7846
      %v7848 = vpop.f32.mrb[0].mxu0
      %7849 = vmatprep.mubr.f32.mxu0 0.0
      %7850 = vmatmul.mubr.f32.gmra.mrb[0].mxu0 %v7645
      %v7851 = vpop.f32.mrb[0].mxu0
      %v7852 = vadd.f32 0.0, %v7851
      %v7853 = vpop.f32.mrb[0].mxu0
      %7854 = vmatprep.mubr.f32.mxu0 0.0
      %7855 = vmatmul.mubr.f32.gmra.mrb[0].mxu0 %v7648
      %v7856 = vpop.f32.mrb[0].mxu0
      %v7857 = vadd.f32 0.0, %v7856
      %v7858 = vpop.f32.mrb[0].mxu0
      %7859 = vmatprep.mubr.f32.mxu0 0.0
      %7860 = vmatmul.mubr.f32.gmra.mrb[0].mxu0 %v7651
      %v7861 = vpop.f32.mrb[0].mxu0
      %v7862 = vadd.f32 0.0, %v7861
      %v7863 = vpop.f32.mrb[0].mxu0
      %7864 = vmatprep.mubr.f32.mxu0 0.0
      %7865 = vmatmul.mubr.f32.gmra.mrb[0].mxu0 %v7654
      %v7866 = vpop.f32.mrb[0].mxu0
      %v7867 = vadd.f32 0.0, %v7866
      %v7868 = vpop.f32.mrb[0].mxu0
      %7869 = vmatprep.mubr.f32.mxu0 0.0
      %7870 = vmatmul.mubr.f32.gmra.mrb[0].mxu0 %v7657
      %v7871 = vpop.f32.mrb[0].mxu0
      %v7872 = vadd.f32 0.0, %v7871
      %v7873 = vpop.f32.mrb[0].mxu0
      %7874 = vmatprep.mubr.f32.mxu0 0.0
      %7875 = vmatmul.mubr.f32.gmra.mrb[0].mxu0 %v7660
      %v7876 = vpop.f32.mrb[0].mxu0
      %v7877 = vadd.f32 0.0, %v7876
      %v7878 = vpop.f32.mrb[0].mxu0
      %7879 = vmatprep.mubr.f32.mxu0 0.0
      %7880 = vmatmul.mubr.f32.gmra.mrb[0].mxu0 %v7663
      %v7881 = vpop.f32.mrb[0].mxu0
      %v7882 = vadd.f32 0.0, %v7881
      %v7883 = vpop.f32.mrb[0].mxu0
      %7884 = vmatprep.mubr.f32.mxu0 0.0
      %7885 = vmatmul.mubr.f32.gmra.mrb[0].mxu0 %v7666
      %v7886 = vpop.f32.mrb[0].mxu0
      %v7887 = vadd.f32 0.0, %v7886
      %v7888 = vpop.f32.mrb[0].mxu0
      %7889 = vmatprep.mubr.f32.mxu0 0.0
      %7890 = vmatmul.mubr.f32.gmra.mrb[0].mxu0 %v7669
      %v7891 = vpop.f32.mrb[0].mxu0
      %v7892 = vadd.f32 0.0, %v7891
      %v7893 = vpop.f32.mrb[0].mxu0
      %7894 = vmatprep.mubr.f32.mxu0 0.0
      %7895 = vmatmul.mubr.f32.gmra.mrb[0].mxu0 %v7672
      %v7896 = vpop.f32.mrb[0].mxu0
      %v7897 = vadd.f32 0.0, %v7896
      %v7898 = vpop.f32.mrb[0].mxu0
      %7899 = vmatprep.mubr.f32.mxu0 0.0
      %7900 = vmatmul.mubr.f32.gmra.mrb[0].mxu0 %v7675
      %v7901 = vpop.f32.mrb[0].mxu0
      %v7902 = vadd.f32 0.0, %v7901
      %v7903 = vpop.f32.mrb[0].mxu0
      %7904 = vdwg.mxu0
      %v7905 = vadd.f32 %v7515, %v7747
      %v7906 = vadd.f32 %v7516, %v7752
      %v7907 = vadd.f32 %v7517, %v7757
      %v7908 = vadd.f32 %v7518, %v7762
      %v7909 = vadd.f32 %v7519, %v7767
      %v7910 = vadd.f32 %v7520, %v7772
      %v7911 = vadd.f32 %v7521, %v7777
      %v7912 = vadd.f32 %v7522, %v7782
      %v7913 = vadd.f32 %v7523, %v7787
      %v7914 = vadd.f32 %v7524, %v7792
      %v7915 = vadd.f32 %v7525, %v7797
      %v7916 = vadd.f32 %v7526, %v7802
      %v7917 = vadd.f32 %v7527, %v7807
      %v7918 = vadd.f32 %v7528, %v7812
      %v7919 = vadd.f32 %v7529, %v7817
      %v7920 = vadd.f32 %v7530, %v7822
      %v7921 = vadd.f32 %v7531, %v7827
      %v7922 = vadd.f32 %v7532, %v7832
      %v7923 = vadd.f32 %v7533, %v7837
      %v7924 = vadd.f32 %v7534, %v7842
      %v7925 = vadd.f32 %v7535, %v7847
      %v7926 = vadd.f32 %v7536, %v7852
      %v7927 = vadd.f32 %v7537, %v7857
      %v7928 = vadd.f32 %v7538, %v7862
      %v7929 = vadd.f32 %v7539, %v7867
      %v7930 = vadd.f32 %v7540, %v7872
      %v7931 = vadd.f32 %v7541, %v7877
      %v7932 = vadd.f32 %v7542, %v7882
      %v7933 = vadd.f32 %v7543, %v7887
      %v7934 = vadd.f32 %v7544, %v7892
      %v7935 = vadd.f32 %v7545, %v7897
      %v7936 = vadd.f32 %v7546, %v7902
      %v7937 = vld [vmem:[%s6018 + $0x2] sm:$0xff]
      %v7938 = vld [vmem:[%s6018 + $0xa] sm:$0xff]
      %v7939 = vld [vmem:[%s6018 + $0x1a] sm:$0xff]
      %v7940 = vld [vmem:[%s6018 + $0x22] sm:$0xff]
      %v7941 = vld [vmem:[%s6018 + $0x32] sm:$0xff]
      %v7942 = vld [vmem:[%s6018 + $0x3a] sm:$0xff]
      %v7943 = vld [vmem:[%s6018 + $0x4a] sm:$0xff]
      %v7944 = vld [vmem:[%s6018 + $0x52] sm:$0xff]
      %v7945 = vld [vmem:[%s6018 + $0x62] sm:$0xff]
      %v7946 = vld [vmem:[%s6018 + $0x6a] sm:$0xff]
      %v7947 = vld [vmem:[%s6018 + $0x7a] sm:$0xff]
      %v7948 = vld [vmem:[%s6018 + $0x82] sm:$0xff]
      %v7949 = vld [vmem:[%s6018 + $0x92] sm:$0xff]
      %v7950 = vld [vmem:[%s6018 + $0x9a] sm:$0xff]
      %v7951 = vld [vmem:[%s6018 + $0xaa] sm:$0xff]
      %v7952 = vld [vmem:[%s6018 + $0xb2] sm:$0xff]
      %v7953 = vld [vmem:[%s6018 + $0xc2] sm:$0xff]
      %v7954 = vld [vmem:[%s6018 + $0xca] sm:$0xff]
      %v7955 = vld [vmem:[%s6018 + $0xda] sm:$0xff]
      %v7956 = vld [vmem:[%s6018 + $0xe2] sm:$0xff]
      %v7957 = vld [vmem:[%s6018 + $0xf2] sm:$0xff]
      %v7958 = vld [vmem:[%s6018 + $0xfa] sm:$0xff]
      %v7959 = vld [vmem:[%s6018 + $0x10a] sm:$0xff]
      %v7960 = vld [vmem:[%s6018 + $0x112] sm:$0xff]
      %v7961 = vld [vmem:[%s6018 + $0x122] sm:$0xff]
      %v7962 = vld [vmem:[%s6018 + $0x12a] sm:$0xff]
      %v7963 = vld [vmem:[%s6018 + $0x13a] sm:$0xff]
      %v7964 = vld [vmem:[%s6018 + $0x142] sm:$0xff]
      %v7965 = vld [vmem:[%s6018 + $0x152] sm:$0xff]
      %v7966 = vld [vmem:[%s6018 + $0x15a] sm:$0xff]
      %v7967 = vld [vmem:[%s6018 + $0x16a] sm:$0xff]
      %v7968 = vld [vmem:[%s6018 + $0x172] sm:$0xff]
      %s7969 = scalar_lea.vmem %s7, 20
      %v7970 = vld [vmem:[%s7969] sm:$0xf]
      %v7972 = vsel %vm426, %v7937, 0
      %v7975 = vsel %vm426, %v7938, 0
      %v7978 = vsel %vm426, %v7939, 0
      %v7981 = vsel %vm426, %v7940, 0
      %v7984 = vsel %vm426, %v7941, 0
      %v7987 = vsel %vm426, %v7942, 0
      %v7990 = vsel %vm426, %v7943, 0
      %v7993 = vsel %vm426, %v7944, 0
      %v7996 = vsel %vm426, %v7945, 0
      %v7999 = vsel %vm426, %v7946, 0
      %v8002 = vsel %vm426, %v7947, 0
      %v8005 = vsel %vm426, %v7948, 0
      %v8008 = vsel %vm426, %v7949, 0
      %v8011 = vsel %vm426, %v7950, 0
      %v8014 = vsel %vm426, %v7951, 0
      %v8017 = vsel %vm426, %v7952, 0
      %v8020 = vsel %vm426, %v7953, 0
      %v8023 = vsel %vm426, %v7954, 0
      %v8026 = vsel %vm426, %v7955, 0
      %v8029 = vsel %vm426, %v7956, 0
      %v8032 = vsel %vm426, %v7957, 0
      %v8035 = vsel %vm426, %v7958, 0
      %v8038 = vsel %vm426, %v7959, 0
      %v8041 = vsel %vm426, %v7960, 0
      %v8044 = vsel %vm426, %v7961, 0
      %v8047 = vsel %vm426, %v7962, 0
      %v8050 = vsel %vm426, %v7963, 0
      %v8053 = vsel %vm426, %v7964, 0
      %v8056 = vsel %vm426, %v7965, 0
      %v8059 = vsel %vm426, %v7966, 0
      %v8062 = vsel %vm426, %v7967, 0
      %v8065 = vsel %vm426, %v7968, 0
      %v8068 = vsel %vm6214, %v7970, 0
      %8070 = vmatprep.subr.mxu0 0.0
      %8071 = vmatpush1.msra.mxu0 %v8068
      %8072 = vmatprep.subr.mxu0 0.0
      %8073 = vmatpush1.msra.mxu0 0.0
      %8074 = vmatprep.subr.mxu0 0.0
      %8075 = vmatpush1.msra.mxu0 0.0
      %8076 = vmatprep.subr.mxu0 0.0
      %8077 = vmatpush1.msra.mxu0 0.0
      %8078 = vmatprep.subr.mxu0 0.0
      %8079 = vmatpush1.msra.mxu0 0.0
      %8080 = vmatprep.subr.mxu0 0.0
      %8081 = vmatpush1.msra.mxu0 0.0
      %8082 = vmatprep.subr.mxu0 0.0
      %8083 = vmatpush1.msra.mxu0 0.0
      %8084 = vmatprep.subr.mxu0 0.0
      %8085 = vmatpush1.msra.mxu0 0.0
      %8086 = vmatprep.subr.mxu0 0.0
      %8087 = vmatpush1.msra.mxu0 0.0
      %8088 = vmatprep.subr.mxu0 0.0
      %8089 = vmatpush1.msra.mxu0 0.0
      %8090 = vmatprep.subr.mxu0 0.0
      %8091 = vmatpush1.msra.mxu0 0.0
      %8092 = vmatprep.subr.mxu0 0.0
      %8093 = vmatpush1.msra.mxu0 0.0
      %8094 = vmatprep.subr.mxu0 0.0
      %8095 = vmatpush1.msra.mxu0 0.0
      %8096 = vmatprep.subr.mxu0 0.0
      %8097 = vmatpush1.msra.mxu0 0.0
      %8098 = vmatprep.subr.mxu0 0.0
      %8099 = vmatpush1.msra.mxu0 0.0
      %8100 = vmatprep.subr.mxu0 0.0
      %8101 = vmatpush1.msra.mxu0 0.0
      %8102 = vmatprep.subr.mxu0 0.0
      %8103 = vmatpush1.msra.mxu0 0.0
      %8104 = vmatprep.subr.mxu0 0.0
      %8105 = vmatpush1.msra.mxu0 0.0
      %8106 = vmatprep.subr.mxu0 0.0
      %8107 = vmatpush1.msra.mxu0 0.0
      %8108 = vmatprep.subr.mxu0 0.0
      %8109 = vmatpush1.msra.mxu0 0.0
      %8110 = vmatprep.subr.mxu0 0.0
      %8111 = vmatpush1.msra.mxu0 0.0
      %8112 = vmatprep.subr.mxu0 0.0
      %8113 = vmatpush1.msra.mxu0 0.0
      %8114 = vmatprep.subr.mxu0 0.0
      %8115 = vmatpush1.msra.mxu0 0.0
      %8116 = vmatprep.subr.mxu0 0.0
      %8117 = vmatpush1.msra.mxu0 0.0
      %8118 = vmatprep.subr.mxu0 0.0
      %8119 = vmatpush1.msra.mxu0 0.0
      %8120 = vmatprep.subr.mxu0 0.0
      %8121 = vmatpush1.msra.mxu0 0.0
      %8122 = vmatprep.subr.mxu0 0.0
      %8123 = vmatpush1.msra.mxu0 0.0
      %8124 = vmatprep.subr.mxu0 0.0
      %8125 = vmatpush1.msra.mxu0 0.0
      %8126 = vmatprep.subr.mxu0 0.0
      %8127 = vmatpush1.msra.mxu0 0.0
      %8128 = vmatprep.subr.mxu0 0.0
      %8129 = vmatpush1.msra.mxu0 0.0
      %8130 = vmatprep.subr.mxu0 0.0
      %8131 = vmatpush1.msra.mxu0 0.0
      %8132 = vmatprep.subr.mxu0 0.0
      %8133 = vmatpush1.msra.mxu0 0.0
      %8134 = vmatprep.mubr.f32.mxu0 0.0
      %8135 = vmatmul.mubr.f32.gmra.mrb[0].mxu0 %v7972
      %v8136 = vpop.f32.mrb[0].mxu0
      %v8137 = vadd.f32 0.0, %v8136
      %v8138 = vpop.f32.mrb[0].mxu0
      %8139 = vmatprep.mubr.f32.mxu0 0.0
      %8140 = vmatmul.mubr.f32.gmra.mrb[0].mxu0 %v7975
      %v8141 = vpop.f32.mrb[0].mxu0
      %v8142 = vadd.f32 0.0, %v8141
      %v8143 = vpop.f32.mrb[0].mxu0
      %8144 = vmatprep.mubr.f32.mxu0 0.0
      %8145 = vmatmul.mubr.f32.gmra.mrb[0].mxu0 %v7978
      %v8146 = vpop.f32.mrb[0].mxu0
      %v8147 = vadd.f32 0.0, %v8146
      %v8148 = vpop.f32.mrb[0].mxu0
      %8149 = vmatprep.mubr.f32.mxu0 0.0
      %8150 = vmatmul.mubr.f32.gmra.mrb[0].mxu0 %v7981
      %v8151 = vpop.f32.mrb[0].mxu0
      %v8152 = vadd.f32 0.0, %v8151
      %v8153 = vpop.f32.mrb[0].mxu0
      %8154 = vmatprep.mubr.f32.mxu0 0.0
      %8155 = vmatmul.mubr.f32.gmra.mrb[0].mxu0 %v7984
      %v8156 = vpop.f32.mrb[0].mxu0
      %v8157 = vadd.f32 0.0, %v8156
      %v8158 = vpop.f32.mrb[0].mxu0
      %8159 = vmatprep.mubr.f32.mxu0 0.0
      %8160 = vmatmul.mubr.f32.gmra.mrb[0].mxu0 %v7987
      %v8161 = vpop.f32.mrb[0].mxu0
      %v8162 = vadd.f32 0.0, %v8161
      %v8163 = vpop.f32.mrb[0].mxu0
      %8164 = vmatprep.mubr.f32.mxu0 0.0
      %8165 = vmatmul.mubr.f32.gmra.mrb[0].mxu0 %v7990
      %v8166 = vpop.f32.mrb[0].mxu0
      %v8167 = vadd.f32 0.0, %v8166
      %v8168 = vpop.f32.mrb[0].mxu0
      %8169 = vmatprep.mubr.f32.mxu0 0.0
      %8170 = vmatmul.mubr.f32.gmra.mrb[0].mxu0 %v7993
      %v8171 = vpop.f32.mrb[0].mxu0
      %v8172 = vadd.f32 0.0, %v8171
      %v8173 = vpop.f32.mrb[0].mxu0
      %8174 = vmatprep.mubr.f32.mxu0 0.0
      %8175 = vmatmul.mubr.f32.gmra.mrb[0].mxu0 %v7996
      %v8176 = vpop.f32.mrb[0].mxu0
      %v8177 = vadd.f32 0.0, %v8176
      %v8178 = vpop.f32.mrb[0].mxu0
      %8179 = vmatprep.mubr.f32.mxu0 0.0
      %8180 = vmatmul.mubr.f32.gmra.mrb[0].mxu0 %v7999
      %v8181 = vpop.f32.mrb[0].mxu0
      %v8182 = vadd.f32 0.0, %v8181
      %v8183 = vpop.f32.mrb[0].mxu0
      %8184 = vmatprep.mubr.f32.mxu0 0.0
      %8185 = vmatmul.mubr.f32.gmra.mrb[0].mxu0 %v8002
      %v8186 = vpop.f32.mrb[0].mxu0
      %v8187 = vadd.f32 0.0, %v8186
      %v8188 = vpop.f32.mrb[0].mxu0
      %8189 = vmatprep.mubr.f32.mxu0 0.0
      %8190 = vmatmul.mubr.f32.gmra.mrb[0].mxu0 %v8005
      %v8191 = vpop.f32.mrb[0].mxu0
      %v8192 = vadd.f32 0.0, %v8191
      %v8193 = vpop.f32.mrb[0].mxu0
      %8194 = vmatprep.mubr.f32.mxu0 0.0
      %8195 = vmatmul.mubr.f32.gmra.mrb[0].mxu0 %v8008
      %v8196 = vpop.f32.mrb[0].mxu0
      %v8197 = vadd.f32 0.0, %v8196
      %v8198 = vpop.f32.mrb[0].mxu0
      %8199 = vmatprep.mubr.f32.mxu0 0.0
      %8200 = vmatmul.mubr.f32.gmra.mrb[0].mxu0 %v8011
      %v8201 = vpop.f32.mrb[0].mxu0
      %v8202 = vadd.f32 0.0, %v8201
      %v8203 = vpop.f32.mrb[0].mxu0
      %8204 = vmatprep.mubr.f32.mxu0 0.0
      %8205 = vmatmul.mubr.f32.gmra.mrb[0].mxu0 %v8014
      %v8206 = vpop.f32.mrb[0].mxu0
      %v8207 = vadd.f32 0.0, %v8206
      %v8208 = vpop.f32.mrb[0].mxu0
      %8209 = vmatprep.mubr.f32.mxu0 0.0
      %8210 = vmatmul.mubr.f32.gmra.mrb[0].mxu0 %v8017
      %v8211 = vpop.f32.mrb[0].mxu0
      %v8212 = vadd.f32 0.0, %v8211
      %v8213 = vpop.f32.mrb[0].mxu0
      %8214 = vmatprep.mubr.f32.mxu0 0.0
      %8215 = vmatmul.mubr.f32.gmra.mrb[0].mxu0 %v8020
      %v8216 = vpop.f32.mrb[0].mxu0
      %v8217 = vadd.f32 0.0, %v8216
      %v8218 = vpop.f32.mrb[0].mxu0
      %8219 = vmatprep.mubr.f32.mxu0 0.0
      %8220 = vmatmul.mubr.f32.gmra.mrb[0].mxu0 %v8023
      %v8221 = vpop.f32.mrb[0].mxu0
      %v8222 = vadd.f32 0.0, %v8221
      %v8223 = vpop.f32.mrb[0].mxu0
      %8224 = vmatprep.mubr.f32.mxu0 0.0
      %8225 = vmatmul.mubr.f32.gmra.mrb[0].mxu0 %v8026
      %v8226 = vpop.f32.mrb[0].mxu0
      %v8227 = vadd.f32 0.0, %v8226
      %v8228 = vpop.f32.mrb[0].mxu0
      %8229 = vmatprep.mubr.f32.mxu0 0.0
      %8230 = vmatmul.mubr.f32.gmra.mrb[0].mxu0 %v8029
      %v8231 = vpop.f32.mrb[0].mxu0
      %v8232 = vadd.f32 0.0, %v8231
      %v8233 = vpop.f32.mrb[0].mxu0
      %8234 = vmatprep.mubr.f32.mxu0 0.0
      %8235 = vmatmul.mubr.f32.gmra.mrb[0].mxu0 %v8032
      %v8236 = vpop.f32.mrb[0].mxu0
      %v8237 = vadd.f32 0.0, %v8236
      %v8238 = vpop.f32.mrb[0].mxu0
      %8239 = vmatprep.mubr.f32.mxu0 0.0
      %8240 = vmatmul.mubr.f32.gmra.mrb[0].mxu0 %v8035
      %v8241 = vpop.f32.mrb[0].mxu0
      %v8242 = vadd.f32 0.0, %v8241
      %v8243 = vpop.f32.mrb[0].mxu0
      %8244 = vmatprep.mubr.f32.mxu0 0.0
      %8245 = vmatmul.mubr.f32.gmra.mrb[0].mxu0 %v8038
      %v8246 = vpop.f32.mrb[0].mxu0
      %v8247 = vadd.f32 0.0, %v8246
      %v8248 = vpop.f32.mrb[0].mxu0
      %8249 = vmatprep.mubr.f32.mxu0 0.0
      %8250 = vmatmul.mubr.f32.gmra.mrb[0].mxu0 %v8041
      %v8251 = vpop.f32.mrb[0].mxu0
      %v8252 = vadd.f32 0.0, %v8251
      %v8253 = vpop.f32.mrb[0].mxu0
      %8254 = vmatprep.mubr.f32.mxu0 0.0
      %8255 = vmatmul.mubr.f32.gmra.mrb[0].mxu0 %v8044
      %v8256 = vpop.f32.mrb[0].mxu0
      %v8257 = vadd.f32 0.0, %v8256
      %v8258 = vpop.f32.mrb[0].mxu0
      %8259 = vmatprep.mubr.f32.mxu0 0.0
      %8260 = vmatmul.mubr.f32.gmra.mrb[0].mxu0 %v8047
      %v8261 = vpop.f32.mrb[0].mxu0
      %v8262 = vadd.f32 0.0, %v8261
      %v8263 = vpop.f32.mrb[0].mxu0
      %8264 = vmatprep.mubr.f32.mxu0 0.0
      %8265 = vmatmul.mubr.f32.gmra.mrb[0].mxu0 %v8050
      %v8266 = vpop.f32.mrb[0].mxu0
      %v8267 = vadd.f32 0.0, %v8266
      %v8268 = vpop.f32.mrb[0].mxu0
      %8269 = vmatprep.mubr.f32.mxu0 0.0
      %8270 = vmatmul.mubr.f32.gmra.mrb[0].mxu0 %v8053
      %v8271 = vpop.f32.mrb[0].mxu0
      %v8272 = vadd.f32 0.0, %v8271
      %v8273 = vpop.f32.mrb[0].mxu0
      %8274 = vmatprep.mubr.f32.mxu0 0.0
      %8275 = vmatmul.mubr.f32.gmra.mrb[0].mxu0 %v8056
      %v8276 = vpop.f32.mrb[0].mxu0
      %v8277 = vadd.f32 0.0, %v8276
      %v8278 = vpop.f32.mrb[0].mxu0
      %8279 = vmatprep.mubr.f32.mxu0 0.0
      %8280 = vmatmul.mubr.f32.gmra.mrb[0].mxu0 %v8059
      %v8281 = vpop.f32.mrb[0].mxu0
      %v8282 = vadd.f32 0.0, %v8281
      %v8283 = vpop.f32.mrb[0].mxu0
      %8284 = vmatprep.mubr.f32.mxu0 0.0
      %8285 = vmatmul.mubr.f32.gmra.mrb[0].mxu0 %v8062
      %v8286 = vpop.f32.mrb[0].mxu0
      %v8287 = vadd.f32 0.0, %v8286
      %v8288 = vpop.f32.mrb[0].mxu0
      %8289 = vmatprep.mubr.f32.mxu0 0.0
      %8290 = vmatmul.mubr.f32.gmra.mrb[0].mxu0 %v8065
      %v8291 = vpop.f32.mrb[0].mxu0
      %v8292 = vadd.f32 0.0, %v8291
      %v8293 = vpop.f32.mrb[0].mxu0
      %8294 = vdwg.mxu0
      %v8295 = vadd.f32 %v7905, %v8137
      %v8296 = vadd.f32 %v7906, %v8142
      %v8297 = vadd.f32 %v7907, %v8147
      %v8298 = vadd.f32 %v7908, %v8152
      %v8299 = vadd.f32 %v7909, %v8157
      %v8300 = vadd.f32 %v7910, %v8162
      %v8301 = vadd.f32 %v7911, %v8167
      %v8302 = vadd.f32 %v7912, %v8172
      %v8303 = vadd.f32 %v7913, %v8177
      %v8304 = vadd.f32 %v7914, %v8182
      %v8305 = vadd.f32 %v7915, %v8187
      %v8306 = vadd.f32 %v7916, %v8192
      %v8307 = vadd.f32 %v7917, %v8197
      %v8308 = vadd.f32 %v7918, %v8202
      %v8309 = vadd.f32 %v7919, %v8207
      %v8310 = vadd.f32 %v7920, %v8212
      %v8311 = vadd.f32 %v7921, %v8217
      %v8312 = vadd.f32 %v7922, %v8222
      %v8313 = vadd.f32 %v7923, %v8227
      %v8314 = vadd.f32 %v7924, %v8232
      %v8315 = vadd.f32 %v7925, %v8237
      %v8316 = vadd.f32 %v7926, %v8242
      %v8317 = vadd.f32 %v7927, %v8247
      %v8318 = vadd.f32 %v7928, %v8252
      %v8319 = vadd.f32 %v7929, %v8257
      %v8320 = vadd.f32 %v7930, %v8262
      %v8321 = vadd.f32 %v7931, %v8267
      %v8322 = vadd.f32 %v7932, %v8272
      %v8323 = vadd.f32 %v7933, %v8277
      %v8324 = vadd.f32 %v7934, %v8282
      %v8325 = vadd.f32 %v7935, %v8287
      %v8326 = vadd.f32 %v7936, %v8292
      %s8327 = scalar_lea.vmem [#allocation3], 48
      %v8328 = vld [vmem:[%s8327] sm:$0xff]
      %v8329 = vld [vmem:[%s8327 + $0x8] sm:$0xff]
      %v8330 = vld [vmem:[%s8327 + $0x18] sm:$0xff]
      %v8331 = vld [vmem:[%s8327 + $0x20] sm:$0xff]
      %v8332 = vld [vmem:[%s8327 + $0x30] sm:$0xff]
      %v8333 = vld [vmem:[%s8327 + $0x38] sm:$0xff]
      %v8334 = vld [vmem:[%s8327 + $0x48] sm:$0xff]
      %v8335 = vld [vmem:[%s8327 + $0x50] sm:$0xff]
      %v8336 = vld [vmem:[%s8327 + $0x60] sm:$0xff]
      %v8337 = vld [vmem:[%s8327 + $0x68] sm:$0xff]
      %v8338 = vld [vmem:[%s8327 + $0x78] sm:$0xff]
      %v8339 = vld [vmem:[%s8327 + $0x80] sm:$0xff]
      %v8340 = vld [vmem:[%s8327 + $0x90] sm:$0xff]
      %v8341 = vld [vmem:[%s8327 + $0x98] sm:$0xff]
      %v8342 = vld [vmem:[%s8327 + $0xa8] sm:$0xff]
      %v8343 = vld [vmem:[%s8327 + $0xb0] sm:$0xff]
      %v8344 = vld [vmem:[%s8327 + $0xc0] sm:$0xff]
      %v8345 = vld [vmem:[%s8327 + $0xc8] sm:$0xff]
      %v8346 = vld [vmem:[%s8327 + $0xd8] sm:$0xff]
      %v8347 = vld [vmem:[%s8327 + $0xe0] sm:$0xff]
      %v8348 = vld [vmem:[%s8327 + $0xf0] sm:$0xff]
      %v8349 = vld [vmem:[%s8327 + $0xf8] sm:$0xff]
      %v8350 = vld [vmem:[%s8327 + $0x108] sm:$0xff]
      %v8351 = vld [vmem:[%s8327 + $0x110] sm:$0xff]
      %v8352 = vld [vmem:[%s8327 + $0x120] sm:$0xff]
      %v8353 = vld [vmem:[%s8327 + $0x128] sm:$0xff]
      %v8354 = vld [vmem:[%s8327 + $0x138] sm:$0xff]
      %v8355 = vld [vmem:[%s8327 + $0x140] sm:$0xff]
      %v8356 = vld [vmem:[%s8327 + $0x150] sm:$0xff]
      %v8357 = vld [vmem:[%s8327 + $0x158] sm:$0xff]
      %v8358 = vld [vmem:[%s8327 + $0x168] sm:$0xff]
      %v8359 = vld [vmem:[%s8327 + $0x170] sm:$0xff]
      %s8360 = scalar_lea.vmem %s7, 24
      %v8361 = vld [vmem:[%s8360] sm:$0xf]
      %v8363 = vsel %vm426, %v8328, 0
      %v8366 = vsel %vm426, %v8329, 0
      %v8369 = vsel %vm426, %v8330, 0
      %v8372 = vsel %vm426, %v8331, 0
      %v8375 = vsel %vm426, %v8332, 0
      %v8378 = vsel %vm426, %v8333, 0
      %v8381 = vsel %vm426, %v8334, 0
      %v8384 = vsel %vm426, %v8335, 0
      %v8387 = vsel %vm426, %v8336, 0
      %v8390 = vsel %vm426, %v8337, 0
      %v8393 = vsel %vm426, %v8338, 0
      %v8396 = vsel %vm426, %v8339, 0
      %v8399 = vsel %vm426, %v8340, 0
      %v8402 = vsel %vm426, %v8341, 0
      %v8405 = vsel %vm426, %v8342, 0
      %v8408 = vsel %vm426, %v8343, 0
      %v8411 = vsel %vm426, %v8344, 0
      %v8414 = vsel %vm426, %v8345, 0
      %v8417 = vsel %vm426, %v8346, 0
      %v8420 = vsel %vm426, %v8347, 0
      %v8423 = vsel %vm426, %v8348, 0
      %v8426 = vsel %vm426, %v8349, 0
      %v8429 = vsel %vm426, %v8350, 0
      %v8432 = vsel %vm426, %v8351, 0
      %v8435 = vsel %vm426, %v8352, 0
      %v8438 = vsel %vm426, %v8353, 0
      %v8441 = vsel %vm426, %v8354, 0
      %v8444 = vsel %vm426, %v8355, 0
      %v8447 = vsel %vm426, %v8356, 0
      %v8450 = vsel %vm426, %v8357, 0
      %v8453 = vsel %vm426, %v8358, 0
      %v8456 = vsel %vm426, %v8359, 0
      %v8459 = vsel %vm6214, %v8361, 0
      %8461 = vmatprep.subr.mxu0 0.0
      %8462 = vmatpush1.msra.mxu0 %v8459
      %8463 = vmatprep.subr.mxu0 0.0
      %8464 = vmatpush1.msra.mxu0 0.0
      %8465 = vmatprep.subr.mxu0 0.0
      %8466 = vmatpush1.msra.mxu0 0.0
      %8467 = vmatprep.subr.mxu0 0.0
      %8468 = vmatpush1.msra.mxu0 0.0
      %8469 = vmatprep.subr.mxu0 0.0
      %8470 = vmatpush1.msra.mxu0 0.0
      %8471 = vmatprep.subr.mxu0 0.0
      %8472 = vmatpush1.msra.mxu0 0.0
      %8473 = vmatprep.subr.mxu0 0.0
      %8474 = vmatpush1.msra.mxu0 0.0
      %8475 = vmatprep.subr.mxu0 0.0
      %8476 = vmatpush1.msra.mxu0 0.0
      %8477 = vmatprep.subr.mxu0 0.0
      %8478 = vmatpush1.msra.mxu0 0.0
      %8479 = vmatprep.subr.mxu0 0.0
      %8480 = vmatpush1.msra.mxu0 0.0
      %8481 = vmatprep.subr.mxu0 0.0
      %8482 = vmatpush1.msra.mxu0 0.0
      %8483 = vmatprep.subr.mxu0 0.0
      %8484 = vmatpush1.msra.mxu0 0.0
      %8485 = vmatprep.subr.mxu0 0.0
      %8486 = vmatpush1.msra.mxu0 0.0
      %8487 = vmatprep.subr.mxu0 0.0
      %8488 = vmatpush1.msra.mxu0 0.0
      %8489 = vmatprep.subr.mxu0 0.0
      %8490 = vmatpush1.msra.mxu0 0.0
      %8491 = vmatprep.subr.mxu0 0.0
      %8492 = vmatpush1.msra.mxu0 0.0
      %8493 = vmatprep.subr.mxu0 0.0
      %8494 = vmatpush1.msra.mxu0 0.0
      %8495 = vmatprep.subr.mxu0 0.0
      %8496 = vmatpush1.msra.mxu0 0.0
      %8497 = vmatprep.subr.mxu0 0.0
      %8498 = vmatpush1.msra.mxu0 0.0
      %8499 = vmatprep.subr.mxu0 0.0
      %8500 = vmatpush1.msra.mxu0 0.0
      %8501 = vmatprep.subr.mxu0 0.0
      %8502 = vmatpush1.msra.mxu0 0.0
      %8503 = vmatprep.subr.mxu0 0.0
      %8504 = vmatpush1.msra.mxu0 0.0
      %8505 = vmatprep.subr.mxu0 0.0
      %8506 = vmatpush1.msra.mxu0 0.0
      %8507 = vmatprep.subr.mxu0 0.0
      %8508 = vmatpush1.msra.mxu0 0.0
      %8509 = vmatprep.subr.mxu0 0.0
      %8510 = vmatpush1.msra.mxu0 0.0
      %8511 = vmatprep.subr.mxu0 0.0
      %8512 = vmatpush1.msra.mxu0 0.0
      %8513 = vmatprep.subr.mxu0 0.0
      %8514 = vmatpush1.msra.mxu0 0.0
      %8515 = vmatprep.subr.mxu0 0.0
      %8516 = vmatpush1.msra.mxu0 0.0
      %8517 = vmatprep.subr.mxu0 0.0
      %8518 = vmatpush1.msra.mxu0 0.0
      %8519 = vmatprep.subr.mxu0 0.0
      %8520 = vmatpush1.msra.mxu0 0.0
      %8521 = vmatprep.subr.mxu0 0.0
      %8522 = vmatpush1.msra.mxu0 0.0
      %8523 = vmatprep.subr.mxu0 0.0
      %8524 = vmatpush1.msra.mxu0 0.0
      %8525 = vmatprep.mubr.f32.mxu0 0.0
      %8526 = vmatmul.mubr.f32.gmra.mrb[0].mxu0 %v8363
      %v8527 = vpop.f32.mrb[0].mxu0
      %v8528 = vadd.f32 0.0, %v8527
      %v8529 = vpop.f32.mrb[0].mxu0
      %8530 = vmatprep.mubr.f32.mxu0 0.0
      %8531 = vmatmul.mubr.f32.gmra.mrb[0].mxu0 %v8366
      %v8532 = vpop.f32.mrb[0].mxu0
      %v8533 = vadd.f32 0.0, %v8532
      %v8534 = vpop.f32.mrb[0].mxu0
      %8535 = vmatprep.mubr.f32.mxu0 0.0
      %8536 = vmatmul.mubr.f32.gmra.mrb[0].mxu0 %v8369
      %v8537 = vpop.f32.mrb[0].mxu0
      %v8538 = vadd.f32 0.0, %v8537
      %v8539 = vpop.f32.mrb[0].mxu0
      %8540 = vmatprep.mubr.f32.mxu0 0.0
      %8541 = vmatmul.mubr.f32.gmra.mrb[0].mxu0 %v8372
      %v8542 = vpop.f32.mrb[0].mxu0
      %v8543 = vadd.f32 0.0, %v8542
      %v8544 = vpop.f32.mrb[0].mxu0
      %8545 = vmatprep.mubr.f32.mxu0 0.0
      %8546 = vmatmul.mubr.f32.gmra.mrb[0].mxu0 %v8375
      %v8547 = vpop.f32.mrb[0].mxu0
      %v8548 = vadd.f32 0.0, %v8547
      %v8549 = vpop.f32.mrb[0].mxu0
      %8550 = vmatprep.mubr.f32.mxu0 0.0
      %8551 = vmatmul.mubr.f32.gmra.mrb[0].mxu0 %v8378
      %v8552 = vpop.f32.mrb[0].mxu0
      %v8553 = vadd.f32 0.0, %v8552
      %v8554 = vpop.f32.mrb[0].mxu0
      %8555 = vmatprep.mubr.f32.mxu0 0.0
      %8556 = vmatmul.mubr.f32.gmra.mrb[0].mxu0 %v8381
      %v8557 = vpop.f32.mrb[0].mxu0
      %v8558 = vadd.f32 0.0, %v8557
      %v8559 = vpop.f32.mrb[0].mxu0
      %8560 = vmatprep.mubr.f32.mxu0 0.0
      %8561 = vmatmul.mubr.f32.gmra.mrb[0].mxu0 %v8384
      %v8562 = vpop.f32.mrb[0].mxu0
      %v8563 = vadd.f32 0.0, %v8562
      %v8564 = vpop.f32.mrb[0].mxu0
      %8565 = vmatprep.mubr.f32.mxu0 0.0
      %8566 = vmatmul.mubr.f32.gmra.mrb[0].mxu0 %v8387
      %v8567 = vpop.f32.mrb[0].mxu0
      %v8568 = vadd.f32 0.0, %v8567
      %v8569 = vpop.f32.mrb[0].mxu0
      %8570 = vmatprep.mubr.f32.mxu0 0.0
      %8571 = vmatmul.mubr.f32.gmra.mrb[0].mxu0 %v8390
      %v8572 = vpop.f32.mrb[0].mxu0
      %v8573 = vadd.f32 0.0, %v8572
      %v8574 = vpop.f32.mrb[0].mxu0
      %8575 = vmatprep.mubr.f32.mxu0 0.0
      %8576 = vmatmul.mubr.f32.gmra.mrb[0].mxu0 %v8393
      %v8577 = vpop.f32.mrb[0].mxu0
      %v8578 = vadd.f32 0.0, %v8577
      %v8579 = vpop.f32.mrb[0].mxu0
      %8580 = vmatprep.mubr.f32.mxu0 0.0
      %8581 = vmatmul.mubr.f32.gmra.mrb[0].mxu0 %v8396
      %v8582 = vpop.f32.mrb[0].mxu0
      %v8583 = vadd.f32 0.0, %v8582
      %v8584 = vpop.f32.mrb[0].mxu0
      %8585 = vmatprep.mubr.f32.mxu0 0.0
      %8586 = vmatmul.mubr.f32.gmra.mrb[0].mxu0 %v8399
      %v8587 = vpop.f32.mrb[0].mxu0
      %v8588 = vadd.f32 0.0, %v8587
      %v8589 = vpop.f32.mrb[0].mxu0
      %8590 = vmatprep.mubr.f32.mxu0 0.0
      %8591 = vmatmul.mubr.f32.gmra.mrb[0].mxu0 %v8402
      %v8592 = vpop.f32.mrb[0].mxu0
      %v8593 = vadd.f32 0.0, %v8592
      %v8594 = vpop.f32.mrb[0].mxu0
      %8595 = vmatprep.mubr.f32.mxu0 0.0
      %8596 = vmatmul.mubr.f32.gmra.mrb[0].mxu0 %v8405
      %v8597 = vpop.f32.mrb[0].mxu0
      %v8598 = vadd.f32 0.0, %v8597
      %v8599 = vpop.f32.mrb[0].mxu0
      %8600 = vmatprep.mubr.f32.mxu0 0.0
      %8601 = vmatmul.mubr.f32.gmra.mrb[0].mxu0 %v8408
      %v8602 = vpop.f32.mrb[0].mxu0
      %v8603 = vadd.f32 0.0, %v8602
      %v8604 = vpop.f32.mrb[0].mxu0
      %8605 = vmatprep.mubr.f32.mxu0 0.0
      %8606 = vmatmul.mubr.f32.gmra.mrb[0].mxu0 %v8411
      %v8607 = vpop.f32.mrb[0].mxu0
      %v8608 = vadd.f32 0.0, %v8607
      %v8609 = vpop.f32.mrb[0].mxu0
      %8610 = vmatprep.mubr.f32.mxu0 0.0
      %8611 = vmatmul.mubr.f32.gmra.mrb[0].mxu0 %v8414
      %v8612 = vpop.f32.mrb[0].mxu0
      %v8613 = vadd.f32 0.0, %v8612
      %v8614 = vpop.f32.mrb[0].mxu0
      %8615 = vmatprep.mubr.f32.mxu0 0.0
      %8616 = vmatmul.mubr.f32.gmra.mrb[0].mxu0 %v8417
      %v8617 = vpop.f32.mrb[0].mxu0
      %v8618 = vadd.f32 0.0, %v8617
      %v8619 = vpop.f32.mrb[0].mxu0
      %8620 = vmatprep.mubr.f32.mxu0 0.0
      %8621 = vmatmul.mubr.f32.gmra.mrb[0].mxu0 %v8420
      %v8622 = vpop.f32.mrb[0].mxu0
      %v8623 = vadd.f32 0.0, %v8622
      %v8624 = vpop.f32.mrb[0].mxu0
      %8625 = vmatprep.mubr.f32.mxu0 0.0
      %8626 = vmatmul.mubr.f32.gmra.mrb[0].mxu0 %v8423
      %v8627 = vpop.f32.mrb[0].mxu0
      %v8628 = vadd.f32 0.0, %v8627
      %v8629 = vpop.f32.mrb[0].mxu0
      %8630 = vmatprep.mubr.f32.mxu0 0.0
      %8631 = vmatmul.mubr.f32.gmra.mrb[0].mxu0 %v8426
      %v8632 = vpop.f32.mrb[0].mxu0
      %v8633 = vadd.f32 0.0, %v8632
      %v8634 = vpop.f32.mrb[0].mxu0
      %8635 = vmatprep.mubr.f32.mxu0 0.0
      %8636 = vmatmul.mubr.f32.gmra.mrb[0].mxu0 %v8429
      %v8637 = vpop.f32.mrb[0].mxu0
      %v8638 = vadd.f32 0.0, %v8637
      %v8639 = vpop.f32.mrb[0].mxu0
      %8640 = vmatprep.mubr.f32.mxu0 0.0
      %8641 = vmatmul.mubr.f32.gmra.mrb[0].mxu0 %v8432
      %v8642 = vpop.f32.mrb[0].mxu0
      %v8643 = vadd.f32 0.0, %v8642
      %v8644 = vpop.f32.mrb[0].mxu0
      %8645 = vmatprep.mubr.f32.mxu0 0.0
      %8646 = vmatmul.mubr.f32.gmra.mrb[0].mxu0 %v8435
      %v8647 = vpop.f32.mrb[0].mxu0
      %v8648 = vadd.f32 0.0, %v8647
      %v8649 = vpop.f32.mrb[0].mxu0
      %8650 = vmatprep.mubr.f32.mxu0 0.0
      %8651 = vmatmul.mubr.f32.gmra.mrb[0].mxu0 %v8438
      %v8652 = vpop.f32.mrb[0].mxu0
      %v8653 = vadd.f32 0.0, %v8652
      %v8654 = vpop.f32.mrb[0].mxu0
      %8655 = vmatprep.mubr.f32.mxu0 0.0
      %8656 = vmatmul.mubr.f32.gmra.mrb[0].mxu0 %v8441
      %v8657 = vpop.f32.mrb[0].mxu0
      %v8658 = vadd.f32 0.0, %v8657
      %v8659 = vpop.f32.mrb[0].mxu0
      %8660 = vmatprep.mubr.f32.mxu0 0.0
      %8661 = vmatmul.mubr.f32.gmra.mrb[0].mxu0 %v8444
      %v8662 = vpop.f32.mrb[0].mxu0
      %v8663 = vadd.f32 0.0, %v8662
      %v8664 = vpop.f32.mrb[0].mxu0
      %8665 = vmatprep.mubr.f32.mxu0 0.0
      %8666 = vmatmul.mubr.f32.gmra.mrb[0].mxu0 %v8447
      %v8667 = vpop.f32.mrb[0].mxu0
      %v8668 = vadd.f32 0.0, %v8667
      %v8669 = vpop.f32.mrb[0].mxu0
      %8670 = vmatprep.mubr.f32.mxu0 0.0
      %8671 = vmatmul.mubr.f32.gmra.mrb[0].mxu0 %v8450
      %v8672 = vpop.f32.mrb[0].mxu0
      %v8673 = vadd.f32 0.0, %v8672
      %v8674 = vpop.f32.mrb[0].mxu0
      %8675 = vmatprep.mubr.f32.mxu0 0.0
      %8676 = vmatmul.mubr.f32.gmra.mrb[0].mxu0 %v8453
      %v8677 = vpop.f32.mrb[0].mxu0
      %v8678 = vadd.f32 0.0, %v8677
      %v8679 = vpop.f32.mrb[0].mxu0
      %8680 = vmatprep.mubr.f32.mxu0 0.0
      %8681 = vmatmul.mubr.f32.gmra.mrb[0].mxu0 %v8456
      %v8682 = vpop.f32.mrb[0].mxu0
      %v8683 = vadd.f32 0.0, %v8682
      %v8684 = vpop.f32.mrb[0].mxu0
      %8685 = vdwg.mxu0
      %v8686 = vadd.f32 %v8295, %v8528
      %v8687 = vadd.f32 %v8296, %v8533
      %v8688 = vadd.f32 %v8297, %v8538
      %v8689 = vadd.f32 %v8298, %v8543
      %v8690 = vadd.f32 %v8299, %v8548
      %v8691 = vadd.f32 %v8300, %v8553
      %v8692 = vadd.f32 %v8301, %v8558
      %v8693 = vadd.f32 %v8302, %v8563
      %v8694 = vadd.f32 %v8303, %v8568
      %v8695 = vadd.f32 %v8304, %v8573
      %v8696 = vadd.f32 %v8305, %v8578
      %v8697 = vadd.f32 %v8306, %v8583
      %v8698 = vadd.f32 %v8307, %v8588
      %v8699 = vadd.f32 %v8308, %v8593
      %v8700 = vadd.f32 %v8309, %v8598
      %v8701 = vadd.f32 %v8310, %v8603
      %v8702 = vadd.f32 %v8311, %v8608
      %v8703 = vadd.f32 %v8312, %v8613
      %v8704 = vadd.f32 %v8313, %v8618
      %v8705 = vadd.f32 %v8314, %v8623
      %v8706 = vadd.f32 %v8315, %v8628
      %v8707 = vadd.f32 %v8316, %v8633
      %v8708 = vadd.f32 %v8317, %v8638
      %v8709 = vadd.f32 %v8318, %v8643
      %v8710 = vadd.f32 %v8319, %v8648
      %v8711 = vadd.f32 %v8320, %v8653
      %v8712 = vadd.f32 %v8321, %v8658
      %v8713 = vadd.f32 %v8322, %v8663
      %v8714 = vadd.f32 %v8323, %v8668
      %v8715 = vadd.f32 %v8324, %v8673
      %v8716 = vadd.f32 %v8325, %v8678
      %v8717 = vadd.f32 %v8326, %v8683
      %v8718 = vld [vmem:[%s8327 + $0x1] sm:$0xff]
      %v8719 = vld [vmem:[%s8327 + $0x9] sm:$0xff]
      %v8720 = vld [vmem:[%s8327 + $0x19] sm:$0xff]
      %v8721 = vld [vmem:[%s8327 + $0x21] sm:$0xff]
      %v8722 = vld [vmem:[%s8327 + $0x31] sm:$0xff]
      %v8723 = vld [vmem:[%s8327 + $0x39] sm:$0xff]
      %v8724 = vld [vmem:[%s8327 + $0x49] sm:$0xff]
      %v8725 = vld [vmem:[%s8327 + $0x51] sm:$0xff]
      %v8726 = vld [vmem:[%s8327 + $0x61] sm:$0xff]
      %v8727 = vld [vmem:[%s8327 + $0x69] sm:$0xff]
      %v8728 = vld [vmem:[%s8327 + $0x79] sm:$0xff]
      %v8729 = vld [vmem:[%s8327 + $0x81] sm:$0xff]
      %v8730 = vld [vmem:[%s8327 + $0x91] sm:$0xff]
      %v8731 = vld [vmem:[%s8327 + $0x99] sm:$0xff]
      %v8732 = vld [vmem:[%s8327 + $0xa9] sm:$0xff]
      %v8733 = vld [vmem:[%s8327 + $0xb1] sm:$0xff]
      %v8734 = vld [vmem:[%s8327 + $0xc1] sm:$0xff]
      %v8735 = vld [vmem:[%s8327 + $0xc9] sm:$0xff]
      %v8736 = vld [vmem:[%s8327 + $0xd9] sm:$0xff]
      %v8737 = vld [vmem:[%s8327 + $0xe1] sm:$0xff]
      %v8738 = vld [vmem:[%s8327 + $0xf1] sm:$0xff]
      %v8739 = vld [vmem:[%s8327 + $0xf9] sm:$0xff]
      %v8740 = vld [vmem:[%s8327 + $0x109] sm:$0xff]
      %v8741 = vld [vmem:[%s8327 + $0x111] sm:$0xff]
      %v8742 = vld [vmem:[%s8327 + $0x121] sm:$0xff]
      %v8743 = vld [vmem:[%s8327 + $0x129] sm:$0xff]
      %v8744 = vld [vmem:[%s8327 + $0x139] sm:$0xff]
      %v8745 = vld [vmem:[%s8327 + $0x141] sm:$0xff]
      %v8746 = vld [vmem:[%s8327 + $0x151] sm:$0xff]
      %v8747 = vld [vmem:[%s8327 + $0x159] sm:$0xff]
      %v8748 = vld [vmem:[%s8327 + $0x169] sm:$0xff]
      %v8749 = vld [vmem:[%s8327 + $0x171] sm:$0xff]
      %s8750 = scalar_lea.vmem %s7, 28
      %v8751 = vld [vmem:[%s8750] sm:$0xf]
      %v8753 = vsel %vm426, %v8718, 0
      %v8756 = vsel %vm426, %v8719, 0
      %v8759 = vsel %vm426, %v8720, 0
      %v8762 = vsel %vm426, %v8721, 0
      %v8765 = vsel %vm426, %v8722, 0
      %v8768 = vsel %vm426, %v8723, 0
      %v8771 = vsel %vm426, %v8724, 0
      %v8774 = vsel %vm426, %v8725, 0
      %v8777 = vsel %vm426, %v8726, 0
      %v8780 = vsel %vm426, %v8727, 0
      %v8783 = vsel %vm426, %v8728, 0
      %v8786 = vsel %vm426, %v8729, 0
      %v8789 = vsel %vm426, %v8730, 0
      %v8792 = vsel %vm426, %v8731, 0
      %v8795 = vsel %vm426, %v8732, 0
      %v8798 = vsel %vm426, %v8733, 0
      %v8801 = vsel %vm426, %v8734, 0
      %v8804 = vsel %vm426, %v8735, 0
      %v8807 = vsel %vm426, %v8736, 0
      %v8810 = vsel %vm426, %v8737, 0
      %v8813 = vsel %vm426, %v8738, 0
      %v8816 = vsel %vm426, %v8739, 0
      %v8819 = vsel %vm426, %v8740, 0
      %v8822 = vsel %vm426, %v8741, 0
      %v8825 = vsel %vm426, %v8742, 0
      %v8828 = vsel %vm426, %v8743, 0
      %v8831 = vsel %vm426, %v8744, 0
      %v8834 = vsel %vm426, %v8745, 0
      %v8837 = vsel %vm426, %v8746, 0
      %v8840 = vsel %vm426, %v8747, 0
      %v8843 = vsel %vm426, %v8748, 0
      %v8846 = vsel %vm426, %v8749, 0
      %v8849 = vsel %vm6214, %v8751, 0
      %8851 = vmatprep.subr.mxu0 0.0
      %8852 = vmatpush1.msra.mxu0 %v8849
      %8853 = vmatprep.subr.mxu0 0.0
      %8854 = vmatpush1.msra.mxu0 0.0
      %8855 = vmatprep.subr.mxu0 0.0
      %8856 = vmatpush1.msra.mxu0 0.0
      %8857 = vmatprep.subr.mxu0 0.0
      %8858 = vmatpush1.msra.mxu0 0.0
      %8859 = vmatprep.subr.mxu0 0.0
      %8860 = vmatpush1.msra.mxu0 0.0
      %8861 = vmatprep.subr.mxu0 0.0
      %8862 = vmatpush1.msra.mxu0 0.0
      %8863 = vmatprep.subr.mxu0 0.0
      %8864 = vmatpush1.msra.mxu0 0.0
      %8865 = vmatprep.subr.mxu0 0.0
      %8866 = vmatpush1.msra.mxu0 0.0
      %8867 = vmatprep.subr.mxu0 0.0
      %8868 = vmatpush1.msra.mxu0 0.0
      %8869 = vmatprep.subr.mxu0 0.0
      %8870 = vmatpush1.msra.mxu0 0.0
      %8871 = vmatprep.subr.mxu0 0.0
      %8872 = vmatpush1.msra.mxu0 0.0
      %8873 = vmatprep.subr.mxu0 0.0
      %8874 = vmatpush1.msra.mxu0 0.0
      %8875 = vmatprep.subr.mxu0 0.0
      %8876 = vmatpush1.msra.mxu0 0.0
      %8877 = vmatprep.subr.mxu0 0.0
      %8878 = vmatpush1.msra.mxu0 0.0
      %8879 = vmatprep.subr.mxu0 0.0
      %8880 = vmatpush1.msra.mxu0 0.0
      %8881 = vmatprep.subr.mxu0 0.0
      %8882 = vmatpush1.msra.mxu0 0.0
      %8883 = vmatprep.subr.mxu0 0.0
      %8884 = vmatpush1.msra.mxu0 0.0
      %8885 = vmatprep.subr.mxu0 0.0
      %8886 = vmatpush1.msra.mxu0 0.0
      %8887 = vmatprep.subr.mxu0 0.0
      %8888 = vmatpush1.msra.mxu0 0.0
      %8889 = vmatprep.subr.mxu0 0.0
      %8890 = vmatpush1.msra.mxu0 0.0
      %8891 = vmatprep.subr.mxu0 0.0
      %8892 = vmatpush1.msra.mxu0 0.0
      %8893 = vmatprep.subr.mxu0 0.0
      %8894 = vmatpush1.msra.mxu0 0.0
      %8895 = vmatprep.subr.mxu0 0.0
      %8896 = vmatpush1.msra.mxu0 0.0
      %8897 = vmatprep.subr.mxu0 0.0
      %8898 = vmatpush1.msra.mxu0 0.0
      %8899 = vmatprep.subr.mxu0 0.0
      %8900 = vmatpush1.msra.mxu0 0.0
      %8901 = vmatprep.subr.mxu0 0.0
      %8902 = vmatpush1.msra.mxu0 0.0
      %8903 = vmatprep.subr.mxu0 0.0
      %8904 = vmatpush1.msra.mxu0 0.0
      %8905 = vmatprep.subr.mxu0 0.0
      %8906 = vmatpush1.msra.mxu0 0.0
      %8907 = vmatprep.subr.mxu0 0.0
      %8908 = vmatpush1.msra.mxu0 0.0
      %8909 = vmatprep.subr.mxu0 0.0
      %8910 = vmatpush1.msra.mxu0 0.0
      %8911 = vmatprep.subr.mxu0 0.0
      %8912 = vmatpush1.msra.mxu0 0.0
      %8913 = vmatprep.subr.mxu0 0.0
      %8914 = vmatpush1.msra.mxu0 0.0
      %8915 = vmatprep.mubr.f32.mxu0 0.0
      %8916 = vmatmul.mubr.f32.gmra.mrb[0].mxu0 %v8753
      %v8917 = vpop.f32.mrb[0].mxu0
      %v8918 = vadd.f32 0.0, %v8917
      %v8919 = vpop.f32.mrb[0].mxu0
      %8920 = vmatprep.mubr.f32.mxu0 0.0
      %8921 = vmatmul.mubr.f32.gmra.mrb[0].mxu0 %v8756
      %v8922 = vpop.f32.mrb[0].mxu0
      %v8923 = vadd.f32 0.0, %v8922
      %v8924 = vpop.f32.mrb[0].mxu0
      %8925 = vmatprep.mubr.f32.mxu0 0.0
      %8926 = vmatmul.mubr.f32.gmra.mrb[0].mxu0 %v8759
      %v8927 = vpop.f32.mrb[0].mxu0
      %v8928 = vadd.f32 0.0, %v8927
      %v8929 = vpop.f32.mrb[0].mxu0
      %8930 = vmatprep.mubr.f32.mxu0 0.0
      %8931 = vmatmul.mubr.f32.gmra.mrb[0].mxu0 %v8762
      %v8932 = vpop.f32.mrb[0].mxu0
      %v8933 = vadd.f32 0.0, %v8932
      %v8934 = vpop.f32.mrb[0].mxu0
      %8935 = vmatprep.mubr.f32.mxu0 0.0
      %8936 = vmatmul.mubr.f32.gmra.mrb[0].mxu0 %v8765
      %v8937 = vpop.f32.mrb[0].mxu0
      %v8938 = vadd.f32 0.0, %v8937
      %v8939 = vpop.f32.mrb[0].mxu0
      %8940 = vmatprep.mubr.f32.mxu0 0.0
      %8941 = vmatmul.mubr.f32.gmra.mrb[0].mxu0 %v8768
      %v8942 = vpop.f32.mrb[0].mxu0
      %v8943 = vadd.f32 0.0, %v8942
      %v8944 = vpop.f32.mrb[0].mxu0
      %8945 = vmatprep.mubr.f32.mxu0 0.0
      %8946 = vmatmul.mubr.f32.gmra.mrb[0].mxu0 %v8771
      %v8947 = vpop.f32.mrb[0].mxu0
      %v8948 = vadd.f32 0.0, %v8947
      %v8949 = vpop.f32.mrb[0].mxu0
      %8950 = vmatprep.mubr.f32.mxu0 0.0
      %8951 = vmatmul.mubr.f32.gmra.mrb[0].mxu0 %v8774
      %v8952 = vpop.f32.mrb[0].mxu0
      %v8953 = vadd.f32 0.0, %v8952
      %v8954 = vpop.f32.mrb[0].mxu0
      %8955 = vmatprep.mubr.f32.mxu0 0.0
      %8956 = vmatmul.mubr.f32.gmra.mrb[0].mxu0 %v8777
      %v8957 = vpop.f32.mrb[0].mxu0
      %v8958 = vadd.f32 0.0, %v8957
      %v8959 = vpop.f32.mrb[0].mxu0
      %8960 = vmatprep.mubr.f32.mxu0 0.0
      %8961 = vmatmul.mubr.f32.gmra.mrb[0].mxu0 %v8780
      %v8962 = vpop.f32.mrb[0].mxu0
      %v8963 = vadd.f32 0.0, %v8962
      %v8964 = vpop.f32.mrb[0].mxu0
      %8965 = vmatprep.mubr.f32.mxu0 0.0
      %8966 = vmatmul.mubr.f32.gmra.mrb[0].mxu0 %v8783
      %v8967 = vpop.f32.mrb[0].mxu0
      %v8968 = vadd.f32 0.0, %v8967
      %v8969 = vpop.f32.mrb[0].mxu0
      %8970 = vmatprep.mubr.f32.mxu0 0.0
      %8971 = vmatmul.mubr.f32.gmra.mrb[0].mxu0 %v8786
      %v8972 = vpop.f32.mrb[0].mxu0
      %v8973 = vadd.f32 0.0, %v8972
      %v8974 = vpop.f32.mrb[0].mxu0
      %8975 = vmatprep.mubr.f32.mxu0 0.0
      %8976 = vmatmul.mubr.f32.gmra.mrb[0].mxu0 %v8789
      %v8977 = vpop.f32.mrb[0].mxu0
      %v8978 = vadd.f32 0.0, %v8977
      %v8979 = vpop.f32.mrb[0].mxu0
      %8980 = vmatprep.mubr.f32.mxu0 0.0
      %8981 = vmatmul.mubr.f32.gmra.mrb[0].mxu0 %v8792
      %v8982 = vpop.f32.mrb[0].mxu0
      %v8983 = vadd.f32 0.0, %v8982
      %v8984 = vpop.f32.mrb[0].mxu0
      %8985 = vmatprep.mubr.f32.mxu0 0.0
      %8986 = vmatmul.mubr.f32.gmra.mrb[0].mxu0 %v8795
      %v8987 = vpop.f32.mrb[0].mxu0
      %v8988 = vadd.f32 0.0, %v8987
      %v8989 = vpop.f32.mrb[0].mxu0
      %8990 = vmatprep.mubr.f32.mxu0 0.0
      %8991 = vmatmul.mubr.f32.gmra.mrb[0].mxu0 %v8798
      %v8992 = vpop.f32.mrb[0].mxu0
      %v8993 = vadd.f32 0.0, %v8992
      %v8994 = vpop.f32.mrb[0].mxu0
      %8995 = vmatprep.mubr.f32.mxu0 0.0
      %8996 = vmatmul.mubr.f32.gmra.mrb[0].mxu0 %v8801
      %v8997 = vpop.f32.mrb[0].mxu0
      %v8998 = vadd.f32 0.0, %v8997
      %v8999 = vpop.f32.mrb[0].mxu0
      %9000 = vmatprep.mubr.f32.mxu0 0.0
      %9001 = vmatmul.mubr.f32.gmra.mrb[0].mxu0 %v8804
      %v9002 = vpop.f32.mrb[0].mxu0
      %v9003 = vadd.f32 0.0, %v9002
      %v9004 = vpop.f32.mrb[0].mxu0
      %9005 = vmatprep.mubr.f32.mxu0 0.0
      %9006 = vmatmul.mubr.f32.gmra.mrb[0].mxu0 %v8807
      %v9007 = vpop.f32.mrb[0].mxu0
      %v9008 = vadd.f32 0.0, %v9007
      %v9009 = vpop.f32.mrb[0].mxu0
      %9010 = vmatprep.mubr.f32.mxu0 0.0
      %9011 = vmatmul.mubr.f32.gmra.mrb[0].mxu0 %v8810
      %v9012 = vpop.f32.mrb[0].mxu0
      %v9013 = vadd.f32 0.0, %v9012
      %v9014 = vpop.f32.mrb[0].mxu0
      %9015 = vmatprep.mubr.f32.mxu0 0.0
      %9016 = vmatmul.mubr.f32.gmra.mrb[0].mxu0 %v8813
      %v9017 = vpop.f32.mrb[0].mxu0
      %v9018 = vadd.f32 0.0, %v9017
      %v9019 = vpop.f32.mrb[0].mxu0
      %9020 = vmatprep.mubr.f32.mxu0 0.0
      %9021 = vmatmul.mubr.f32.gmra.mrb[0].mxu0 %v8816
      %v9022 = vpop.f32.mrb[0].mxu0
      %v9023 = vadd.f32 0.0, %v9022
      %v9024 = vpop.f32.mrb[0].mxu0
      %9025 = vmatprep.mubr.f32.mxu0 0.0
      %9026 = vmatmul.mubr.f32.gmra.mrb[0].mxu0 %v8819
      %v9027 = vpop.f32.mrb[0].mxu0
      %v9028 = vadd.f32 0.0, %v9027
      %v9029 = vpop.f32.mrb[0].mxu0
      %9030 = vmatprep.mubr.f32.mxu0 0.0
      %9031 = vmatmul.mubr.f32.gmra.mrb[0].mxu0 %v8822
      %v9032 = vpop.f32.mrb[0].mxu0
      %v9033 = vadd.f32 0.0, %v9032
      %v9034 = vpop.f32.mrb[0].mxu0
      %9035 = vmatprep.mubr.f32.mxu0 0.0
      %9036 = vmatmul.mubr.f32.gmra.mrb[0].mxu0 %v8825
      %v9037 = vpop.f32.mrb[0].mxu0
      %v9038 = vadd.f32 0.0, %v9037
      %v9039 = vpop.f32.mrb[0].mxu0
      %9040 = vmatprep.mubr.f32.mxu0 0.0
      %9041 = vmatmul.mubr.f32.gmra.mrb[0].mxu0 %v8828
      %v9042 = vpop.f32.mrb[0].mxu0
      %v9043 = vadd.f32 0.0, %v9042
      %v9044 = vpop.f32.mrb[0].mxu0
      %9045 = vmatprep.mubr.f32.mxu0 0.0
      %9046 = vmatmul.mubr.f32.gmra.mrb[0].mxu0 %v8831
      %v9047 = vpop.f32.mrb[0].mxu0
      %v9048 = vadd.f32 0.0, %v9047
      %v9049 = vpop.f32.mrb[0].mxu0
      %9050 = vmatprep.mubr.f32.mxu0 0.0
      %9051 = vmatmul.mubr.f32.gmra.mrb[0].mxu0 %v8834
      %v9052 = vpop.f32.mrb[0].mxu0
      %v9053 = vadd.f32 0.0, %v9052
      %v9054 = vpop.f32.mrb[0].mxu0
      %9055 = vmatprep.mubr.f32.mxu0 0.0
      %9056 = vmatmul.mubr.f32.gmra.mrb[0].mxu0 %v8837
      %v9057 = vpop.f32.mrb[0].mxu0
      %v9058 = vadd.f32 0.0, %v9057
      %v9059 = vpop.f32.mrb[0].mxu0
      %9060 = vmatprep.mubr.f32.mxu0 0.0
      %9061 = vmatmul.mubr.f32.gmra.mrb[0].mxu0 %v8840
      %v9062 = vpop.f32.mrb[0].mxu0
      %v9063 = vadd.f32 0.0, %v9062
      %v9064 = vpop.f32.mrb[0].mxu0
      %9065 = vmatprep.mubr.f32.mxu0 0.0
      %9066 = vmatmul.mubr.f32.gmra.mrb[0].mxu0 %v8843
      %v9067 = vpop.f32.mrb[0].mxu0
      %v9068 = vadd.f32 0.0, %v9067
      %v9069 = vpop.f32.mrb[0].mxu0
      %9070 = vmatprep.mubr.f32.mxu0 0.0
      %9071 = vmatmul.mubr.f32.gmra.mrb[0].mxu0 %v8846
      %v9072 = vpop.f32.mrb[0].mxu0
      %v9073 = vadd.f32 0.0, %v9072
      %v9074 = vpop.f32.mrb[0].mxu0
      %9075 = vdwg.mxu0
      %v9076 = vadd.f32 %v8686, %v8918
      %v9077 = vadd.f32 %v8687, %v8923
      %v9078 = vadd.f32 %v8688, %v8928
      %v9079 = vadd.f32 %v8689, %v8933
      %v9080 = vadd.f32 %v8690, %v8938
      %v9081 = vadd.f32 %v8691, %v8943
      %v9082 = vadd.f32 %v8692, %v8948
      %v9083 = vadd.f32 %v8693, %v8953
      %v9084 = vadd.f32 %v8694, %v8958
      %v9085 = vadd.f32 %v8695, %v8963
      %v9086 = vadd.f32 %v8696, %v8968
      %v9087 = vadd.f32 %v8697, %v8973
      %v9088 = vadd.f32 %v8698, %v8978
      %v9089 = vadd.f32 %v8699, %v8983
      %v9090 = vadd.f32 %v8700, %v8988
      %v9091 = vadd.f32 %v8701, %v8993
      %v9092 = vadd.f32 %v8702, %v8998
      %v9093 = vadd.f32 %v8703, %v9003
      %v9094 = vadd.f32 %v8704, %v9008
      %v9095 = vadd.f32 %v8705, %v9013
      %v9096 = vadd.f32 %v8706, %v9018
      %v9097 = vadd.f32 %v8707, %v9023
      %v9098 = vadd.f32 %v8708, %v9028
      %v9099 = vadd.f32 %v8709, %v9033
      %v9100 = vadd.f32 %v8710, %v9038
      %v9101 = vadd.f32 %v8711, %v9043
      %v9102 = vadd.f32 %v8712, %v9048
      %v9103 = vadd.f32 %v8713, %v9053
      %v9104 = vadd.f32 %v8714, %v9058
      %v9105 = vadd.f32 %v8715, %v9063
      %v9106 = vadd.f32 %v8716, %v9068
      %v9107 = vadd.f32 %v8717, %v9073
      %v9108 = vld [vmem:[%s8327 + $0x2] sm:$0xff]
      %v9109 = vld [vmem:[%s8327 + $0xa] sm:$0xff]
      %v9110 = vld [vmem:[%s8327 + $0x1a] sm:$0xff]
      %v9111 = vld [vmem:[%s8327 + $0x22] sm:$0xff]
      %v9112 = vld [vmem:[%s8327 + $0x32] sm:$0xff]
      %v9113 = vld [vmem:[%s8327 + $0x3a] sm:$0xff]
      %v9114 = vld [vmem:[%s8327 + $0x4a] sm:$0xff]
      %v9115 = vld [vmem:[%s8327 + $0x52] sm:$0xff]
      %v9116 = vld [vmem:[%s8327 + $0x62] sm:$0xff]
      %v9117 = vld [vmem:[%s8327 + $0x6a] sm:$0xff]
      %v9118 = vld [vmem:[%s8327 + $0x7a] sm:$0xff]
      %v9119 = vld [vmem:[%s8327 + $0x82] sm:$0xff]
      %v9120 = vld [vmem:[%s8327 + $0x92] sm:$0xff]
      %v9121 = vld [vmem:[%s8327 + $0x9a] sm:$0xff]
      %v9122 = vld [vmem:[%s8327 + $0xaa] sm:$0xff]
      %v9123 = vld [vmem:[%s8327 + $0xb2] sm:$0xff]
      %v9124 = vld [vmem:[%s8327 + $0xc2] sm:$0xff]
      %v9125 = vld [vmem:[%s8327 + $0xca] sm:$0xff]
      %v9126 = vld [vmem:[%s8327 + $0xda] sm:$0xff]
      %v9127 = vld [vmem:[%s8327 + $0xe2] sm:$0xff]
      %v9128 = vld [vmem:[%s8327 + $0xf2] sm:$0xff]
      %v9129 = vld [vmem:[%s8327 + $0xfa] sm:$0xff]
      %v9130 = vld [vmem:[%s8327 + $0x10a] sm:$0xff]
      %v9131 = vld [vmem:[%s8327 + $0x112] sm:$0xff]
      %v9132 = vld [vmem:[%s8327 + $0x122] sm:$0xff]
      %v9133 = vld [vmem:[%s8327 + $0x12a] sm:$0xff]
      %v9134 = vld [vmem:[%s8327 + $0x13a] sm:$0xff]
      %v9135 = vld [vmem:[%s8327 + $0x142] sm:$0xff]
      %v9136 = vld [vmem:[%s8327 + $0x152] sm:$0xff]
      %v9137 = vld [vmem:[%s8327 + $0x15a] sm:$0xff]
      %v9138 = vld [vmem:[%s8327 + $0x16a] sm:$0xff]
      %v9139 = vld [vmem:[%s8327 + $0x172] sm:$0xff]
      %s9140 = scalar_lea.vmem %s7, 32
      %v9141 = vld [vmem:[%s9140] sm:$0xf]
      %v9143 = vsel %vm426, %v9108, 0
      %v9146 = vsel %vm426, %v9109, 0
      %v9149 = vsel %vm426, %v9110, 0
      %v9152 = vsel %vm426, %v9111, 0
      %v9155 = vsel %vm426, %v9112, 0
      %v9158 = vsel %vm426, %v9113, 0
      %v9161 = vsel %vm426, %v9114, 0
      %v9164 = vsel %vm426, %v9115, 0
      %v9167 = vsel %vm426, %v9116, 0
      %v9170 = vsel %vm426, %v9117, 0
      %v9173 = vsel %vm426, %v9118, 0
      %v9176 = vsel %vm426, %v9119, 0
      %v9179 = vsel %vm426, %v9120, 0
      %v9182 = vsel %vm426, %v9121, 0
      %v9185 = vsel %vm426, %v9122, 0
      %v9188 = vsel %vm426, %v9123, 0
      %v9191 = vsel %vm426, %v9124, 0
      %v9194 = vsel %vm426, %v9125, 0
      %v9197 = vsel %vm426, %v9126, 0
      %v9200 = vsel %vm426, %v9127, 0
      %v9203 = vsel %vm426, %v9128, 0
      %v9206 = vsel %vm426, %v9129, 0
      %v9209 = vsel %vm426, %v9130, 0
      %v9212 = vsel %vm426, %v9131, 0
      %v9215 = vsel %vm426, %v9132, 0
      %v9218 = vsel %vm426, %v9133, 0
      %v9221 = vsel %vm426, %v9134, 0
      %v9224 = vsel %vm426, %v9135, 0
      %v9227 = vsel %vm426, %v9136, 0
      %v9230 = vsel %vm426, %v9137, 0
      %v9233 = vsel %vm426, %v9138, 0
      %v9236 = vsel %vm426, %v9139, 0
      %v9239 = vsel %vm6214, %v9141, 0
      %9241 = vmatprep.subr.mxu0 0.0
      %9242 = vmatpush1.msra.mxu0 %v9239
      %9243 = vmatprep.subr.mxu0 0.0
      %9244 = vmatpush1.msra.mxu0 0.0
      %9245 = vmatprep.subr.mxu0 0.0
      %9246 = vmatpush1.msra.mxu0 0.0
      %9247 = vmatprep.subr.mxu0 0.0
      %9248 = vmatpush1.msra.mxu0 0.0
      %9249 = vmatprep.subr.mxu0 0.0
      %9250 = vmatpush1.msra.mxu0 0.0
      %9251 = vmatprep.subr.mxu0 0.0
      %9252 = vmatpush1.msra.mxu0 0.0
      %9253 = vmatprep.subr.mxu0 0.0
      %9254 = vmatpush1.msra.mxu0 0.0
      %9255 = vmatprep.subr.mxu0 0.0
      %9256 = vmatpush1.msra.mxu0 0.0
      %9257 = vmatprep.subr.mxu0 0.0
      %9258 = vmatpush1.msra.mxu0 0.0
      %9259 = vmatprep.subr.mxu0 0.0
      %9260 = vmatpush1.msra.mxu0 0.0
      %9261 = vmatprep.subr.mxu0 0.0
      %9262 = vmatpush1.msra.mxu0 0.0
      %9263 = vmatprep.subr.mxu0 0.0
      %9264 = vmatpush1.msra.mxu0 0.0
      %9265 = vmatprep.subr.mxu0 0.0
      %9266 = vmatpush1.msra.mxu0 0.0
      %9267 = vmatprep.subr.mxu0 0.0
      %9268 = vmatpush1.msra.mxu0 0.0
      %9269 = vmatprep.subr.mxu0 0.0
      %9270 = vmatpush1.msra.mxu0 0.0
      %9271 = vmatprep.subr.mxu0 0.0
      %9272 = vmatpush1.msra.mxu0 0.0
      %9273 = vmatprep.subr.mxu0 0.0
      %9274 = vmatpush1.msra.mxu0 0.0
      %9275 = vmatprep.subr.mxu0 0.0
      %9276 = vmatpush1.msra.mxu0 0.0
      %9277 = vmatprep.subr.mxu0 0.0
      %9278 = vmatpush1.msra.mxu0 0.0
      %9279 = vmatprep.subr.mxu0 0.0
      %9280 = vmatpush1.msra.mxu0 0.0
      %9281 = vmatprep.subr.mxu0 0.0
      %9282 = vmatpush1.msra.mxu0 0.0
      %9283 = vmatprep.subr.mxu0 0.0
      %9284 = vmatpush1.msra.mxu0 0.0
      %9285 = vmatprep.subr.mxu0 0.0
      %9286 = vmatpush1.msra.mxu0 0.0
      %9287 = vmatprep.subr.mxu0 0.0
      %9288 = vmatpush1.msra.mxu0 0.0
      %9289 = vmatprep.subr.mxu0 0.0
      %9290 = vmatpush1.msra.mxu0 0.0
      %9291 = vmatprep.subr.mxu0 0.0
      %9292 = vmatpush1.msra.mxu0 0.0
      %9293 = vmatprep.subr.mxu0 0.0
      %9294 = vmatpush1.msra.mxu0 0.0
      %9295 = vmatprep.subr.mxu0 0.0
      %9296 = vmatpush1.msra.mxu0 0.0
      %9297 = vmatprep.subr.mxu0 0.0
      %9298 = vmatpush1.msra.mxu0 0.0
      %9299 = vmatprep.subr.mxu0 0.0
      %9300 = vmatpush1.msra.mxu0 0.0
      %9301 = vmatprep.subr.mxu0 0.0
      %9302 = vmatpush1.msra.mxu0 0.0
      %9303 = vmatprep.subr.mxu0 0.0
      %9304 = vmatpush1.msra.mxu0 0.0
      %9305 = vmatprep.mubr.f32.mxu0 0.0
      %9306 = vmatmul.mubr.f32.gmra.mrb[0].mxu0 %v9143
      %v9307 = vpop.f32.mrb[0].mxu0
      %v9308 = vadd.f32 0.0, %v9307
      %v9309 = vpop.f32.mrb[0].mxu0
      %9310 = vmatprep.mubr.f32.mxu0 0.0
      %9311 = vmatmul.mubr.f32.gmra.mrb[0].mxu0 %v9146
      %v9312 = vpop.f32.mrb[0].mxu0
      %v9313 = vadd.f32 0.0, %v9312
      %v9314 = vpop.f32.mrb[0].mxu0
      %9315 = vmatprep.mubr.f32.mxu0 0.0
      %9316 = vmatmul.mubr.f32.gmra.mrb[0].mxu0 %v9149
      %v9317 = vpop.f32.mrb[0].mxu0
      %v9318 = vadd.f32 0.0, %v9317
      %v9319 = vpop.f32.mrb[0].mxu0
      %9320 = vmatprep.mubr.f32.mxu0 0.0
      %9321 = vmatmul.mubr.f32.gmra.mrb[0].mxu0 %v9152
      %v9322 = vpop.f32.mrb[0].mxu0
      %v9323 = vadd.f32 0.0, %v9322
      %v9324 = vpop.f32.mrb[0].mxu0
      %9325 = vmatprep.mubr.f32.mxu0 0.0
      %9326 = vmatmul.mubr.f32.gmra.mrb[0].mxu0 %v9155
      %v9327 = vpop.f32.mrb[0].mxu0
      %v9328 = vadd.f32 0.0, %v9327
      %v9329 = vpop.f32.mrb[0].mxu0
      %9330 = vmatprep.mubr.f32.mxu0 0.0
      %9331 = vmatmul.mubr.f32.gmra.mrb[0].mxu0 %v9158
      %v9332 = vpop.f32.mrb[0].mxu0
      %v9333 = vadd.f32 0.0, %v9332
      %v9334 = vpop.f32.mrb[0].mxu0
      %9335 = vmatprep.mubr.f32.mxu0 0.0
      %9336 = vmatmul.mubr.f32.gmra.mrb[0].mxu0 %v9161
      %v9337 = vpop.f32.mrb[0].mxu0
      %v9338 = vadd.f32 0.0, %v9337
      %v9339 = vpop.f32.mrb[0].mxu0
      %9340 = vmatprep.mubr.f32.mxu0 0.0
      %9341 = vmatmul.mubr.f32.gmra.mrb[0].mxu0 %v9164
      %v9342 = vpop.f32.mrb[0].mxu0
      %v9343 = vadd.f32 0.0, %v9342
      %v9344 = vpop.f32.mrb[0].mxu0
      %9345 = vmatprep.mubr.f32.mxu0 0.0
      %9346 = vmatmul.mubr.f32.gmra.mrb[0].mxu0 %v9167
      %v9347 = vpop.f32.mrb[0].mxu0
      %v9348 = vadd.f32 0.0, %v9347
      %v9349 = vpop.f32.mrb[0].mxu0
      %9350 = vmatprep.mubr.f32.mxu0 0.0
      %9351 = vmatmul.mubr.f32.gmra.mrb[0].mxu0 %v9170
      %v9352 = vpop.f32.mrb[0].mxu0
      %v9353 = vadd.f32 0.0, %v9352
      %v9354 = vpop.f32.mrb[0].mxu0
      %9355 = vmatprep.mubr.f32.mxu0 0.0
      %9356 = vmatmul.mubr.f32.gmra.mrb[0].mxu0 %v9173
      %v9357 = vpop.f32.mrb[0].mxu0
      %v9358 = vadd.f32 0.0, %v9357
      %v9359 = vpop.f32.mrb[0].mxu0
      %9360 = vmatprep.mubr.f32.mxu0 0.0
      %9361 = vmatmul.mubr.f32.gmra.mrb[0].mxu0 %v9176
      %v9362 = vpop.f32.mrb[0].mxu0
      %v9363 = vadd.f32 0.0, %v9362
      %v9364 = vpop.f32.mrb[0].mxu0
      %9365 = vmatprep.mubr.f32.mxu0 0.0
      %9366 = vmatmul.mubr.f32.gmra.mrb[0].mxu0 %v9179
      %v9367 = vpop.f32.mrb[0].mxu0
      %v9368 = vadd.f32 0.0, %v9367
      %v9369 = vpop.f32.mrb[0].mxu0
      %9370 = vmatprep.mubr.f32.mxu0 0.0
      %9371 = vmatmul.mubr.f32.gmra.mrb[0].mxu0 %v9182
      %v9372 = vpop.f32.mrb[0].mxu0
      %v9373 = vadd.f32 0.0, %v9372
      %v9374 = vpop.f32.mrb[0].mxu0
      %9375 = vmatprep.mubr.f32.mxu0 0.0
      %9376 = vmatmul.mubr.f32.gmra.mrb[0].mxu0 %v9185
      %v9377 = vpop.f32.mrb[0].mxu0
      %v9378 = vadd.f32 0.0, %v9377
      %v9379 = vpop.f32.mrb[0].mxu0
      %9380 = vmatprep.mubr.f32.mxu0 0.0
      %9381 = vmatmul.mubr.f32.gmra.mrb[0].mxu0 %v9188
      %v9382 = vpop.f32.mrb[0].mxu0
      %v9383 = vadd.f32 0.0, %v9382
      %v9384 = vpop.f32.mrb[0].mxu0
      %9385 = vmatprep.mubr.f32.mxu0 0.0
      %9386 = vmatmul.mubr.f32.gmra.mrb[0].mxu0 %v9191
      %v9387 = vpop.f32.mrb[0].mxu0
      %v9388 = vadd.f32 0.0, %v9387
      %v9389 = vpop.f32.mrb[0].mxu0
      %9390 = vmatprep.mubr.f32.mxu0 0.0
      %9391 = vmatmul.mubr.f32.gmra.mrb[0].mxu0 %v9194
      %v9392 = vpop.f32.mrb[0].mxu0
      %v9393 = vadd.f32 0.0, %v9392
      %v9394 = vpop.f32.mrb[0].mxu0
      %9395 = vmatprep.mubr.f32.mxu0 0.0
      %9396 = vmatmul.mubr.f32.gmra.mrb[0].mxu0 %v9197
      %v9397 = vpop.f32.mrb[0].mxu0
      %v9398 = vadd.f32 0.0, %v9397
      %v9399 = vpop.f32.mrb[0].mxu0
      %9400 = vmatprep.mubr.f32.mxu0 0.0
      %9401 = vmatmul.mubr.f32.gmra.mrb[0].mxu0 %v9200
      %v9402 = vpop.f32.mrb[0].mxu0
      %v9403 = vadd.f32 0.0, %v9402
      %v9404 = vpop.f32.mrb[0].mxu0
      %9405 = vmatprep.mubr.f32.mxu0 0.0
      %9406 = vmatmul.mubr.f32.gmra.mrb[0].mxu0 %v9203
      %v9407 = vpop.f32.mrb[0].mxu0
      %v9408 = vadd.f32 0.0, %v9407
      %v9409 = vpop.f32.mrb[0].mxu0
      %9410 = vmatprep.mubr.f32.mxu0 0.0
      %9411 = vmatmul.mubr.f32.gmra.mrb[0].mxu0 %v9206
      %v9412 = vpop.f32.mrb[0].mxu0
      %v9413 = vadd.f32 0.0, %v9412
      %v9414 = vpop.f32.mrb[0].mxu0
      %9415 = vmatprep.mubr.f32.mxu0 0.0
      %9416 = vmatmul.mubr.f32.gmra.mrb[0].mxu0 %v9209
      %v9417 = vpop.f32.mrb[0].mxu0
      %v9418 = vadd.f32 0.0, %v9417
      %v9419 = vpop.f32.mrb[0].mxu0
      %9420 = vmatprep.mubr.f32.mxu0 0.0
      %9421 = vmatmul.mubr.f32.gmra.mrb[0].mxu0 %v9212
      %v9422 = vpop.f32.mrb[0].mxu0
      %v9423 = vadd.f32 0.0, %v9422
      %v9424 = vpop.f32.mrb[0].mxu0
      %9425 = vmatprep.mubr.f32.mxu0 0.0
      %9426 = vmatmul.mubr.f32.gmra.mrb[0].mxu0 %v9215
      %v9427 = vpop.f32.mrb[0].mxu0
      %v9428 = vadd.f32 0.0, %v9427
      %v9429 = vpop.f32.mrb[0].mxu0
      %9430 = vmatprep.mubr.f32.mxu0 0.0
      %9431 = vmatmul.mubr.f32.gmra.mrb[0].mxu0 %v9218
      %v9432 = vpop.f32.mrb[0].mxu0
      %v9433 = vadd.f32 0.0, %v9432
      %v9434 = vpop.f32.mrb[0].mxu0
      %9435 = vmatprep.mubr.f32.mxu0 0.0
      %9436 = vmatmul.mubr.f32.gmra.mrb[0].mxu0 %v9221
      %v9437 = vpop.f32.mrb[0].mxu0
      %v9438 = vadd.f32 0.0, %v9437
      %v9439 = vpop.f32.mrb[0].mxu0
      %9440 = vmatprep.mubr.f32.mxu0 0.0
      %9441 = vmatmul.mubr.f32.gmra.mrb[0].mxu0 %v9224
      %v9442 = vpop.f32.mrb[0].mxu0
      %v9443 = vadd.f32 0.0, %v9442
      %v9444 = vpop.f32.mrb[0].mxu0
      %9445 = vmatprep.mubr.f32.mxu0 0.0
      %9446 = vmatmul.mubr.f32.gmra.mrb[0].mxu0 %v9227
      %v9447 = vpop.f32.mrb[0].mxu0
      %v9448 = vadd.f32 0.0, %v9447
      %v9449 = vpop.f32.mrb[0].mxu0
      %9450 = vmatprep.mubr.f32.mxu0 0.0
      %9451 = vmatmul.mubr.f32.gmra.mrb[0].mxu0 %v9230
      %v9452 = vpop.f32.mrb[0].mxu0
      %v9453 = vadd.f32 0.0, %v9452
      %v9454 = vpop.f32.mrb[0].mxu0
      %9455 = vmatprep.mubr.f32.mxu0 0.0
      %9456 = vmatmul.mubr.f32.gmra.mrb[0].mxu0 %v9233
      %v9457 = vpop.f32.mrb[0].mxu0
      %v9458 = vadd.f32 0.0, %v9457
      %v9459 = vpop.f32.mrb[0].mxu0
      %9460 = vmatprep.mubr.f32.mxu0 0.0
      %9461 = vmatmul.mubr.f32.gmra.mrb[0].mxu0 %v9236
      %v9462 = vpop.f32.mrb[0].mxu0
      %v9463 = vadd.f32 0.0, %v9462
      %v9464 = vpop.f32.mrb[0].mxu0
      %9465 = vdwg.mxu0
      %v9466 = vadd.f32 %v9076, %v9308
      %v9467 = vadd.f32 %v9077, %v9313
      %v9468 = vadd.f32 %v9078, %v9318
      %v9469 = vadd.f32 %v9079, %v9323
      %v9470 = vadd.f32 %v9080, %v9328
      %v9471 = vadd.f32 %v9081, %v9333
      %v9472 = vadd.f32 %v9082, %v9338
      %v9473 = vadd.f32 %v9083, %v9343
      %v9474 = vadd.f32 %v9084, %v9348
      %v9475 = vadd.f32 %v9085, %v9353
      %v9476 = vadd.f32 %v9086, %v9358
      %v9477 = vadd.f32 %v9087, %v9363
      %v9478 = vadd.f32 %v9088, %v9368
      %v9479 = vadd.f32 %v9089, %v9373
      %v9480 = vadd.f32 %v9090, %v9378
      %v9481 = vadd.f32 %v9091, %v9383
      %v9482 = vadd.f32 %v9092, %v9388
      %v9483 = vadd.f32 %v9093, %v9393
      %v9484 = vadd.f32 %v9094, %v9398
      %v9485 = vadd.f32 %v9095, %v9403
      %v9486 = vadd.f32 %v9096, %v9408
      %v9487 = vadd.f32 %v9097, %v9413
      %v9488 = vadd.f32 %v9098, %v9418
      %v9489 = vadd.f32 %v9099, %v9423
      %v9490 = vadd.f32 %v9100, %v9428
      %v9491 = vadd.f32 %v9101, %v9433
      %v9492 = vadd.f32 %v9102, %v9438
      %v9493 = vadd.f32 %v9103, %v9443
      %v9494 = vadd.f32 %v9104, %v9448
      %v9495 = vadd.f32 %v9105, %v9453
      %v9496 = vadd.f32 %v9106, %v9458
      %v9497 = vadd.f32 %v9107, %v9463
      %v9498 = vld [vmem:[%s8] sm:$0x1]
      %v9500 = vlaneseq
      %v9501 = vshrl.u32 %v9500, 7
      %v9502 = vsub.s32 0, %v9501
      %v9503 = vrot.slane %v9498, %v9502
      %v9505 = vmul.f32 %v9466, %v9503
      %v9506 = vmul.f32 %v9467, %v9503
      %v9507 = vmul.f32 %v9468, %v9503
      %v9508 = vmul.f32 %v9469, %v9503
      %v9509 = vmul.f32 %v9470, %v9503
      %v9510 = vmul.f32 %v9471, %v9503
      %v9511 = vmul.f32 %v9472, %v9503
      %v9512 = vmul.f32 %v9473, %v9503
      %v9513 = vmul.f32 %v9474, %v9503
      %v9514 = vmul.f32 %v9475, %v9503
      %v9515 = vmul.f32 %v9476, %v9503
      %v9516 = vmul.f32 %v9477, %v9503
      %v9517 = vmul.f32 %v9478, %v9503
      %v9518 = vmul.f32 %v9479, %v9503
      %v9519 = vmul.f32 %v9480, %v9503
      %v9520 = vmul.f32 %v9481, %v9503
      %v9521 = vmul.f32 %v9482, %v9503
      %v9522 = vmul.f32 %v9483, %v9503
      %v9523 = vmul.f32 %v9484, %v9503
      %v9524 = vmul.f32 %v9485, %v9503
      %v9525 = vmul.f32 %v9486, %v9503
      %v9526 = vmul.f32 %v9487, %v9503
      %v9527 = vmul.f32 %v9488, %v9503
      %v9528 = vmul.f32 %v9489, %v9503
      %v9529 = vmul.f32 %v9490, %v9503
      %v9530 = vmul.f32 %v9491, %v9503
      %v9531 = vmul.f32 %v9492, %v9503
      %v9532 = vmul.f32 %v9493, %v9503
      %v9533 = vmul.f32 %v9494, %v9503
      %v9534 = vmul.f32 %v9495, %v9503
      %v9535 = vmul.f32 %v9496, %v9503
      %v9536 = vmul.f32 %v9497, %v9503
      %v9537 = vld [vmem:[%s9] sm:$0x1]
      %v9539 = vlaneseq
      %v9540 = vshrl.u32 %v9539, 7
      %v9541 = vsub.s32 0, %v9540
      %v9542 = vrot.slane %v9537, %v9541
      %v9544 = vadd.f32 %v9505, %v9542
      %v9545 = vadd.f32 %v9506, %v9542
      %v9546 = vadd.f32 %v9507, %v9542
      %v9547 = vadd.f32 %v9508, %v9542
      %v9548 = vadd.f32 %v9509, %v9542
      %v9549 = vadd.f32 %v9510, %v9542
      %v9550 = vadd.f32 %v9511, %v9542
      %v9551 = vadd.f32 %v9512, %v9542
      %v9552 = vadd.f32 %v9513, %v9542
      %v9553 = vadd.f32 %v9514, %v9542
      %v9554 = vadd.f32 %v9515, %v9542
      %v9555 = vadd.f32 %v9516, %v9542
      %v9556 = vadd.f32 %v9517, %v9542
      %v9557 = vadd.f32 %v9518, %v9542
      %v9558 = vadd.f32 %v9519, %v9542
      %v9559 = vadd.f32 %v9520, %v9542
      %v9560 = vadd.f32 %v9521, %v9542
      %v9561 = vadd.f32 %v9522, %v9542
      %v9562 = vadd.f32 %v9523, %v9542
      %v9563 = vadd.f32 %v9524, %v9542
      %v9564 = vadd.f32 %v9525, %v9542
      %v9565 = vadd.f32 %v9526, %v9542
      %v9566 = vadd.f32 %v9527, %v9542
      %v9567 = vadd.f32 %v9528, %v9542
      %v9568 = vadd.f32 %v9529, %v9542
      %v9569 = vadd.f32 %v9530, %v9542
      %v9570 = vadd.f32 %v9531, %v9542
      %v9571 = vadd.f32 %v9532, %v9542
      %v9572 = vadd.f32 %v9533, %v9542
      %v9573 = vadd.f32 %v9534, %v9542
      %v9574 = vadd.f32 %v9535, %v9542
      %v9575 = vadd.f32 %v9536, %v9542
      %v9576 = vmax.f32 %v9544, 0.0
      %v9577 = vmax.f32 %v9545, 0.0
      %v9578 = vmax.f32 %v9546, 0.0
      %v9579 = vmax.f32 %v9547, 0.0
      %v9580 = vmax.f32 %v9548, 0.0
      %v9581 = vmax.f32 %v9549, 0.0
      %v9582 = vmax.f32 %v9550, 0.0
      %v9583 = vmax.f32 %v9551, 0.0
      %v9584 = vmax.f32 %v9552, 0.0
      %v9585 = vmax.f32 %v9553, 0.0
      %v9586 = vmax.f32 %v9554, 0.0
      %v9587 = vmax.f32 %v9555, 0.0
      %v9588 = vmax.f32 %v9556, 0.0
      %v9589 = vmax.f32 %v9557, 0.0
      %v9590 = vmax.f32 %v9558, 0.0
      %v9591 = vmax.f32 %v9559, 0.0
      %v9592 = vmax.f32 %v9560, 0.0
      %v9593 = vmax.f32 %v9561, 0.0
      %v9594 = vmax.f32 %v9562, 0.0
      %v9595 = vmax.f32 %v9563, 0.0
      %v9596 = vmax.f32 %v9564, 0.0
      %v9597 = vmax.f32 %v9565, 0.0
      %v9598 = vmax.f32 %v9566, 0.0
      %v9599 = vmax.f32 %v9567, 0.0
      %v9600 = vmax.f32 %v9568, 0.0
      %v9601 = vmax.f32 %v9569, 0.0
      %v9602 = vmax.f32 %v9570, 0.0
      %v9603 = vmax.f32 %v9571, 0.0
      %v9604 = vmax.f32 %v9572, 0.0
      %v9605 = vmax.f32 %v9573, 0.0
      %v9606 = vmax.f32 %v9574, 0.0
      %v9607 = vmax.f32 %v9575, 0.0
      %9608 = vst.msk [vmem:[%s379] sm:$0xff] %vm426, %v9576
      %9609 = vst.msk [vmem:[%s379 + $0x8] sm:$0xff] %vm426, %v9577
      %9610 = vst.msk [vmem:[%s379 + $0x10] sm:$0xff] %vm426, %v9578
      %9611 = vst.msk [vmem:[%s379 + $0x18] sm:$0xff] %vm426, %v9579
      %9612 = vst.msk [vmem:[%s379 + $0x20] sm:$0xff] %vm426, %v9580
      %9613 = vst.msk [vmem:[%s379 + $0x28] sm:$0xff] %vm426, %v9581
      %9614 = vst.msk [vmem:[%s379 + $0x30] sm:$0xff] %vm426, %v9582
      %9615 = vst.msk [vmem:[%s379 + $0x38] sm:$0xff] %vm426, %v9583
      %9616 = vst.msk [vmem:[%s379 + $0x40] sm:$0xff] %vm426, %v9584
      %9617 = vst.msk [vmem:[%s379 + $0x48] sm:$0xff] %vm426, %v9585
      %9618 = vst.msk [vmem:[%s379 + $0x50] sm:$0xff] %vm426, %v9586
      %9619 = vst.msk [vmem:[%s379 + $0x58] sm:$0xff] %vm426, %v9587
      %9620 = vst.msk [vmem:[%s379 + $0x60] sm:$0xff] %vm426, %v9588
      %9621 = vst.msk [vmem:[%s379 + $0x68] sm:$0xff] %vm426, %v9589
      %9622 = vst.msk [vmem:[%s379 + $0x70] sm:$0xff] %vm426, %v9590
      %9623 = vst.msk [vmem:[%s379 + $0x78] sm:$0xff] %vm426, %v9591
      %9624 = vst.msk [vmem:[%s379 + $0x80] sm:$0xff] %vm426, %v9592
      %9625 = vst.msk [vmem:[%s379 + $0x88] sm:$0xff] %vm426, %v9593
      %9626 = vst.msk [vmem:[%s379 + $0x90] sm:$0xff] %vm426, %v9594
      %9627 = vst.msk [vmem:[%s379 + $0x98] sm:$0xff] %vm426, %v9595
      %9628 = vst.msk [vmem:[%s379 + $0xa0] sm:$0xff] %vm426, %v9596
      %9629 = vst.msk [vmem:[%s379 + $0xa8] sm:$0xff] %vm426, %v9597
      %9630 = vst.msk [vmem:[%s379 + $0xb0] sm:$0xff] %vm426, %v9598
      %9631 = vst.msk [vmem:[%s379 + $0xb8] sm:$0xff] %vm426, %v9599
      %9632 = vst.msk [vmem:[%s379 + $0xc0] sm:$0xff] %vm426, %v9600
      %9633 = vst.msk [vmem:[%s379 + $0xc8] sm:$0xff] %vm426, %v9601
      %9634 = vst.msk [vmem:[%s379 + $0xd0] sm:$0xff] %vm426, %v9602
      %9635 = vst.msk [vmem:[%s379 + $0xd8] sm:$0xff] %vm426, %v9603
      %9636 = vst.msk [vmem:[%s379 + $0xe0] sm:$0xff] %vm426, %v9604
      %9637 = vst.msk [vmem:[%s379 + $0xe8] sm:$0xff] %vm426, %v9605
      %9638 = vst.msk [vmem:[%s379 + $0xf0] sm:$0xff] %vm426, %v9606
      %9639 = vst.msk [vmem:[%s379 + $0xf8] sm:$0xff] %vm426, %v9607
      %p9640 = scmp.lt.s32.totalorder %s21, 1
      %s9641 = scalar_select %p9640, %s21, 1
      %s9642 = smul.addr %s9641, 32
      %s9643 = smul.addr %s9642, 8
      %s9644 = scalar_lea.vmem %s10, %s9643
      // Predicated region
      $region61: #{tpu_custom_call.1} parent=59 // pred_check
        %p9645 = pneg %p259
      $region62: #{tpu_custom_call.1} parent=59 // pred_check_branch
        %9647 = sbr.rel (%p9645) target = $region64
      $region63: #{tpu_custom_call.1} parent=59 // pred_region
        _
      $region64: #{tpu_custom_call.1} parent=59 // pred_fallthru
        _
    $region60: #{tpu_custom_call.1} parent=5 // pred_fallthru
      _
    %p9648 = scmp.le.s32.totalorder 2, %s16
    // Predicated region
    $region65: #{tpu_custom_call.1} parent=5 // pred_check
      %p9649 = pneg %p9648
    $region66: #{tpu_custom_call.1} parent=5 // pred_check_branch
      %9651 = sbr.rel (%p9649) target = $region68
    $region67: #{tpu_custom_call.1} parent=5 // pred_region
      %s9652 = ssub.s32 %s16, 2
      // Predicated region
      $region69: #{tpu_custom_call.1} parent=67 // pred_check
        %p9653 = pneg %p265
      $region70: #{tpu_custom_call.1} parent=67 // pred_check_branch
        %9655 = sbr.rel (%p9653) target = $region72
      $region71: #{tpu_custom_call.1} parent=67 // pred_region
        %p9656 = scmp.lt.s32.totalorder %s22, 1
        %s9657 = scalar_select %p9656, %s22, 1
        %s9658 = smul.addr %s9657, 32
        %s9659 = smul.addr %s9658, 8
        %s9660 = scalar_lea.vmem %s10, %s9659
      $region72: #{tpu_custom_call.1} parent=67 // pred_fallthru
        _
    $region68: #{tpu_custom_call.1} parent=5 // pred_fallthru
      _
  $region6: #{tpu_custom_call.1} parent=0 // loop_footer
    %s20 = sadd.s32 1, %s16
  $region7: #{tpu_custom_call.1} parent=0 // loop_footer_branch
    %15 = sbr.rel target = $region3
  $region8: #{tpu_custom_call.1} parent=0 // loop_exit
    _

</llo_original>
